<compile_context>
chip_gen: v7x
topology: tpu7x:2x2x1
jax: 0.10.0
libtpu: 0.0.40
codegen_flags: <defaults>
</compile_context>

<pallas_src>
import functools

import jax
import jax.numpy as jnp
from jax import lax
from jax.experimental import pallas as pl
from jax.experimental.pallas import tpu as pltpu


# --------------------------------------------------------------------------
# small static helpers (glue, shape-only)
# --------------------------------------------------------------------------
def _align_corners_coords(n_out, n_in):
    """Source-pixel coordinates for align_corners=True resampling."""
    if n_out == 1:
        return jnp.zeros((1,), jnp.float32)
    return jnp.arange(n_out, dtype=jnp.float32) * ((n_in - 1) / (n_out - 1))


def _interp_matrix(n_out, n_in):
    """(n_out, n_in) 1-D bilinear interpolation matrix, align_corners=True."""
    coords = _align_corners_coords(n_out, n_in)
    i0 = jnp.clip(jnp.floor(coords).astype(jnp.int32), 0, n_in - 1)
    i1 = jnp.clip(i0 + 1, 0, n_in - 1)
    f = coords - i0.astype(jnp.float32)
    eye = jnp.eye(n_in, dtype=jnp.float32)
    return eye[i0] * (1.0 - f)[:, None] + eye[i1] * f[:, None]


def _conv3x3_taps(H, W):
    """Static flat shifts and boundary masks for a padded 3x3 conv on (H, W)."""
    HW = H * W
    oy = jnp.arange(HW, dtype=jnp.int32) // W
    ox = jnp.arange(HW, dtype=jnp.int32) % W
    shifts, masks = [], []
    for ky in range(3):
        for kx in range(3):
            dy, dx = ky - 1, kx - 1
            shifts.append(dy * W + dx)
            valid = ((oy + dy >= 0) & (oy + dy < H) &
                     (ox + dx >= 0) & (ox + dx < W))
            masks.append(valid.astype(jnp.float32))
    return tuple(shifts), jnp.stack(masks).reshape(9, HW, 1)


def _base_pixel_coords(Ho, Wo, Hi, Wi):
    """(Ho*Wo, 2) base sampling positions (x_pix, y_pix) of the identity grid."""
    ys = _align_corners_coords(Ho, Hi)
    xs = _align_corners_coords(Wo, Wi)
    X = jnp.broadcast_to(xs[None, :], (Ho, Wo)).reshape(-1)
    Y = jnp.broadcast_to(ys[:, None], (Ho, Wo)).reshape(-1)
    return jnp.stack([X, Y], axis=1)


def _shift_rows(x, s):
    """y[i] = x[i + s] if 0 <= i + s < rows else 0 (static sublane shift)."""
    if s == 0:
        return x
    n = x.shape[0]
    pad = jnp.zeros((abs(s), x.shape[1]), x.dtype)
    if s > 0:
        return jnp.concatenate([x[s:, :], pad], axis=0)
    return jnp.concatenate([pad, x[:n + s, :]], axis=0)


# --------------------------------------------------------------------------
# Kernel 1: down_h + upsample + down_l + flow_make 3x3 conv (fully fused)
# --------------------------------------------------------------------------
def _flow_kernel(xl_ref, xh_ref, wl_ref, wh_ref, up_ref, wfh_ref, wfl_ref,
                 mask_ref, flow_ref, *, shifts):
    h_ch = jnp.dot(xh_ref[0], wh_ref[...], preferred_element_type=jnp.float32)   # (HWh, Cp)
    h_up = jnp.dot(up_ref[...], h_ch, preferred_element_type=jnp.float32)        # (HWl, Cp)
    low = jnp.dot(xl_ref[0], wl_ref[...], preferred_element_type=jnp.float32)    # (HWl, Cp)

    hwl = xl_ref.shape[1]
    acc = jnp.zeros((hwl, 2), jnp.float32)
    for t, s in enumerate(shifts):            # 9 static taps of the 3x3 conv
        m = mask_ref[t]                        # (HWl, 1) boundary mask
        h_tap = _shift_rows(h_up, s) * m
        l_tap = _shift_rows(low, s) * m
        acc = acc + jnp.dot(h_tap, wfh_ref[t], preferred_element_type=jnp.float32)
        acc = acc + jnp.dot(l_tap, wfl_ref[t], preferred_element_type=jnp.float32)
    flow_ref[0] = acc.astype(flow_ref.dtype)


def make_flow(x_low, x_high, wl_t, wh_t, up_mat, wfh, wfl, tap_mask, shifts):
    B, HWl, Cin = x_low.shape
    _, HWh, _ = x_high.shape
    Cp = wl_t.shape[1]
    kernel = functools.partial(_flow_kernel, shifts=tuple(int(s) for s in shifts))
    return pl.pallas_call(
        kernel,
        out_shape=jax.ShapeDtypeStruct((B, HWl, 2), jnp.float32),
        grid_spec=pltpu.PrefetchScalarGridSpec(
            num_scalar_prefetch=0,
            grid=(B,),
            in_specs=[
                pl.BlockSpec((1, HWl, Cin), lambda b: (b, 0, 0)),   # low feature
                pl.BlockSpec((1, HWh, Cin), lambda b: (b, 0, 0)),   # high feature
                pl.BlockSpec((Cin, Cp), lambda b: (0, 0)),          # down_l weight
                pl.BlockSpec((Cin, Cp), lambda b: (0, 0)),          # down_h weight
                pl.BlockSpec((HWl, HWh), lambda b: (0, 0)),         # upsample matrix
                pl.BlockSpec((9, Cp, 2), lambda b: (0, 0, 0)),      # flow weights (h half)
                pl.BlockSpec((9, Cp, 2), lambda b: (0, 0, 0)),      # flow weights (low half)
                pl.BlockSpec((9, HWl, 1), lambda b: (0, 0, 0)),     # 3x3 boundary masks
            ],
            out_specs=pl.BlockSpec((1, HWl, 2), lambda b: (b, 0, 0)),
        ),
        compiler_params=pltpu.CompilerParams(dimension_semantics=("parallel",)),
    )(x_low, x_high, wl_t, wh_t, up_mat, wfh, wfl, tap_mask)


# --------------------------------------------------------------------------
# Kernel 2: flow_warp == grid_sample(align_corners=True, zero padding)
# --------------------------------------------------------------------------
def _warp_kernel(base_ref, flow_ref, src_ref, out_ref, *, sx, sy, h_in, w_in):
    base = base_ref[...]        # (TILE, 2) identity-grid position in source pixels
    flw = flow_ref[0]           # (TILE, 2) predicted flow (x, y)
    px = base[:, 0:1] + flw[:, 0:1] * sx
    py = base[:, 1:2] + flw[:, 1:2] * sy

    x0f = jnp.floor(px)
    y0f = jnp.floor(py)
    fx = px - x0f
    fy = py - y0f
    x0 = x0f.astype(jnp.int32)
    y0 = y0f.astype(jnp.int32)
    x1 = x0 + 1
    y1 = y0 + 1

    tile = base.shape[0]
    hw_in = h_in * w_in
    lane = lax.broadcasted_iota(jnp.int32, (tile, hw_in), 1)

    def tap(xi, yi, wgt):
        # zero-padding grid_sample: out-of-range corners contribute nothing.
        valid = ((xi >= 0) & (xi < w_in) & (yi >= 0) & (yi < h_in)).astype(jnp.float32)
        onehot = (lane == (yi * w_in + xi)).astype(jnp.float32)     # (TILE, HWh)
        return onehot * (wgt * valid)

    g = (tap(x0, y0, (1.0 - fx) * (1.0 - fy))
         + tap(x1, y0, fx * (1.0 - fy))
         + tap(x0, y1, (1.0 - fx) * fy)
         + tap(x1, y1, fx * fy))
    out = jnp.dot(g, src_ref[0], preferred_element_type=jnp.float32)
    out_ref[0] = out.astype(out_ref.dtype)


def flow_warp(src_bhwc, flow, base_pix, sx, sy, h_in, w_in):
    B, HWl, _ = flow.shape
    _, HWh, Cin = src_bhwc.shape
    tile_hw = 128 if HWl % 128 == 0 else HWl
    kernel = functools.partial(_warp_kernel, sx=sx, sy=sy, h_in=h_in, w_in=w_in)
    return pl.pallas_call(
        kernel,
        out_shape=jax.ShapeDtypeStruct((B, HWl, Cin), jnp.float32),
        grid_spec=pltpu.PrefetchScalarGridSpec(
            num_scalar_prefetch=0,
            grid=(B, HWl // tile_hw),
            in_specs=[
                pl.BlockSpec((tile_hw, 2), lambda b, i: (i, 0)),        # base grid
                pl.BlockSpec((1, tile_hw, 2), lambda b, i: (b, i, 0)),  # flow
                pl.BlockSpec((1, HWh, Cin), lambda b, i: (b, 0, 0)),    # h_feature_orign
            ],
            out_specs=pl.BlockSpec((1, tile_hw, Cin), lambda b, i: (b, i, 0)),
        ),
        compiler_params=pltpu.CompilerParams(
            dimension_semantics=("parallel", "parallel")),
    )(base_pix, flow, src_bhwc)


# --------------------------------------------------------------------------
# Full forward (glue + kernels)
# --------------------------------------------------------------------------
@jax.jit
def aligned_module_forward(low_nchw, high_nchw, params):
    B, Cin, Hl, Wl = low_nchw.shape
    _, _, Hh, Wh = high_nchw.shape
    Cp = params["w_down_l"].shape[0]
    HWl, HWh = Hl * Wl, Hh * Wh

    x_low = jnp.transpose(low_nchw, (0, 2, 3, 1)).reshape(B, HWl, Cin).astype(jnp.float32)
    x_high = jnp.transpose(high_nchw, (0, 2, 3, 1)).reshape(B, HWh, Cin).astype(jnp.float32)

    wl_t = params["w_down_l"].reshape(Cp, Cin).T          # (Cin, Cp)
    wh_t = params["w_down_h"].reshape(Cp, Cin).T          # (Cin, Cp)

    # static bilinear upsample matrix (align_corners=True): kron of 1-D interpolators
    up_mat = jnp.kron(_interp_matrix(Hl, Hh), _interp_matrix(Wl, Wh))   # (HWl, HWh)

    # flow_make 3x3 weights, tap-major, split into h / low halves (fuses the concat)
    wf_taps = jnp.transpose(params["w_flow"], (2, 3, 1, 0)).reshape(9, 2 * Cp, 2)
    wfh = wf_taps[:, :Cp, :]
    wfl = wf_taps[:, Cp:, :]
    shifts, tap_mask = _conv3x3_taps(Hl, Wl)

    # ---- Pallas kernel 1: flow field ----
    flow = make_flow(x_low, x_high, wl_t, wh_t, up_mat, wfh, wfl, tap_mask, shifts)

    # ---- Pallas kernel 2: warp the ORIGINAL high-level feature ----
    base_pix = _base_pixel_coords(Hl, Wl, Hh, Wh)         # (HWl, 2)
    sx = (Wh - 1) / (2.0 * Wl)                            # flow_x / out_w -> source px
    sy = (Hh - 1) / (2.0 * Hl)                            # flow_y / out_h -> source px
    out = flow_warp(x_high, flow, base_pix, sx, sy, Hh, Wh)   # (B, HWl, Cin)

    return out.reshape(B, Hl, Wl, Cin).transpose(0, 3, 1, 2)


# --------------------------------------------------------------------------
# Pure-JAX reference (NCHW, mirrors the PyTorch module)
# --------------------------------------------------------------------------
def _upsample_bilinear_ac(x, Ho, Wo):
    B, C, Hi, Wi = x.shape
    ys = _align_corners_coords(Ho, Hi)
    xs = _align_corners_coords(Wo, Wi)
    y0 = jnp.clip(jnp.floor(ys).astype(jnp.int32), 0, Hi - 1)
    y1 = jnp.clip(y0 + 1, 0, Hi - 1)
    fy = (ys - y0.astype(jnp.float32))[None, None, :, None]
    x0 = jnp.clip(jnp.floor(xs).astype(jnp.int32), 0, Wi - 1)
    x1 = jnp.clip(x0 + 1, 0, Wi - 1)
    fx = (xs - x0.astype(jnp.float32))[None, None, None, :]
    rows = x[:, :, y0, :] * (1.0 - fy) + x[:, :, y1, :] * fy
    return rows[:, :, :, x0] * (1.0 - fx) + rows[:, :, :, x1] * fx


def _grid_sample_ref(inp, flow, Ho, Wo):
    B, C, Hi, Wi = inp.shape
    xs = jnp.linspace(-1.0, 1.0, Wo)
    ys = jnp.linspace(-1.0, 1.0, Ho)
    gx = xs[None, None, :] + flow[:, 0, :, :] / Wo
    gy = ys[None, :, None] + flow[:, 1, :, :] / Ho
    px = (gx + 1.0) * 0.5 * (Wi - 1)
    py = (gy + 1.0) * 0.5 * (Hi - 1)
    x0 = jnp.floor(px).astype(jnp.int32); x1 = x0 + 1
    y0 = jnp.floor(py).astype(jnp.int32); y1 = y0 + 1
    fx = px - x0.astype(jnp.float32)
    fy = py - y0.astype(jnp.float32)
    inp_flat = inp.reshape(B, C, Hi * Wi)

    def tap(xi, yi, w):
        valid = ((xi >= 0) & (xi < Wi) & (yi >= 0) & (yi < Hi)).astype(jnp.float32)
        idx = jnp.clip(yi, 0, Hi - 1) * Wi + jnp.clip(xi, 0, Wi - 1)
        v = jnp.take_along_axis(inp_flat, idx.reshape(B, 1, Ho * Wo), axis=2)
        return v.reshape(B, C, Ho, Wo) * (w * valid)[:, None, :, :]

    return (tap(x0, y0, (1 - fx) * (1 - fy)) + tap(x1, y0, fx * (1 - fy))
            + tap(x0, y1, (1 - fx) * fy) + tap(x1, y1, fx * fy))


def reference_forward(low, high, params):
    B, Cin, Hl, Wl = low.shape
    _, _, Hh, Wh = high.shape
    Cp = params["w_down_l"].shape[0]
    low_ch = jnp.einsum("oc,bchw->bohw", params["w_down_l"].reshape(Cp, Cin), low)
    h_ch = jnp.einsum("oc,bchw->bohw", params["w_down_h"].reshape(Cp, Cin), high)
    h_up = _upsample_bilinear_ac(h_ch, Hl, Wl)
    feat = jnp.concatenate([h_up, low_ch], axis=1)
    flow = lax.conv_general_dilated(
        feat, params["w_flow"], window_strides=(1, 1), padding=((1, 1), (1, 1)),
        dimension_numbers=("NCHW", "OIHW", "NCHW"))
    return _grid_sample_ref(high, flow, Hl, Wl)


# --------------------------------------------------------------------------
def init_params(key, inplane, outplane):
    k1, k2, k3 = jax.random.split(key, 3)
    s = 0.25
    return dict(
        w_down_l=jax.random.normal(k1, (outplane, inplane, 1, 1), jnp.float32) * s,
        w_down_h=jax.random.normal(k2, (outplane, inplane, 1, 1), jnp.float32) * s,
        w_flow=jax.random.normal(k3, (2, 2 * outplane, 3, 3), jnp.float32) * s,
    )


if __name__ == "__main__":
    # small shapes: low-level feature 16x16, high-level feature 8x8
    B, inplane, outplane = 2, 16, 8
    Hl, Wl, Hh, Wh = 16, 16, 8, 8

    key = jax.random.PRNGKey(0)
    k_low, k_high, k_p = jax.random.split(key, 3)
    low = jax.random.normal(k_low, (B, inplane, Hl, Wl), jnp.float32)
    high = jax.random.normal(k_high, (B, inplane, Hh, Wh), jnp.float32)
    params = init_params(k_p, inplane, outplane)

    out = aligned_module_forward(low, high, params)
    out = jax.block_until_ready(out)
    assert out.shape == (B, inplane, Hl, Wl)

    ref = reference_forward(low, high, params)
    max_err = float(jnp.max(jnp.abs(out - ref)))
    assert max_err < 1e-3, f"mismatch vs reference: {max_err}"

    print("KERNEL_OK")
</pallas_src>

<mosaic_0001>
module attributes {stable_mosaic.version = 11 : i64} {
  func.func @_flow_kernel(%arg0: i32, %arg1: memref<1x256x16xf32, #tpu.memory_space<vmem>>, %arg2: memref<1x64x16xf32, #tpu.memory_space<vmem>>, %arg3: memref<16x8xf32, #tpu.memory_space<vmem>>, %arg4: memref<16x8xf32, #tpu.memory_space<vmem>>, %arg5: memref<256x64xf32, #tpu.memory_space<vmem>>, %arg6: memref<9x8x2xf32, #tpu.memory_space<vmem>>, %arg7: memref<9x8x2xf32, #tpu.memory_space<vmem>>, %arg8: memref<9x256x1xf32, #tpu.memory_space<vmem>>, %arg9: memref<1x256x2xf32, #tpu.memory_space<vmem>>) attributes {dimension_semantics = [#tpu.dimension_semantics<parallel>], iteration_bounds = array<i64: 2>, scalar_prefetch = 0 : i64, scratch_operands = 0 : i64, tpu.core_type = #tpu.core_type<tc>, window_params = [{transform_indices = @transform_0, window_bounds = array<i64: 1, 256, 16>}, {transform_indices = @transform_1, window_bounds = array<i64: 1, 64, 16>}, {pipeline_mode = #tpu.pipeline_mode<synchronous>, transform_indices = @transform_2, window_bounds = array<i64: 16, 8>}, {pipeline_mode = #tpu.pipeline_mode<synchronous>, transform_indices = @transform_3, window_bounds = array<i64: 16, 8>}, {pipeline_mode = #tpu.pipeline_mode<synchronous>, transform_indices = @transform_4, window_bounds = array<i64: 256, 64>}, {pipeline_mode = #tpu.pipeline_mode<synchronous>, transform_indices = @transform_5, window_bounds = array<i64: 9, 8, 2>}, {pipeline_mode = #tpu.pipeline_mode<synchronous>, transform_indices = @transform_6, window_bounds = array<i64: 9, 8, 2>}, {pipeline_mode = #tpu.pipeline_mode<synchronous>, transform_indices = @transform_7, window_bounds = array<i64: 9, 256, 1>}, {transform_indices = @transform_8, window_bounds = array<i64: 1, 256, 2>}]} {
    %c0 = arith.constant 0 : index
    %c0_0 = arith.constant 0 : index
    %c0_1 = arith.constant 0 : index
    %0 = vector.load %arg2[%c0, %c0_0, %c0_1] : memref<1x64x16xf32, #tpu.memory_space<vmem>>, vector<1x64x16xf32>
    %1 = vector.shape_cast %0 : vector<1x64x16xf32> to vector<64x16xf32>
    %c0_2 = arith.constant 0 : index
    %c0_3 = arith.constant 0 : index
    %2 = vector.load %arg4[%c0_2, %c0_3] : memref<16x8xf32, #tpu.memory_space<vmem>>, vector<16x8xf32>
    %cst = arith.constant dense<0.000000e+00> : vector<64x8xf32>
    %3 = tpu.matmul %1, %2, %cst {dimension_numbers = #tpu.dot_dimension_numbers<[1], [0], [0], [1], [0, 0, 1, 1], [], []>} : vector<64x16xf32>, vector<16x8xf32>, vector<64x8xf32> -> vector<64x8xf32>
    %c0_4 = arith.constant 0 : index
    %c0_5 = arith.constant 0 : index
    %4 = vector.load %arg5[%c0_4, %c0_5] : memref<256x64xf32, #tpu.memory_space<vmem>>, vector<256x64xf32>
    %cst_6 = arith.constant dense<0.000000e+00> : vector<256x8xf32>
    %5 = tpu.matmul %4, %3, %cst_6 {dimension_numbers = #tpu.dot_dimension_numbers<[1], [0], [0], [1], [0, 0, 1, 1], [], []>} : vector<256x64xf32>, vector<64x8xf32>, vector<256x8xf32> -> vector<256x8xf32>
    %c0_7 = arith.constant 0 : index
    %c0_8 = arith.constant 0 : index
    %c0_9 = arith.constant 0 : index
    %6 = vector.load %arg1[%c0_7, %c0_8, %c0_9] : memref<1x256x16xf32, #tpu.memory_space<vmem>>, vector<1x256x16xf32>
    %7 = vector.shape_cast %6 : vector<1x256x16xf32> to vector<256x16xf32>
    %c0_10 = arith.constant 0 : index
    %c0_11 = arith.constant 0 : index
    %8 = vector.load %arg3[%c0_10, %c0_11] : memref<16x8xf32, #tpu.memory_space<vmem>>, vector<16x8xf32>
    %cst_12 = arith.constant dense<0.000000e+00> : vector<256x8xf32>
    %9 = tpu.matmul %7, %8, %cst_12 {dimension_numbers = #tpu.dot_dimension_numbers<[1], [0], [0], [1], [0, 0, 1, 1], [], []>} : vector<256x16xf32>, vector<16x8xf32>, vector<256x8xf32> -> vector<256x8xf32>
    %cst_13 = arith.constant 0.000000e+00 : f32
    %10 = vector.broadcast %cst_13 : f32 to vector<256x2xf32>
    %c0_14 = arith.constant 0 : index
    %c0_15 = arith.constant 0 : index
    %c0_16 = arith.constant 0 : index
    %11 = vector.load %arg8[%c0_14, %c0_15, %c0_16] : memref<9x256x1xf32, #tpu.memory_space<vmem>>, vector<1x256x1xf32>
    %12 = vector.shape_cast %11 : vector<1x256x1xf32> to vector<256x1xf32>
    %cst_17 = arith.constant 0.000000e+00 : f32
    %13 = vector.broadcast %cst_17 : f32 to vector<17x8xf32>
    %14 = vector.extract_strided_slice %5 {offsets = [0, 0], sizes = [239, 8], strides = [1, 1]} : vector<256x8xf32> to vector<239x8xf32>
    %15 = tpu.concatenate %13, %14 in 0 : vector<17x8xf32>, vector<239x8xf32> -> vector<256x8xf32>
    %16 = vector.broadcast %12 : vector<256x1xf32> to vector<256x8xf32>
    %17 = arith.mulf %15, %16 : vector<256x8xf32>
    %cst_18 = arith.constant 0.000000e+00 : f32
    %18 = vector.broadcast %cst_18 : f32 to vector<17x8xf32>
    %19 = vector.extract_strided_slice %9 {offsets = [0, 0], sizes = [239, 8], strides = [1, 1]} : vector<256x8xf32> to vector<239x8xf32>
    %20 = tpu.concatenate %18, %19 in 0 : vector<17x8xf32>, vector<239x8xf32> -> vector<256x8xf32>
    %21 = vector.broadcast %12 : vector<256x1xf32> to vector<256x8xf32>
    %22 = arith.mulf %20, %21 : vector<256x8xf32>
    %c0_19 = arith.constant 0 : index
    %c0_20 = arith.constant 0 : index
    %c0_21 = arith.constant 0 : index
    %23 = vector.load %arg6[%c0_19, %c0_20, %c0_21] : memref<9x8x2xf32, #tpu.memory_space<vmem>>, vector<1x8x2xf32>
    %24 = vector.shape_cast %23 : vector<1x8x2xf32> to vector<8x2xf32>
    %cst_22 = arith.constant dense<0.000000e+00> : vector<256x2xf32>
    %25 = tpu.matmul %17, %24, %cst_22 {dimension_numbers = #tpu.dot_dimension_numbers<[1], [0], [0], [1], [0, 0, 1, 1], [], []>} : vector<256x8xf32>, vector<8x2xf32>, vector<256x2xf32> -> vector<256x2xf32>
    %26 = arith.addf %10, %25 : vector<256x2xf32>
    %c0_23 = arith.constant 0 : index
    %c0_24 = arith.constant 0 : index
    %c0_25 = arith.constant 0 : index
    %27 = vector.load %arg7[%c0_23, %c0_24, %c0_25] : memref<9x8x2xf32, #tpu.memory_space<vmem>>, vector<1x8x2xf32>
    %28 = vector.shape_cast %27 : vector<1x8x2xf32> to vector<8x2xf32>
    %cst_26 = arith.constant dense<0.000000e+00> : vector<256x2xf32>
    %29 = tpu.matmul %22, %28, %cst_26 {dimension_numbers = #tpu.dot_dimension_numbers<[1], [0], [0], [1], [0, 0, 1, 1], [], []>} : vector<256x8xf32>, vector<8x2xf32>, vector<256x2xf32> -> vector<256x2xf32>
    %30 = arith.addf %26, %29 : vector<256x2xf32>
    %c1 = arith.constant 1 : index
    %c0_27 = arith.constant 0 : index
    %c0_28 = arith.constant 0 : index
    %31 = vector.load %arg8[%c1, %c0_27, %c0_28] : memref<9x256x1xf32, #tpu.memory_space<vmem>>, vector<1x256x1xf32>
    %32 = vector.shape_cast %31 : vector<1x256x1xf32> to vector<256x1xf32>
    %cst_29 = arith.constant 0.000000e+00 : f32
    %33 = vector.broadcast %cst_29 : f32 to vector<16x8xf32>
    %34 = vector.extract_strided_slice %5 {offsets = [0, 0], sizes = [240, 8], strides = [1, 1]} : vector<256x8xf32> to vector<240x8xf32>
    %35 = tpu.concatenate %33, %34 in 0 : vector<16x8xf32>, vector<240x8xf32> -> vector<256x8xf32>
    %36 = vector.broadcast %32 : vector<256x1xf32> to vector<256x8xf32>
    %37 = arith.mulf %35, %36 : vector<256x8xf32>
    %cst_30 = arith.constant 0.000000e+00 : f32
    %38 = vector.broadcast %cst_30 : f32 to vector<16x8xf32>
    %39 = vector.extract_strided_slice %9 {offsets = [0, 0], sizes = [240, 8], strides = [1, 1]} : vector<256x8xf32> to vector<240x8xf32>
    %40 = tpu.concatenate %38, %39 in 0 : vector<16x8xf32>, vector<240x8xf32> -> vector<256x8xf32>
    %41 = vector.broadcast %32 : vector<256x1xf32> to vector<256x8xf32>
    %42 = arith.mulf %40, %41 : vector<256x8xf32>
    %c1_31 = arith.constant 1 : index
    %c0_32 = arith.constant 0 : index
    %c0_33 = arith.constant 0 : index
    %43 = vector.load %arg6[%c1_31, %c0_32, %c0_33] : memref<9x8x2xf32, #tpu.memory_space<vmem>>, vector<1x8x2xf32>
    %44 = vector.shape_cast %43 : vector<1x8x2xf32> to vector<8x2xf32>
    %cst_34 = arith.constant dense<0.000000e+00> : vector<256x2xf32>
    %45 = tpu.matmul %37, %44, %cst_34 {dimension_numbers = #tpu.dot_dimension_numbers<[1], [0], [0], [1], [0, 0, 1, 1], [], []>} : vector<256x8xf32>, vector<8x2xf32>, vector<256x2xf32> -> vector<256x2xf32>
    %46 = arith.addf %30, %45 : vector<256x2xf32>
    %c1_35 = arith.constant 1 : index
    %c0_36 = arith.constant 0 : index
    %c0_37 = arith.constant 0 : index
    %47 = vector.load %arg7[%c1_35, %c0_36, %c0_37] : memref<9x8x2xf32, #tpu.memory_space<vmem>>, vector<1x8x2xf32>
    %48 = vector.shape_cast %47 : vector<1x8x2xf32> to vector<8x2xf32>
    %cst_38 = arith.constant dense<0.000000e+00> : vector<256x2xf32>
    %49 = tpu.matmul %42, %48, %cst_38 {dimension_numbers = #tpu.dot_dimension_numbers<[1], [0], [0], [1], [0, 0, 1, 1], [], []>} : vector<256x8xf32>, vector<8x2xf32>, vector<256x2xf32> -> vector<256x2xf32>
    %50 = arith.addf %46, %49 : vector<256x2xf32>
    %c2 = arith.constant 2 : index
    %c0_39 = arith.constant 0 : index
    %c0_40 = arith.constant 0 : index
    %51 = vector.load %arg8[%c2, %c0_39, %c0_40] : memref<9x256x1xf32, #tpu.memory_space<vmem>>, vector<1x256x1xf32>
    %52 = vector.shape_cast %51 : vector<1x256x1xf32> to vector<256x1xf32>
    %cst_41 = arith.constant 0.000000e+00 : f32
    %53 = vector.broadcast %cst_41 : f32 to vector<15x8xf32>
    %54 = vector.extract_strided_slice %5 {offsets = [0, 0], sizes = [241, 8], strides = [1, 1]} : vector<256x8xf32> to vector<241x8xf32>
    %55 = tpu.concatenate %53, %54 in 0 : vector<15x8xf32>, vector<241x8xf32> -> vector<256x8xf32>
    %56 = vector.broadcast %52 : vector<256x1xf32> to vector<256x8xf32>
    %57 = arith.mulf %55, %56 : vector<256x8xf32>
    %cst_42 = arith.constant 0.000000e+00 : f32
    %58 = vector.broadcast %cst_42 : f32 to vector<15x8xf32>
    %59 = vector.extract_strided_slice %9 {offsets = [0, 0], sizes = [241, 8], strides = [1, 1]} : vector<256x8xf32> to vector<241x8xf32>
    %60 = tpu.concatenate %58, %59 in 0 : vector<15x8xf32>, vector<241x8xf32> -> vector<256x8xf32>
    %61 = vector.broadcast %52 : vector<256x1xf32> to vector<256x8xf32>
    %62 = arith.mulf %60, %61 : vector<256x8xf32>
    %c2_43 = arith.constant 2 : index
    %c0_44 = arith.constant 0 : index
    %c0_45 = arith.constant 0 : index
    %63 = vector.load %arg6[%c2_43, %c0_44, %c0_45] : memref<9x8x2xf32, #tpu.memory_space<vmem>>, vector<1x8x2xf32>
    %64 = vector.shape_cast %63 : vector<1x8x2xf32> to vector<8x2xf32>
    %cst_46 = arith.constant dense<0.000000e+00> : vector<256x2xf32>
    %65 = tpu.matmul %57, %64, %cst_46 {dimension_numbers = #tpu.dot_dimension_numbers<[1], [0], [0], [1], [0, 0, 1, 1], [], []>} : vector<256x8xf32>, vector<8x2xf32>, vector<256x2xf32> -> vector<256x2xf32>
    %66 = arith.addf %50, %65 : vector<256x2xf32>
    %c2_47 = arith.constant 2 : index
    %c0_48 = arith.constant 0 : index
    %c0_49 = arith.constant 0 : index
    %67 = vector.load %arg7[%c2_47, %c0_48, %c0_49] : memref<9x8x2xf32, #tpu.memory_space<vmem>>, vector<1x8x2xf32>
    %68 = vector.shape_cast %67 : vector<1x8x2xf32> to vector<8x2xf32>
    %cst_50 = arith.constant dense<0.000000e+00> : vector<256x2xf32>
    %69 = tpu.matmul %62, %68, %cst_50 {dimension_numbers = #tpu.dot_dimension_numbers<[1], [0], [0], [1], [0, 0, 1, 1], [], []>} : vector<256x8xf32>, vector<8x2xf32>, vector<256x2xf32> -> vector<256x2xf32>
    %70 = arith.addf %66, %69 : vector<256x2xf32>
    %c3 = arith.constant 3 : index
    %c0_51 = arith.constant 0 : index
    %c0_52 = arith.constant 0 : index
    %71 = vector.load %arg8[%c3, %c0_51, %c0_52] : memref<9x256x1xf32, #tpu.memory_space<vmem>>, vector<1x256x1xf32>
    %72 = vector.shape_cast %71 : vector<1x256x1xf32> to vector<256x1xf32>
    %cst_53 = arith.constant 0.000000e+00 : f32
    %73 = vector.broadcast %cst_53 : f32 to vector<1x8xf32>
    %74 = vector.extract_strided_slice %5 {offsets = [0, 0], sizes = [255, 8], strides = [1, 1]} : vector<256x8xf32> to vector<255x8xf32>
    %75 = tpu.concatenate %73, %74 in 0 : vector<1x8xf32>, vector<255x8xf32> -> vector<256x8xf32>
    %76 = vector.broadcast %72 : vector<256x1xf32> to vector<256x8xf32>
    %77 = arith.mulf %75, %76 : vector<256x8xf32>
    %cst_54 = arith.constant 0.000000e+00 : f32
    %78 = vector.broadcast %cst_54 : f32 to vector<1x8xf32>
    %79 = vector.extract_strided_slice %9 {offsets = [0, 0], sizes = [255, 8], strides = [1, 1]} : vector<256x8xf32> to vector<255x8xf32>
    %80 = tpu.concatenate %78, %79 in 0 : vector<1x8xf32>, vector<255x8xf32> -> vector<256x8xf32>
    %81 = vector.broadcast %72 : vector<256x1xf32> to vector<256x8xf32>
    %82 = arith.mulf %80, %81 : vector<256x8xf32>
    %c3_55 = arith.constant 3 : index
    %c0_56 = arith.constant 0 : index
    %c0_57 = arith.constant 0 : index
    %83 = vector.load %arg6[%c3_55, %c0_56, %c0_57] : memref<9x8x2xf32, #tpu.memory_space<vmem>>, vector<1x8x2xf32>
    %84 = vector.shape_cast %83 : vector<1x8x2xf32> to vector<8x2xf32>
    %cst_58 = arith.constant dense<0.000000e+00> : vector<256x2xf32>
    %85 = tpu.matmul %77, %84, %cst_58 {dimension_numbers = #tpu.dot_dimension_numbers<[1], [0], [0], [1], [0, 0, 1, 1], [], []>} : vector<256x8xf32>, vector<8x2xf32>, vector<256x2xf32> -> vector<256x2xf32>
    %86 = arith.addf %70, %85 : vector<256x2xf32>
    %c3_59 = arith.constant 3 : index
    %c0_60 = arith.constant 0 : index
    %c0_61 = arith.constant 0 : index
    %87 = vector.load %arg7[%c3_59, %c0_60, %c0_61] : memref<9x8x2xf32, #tpu.memory_space<vmem>>, vector<1x8x2xf32>
    %88 = vector.shape_cast %87 : vector<1x8x2xf32> to vector<8x2xf32>
    %cst_62 = arith.constant dense<0.000000e+00> : vector<256x2xf32>
    %89 = tpu.matmul %82, %88, %cst_62 {dimension_numbers = #tpu.dot_dimension_numbers<[1], [0], [0], [1], [0, 0, 1, 1], [], []>} : vector<256x8xf32>, vector<8x2xf32>, vector<256x2xf32> -> vector<256x2xf32>
    %90 = arith.addf %86, %89 : vector<256x2xf32>
    %c4 = arith.constant 4 : index
    %c0_63 = arith.constant 0 : index
    %c0_64 = arith.constant 0 : index
    %91 = vector.load %arg8[%c4, %c0_63, %c0_64] : memref<9x256x1xf32, #tpu.memory_space<vmem>>, vector<1x256x1xf32>
    %92 = vector.shape_cast %91 : vector<1x256x1xf32> to vector<256x1xf32>
    %93 = vector.broadcast %92 : vector<256x1xf32> to vector<256x8xf32>
    %94 = arith.mulf %5, %93 : vector<256x8xf32>
    %95 = vector.broadcast %92 : vector<256x1xf32> to vector<256x8xf32>
    %96 = arith.mulf %9, %95 : vector<256x8xf32>
    %c4_65 = arith.constant 4 : index
    %c0_66 = arith.constant 0 : index
    %c0_67 = arith.constant 0 : index
    %97 = vector.load %arg6[%c4_65, %c0_66, %c0_67] : memref<9x8x2xf32, #tpu.memory_space<vmem>>, vector<1x8x2xf32>
    %98 = vector.shape_cast %97 : vector<1x8x2xf32> to vector<8x2xf32>
    %cst_68 = arith.constant dense<0.000000e+00> : vector<256x2xf32>
    %99 = tpu.matmul %94, %98, %cst_68 {dimension_numbers = #tpu.dot_dimension_numbers<[1], [0], [0], [1], [0, 0, 1, 1], [], []>} : vector<256x8xf32>, vector<8x2xf32>, vector<256x2xf32> -> vector<256x2xf32>
    %100 = arith.addf %90, %99 : vector<256x2xf32>
    %c4_69 = arith.constant 4 : index
    %c0_70 = arith.constant 0 : index
    %c0_71 = arith.constant 0 : index
    %101 = vector.load %arg7[%c4_69, %c0_70, %c0_71] : memref<9x8x2xf32, #tpu.memory_space<vmem>>, vector<1x8x2xf32>
    %102 = vector.shape_cast %101 : vector<1x8x2xf32> to vector<8x2xf32>
    %cst_72 = arith.constant dense<0.000000e+00> : vector<256x2xf32>
    %103 = tpu.matmul %96, %102, %cst_72 {dimension_numbers = #tpu.dot_dimension_numbers<[1], [0], [0], [1], [0, 0, 1, 1], [], []>} : vector<256x8xf32>, vector<8x2xf32>, vector<256x2xf32> -> vector<256x2xf32>
    %104 = arith.addf %100, %103 : vector<256x2xf32>
    %c5 = arith.constant 5 : index
    %c0_73 = arith.constant 0 : index
    %c0_74 = arith.constant 0 : index
    %105 = vector.load %arg8[%c5, %c0_73, %c0_74] : memref<9x256x1xf32, #tpu.memory_space<vmem>>, vector<1x256x1xf32>
    %106 = vector.shape_cast %105 : vector<1x256x1xf32> to vector<256x1xf32>
    %cst_75 = arith.constant 0.000000e+00 : f32
    %107 = vector.broadcast %cst_75 : f32 to vector<1x8xf32>
    %108 = vector.extract_strided_slice %5 {offsets = [1, 0], sizes = [255, 8], strides = [1, 1]} : vector<256x8xf32> to vector<255x8xf32>
    %109 = tpu.concatenate %108, %107 in 0 : vector<255x8xf32>, vector<1x8xf32> -> vector<256x8xf32>
    %110 = vector.broadcast %106 : vector<256x1xf32> to vector<256x8xf32>
    %111 = arith.mulf %109, %110 : vector<256x8xf32>
    %cst_76 = arith.constant 0.000000e+00 : f32
    %112 = vector.broadcast %cst_76 : f32 to vector<1x8xf32>
    %113 = vector.extract_strided_slice %9 {offsets = [1, 0], sizes = [255, 8], strides = [1, 1]} : vector<256x8xf32> to vector<255x8xf32>
    %114 = tpu.concatenate %113, %112 in 0 : vector<255x8xf32>, vector<1x8xf32> -> vector<256x8xf32>
    %115 = vector.broadcast %106 : vector<256x1xf32> to vector<256x8xf32>
    %116 = arith.mulf %114, %115 : vector<256x8xf32>
    %c5_77 = arith.constant 5 : index
    %c0_78 = arith.constant 0 : index
    %c0_79 = arith.constant 0 : index
    %117 = vector.load %arg6[%c5_77, %c0_78, %c0_79] : memref<9x8x2xf32, #tpu.memory_space<vmem>>, vector<1x8x2xf32>
    %118 = vector.shape_cast %117 : vector<1x8x2xf32> to vector<8x2xf32>
    %cst_80 = arith.constant dense<0.000000e+00> : vector<256x2xf32>
    %119 = tpu.matmul %111, %118, %cst_80 {dimension_numbers = #tpu.dot_dimension_numbers<[1], [0], [0], [1], [0, 0, 1, 1], [], []>} : vector<256x8xf32>, vector<8x2xf32>, vector<256x2xf32> -> vector<256x2xf32>
    %120 = arith.addf %104, %119 : vector<256x2xf32>
    %c5_81 = arith.constant 5 : index
    %c0_82 = arith.constant 0 : index
    %c0_83 = arith.constant 0 : index
    %121 = vector.load %arg7[%c5_81, %c0_82, %c0_83] : memref<9x8x2xf32, #tpu.memory_space<vmem>>, vector<1x8x2xf32>
    %122 = vector.shape_cast %121 : vector<1x8x2xf32> to vector<8x2xf32>
    %cst_84 = arith.constant dense<0.000000e+00> : vector<256x2xf32>
    %123 = tpu.matmul %116, %122, %cst_84 {dimension_numbers = #tpu.dot_dimension_numbers<[1], [0], [0], [1], [0, 0, 1, 1], [], []>} : vector<256x8xf32>, vector<8x2xf32>, vector<256x2xf32> -> vector<256x2xf32>
    %124 = arith.addf %120, %123 : vector<256x2xf32>
    %c6 = arith.constant 6 : index
    %c0_85 = arith.constant 0 : index
    %c0_86 = arith.constant 0 : index
    %125 = vector.load %arg8[%c6, %c0_85, %c0_86] : memref<9x256x1xf32, #tpu.memory_space<vmem>>, vector<1x256x1xf32>
    %126 = vector.shape_cast %125 : vector<1x256x1xf32> to vector<256x1xf32>
    %cst_87 = arith.constant 0.000000e+00 : f32
    %127 = vector.broadcast %cst_87 : f32 to vector<15x8xf32>
    %128 = vector.extract_strided_slice %5 {offsets = [15, 0], sizes = [241, 8], strides = [1, 1]} : vector<256x8xf32> to vector<241x8xf32>
    %129 = tpu.concatenate %128, %127 in 0 : vector<241x8xf32>, vector<15x8xf32> -> vector<256x8xf32>
    %130 = vector.broadcast %126 : vector<256x1xf32> to vector<256x8xf32>
    %131 = arith.mulf %129, %130 : vector<256x8xf32>
    %cst_88 = arith.constant 0.000000e+00 : f32
    %132 = vector.broadcast %cst_88 : f32 to vector<15x8xf32>
    %133 = vector.extract_strided_slice %9 {offsets = [15, 0], sizes = [241, 8], strides = [1, 1]} : vector<256x8xf32> to vector<241x8xf32>
    %134 = tpu.concatenate %133, %132 in 0 : vector<241x8xf32>, vector<15x8xf32> -> vector<256x8xf32>
    %135 = vector.broadcast %126 : vector<256x1xf32> to vector<256x8xf32>
    %136 = arith.mulf %134, %135 : vector<256x8xf32>
    %c6_89 = arith.constant 6 : index
    %c0_90 = arith.constant 0 : index
    %c0_91 = arith.constant 0 : index
    %137 = vector.load %arg6[%c6_89, %c0_90, %c0_91] : memref<9x8x2xf32, #tpu.memory_space<vmem>>, vector<1x8x2xf32>
    %138 = vector.shape_cast %137 : vector<1x8x2xf32> to vector<8x2xf32>
    %cst_92 = arith.constant dense<0.000000e+00> : vector<256x2xf32>
    %139 = tpu.matmul %131, %138, %cst_92 {dimension_numbers = #tpu.dot_dimension_numbers<[1], [0], [0], [1], [0, 0, 1, 1], [], []>} : vector<256x8xf32>, vector<8x2xf32>, vector<256x2xf32> -> vector<256x2xf32>
    %140 = arith.addf %124, %139 : vector<256x2xf32>
    %c6_93 = arith.constant 6 : index
    %c0_94 = arith.constant 0 : index
    %c0_95 = arith.constant 0 : index
    %141 = vector.load %arg7[%c6_93, %c0_94, %c0_95] : memref<9x8x2xf32, #tpu.memory_space<vmem>>, vector<1x8x2xf32>
    %142 = vector.shape_cast %141 : vector<1x8x2xf32> to vector<8x2xf32>
    %cst_96 = arith.constant dense<0.000000e+00> : vector<256x2xf32>
    %143 = tpu.matmul %136, %142, %cst_96 {dimension_numbers = #tpu.dot_dimension_numbers<[1], [0], [0], [1], [0, 0, 1, 1], [], []>} : vector<256x8xf32>, vector<8x2xf32>, vector<256x2xf32> -> vector<256x2xf32>
    %144 = arith.addf %140, %143 : vector<256x2xf32>
    %c7 = arith.constant 7 : index
    %c0_97 = arith.constant 0 : index
    %c0_98 = arith.constant 0 : index
    %145 = vector.load %arg8[%c7, %c0_97, %c0_98] : memref<9x256x1xf32, #tpu.memory_space<vmem>>, vector<1x256x1xf32>
    %146 = vector.shape_cast %145 : vector<1x256x1xf32> to vector<256x1xf32>
    %cst_99 = arith.constant 0.000000e+00 : f32
    %147 = vector.broadcast %cst_99 : f32 to vector<16x8xf32>
    %148 = vector.extract_strided_slice %5 {offsets = [16, 0], sizes = [240, 8], strides = [1, 1]} : vector<256x8xf32> to vector<240x8xf32>
    %149 = tpu.concatenate %148, %147 in 0 : vector<240x8xf32>, vector<16x8xf32> -> vector<256x8xf32>
    %150 = vector.broadcast %146 : vector<256x1xf32> to vector<256x8xf32>
    %151 = arith.mulf %149, %150 : vector<256x8xf32>
    %cst_100 = arith.constant 0.000000e+00 : f32
    %152 = vector.broadcast %cst_100 : f32 to vector<16x8xf32>
    %153 = vector.extract_strided_slice %9 {offsets = [16, 0], sizes = [240, 8], strides = [1, 1]} : vector<256x8xf32> to vector<240x8xf32>
    %154 = tpu.concatenate %153, %152 in 0 : vector<240x8xf32>, vector<16x8xf32> -> vector<256x8xf32>
    %155 = vector.broadcast %146 : vector<256x1xf32> to vector<256x8xf32>
    %156 = arith.mulf %154, %155 : vector<256x8xf32>
    %c7_101 = arith.constant 7 : index
    %c0_102 = arith.constant 0 : index
    %c0_103 = arith.constant 0 : index
    %157 = vector.load %arg6[%c7_101, %c0_102, %c0_103] : memref<9x8x2xf32, #tpu.memory_space<vmem>>, vector<1x8x2xf32>
    %158 = vector.shape_cast %157 : vector<1x8x2xf32> to vector<8x2xf32>
    %cst_104 = arith.constant dense<0.000000e+00> : vector<256x2xf32>
    %159 = tpu.matmul %151, %158, %cst_104 {dimension_numbers = #tpu.dot_dimension_numbers<[1], [0], [0], [1], [0, 0, 1, 1], [], []>} : vector<256x8xf32>, vector<8x2xf32>, vector<256x2xf32> -> vector<256x2xf32>
    %160 = arith.addf %144, %159 : vector<256x2xf32>
    %c7_105 = arith.constant 7 : index
    %c0_106 = arith.constant 0 : index
    %c0_107 = arith.constant 0 : index
    %161 = vector.load %arg7[%c7_105, %c0_106, %c0_107] : memref<9x8x2xf32, #tpu.memory_space<vmem>>, vector<1x8x2xf32>
    %162 = vector.shape_cast %161 : vector<1x8x2xf32> to vector<8x2xf32>
    %cst_108 = arith.constant dense<0.000000e+00> : vector<256x2xf32>
    %163 = tpu.matmul %156, %162, %cst_108 {dimension_numbers = #tpu.dot_dimension_numbers<[1], [0], [0], [1], [0, 0, 1, 1], [], []>} : vector<256x8xf32>, vector<8x2xf32>, vector<256x2xf32> -> vector<256x2xf32>
    %164 = arith.addf %160, %163 : vector<256x2xf32>
    %c8 = arith.constant 8 : index
    %c0_109 = arith.constant 0 : index
    %c0_110 = arith.constant 0 : index
    %165 = vector.load %arg8[%c8, %c0_109, %c0_110] : memref<9x256x1xf32, #tpu.memory_space<vmem>>, vector<1x256x1xf32>
    %166 = vector.shape_cast %165 : vector<1x256x1xf32> to vector<256x1xf32>
    %cst_111 = arith.constant 0.000000e+00 : f32
    %167 = vector.broadcast %cst_111 : f32 to vector<17x8xf32>
    %168 = vector.extract_strided_slice %5 {offsets = [17, 0], sizes = [239, 8], strides = [1, 1]} : vector<256x8xf32> to vector<239x8xf32>
    %169 = tpu.concatenate %168, %167 in 0 : vector<239x8xf32>, vector<17x8xf32> -> vector<256x8xf32>
    %170 = vector.broadcast %166 : vector<256x1xf32> to vector<256x8xf32>
    %171 = arith.mulf %169, %170 : vector<256x8xf32>
    %cst_112 = arith.constant 0.000000e+00 : f32
    %172 = vector.broadcast %cst_112 : f32 to vector<17x8xf32>
    %173 = vector.extract_strided_slice %9 {offsets = [17, 0], sizes = [239, 8], strides = [1, 1]} : vector<256x8xf32> to vector<239x8xf32>
    %174 = tpu.concatenate %173, %172 in 0 : vector<239x8xf32>, vector<17x8xf32> -> vector<256x8xf32>
    %175 = vector.broadcast %166 : vector<256x1xf32> to vector<256x8xf32>
    %176 = arith.mulf %174, %175 : vector<256x8xf32>
    %c8_113 = arith.constant 8 : index
    %c0_114 = arith.constant 0 : index
    %c0_115 = arith.constant 0 : index
    %177 = vector.load %arg6[%c8_113, %c0_114, %c0_115] : memref<9x8x2xf32, #tpu.memory_space<vmem>>, vector<1x8x2xf32>
    %178 = vector.shape_cast %177 : vector<1x8x2xf32> to vector<8x2xf32>
    %cst_116 = arith.constant dense<0.000000e+00> : vector<256x2xf32>
    %179 = tpu.matmul %171, %178, %cst_116 {dimension_numbers = #tpu.dot_dimension_numbers<[1], [0], [0], [1], [0, 0, 1, 1], [], []>} : vector<256x8xf32>, vector<8x2xf32>, vector<256x2xf32> -> vector<256x2xf32>
    %180 = arith.addf %164, %179 : vector<256x2xf32>
    %c8_117 = arith.constant 8 : index
    %c0_118 = arith.constant 0 : index
    %c0_119 = arith.constant 0 : index
    %181 = vector.load %arg7[%c8_117, %c0_118, %c0_119] : memref<9x8x2xf32, #tpu.memory_space<vmem>>, vector<1x8x2xf32>
    %182 = vector.shape_cast %181 : vector<1x8x2xf32> to vector<8x2xf32>
    %cst_120 = arith.constant dense<0.000000e+00> : vector<256x2xf32>
    %183 = tpu.matmul %176, %182, %cst_120 {dimension_numbers = #tpu.dot_dimension_numbers<[1], [0], [0], [1], [0, 0, 1, 1], [], []>} : vector<256x8xf32>, vector<8x2xf32>, vector<256x2xf32> -> vector<256x2xf32>
    %184 = arith.addf %180, %183 : vector<256x2xf32>
    %c0_121 = arith.constant 0 : index
    %c0_122 = arith.constant 0 : index
    %c0_123 = arith.constant 0 : index
    %185 = vector.load %arg9[%c0_121, %c0_122, %c0_123] : memref<1x256x2xf32, #tpu.memory_space<vmem>>, vector<1x256x2xf32>
    %186 = vector.shape_cast %185 : vector<1x256x2xf32> to vector<256x2xf32>
    %187 = vector.shape_cast %184 : vector<256x2xf32> to vector<1x256x2xf32>
    tpu.vector_store %arg9[%c0_121, %c0_122, %c0_123], %187 {strides = array<i32>} : memref<1x256x2xf32, #tpu.memory_space<vmem>>, vector<1x256x2xf32>,
    return
  }
  func.func @transform_0(%arg0: i32) -> (i32, i32, i32) {
    %c0_i32 = arith.constant 0 : i32
    %c0_i32_0 = arith.constant 0 : i32
    %c0_i32_1 = arith.constant 0 : i32
    return %arg0, %c0_i32, %c0_i32_0 : i32, i32, i32
  }
  func.func @transform_1(%arg0: i32) -> (i32, i32, i32) {
    %c0_i32 = arith.constant 0 : i32
    %c0_i32_0 = arith.constant 0 : i32
    %c0_i32_1 = arith.constant 0 : i32
    return %arg0, %c0_i32, %c0_i32_0 : i32, i32, i32
  }
  func.func @transform_2(%arg0: i32) -> (i32, i32) {
    %c0_i32 = arith.constant 0 : i32
    %c0_i32_0 = arith.constant 0 : i32
    %c0_i32_1 = arith.constant 0 : i32
    return %c0_i32, %c0_i32_0 : i32, i32
  }
  func.func @transform_3(%arg0: i32) -> (i32, i32) {
    %c0_i32 = arith.constant 0 : i32
    %c0_i32_0 = arith.constant 0 : i32
    %c0_i32_1 = arith.constant 0 : i32
    return %c0_i32, %c0_i32_0 : i32, i32
  }
  func.func @transform_4(%arg0: i32) -> (i32, i32) {
    %c0_i32 = arith.constant 0 : i32
    %c0_i32_0 = arith.constant 0 : i32
    %c0_i32_1 = arith.constant 0 : i32
    return %c0_i32, %c0_i32_0 : i32, i32
  }
  func.func @transform_5(%arg0: i32) -> (i32, i32, i32) {
    %c0_i32 = arith.constant 0 : i32
    %c0_i32_0 = arith.constant 0 : i32
    %c0_i32_1 = arith.constant 0 : i32
    %c0_i32_2 = arith.constant 0 : i32
    return %c0_i32, %c0_i32_0, %c0_i32_1 : i32, i32, i32
  }
  func.func @transform_6(%arg0: i32) -> (i32, i32, i32) {
    %c0_i32 = arith.constant 0 : i32
    %c0_i32_0 = arith.constant 0 : i32
    %c0_i32_1 = arith.constant 0 : i32
    %c0_i32_2 = arith.constant 0 : i32
    return %c0_i32, %c0_i32_0, %c0_i32_1 : i32, i32, i32
  }
  func.func @transform_7(%arg0: i32) -> (i32, i32, i32) {
    %c0_i32 = arith.constant 0 : i32
    %c0_i32_0 = arith.constant 0 : i32
    %c0_i32_1 = arith.constant 0 : i32
    %c0_i32_2 = arith.constant 0 : i32
    return %c0_i32, %c0_i32_0, %c0_i32_1 : i32, i32, i32
  }
  func.func @transform_8(%arg0: i32) -> (i32, i32, i32) {
    %c0_i32 = arith.constant 0 : i32
    %c0_i32_0 = arith.constant 0 : i32
    %c0_i32_1 = arith.constant 0 : i32
    return %arg0, %c0_i32, %c0_i32_0 : i32, i32, i32
  }
}

module attributes {stable_mosaic.version = 11 : i64} {
  func.func @_warp_kernel(%arg0: i32, %arg1: i32, %arg2: memref<128x2xf32, #tpu.memory_space<vmem>>, %arg3: memref<1x128x2xf32, #tpu.memory_space<vmem>>, %arg4: memref<1x64x16xf32, #tpu.memory_space<vmem>>, %arg5: memref<1x128x16xf32, #tpu.memory_space<vmem>>) attributes {dimension_semantics = [#tpu.dimension_semantics<parallel>, #tpu.dimension_semantics<parallel>], iteration_bounds = array<i64: 2, 2>, scalar_prefetch = 0 : i64, scratch_operands = 0 : i64, tpu.core_type = #tpu.core_type<tc>, window_params = [{transform_indices = @transform_0, window_bounds = array<i64: 128, 2>}, {transform_indices = @transform_1, window_bounds = array<i64: 1, 128, 2>}, {transform_indices = @transform_2, window_bounds = array<i64: 1, 64, 16>}, {transform_indices = @transform_3, window_bounds = array<i64: 1, 128, 16>}]} {
    %c0 = arith.constant 0 : index
    %c0_0 = arith.constant 0 : index
    %0 = vector.load %arg2[%c0, %c0_0] : memref<128x2xf32, #tpu.memory_space<vmem>>, vector<128x2xf32>
    %c0_1 = arith.constant 0 : index
    %c0_2 = arith.constant 0 : index
    %c0_3 = arith.constant 0 : index
    %1 = vector.load %arg3[%c0_1, %c0_2, %c0_3] : memref<1x128x2xf32, #tpu.memory_space<vmem>>, vector<1x128x2xf32>
    %2 = vector.shape_cast %1 : vector<1x128x2xf32> to vector<128x2xf32>
    %3 = vector.extract_strided_slice %0 {offsets = [0, 0], sizes = [128, 1], strides = [1, 1]} : vector<128x2xf32> to vector<128x1xf32>
    %4 = vector.extract_strided_slice %2 {offsets = [0, 0], sizes = [128, 1], strides = [1, 1]} : vector<128x2xf32> to vector<128x1xf32>
    %cst = arith.constant 2.187500e-01 : f32
    %5 = vector.broadcast %cst : f32 to vector<128x1xf32>
    %6 = arith.mulf %4, %5 : vector<128x1xf32>
    %7 = arith.addf %3, %6 : vector<128x1xf32>
    %8 = vector.extract_strided_slice %0 {offsets = [0, 1], sizes = [128, 1], strides = [1, 1]} : vector<128x2xf32> to vector<128x1xf32>
    %9 = vector.extract_strided_slice %2 {offsets = [0, 1], sizes = [128, 1], strides = [1, 1]} : vector<128x2xf32> to vector<128x1xf32>
    %cst_4 = arith.constant 2.187500e-01 : f32
    %10 = vector.broadcast %cst_4 : f32 to vector<128x1xf32>
    %11 = arith.mulf %9, %10 : vector<128x1xf32>
    %12 = arith.addf %8, %11 : vector<128x1xf32>
    %13 = math.floor %7 : vector<128x1xf32>
    %14 = math.floor %12 : vector<128x1xf32>
    %15 = arith.subf %7, %13 : vector<128x1xf32>
    %16 = arith.subf %12, %14 : vector<128x1xf32>
    %17 = arith.fptosi %13 : vector<128x1xf32> to vector<128x1xi32>
    %18 = arith.fptosi %14 : vector<128x1xf32> to vector<128x1xi32>
    %c1_i32 = arith.constant 1 : i32
    %19 = vector.broadcast %c1_i32 : i32 to vector<128x1xi32>
    %20 = arith.addi %17, %19 : vector<128x1xi32>
    %c1_i32_5 = arith.constant 1 : i32
    %21 = vector.broadcast %c1_i32_5 : i32 to vector<128x1xi32>
    %22 = arith.addi %18, %21 : vector<128x1xi32>
    %23 = tpu.iota {dimensions = array<i32: 1>} : vector<128x64xi32>
    %cst_6 = arith.constant 1.000000e+00 : f32
    %24 = vector.broadcast %cst_6 : f32 to vector<128x1xf32>
    %25 = arith.subf %24, %15 : vector<128x1xf32>
    %cst_7 = arith.constant 1.000000e+00 : f32
    %26 = vector.broadcast %cst_7 : f32 to vector<128x1xf32>
    %27 = arith.subf %26, %16 : vector<128x1xf32>
    %28 = arith.mulf %25, %27 : vector<128x1xf32>
    %c0_i32 = arith.constant 0 : i32
    %29 = vector.broadcast %c0_i32 : i32 to vector<128x1xi32>
    %30 = arith.cmpi sge, %17, %29 : vector<128x1xi32>
    %c8_i32 = arith.constant 8 : i32
    %31 = vector.broadcast %c8_i32 : i32 to vector<128x1xi32>
    %32 = arith.cmpi slt, %17, %31 : vector<128x1xi32>
    %33 = arith.andi %30, %32 : vector<128x1xi1>
    %c0_i32_8 = arith.constant 0 : i32
    %34 = vector.broadcast %c0_i32_8 : i32 to vector<128x1xi32>
    %35 = arith.cmpi sge, %18, %34 : vector<128x1xi32>
    %36 = arith.andi %33, %35 : vector<128x1xi1>
    %c8_i32_9 = arith.constant 8 : i32
    %37 = vector.broadcast %c8_i32_9 : i32 to vector<128x1xi32>
    %38 = arith.cmpi slt, %18, %37 : vector<128x1xi32>
    %39 = arith.andi %36, %38 : vector<128x1xi1>
    %40 = arith.extui %39 : vector<128x1xi1> to vector<128x1xi32>
    %41 = arith.sitofp %40 : vector<128x1xi32> to vector<128x1xf32>
    %c8_i32_10 = arith.constant 8 : i32
    %42 = vector.broadcast %c8_i32_10 : i32 to vector<128x1xi32>
    %43 = arith.muli %18, %42 : vector<128x1xi32>
    %44 = arith.addi %43, %17 : vector<128x1xi32>
    %45 = vector.broadcast %44 : vector<128x1xi32> to vector<128x64xi32>
    %46 = arith.cmpi eq, %23, %45 : vector<128x64xi32>
    %47 = arith.extui %46 : vector<128x64xi1> to vector<128x64xi32>
    %48 = arith.sitofp %47 : vector<128x64xi32> to vector<128x64xf32>
    %49 = arith.mulf %28, %41 : vector<128x1xf32>
    %50 = vector.broadcast %49 : vector<128x1xf32> to vector<128x64xf32>
    %51 = arith.mulf %48, %50 : vector<128x64xf32>
    %cst_11 = arith.constant 1.000000e+00 : f32
    %52 = vector.broadcast %cst_11 : f32 to vector<128x1xf32>
    %53 = arith.subf %52, %16 : vector<128x1xf32>
    %54 = arith.mulf %15, %53 : vector<128x1xf32>
    %c0_i32_12 = arith.constant 0 : i32
    %55 = vector.broadcast %c0_i32_12 : i32 to vector<128x1xi32>
    %56 = arith.cmpi sge, %20, %55 : vector<128x1xi32>
    %c8_i32_13 = arith.constant 8 : i32
    %57 = vector.broadcast %c8_i32_13 : i32 to vector<128x1xi32>
    %58 = arith.cmpi slt, %20, %57 : vector<128x1xi32>
    %59 = arith.andi %56, %58 : vector<128x1xi1>
    %c0_i32_14 = arith.constant 0 : i32
    %60 = vector.broadcast %c0_i32_14 : i32 to vector<128x1xi32>
    %61 = arith.cmpi sge, %18, %60 : vector<128x1xi32>
    %62 = arith.andi %59, %61 : vector<128x1xi1>
    %c8_i32_15 = arith.constant 8 : i32
    %63 = vector.broadcast %c8_i32_15 : i32 to vector<128x1xi32>
    %64 = arith.cmpi slt, %18, %63 : vector<128x1xi32>
    %65 = arith.andi %62, %64 : vector<128x1xi1>
    %66 = arith.extui %65 : vector<128x1xi1> to vector<128x1xi32>
    %67 = arith.sitofp %66 : vector<128x1xi32> to vector<128x1xf32>
    %c8_i32_16 = arith.constant 8 : i32
    %68 = vector.broadcast %c8_i32_16 : i32 to vector<128x1xi32>
    %69 = arith.muli %18, %68 : vector<128x1xi32>
    %70 = arith.addi %69, %20 : vector<128x1xi32>
    %71 = vector.broadcast %70 : vector<128x1xi32> to vector<128x64xi32>
    %72 = arith.cmpi eq, %23, %71 : vector<128x64xi32>
    %73 = arith.extui %72 : vector<128x64xi1> to vector<128x64xi32>
    %74 = arith.sitofp %73 : vector<128x64xi32> to vector<128x64xf32>
    %75 = arith.mulf %54, %67 : vector<128x1xf32>
    %76 = vector.broadcast %75 : vector<128x1xf32> to vector<128x64xf32>
    %77 = arith.mulf %74, %76 : vector<128x64xf32>
    %78 = arith.addf %51, %77 : vector<128x64xf32>
    %cst_17 = arith.constant 1.000000e+00 : f32
    %79 = vector.broadcast %cst_17 : f32 to vector<128x1xf32>
    %80 = arith.subf %79, %15 : vector<128x1xf32>
    %81 = arith.mulf %80, %16 : vector<128x1xf32>
    %c0_i32_18 = arith.constant 0 : i32
    %82 = vector.broadcast %c0_i32_18 : i32 to vector<128x1xi32>
    %83 = arith.cmpi sge, %17, %82 : vector<128x1xi32>
    %c8_i32_19 = arith.constant 8 : i32
    %84 = vector.broadcast %c8_i32_19 : i32 to vector<128x1xi32>
    %85 = arith.cmpi slt, %17, %84 : vector<128x1xi32>
    %86 = arith.andi %83, %85 : vector<128x1xi1>
    %c0_i32_20 = arith.constant 0 : i32
    %87 = vector.broadcast %c0_i32_20 : i32 to vector<128x1xi32>
    %88 = arith.cmpi sge, %22, %87 : vector<128x1xi32>
    %89 = arith.andi %86, %88 : vector<128x1xi1>
    %c8_i32_21 = arith.constant 8 : i32
    %90 = vector.broadcast %c8_i32_21 : i32 to vector<128x1xi32>
    %91 = arith.cmpi slt, %22, %90 : vector<128x1xi32>
    %92 = arith.andi %89, %91 : vector<128x1xi1>
    %93 = arith.extui %92 : vector<128x1xi1> to vector<128x1xi32>
    %94 = arith.sitofp %93 : vector<128x1xi32> to vector<128x1xf32>
    %c8_i32_22 = arith.constant 8 : i32
    %95 = vector.broadcast %c8_i32_22 : i32 to vector<128x1xi32>
    %96 = arith.muli %22, %95 : vector<128x1xi32>
    %97 = arith.addi %96, %17 : vector<128x1xi32>
    %98 = vector.broadcast %97 : vector<128x1xi32> to vector<128x64xi32>
    %99 = arith.cmpi eq, %23, %98 : vector<128x64xi32>
    %100 = arith.extui %99 : vector<128x64xi1> to vector<128x64xi32>
    %101 = arith.sitofp %100 : vector<128x64xi32> to vector<128x64xf32>
    %102 = arith.mulf %81, %94 : vector<128x1xf32>
    %103 = vector.broadcast %102 : vector<128x1xf32> to vector<128x64xf32>
    %104 = arith.mulf %101, %103 : vector<128x64xf32>
    %105 = arith.addf %78, %104 : vector<128x64xf32>
    %106 = arith.mulf %15, %16 : vector<128x1xf32>
    %c0_i32_23 = arith.constant 0 : i32
    %107 = vector.broadcast %c0_i32_23 : i32 to vector<128x1xi32>
    %108 = arith.cmpi sge, %20, %107 : vector<128x1xi32>
    %c8_i32_24 = arith.constant 8 : i32
    %109 = vector.broadcast %c8_i32_24 : i32 to vector<128x1xi32>
    %110 = arith.cmpi slt, %20, %109 : vector<128x1xi32>
    %111 = arith.andi %108, %110 : vector<128x1xi1>
    %c0_i32_25 = arith.constant 0 : i32
    %112 = vector.broadcast %c0_i32_25 : i32 to vector<128x1xi32>
    %113 = arith.cmpi sge, %22, %112 : vector<128x1xi32>
    %114 = arith.andi %111, %113 : vector<128x1xi1>
    %c8_i32_26 = arith.constant 8 : i32
    %115 = vector.broadcast %c8_i32_26 : i32 to vector<128x1xi32>
    %116 = arith.cmpi slt, %22, %115 : vector<128x1xi32>
    %117 = arith.andi %114, %116 : vector<128x1xi1>
    %118 = arith.extui %117 : vector<128x1xi1> to vector<128x1xi32>
    %119 = arith.sitofp %118 : vector<128x1xi32> to vector<128x1xf32>
    %c8_i32_27 = arith.constant 8 : i32
    %120 = vector.broadcast %c8_i32_27 : i32 to vector<128x1xi32>
    %121 = arith.muli %22, %120 : vector<128x1xi32>
    %122 = arith.addi %121, %20 : vector<128x1xi32>
    %123 = vector.broadcast %122 : vector<128x1xi32> to vector<128x64xi32>
    %124 = arith.cmpi eq, %23, %123 : vector<128x64xi32>
    %125 = arith.extui %124 : vector<128x64xi1> to vector<128x64xi32>
    %126 = arith.sitofp %125 : vector<128x64xi32> to vector<128x64xf32>
    %127 = arith.mulf %106, %119 : vector<128x1xf32>
    %128 = vector.broadcast %127 : vector<128x1xf32> to vector<128x64xf32>
    %129 = arith.mulf %126, %128 : vector<128x64xf32>
    %130 = arith.addf %105, %129 : vector<128x64xf32>
    %c0_28 = arith.constant 0 : index
    %c0_29 = arith.constant 0 : index
    %c0_30 = arith.constant 0 : index
    %131 = vector.load %arg4[%c0_28, %c0_29, %c0_30] : memref<1x64x16xf32, #tpu.memory_space<vmem>>, vector<1x64x16xf32>
    %132 = vector.shape_cast %131 : vector<1x64x16xf32> to vector<64x16xf32>
    %cst_31 = arith.constant dense<0.000000e+00> : vector<128x16xf32>
    %133 = tpu.matmul %130, %132, %cst_31 {dimension_numbers = #tpu.dot_dimension_numbers<[1], [0], [0], [1], [0, 0, 1, 1], [], []>} : vector<128x64xf32>, vector<64x16xf32>, vector<128x16xf32> -> vector<128x16xf32>
    %c0_32 = arith.constant 0 : index
    %c0_33 = arith.constant 0 : index
    %c0_34 = arith.constant 0 : index
    %134 = vector.load %arg5[%c0_32, %c0_33, %c0_34] : memref<1x128x16xf32, #tpu.memory_space<vmem>>, vector<1x128x16xf32>
    %135 = vector.shape_cast %134 : vector<1x128x16xf32> to vector<128x16xf32>
    %136 = vector.shape_cast %133 : vector<128x16xf32> to vector<1x128x16xf32>
    tpu.vector_store %arg5[%c0_32, %c0_33, %c0_34], %136 {strides = array<i32>} : memref<1x128x16xf32, #tpu.memory_space<vmem>>, vector<1x128x16xf32>,
    return
  }
  func.func @transform_0(%arg0: i32, %arg1: i32) -> (i32, i32) {
    %c0_i32 = arith.constant 0 : i32
    %c0_i32_0 = arith.constant 0 : i32
    return %arg1, %c0_i32 : i32, i32
  }
  func.func @transform_1(%arg0: i32, %arg1: i32) -> (i32, i32, i32) {
    %c0_i32 = arith.constant 0 : i32
    %c0_i32_0 = arith.constant 0 : i32
    return %arg0, %arg1, %c0_i32 : i32, i32, i32
  }
  func.func @transform_2(%arg0: i32, %arg1: i32) -> (i32, i32, i32) {
    %c0_i32 = arith.constant 0 : i32
    %c0_i32_0 = arith.constant 0 : i32
    %c0_i32_1 = arith.constant 0 : i32
    return %arg0, %c0_i32, %c0_i32_0 : i32, i32, i32
  }
  func.func @transform_3(%arg0: i32, %arg1: i32) -> (i32, i32, i32) {
    %c0_i32 = arith.constant 0 : i32
    %c0_i32_0 = arith.constant 0 : i32
    return %arg0, %arg1, %c0_i32 : i32, i32, i32
  }
}

</mosaic_0001>

<llo_original>
// kernel: aligned_module_forward.3
$region0: #{aligned_module_forward.3}
  #allocation0 [shape = 'u32[]', space=smem, size = 0x4, offset = 0x4, fixed_abs, tag = 'smem constant byte address 0x4 - core index']
  #allocation1 [shape = 'u32[144,128]{1,0:T(1,128)}', space=vmem, size = 0x12000, scoped, tag = 'internal scratch']
  %s0 = inlined_call_operand.vmem [shape: f32[256,2], index: 0, kind: input, shape index: {}]
  %s1 = inlined_call_operand.vmem [shape: f32[2,256,2], index: 1, kind: input, shape index: {}]
  %s2 = inlined_call_operand.vmem [shape: f32[2,64,16], index: 2, kind: input, shape index: {}]
  %s3 = inlined_call_operand.vmem [shape: f32[2,256,16], index: 3, kind: output, shape index: {}]
  %s4 = sld [smem:[#allocation0]]
  $region45: #{aligned_module_forward.3} parent=0
    _
  %s6 = ssub.s32 1, %s4
  %s7 = scalar_select 0, %s6, %s4
  loop: start=0, step=1, limit=6
  $region2: #{aligned_module_forward.3} parent=0 // loop_pre_header
    _
  $region3: #{aligned_module_forward.3} parent=0 // loop_header
    %s9 = sphi 0, %s13
    %p10 = scmp.ge.s32.totalorder %s9, 6
    %s16 = sphi 0, %s28
    %s17 = sphi 0, %s24
    %s18 = sphi 0, %s16
    %s19 = sphi 0, %s17
    %s20 = sphi 0, %s18
    %s21 = sphi 0, %s19
    %s31 = sphi 0, %s33
    %s34 = sphi 0, %s31
    %s35 = sphi 0, %s34
    %s51 = sphi 0, %s35
    %s59 = sphi 0, %s61
    %s62 = sphi 0, %s59
    %s63 = sphi 0, %s62
    %s79 = sphi 0, %s63
    %s85 = sphi 0, %s87
    %s88 = sphi 0, %s85
    %s89 = sphi 0, %s88
    %s105 = sphi 0, %s89
    %s113 = sphi 0, %s115
    %s116 = sphi 0, %s113
    %s117 = sphi 0, %s116
    %s133 = sphi 0, %s117
  $region4: #{aligned_module_forward.3} parent=0 // loop_header_branch
    %12 = sbr.rel (%p10) target = $region8
  $region5: #{aligned_module_forward.3} parent=0 // loop_body
    %s14 = ssub.s32 %s9, 1
    %s15 = ssub.s32 %s9, 2
    %s22 = sadd.s32 1, %s17
    %p23 = scmp.ge.s32.totalorder %s22, 2
    %s24 = scalar_select %p23, 0, %s22
    %s25 = sadd.s32 1, %s16
    %s26 = scalar_select %p23, %s25, %s16
    %p27 = scmp.ge.s32.totalorder %s26, 2
    %s28 = scalar_select %p27, 0, %s26
    %s29 = ssub.s32 %s17, %s24
    %p30 = scmp.eq.s32.totalorder %s29, 0
    %s32 = sadd.s32 %s31, 1
    %s33 = scalar_select %p30, %s31, %s32
    %p36 = pneg %p30
    %p37 = scmp.eq.s32.totalorder %s9, 3
    %p38 = por %p36, %p37
    %p39 = scmp.ne.s32.totalorder %s31, %s34
    %p40 = scmp.eq.s32.totalorder %s9, 0
    %p41 = por %p39, %p40
    %p42 = scmp.ne.s32.totalorder %s31, %s34
    %p43 = scmp.eq.s32.totalorder %s14, 3
    %p44 = por %p42, %p43
    %p45 = scmp.ne.s32.totalorder %s34, %s35
    %p46 = scmp.eq.s32.totalorder %s14, 0
    %p47 = por %p45, %p46
    %p48 = scmp.ne.s32.totalorder %s34, %s35
    %p49 = scmp.eq.s32.totalorder %s15, 3
    %p50 = por %p48, %p49
    %p52 = scmp.ne.s32.totalorder %s35, %s51
    %p53 = scmp.eq.s32.totalorder %s15, 0
    %p54 = por %p52, %p53
    %s55 = ssub.s32 %s16, %s28
    %s56 = ssub.s32 %s17, %s24
    %s57 = sor.u32 %s55, %s56
    %p58 = scmp.eq.s32.totalorder %s57, 0
    %s60 = sadd.s32 %s59, 1
    %s61 = scalar_select %p58, %s59, %s60
    %p64 = pneg %p58
    %p65 = scmp.eq.s32.totalorder %s9, 3
    %p66 = por %p64, %p65
    %p67 = scmp.ne.s32.totalorder %s59, %s62
    %p68 = scmp.eq.s32.totalorder %s9, 0
    %p69 = por %p67, %p68
    %p70 = scmp.ne.s32.totalorder %s59, %s62
    %p71 = scmp.eq.s32.totalorder %s14, 3
    %p72 = por %p70, %p71
    %p73 = scmp.ne.s32.totalorder %s62, %s63
    %p74 = scmp.eq.s32.totalorder %s14, 0
    %p75 = por %p73, %p74
    %p76 = scmp.ne.s32.totalorder %s62, %s63
    %p77 = scmp.eq.s32.totalorder %s15, 3
    %p78 = por %p76, %p77
    %p80 = scmp.ne.s32.totalorder %s63, %s79
    %p81 = scmp.eq.s32.totalorder %s15, 0
    %p82 = por %p80, %p81
    %s83 = ssub.s32 %s16, %s28
    %p84 = scmp.eq.s32.totalorder %s83, 0
    %s86 = sadd.s32 %s85, 1
    %s87 = scalar_select %p84, %s85, %s86
    %p90 = pneg %p84
    %p91 = scmp.eq.s32.totalorder %s9, 3
    %p92 = por %p90, %p91
    %p93 = scmp.ne.s32.totalorder %s85, %s88
    %p94 = scmp.eq.s32.totalorder %s9, 0
    %p95 = por %p93, %p94
    %p96 = scmp.ne.s32.totalorder %s85, %s88
    %p97 = scmp.eq.s32.totalorder %s14, 3
    %p98 = por %p96, %p97
    %p99 = scmp.ne.s32.totalorder %s88, %s89
    %p100 = scmp.eq.s32.totalorder %s14, 0
    %p101 = por %p99, %p100
    %p102 = scmp.ne.s32.totalorder %s88, %s89
    %p103 = scmp.eq.s32.totalorder %s15, 3
    %p104 = por %p102, %p103
    %p106 = scmp.ne.s32.totalorder %s89, %s105
    %p107 = scmp.eq.s32.totalorder %s15, 0
    %p108 = por %p106, %p107
    %s109 = ssub.s32 %s16, %s28
    %s110 = ssub.s32 %s17, %s24
    %s111 = sor.u32 %s109, %s110
    %p112 = scmp.eq.s32.totalorder %s111, 0
    %s114 = sadd.s32 %s113, 1
    %s115 = scalar_select %p112, %s113, %s114
    %p118 = pneg %p112
    %p119 = scmp.eq.s32.totalorder %s9, 3
    %p120 = por %p118, %p119
    %p121 = scmp.ne.s32.totalorder %s113, %s116
    %p122 = scmp.eq.s32.totalorder %s9, 0
    %p123 = por %p121, %p122
    %p124 = scmp.ne.s32.totalorder %s113, %s116
    %p125 = scmp.eq.s32.totalorder %s14, 3
    %p126 = por %p124, %p125
    %p127 = scmp.ne.s32.totalorder %s116, %s117
    %p128 = scmp.eq.s32.totalorder %s14, 0
    %p129 = por %p127, %p128
    %p130 = scmp.ne.s32.totalorder %s116, %s117
    %p131 = scmp.eq.s32.totalorder %s15, 3
    %p132 = por %p130, %p131
    %p134 = scmp.ne.s32.totalorder %s117, %s133
    %p135 = scmp.eq.s32.totalorder %s15, 0
    %p136 = por %p134, %p135
    %p137 = scmp.le.s32.totalorder 1, %s9
    %p138 = scmp.lt.s32.totalorder %s9, 5
    %p139 = pnand %p137, %p138
    %p140 = pneg %p139
    // Predicated region
    $region9: #{aligned_module_forward.3} parent=5 // pred_check
      _
    $region10: #{aligned_module_forward.3} parent=5 // pred_check_branch
      %142 = sbr.rel (%p139) target = $region12
    $region11: #{aligned_module_forward.3} parent=5 // pred_region
      %s143 = ssub.s32 %s9, 1
    $region12: #{aligned_module_forward.3} parent=5 // pred_fallthru
      _
    %p144 = scmp.lt.s32.totalorder %s9, 4
    // Predicated region
    $region13: #{aligned_module_forward.3} parent=5 // pred_check
      %p145 = pneg %p144
    $region14: #{aligned_module_forward.3} parent=5 // pred_check_branch
      %147 = sbr.rel (%p145) target = $region16
    $region15: #{aligned_module_forward.3} parent=5 // pred_region
      // Predicated region
      $region17: #{aligned_module_forward.3} parent=15 // pred_check
        %p148 = pneg %p41
      $region18: #{aligned_module_forward.3} parent=15 // pred_check_branch
        %150 = sbr.rel (%p148) target = $region20
      $region19: #{aligned_module_forward.3} parent=15 // pred_region
        %s151 = smul.u32 16, %s17
        %p152 = scmp.lt.s32.totalorder %s151, 31
        %s153 = scalar_select %p152, %s151, 31
        %s154 = smul.addr %s153, 8
        %s155 = scalar_lea.vmem %s0, %s154
        %s156 = smul.u32 16, %s17
      $region20: #{aligned_module_forward.3} parent=15 // pred_fallthru
        _
      // Predicated region
      $region21: #{aligned_module_forward.3} parent=15 // pred_check
        %p157 = pneg %p69
      $region22: #{aligned_module_forward.3} parent=15 // pred_check_branch
        %159 = sbr.rel (%p157) target = $region24
      $region23: #{aligned_module_forward.3} parent=15 // pred_region
        %s160 = smul.u32 16, %s17
        %p161 = scmp.lt.s32.totalorder %s16, 1
        %s162 = scalar_select %p161, %s16, 1
        %p163 = scmp.lt.s32.totalorder %s160, 31
        %s164 = scalar_select %p163, %s160, 31
        %s165 = smul.addr %s162, 32
        %s166 = sadd.s32 %s164, %s165
        %s167 = smul.addr %s166, 8
        %s168 = scalar_lea.vmem %s1, %s167
        %s169 = smul.u32 16, %s17
      $region24: #{aligned_module_forward.3} parent=15 // pred_fallthru
        _
      // Predicated region
      $region25: #{aligned_module_forward.3} parent=15 // pred_check
        %p170 = pneg %p95
      $region26: #{aligned_module_forward.3} parent=15 // pred_check_branch
        %172 = sbr.rel (%p170) target = $region28
      $region27: #{aligned_module_forward.3} parent=15 // pred_region
        %p173 = scmp.lt.s32.totalorder %s16, 1
        %s174 = scalar_select %p173, %s16, 1
        %s175 = smul.addr %s174, 8
        %s176 = smul.addr %s175, 8
        %s177 = scalar_lea.vmem %s2, %s176
      $region28: #{aligned_module_forward.3} parent=15 // pred_fallthru
        _
    $region16: #{aligned_module_forward.3} parent=5 // pred_fallthru
      _
    %p178 = scmp.le.s32.totalorder 1, %s9
    %p179 = scmp.lt.s32.totalorder %s9, 5
    %p180 = pnand %p178, %p179
    %p181 = pneg %p180
    // Predicated region
    $region29: #{aligned_module_forward.3} parent=5 // pred_check
      _
    $region30: #{aligned_module_forward.3} parent=5 // pred_check_branch
      %183 = sbr.rel (%p180) target = $region32
    $region31: #{aligned_module_forward.3} parent=5 // pred_region
      %s184 = ssub.s32 %s9, 1
      %s185 = smul.u32 16, %s19
      %p186 = scmp.lt.s32.totalorder %s185, 31
      %s187 = scalar_select %p186, %s185, 31
      %s188 = smul.addr %s187, 8
      %s189 = scalar_lea.vmem %s0, %s188
      %p190 = pneg %p47
      %p191 = pneg %p44
      %s192 = smul.u32 16, %s19
      %p193 = scmp.lt.s32.totalorder %s18, 1
      %s194 = scalar_select %p193, %s18, 1
      %p195 = scmp.lt.s32.totalorder %s192, 31
      %s196 = scalar_select %p195, %s192, 31
      %s197 = smul.addr %s194, 32
      %s198 = sadd.s32 %s196, %s197
      %s199 = smul.addr %s198, 8
      %s200 = scalar_lea.vmem %s1, %s199
      %p201 = pneg %p75
      %p202 = pneg %p72
      %p203 = scmp.lt.s32.totalorder %s18, 1
      %s204 = scalar_select %p203, %s18, 1
      %s205 = smul.addr %s204, 8
      %s206 = smul.addr %s205, 8
      %s207 = scalar_lea.vmem %s2, %s206
      %p208 = pneg %p101
      %p209 = pneg %p98
      %p210 = pneg %p129
      %p211 = pneg %p126
      %s212 = smul.u32 16, %s19
      %p213 = scmp.lt.s32.totalorder %s18, 1
      %s214 = scalar_select %p213, %s18, 1
      %p215 = scmp.lt.s32.totalorder %s212, 31
      %s216 = scalar_select %p215, %s212, 31
      %s217 = smul.addr %s214, 32
      %s218 = sadd.s32 %s216, %s217
      %s219 = smul.addr %s218, 8
      %s220 = scalar_lea.vmem %s3, %s219
      %s221 = smul.u32 16, %s19
      %p222 = scmp.lt.s32.totalorder %s221, 31
      %s223 = scalar_select %p222, %s221, 31
      %s224 = smul.addr %s223, 8
      %s225 = scalar_lea.vmem %s0, %s224
      %s226 = smul.u32 16, %s19
      %s227 = smul.u32 16, %s19
      %p228 = scmp.lt.s32.totalorder %s18, 1
      %s229 = scalar_select %p228, %s18, 1
      %p230 = scmp.lt.s32.totalorder %s227, 31
      %s231 = scalar_select %p230, %s227, 31
      %s232 = smul.addr %s229, 32
      %s233 = sadd.s32 %s231, %s232
      %s234 = smul.addr %s233, 8
      %s235 = scalar_lea.vmem %s1, %s234
      %s236 = smul.u32 16, %s19
      %p237 = scmp.lt.s32.totalorder %s18, 1
      %s238 = scalar_select %p237, %s18, 1
      %s239 = smul.addr %s238, 8
      %s240 = smul.addr %s239, 8
      %s241 = scalar_lea.vmem %s2, %s240
      %s242 = smul.u32 16, %s19
      %p243 = scmp.lt.s32.totalorder %s18, 1
      %s244 = scalar_select %p243, %s18, 1
      %p245 = scmp.lt.s32.totalorder %s242, 31
      %s246 = scalar_select %p245, %s242, 31
      %s247 = smul.addr %s244, 32
      %s248 = sadd.s32 %s246, %s247
      %s249 = smul.addr %s248, 8
      %s250 = scalar_lea.vmem %s3, %s249
      %s251 = smul.u32 16, %s19
      %v252 = vld [vmem:[%s225] sm:$0xff]
      %v253 = vld [vmem:[%s225 + $0x8] sm:$0xff]
      %v254 = vld [vmem:[%s225 + $0x10] sm:$0xff]
      %v255 = vld [vmem:[%s225 + $0x18] sm:$0xff]
      %v256 = vld [vmem:[%s225 + $0x20] sm:$0xff]
      %v257 = vld [vmem:[%s225 + $0x28] sm:$0xff]
      %v258 = vld [vmem:[%s225 + $0x30] sm:$0xff]
      %v259 = vld [vmem:[%s225 + $0x38] sm:$0xff]
      %v260 = vld [vmem:[%s225 + $0x40] sm:$0xff]
      %v261 = vld [vmem:[%s225 + $0x48] sm:$0xff]
      %v262 = vld [vmem:[%s225 + $0x50] sm:$0xff]
      %v263 = vld [vmem:[%s225 + $0x58] sm:$0xff]
      %v264 = vld [vmem:[%s225 + $0x60] sm:$0xff]
      %v265 = vld [vmem:[%s225 + $0x68] sm:$0xff]
      %v266 = vld [vmem:[%s225 + $0x70] sm:$0xff]
      %v267 = vld [vmem:[%s225 + $0x78] sm:$0xff]
      %v268 = vld [vmem:[%s235] sm:$0xff]
      %v269 = vld [vmem:[%s235 + $0x8] sm:$0xff]
      %v270 = vld [vmem:[%s235 + $0x10] sm:$0xff]
      %v271 = vld [vmem:[%s235 + $0x18] sm:$0xff]
      %v272 = vld [vmem:[%s235 + $0x20] sm:$0xff]
      %v273 = vld [vmem:[%s235 + $0x28] sm:$0xff]
      %v274 = vld [vmem:[%s235 + $0x30] sm:$0xff]
      %v275 = vld [vmem:[%s235 + $0x38] sm:$0xff]
      %v276 = vld [vmem:[%s235 + $0x40] sm:$0xff]
      %v277 = vld [vmem:[%s235 + $0x48] sm:$0xff]
      %v278 = vld [vmem:[%s235 + $0x50] sm:$0xff]
      %v279 = vld [vmem:[%s235 + $0x58] sm:$0xff]
      %v280 = vld [vmem:[%s235 + $0x60] sm:$0xff]
      %v281 = vld [vmem:[%s235 + $0x68] sm:$0xff]
      %v282 = vld [vmem:[%s235 + $0x70] sm:$0xff]
      %v283 = vld [vmem:[%s235 + $0x78] sm:$0xff]
      %v284 = vmul.f32 %v268, 0.21875
      %v285 = vmul.f32 %v269, 0.21875
      %v286 = vmul.f32 %v270, 0.21875
      %v287 = vmul.f32 %v271, 0.21875
      %v288 = vmul.f32 %v272, 0.21875
      %v289 = vmul.f32 %v273, 0.21875
      %v290 = vmul.f32 %v274, 0.21875
      %v291 = vmul.f32 %v275, 0.21875
      %v292 = vmul.f32 %v276, 0.21875
      %v293 = vmul.f32 %v277, 0.21875
      %v294 = vmul.f32 %v278, 0.21875
      %v295 = vmul.f32 %v279, 0.21875
      %v296 = vmul.f32 %v280, 0.21875
      %v297 = vmul.f32 %v281, 0.21875
      %v298 = vmul.f32 %v282, 0.21875
      %v299 = vmul.f32 %v283, 0.21875
      %v300 = vadd.f32 %v252, %v284
      %v301 = vadd.f32 %v253, %v285
      %v302 = vadd.f32 %v254, %v286
      %v303 = vadd.f32 %v255, %v287
      %v304 = vadd.f32 %v256, %v288
      %v305 = vadd.f32 %v257, %v289
      %v306 = vadd.f32 %v258, %v290
      %v307 = vadd.f32 %v259, %v291
      %v308 = vadd.f32 %v260, %v292
      %v309 = vadd.f32 %v261, %v293
      %v310 = vadd.f32 %v262, %v294
      %v311 = vadd.f32 %v263, %v295
      %v312 = vadd.f32 %v264, %v296
      %v313 = vadd.f32 %v265, %v297
      %v314 = vadd.f32 %v266, %v298
      %v315 = vadd.f32 %v267, %v299
      %v316 = vfloor.f32 %v300
      %v317 = vfloor.f32 %v301
      %v318 = vfloor.f32 %v302
      %v319 = vfloor.f32 %v303
      %v320 = vfloor.f32 %v304
      %v321 = vfloor.f32 %v305
      %v322 = vfloor.f32 %v306
      %v323 = vfloor.f32 %v307
      %v324 = vfloor.f32 %v308
      %v325 = vfloor.f32 %v309
      %v326 = vfloor.f32 %v310
      %v327 = vfloor.f32 %v311
      %v328 = vfloor.f32 %v312
      %v329 = vfloor.f32 %v313
      %v330 = vfloor.f32 %v314
      %v331 = vfloor.f32 %v315
      %v332 = vsub.f32 %v300, %v316
      %v333 = vsub.f32 %v301, %v317
      %v334 = vsub.f32 %v302, %v318
      %v335 = vsub.f32 %v303, %v319
      %v336 = vsub.f32 %v304, %v320
      %v337 = vsub.f32 %v305, %v321
      %v338 = vsub.f32 %v306, %v322
      %v339 = vsub.f32 %v307, %v323
      %v340 = vsub.f32 %v308, %v324
      %v341 = vsub.f32 %v309, %v325
      %v342 = vsub.f32 %v310, %v326
      %v343 = vsub.f32 %v311, %v327
      %v344 = vsub.f32 %v312, %v328
      %v345 = vsub.f32 %v313, %v329
      %v346 = vsub.f32 %v314, %v330
      %v347 = vsub.f32 %v315, %v331
      %v348 = vcvt.f32.s32.to.zero.pseudo %v316
      %v349 = vcvt.f32.s32.to.zero.pseudo %v317
      %v350 = vcvt.f32.s32.to.zero.pseudo %v318
      %v351 = vcvt.f32.s32.to.zero.pseudo %v319
      %v352 = vcvt.f32.s32.to.zero.pseudo %v320
      %v353 = vcvt.f32.s32.to.zero.pseudo %v321
      %v354 = vcvt.f32.s32.to.zero.pseudo %v322
      %v355 = vcvt.f32.s32.to.zero.pseudo %v323
      %v356 = vcvt.f32.s32.to.zero.pseudo %v324
      %v357 = vcvt.f32.s32.to.zero.pseudo %v325
      %v358 = vcvt.f32.s32.to.zero.pseudo %v326
      %v359 = vcvt.f32.s32.to.zero.pseudo %v327
      %v360 = vcvt.f32.s32.to.zero.pseudo %v328
      %v361 = vcvt.f32.s32.to.zero.pseudo %v329
      %v362 = vcvt.f32.s32.to.zero.pseudo %v330
      %v363 = vcvt.f32.s32.to.zero.pseudo %v331
      %v364 = vadd.s32 %v348, 1
      %v365 = vadd.s32 %v349, 1
      %v366 = vadd.s32 %v350, 1
      %v367 = vadd.s32 %v351, 1
      %v368 = vadd.s32 %v352, 1
      %v369 = vadd.s32 %v353, 1
      %v370 = vadd.s32 %v354, 1
      %v371 = vadd.s32 %v355, 1
      %v372 = vadd.s32 %v356, 1
      %v373 = vadd.s32 %v357, 1
      %v374 = vadd.s32 %v358, 1
      %v375 = vadd.s32 %v359, 1
      %v376 = vadd.s32 %v360, 1
      %v377 = vadd.s32 %v361, 1
      %v378 = vadd.s32 %v362, 1
      %v379 = vadd.s32 %v363, 1
      %v380 = vlaneseq
      %v381 = vand.u32 %v380, 127
      %v382 = vsub.f32 1.0, %v332
      %v383 = vsub.f32 1.0, %v333
      %v384 = vsub.f32 1.0, %v334
      %v385 = vsub.f32 1.0, %v335
      %v386 = vsub.f32 1.0, %v336
      %v387 = vsub.f32 1.0, %v337
      %v388 = vsub.f32 1.0, %v338
      %v389 = vsub.f32 1.0, %v339
      %v390 = vsub.f32 1.0, %v340
      %v391 = vsub.f32 1.0, %v341
      %v392 = vsub.f32 1.0, %v342
      %v393 = vsub.f32 1.0, %v343
      %v394 = vsub.f32 1.0, %v344
      %v395 = vsub.f32 1.0, %v345
      %v396 = vsub.f32 1.0, %v346
      %v397 = vsub.f32 1.0, %v347
      %414 = vrot.lane.b32.xlu0 %v382, 127
      %v415 = vpop.permute.xlu0 %414
      %416 = vrot.lane.b32.xlu0 %v383, 127
      %v417 = vpop.permute.xlu0 %416
      %418 = vrot.lane.b32.xlu0 %v384, 127
      %v419 = vpop.permute.xlu0 %418
      %420 = vrot.lane.b32.xlu0 %v385, 127
      %v421 = vpop.permute.xlu0 %420
      %422 = vrot.lane.b32.xlu0 %v386, 127
      %v423 = vpop.permute.xlu0 %422
      %424 = vrot.lane.b32.xlu0 %v387, 127
      %v425 = vpop.permute.xlu0 %424
      %426 = vrot.lane.b32.xlu0 %v388, 127
      %v427 = vpop.permute.xlu0 %426
      %428 = vrot.lane.b32.xlu0 %v389, 127
      %v429 = vpop.permute.xlu0 %428
      %430 = vrot.lane.b32.xlu0 %v390, 127
      %v431 = vpop.permute.xlu0 %430
      %432 = vrot.lane.b32.xlu0 %v391, 127
      %v433 = vpop.permute.xlu0 %432
      %434 = vrot.lane.b32.xlu0 %v392, 127
      %v435 = vpop.permute.xlu0 %434
      %436 = vrot.lane.b32.xlu0 %v393, 127
      %v437 = vpop.permute.xlu0 %436
      %438 = vrot.lane.b32.xlu0 %v394, 127
      %v439 = vpop.permute.xlu0 %438
      %440 = vrot.lane.b32.xlu0 %v395, 127
      %v441 = vpop.permute.xlu0 %440
      %442 = vrot.lane.b32.xlu0 %v396, 127
      %v443 = vpop.permute.xlu0 %442
      %444 = vrot.lane.b32.xlu0 %v397, 127
      %v445 = vpop.permute.xlu0 %444
      %v462 = vmul.f32 %v382, %v415
      %v463 = vmul.f32 %v383, %v417
      %v464 = vmul.f32 %v384, %v419
      %v465 = vmul.f32 %v385, %v421
      %v466 = vmul.f32 %v386, %v423
      %v467 = vmul.f32 %v387, %v425
      %v468 = vmul.f32 %v388, %v427
      %v469 = vmul.f32 %v389, %v429
      %v470 = vmul.f32 %v390, %v431
      %v471 = vmul.f32 %v391, %v433
      %v472 = vmul.f32 %v392, %v435
      %v473 = vmul.f32 %v393, %v437
      %v474 = vmul.f32 %v394, %v439
      %v475 = vmul.f32 %v395, %v441
      %v476 = vmul.f32 %v396, %v443
      %v477 = vmul.f32 %v397, %v445
      %vm478 = vcmp.ge.s32.totalorder %v348, 0
      %vm479 = vcmp.ge.s32.totalorder %v349, 0
      %vm480 = vcmp.ge.s32.totalorder %v350, 0
      %vm481 = vcmp.ge.s32.totalorder %v351, 0
      %vm482 = vcmp.ge.s32.totalorder %v352, 0
      %vm483 = vcmp.ge.s32.totalorder %v353, 0
      %vm484 = vcmp.ge.s32.totalorder %v354, 0
      %vm485 = vcmp.ge.s32.totalorder %v355, 0
      %vm486 = vcmp.ge.s32.totalorder %v356, 0
      %vm487 = vcmp.ge.s32.totalorder %v357, 0
      %vm488 = vcmp.ge.s32.totalorder %v358, 0
      %vm489 = vcmp.ge.s32.totalorder %v359, 0
      %vm490 = vcmp.ge.s32.totalorder %v360, 0
      %vm491 = vcmp.ge.s32.totalorder %v361, 0
      %vm492 = vcmp.ge.s32.totalorder %v362, 0
      %vm493 = vcmp.ge.s32.totalorder %v363, 0
      %vm494 = vcmp.lt.s32.totalorder %v348, 8
      %vm495 = vcmp.lt.s32.totalorder %v349, 8
      %vm496 = vcmp.lt.s32.totalorder %v350, 8
      %vm497 = vcmp.lt.s32.totalorder %v351, 8
      %vm498 = vcmp.lt.s32.totalorder %v352, 8
      %vm499 = vcmp.lt.s32.totalorder %v353, 8
      %vm500 = vcmp.lt.s32.totalorder %v354, 8
      %vm501 = vcmp.lt.s32.totalorder %v355, 8
      %vm502 = vcmp.lt.s32.totalorder %v356, 8
      %vm503 = vcmp.lt.s32.totalorder %v357, 8
      %vm504 = vcmp.lt.s32.totalorder %v358, 8
      %vm505 = vcmp.lt.s32.totalorder %v359, 8
      %vm506 = vcmp.lt.s32.totalorder %v360, 8
      %vm507 = vcmp.lt.s32.totalorder %v361, 8
      %vm508 = vcmp.lt.s32.totalorder %v362, 8
      %vm509 = vcmp.lt.s32.totalorder %v363, 8
      %vm510 = vmand %vm478, %vm494
      %vm511 = vmand %vm479, %vm495
      %vm512 = vmand %vm480, %vm496
      %vm513 = vmand %vm481, %vm497
      %vm514 = vmand %vm482, %vm498
      %vm515 = vmand %vm483, %vm499
      %vm516 = vmand %vm484, %vm500
      %vm517 = vmand %vm485, %vm501
      %vm518 = vmand %vm486, %vm502
      %vm519 = vmand %vm487, %vm503
      %vm520 = vmand %vm488, %vm504
      %vm521 = vmand %vm489, %vm505
      %vm522 = vmand %vm490, %vm506
      %vm523 = vmand %vm491, %vm507
      %vm524 = vmand %vm492, %vm508
      %vm525 = vmand %vm493, %vm509
      %v526 = vsel %vm478, 1, 0
      %v527 = vsel %vm479, 1, 0
      %v528 = vsel %vm480, 1, 0
      %v529 = vsel %vm481, 1, 0
      %v530 = vsel %vm482, 1, 0
      %v531 = vsel %vm483, 1, 0
      %v532 = vsel %vm484, 1, 0
      %v533 = vsel %vm485, 1, 0
      %v534 = vsel %vm486, 1, 0
      %v535 = vsel %vm487, 1, 0
      %v536 = vsel %vm488, 1, 0
      %v537 = vsel %vm489, 1, 0
      %v538 = vsel %vm490, 1, 0
      %v539 = vsel %vm491, 1, 0
      %v540 = vsel %vm492, 1, 0
      %v541 = vsel %vm493, 1, 0
      %542 = vrot.lane.b32.xlu0 %v526, 127
      %v543 = vpop.permute.xlu0 %542
      %544 = vrot.lane.b32.xlu0 %v527, 127
      %v545 = vpop.permute.xlu0 %544
      %546 = vrot.lane.b32.xlu0 %v528, 127
      %v547 = vpop.permute.xlu0 %546
      %548 = vrot.lane.b32.xlu0 %v529, 127
      %v549 = vpop.permute.xlu0 %548
      %550 = vrot.lane.b32.xlu0 %v530, 127
      %v551 = vpop.permute.xlu0 %550
      %552 = vrot.lane.b32.xlu0 %v531, 127
      %v553 = vpop.permute.xlu0 %552
      %554 = vrot.lane.b32.xlu0 %v532, 127
      %v555 = vpop.permute.xlu0 %554
      %556 = vrot.lane.b32.xlu0 %v533, 127
      %v557 = vpop.permute.xlu0 %556
      %558 = vrot.lane.b32.xlu0 %v534, 127
      %v559 = vpop.permute.xlu0 %558
      %560 = vrot.lane.b32.xlu0 %v535, 127
      %v561 = vpop.permute.xlu0 %560
      %562 = vrot.lane.b32.xlu0 %v536, 127
      %v563 = vpop.permute.xlu0 %562
      %564 = vrot.lane.b32.xlu0 %v537, 127
      %v565 = vpop.permute.xlu0 %564
      %566 = vrot.lane.b32.xlu0 %v538, 127
      %v567 = vpop.permute.xlu0 %566
      %568 = vrot.lane.b32.xlu0 %v539, 127
      %v569 = vpop.permute.xlu0 %568
      %570 = vrot.lane.b32.xlu0 %v540, 127
      %v571 = vpop.permute.xlu0 %570
      %572 = vrot.lane.b32.xlu0 %v541, 127
      %v573 = vpop.permute.xlu0 %572
      %vm574 = vcmp.ne.s32.totalorder %v543, 0
      %vm575 = vcmp.ne.s32.totalorder %v545, 0
      %vm576 = vcmp.ne.s32.totalorder %v547, 0
      %vm577 = vcmp.ne.s32.totalorder %v549, 0
      %vm578 = vcmp.ne.s32.totalorder %v551, 0
      %vm579 = vcmp.ne.s32.totalorder %v553, 0
      %vm580 = vcmp.ne.s32.totalorder %v555, 0
      %vm581 = vcmp.ne.s32.totalorder %v557, 0
      %vm582 = vcmp.ne.s32.totalorder %v559, 0
      %vm583 = vcmp.ne.s32.totalorder %v561, 0
      %vm584 = vcmp.ne.s32.totalorder %v563, 0
      %vm585 = vcmp.ne.s32.totalorder %v565, 0
      %vm586 = vcmp.ne.s32.totalorder %v567, 0
      %vm587 = vcmp.ne.s32.totalorder %v569, 0
      %vm588 = vcmp.ne.s32.totalorder %v571, 0
      %vm589 = vcmp.ne.s32.totalorder %v573, 0
      %vm590 = vmand %vm510, %vm574
      %vm591 = vmand %vm511, %vm575
      %vm592 = vmand %vm512, %vm576
      %vm593 = vmand %vm513, %vm577
      %vm594 = vmand %vm514, %vm578
      %vm595 = vmand %vm515, %vm579
      %vm596 = vmand %vm516, %vm580
      %vm597 = vmand %vm517, %vm581
      %vm598 = vmand %vm518, %vm582
      %vm599 = vmand %vm519, %vm583
      %vm600 = vmand %vm520, %vm584
      %vm601 = vmand %vm521, %vm585
      %vm602 = vmand %vm522, %vm586
      %vm603 = vmand %vm523, %vm587
      %vm604 = vmand %vm524, %vm588
      %vm605 = vmand %vm525, %vm589
      %v606 = vsel %vm494, 1, 0
      %v607 = vsel %vm495, 1, 0
      %v608 = vsel %vm496, 1, 0
      %v609 = vsel %vm497, 1, 0
      %v610 = vsel %vm498, 1, 0
      %v611 = vsel %vm499, 1, 0
      %v612 = vsel %vm500, 1, 0
      %v613 = vsel %vm501, 1, 0
      %v614 = vsel %vm502, 1, 0
      %v615 = vsel %vm503, 1, 0
      %v616 = vsel %vm504, 1, 0
      %v617 = vsel %vm505, 1, 0
      %v618 = vsel %vm506, 1, 0
      %v619 = vsel %vm507, 1, 0
      %v620 = vsel %vm508, 1, 0
      %v621 = vsel %vm509, 1, 0
      %622 = vrot.lane.b32.xlu0 %v606, 127
      %v623 = vpop.permute.xlu0 %622
      %624 = vrot.lane.b32.xlu0 %v607, 127
      %v625 = vpop.permute.xlu0 %624
      %626 = vrot.lane.b32.xlu0 %v608, 127
      %v627 = vpop.permute.xlu0 %626
      %628 = vrot.lane.b32.xlu0 %v609, 127
      %v629 = vpop.permute.xlu0 %628
      %630 = vrot.lane.b32.xlu0 %v610, 127
      %v631 = vpop.permute.xlu0 %630
      %632 = vrot.lane.b32.xlu0 %v611, 127
      %v633 = vpop.permute.xlu0 %632
      %634 = vrot.lane.b32.xlu0 %v612, 127
      %v635 = vpop.permute.xlu0 %634
      %636 = vrot.lane.b32.xlu0 %v613, 127
      %v637 = vpop.permute.xlu0 %636
      %638 = vrot.lane.b32.xlu0 %v614, 127
      %v639 = vpop.permute.xlu0 %638
      %640 = vrot.lane.b32.xlu0 %v615, 127
      %v641 = vpop.permute.xlu0 %640
      %642 = vrot.lane.b32.xlu0 %v616, 127
      %v643 = vpop.permute.xlu0 %642
      %644 = vrot.lane.b32.xlu0 %v617, 127
      %v645 = vpop.permute.xlu0 %644
      %646 = vrot.lane.b32.xlu0 %v618, 127
      %v647 = vpop.permute.xlu0 %646
      %648 = vrot.lane.b32.xlu0 %v619, 127
      %v649 = vpop.permute.xlu0 %648
      %650 = vrot.lane.b32.xlu0 %v620, 127
      %v651 = vpop.permute.xlu0 %650
      %652 = vrot.lane.b32.xlu0 %v621, 127
      %v653 = vpop.permute.xlu0 %652
      %vm654 = vcmp.ne.s32.totalorder %v623, 0
      %vm655 = vcmp.ne.s32.totalorder %v625, 0
      %vm656 = vcmp.ne.s32.totalorder %v627, 0
      %vm657 = vcmp.ne.s32.totalorder %v629, 0
      %vm658 = vcmp.ne.s32.totalorder %v631, 0
      %vm659 = vcmp.ne.s32.totalorder %v633, 0
      %vm660 = vcmp.ne.s32.totalorder %v635, 0
      %vm661 = vcmp.ne.s32.totalorder %v637, 0
      %vm662 = vcmp.ne.s32.totalorder %v639, 0
      %vm663 = vcmp.ne.s32.totalorder %v641, 0
      %vm664 = vcmp.ne.s32.totalorder %v643, 0
      %vm665 = vcmp.ne.s32.totalorder %v645, 0
      %vm666 = vcmp.ne.s32.totalorder %v647, 0
      %vm667 = vcmp.ne.s32.totalorder %v649, 0
      %vm668 = vcmp.ne.s32.totalorder %v651, 0
      %vm669 = vcmp.ne.s32.totalorder %v653, 0
      %vm670 = vmand %vm590, %vm654
      %vm671 = vmand %vm591, %vm655
      %vm672 = vmand %vm592, %vm656
      %vm673 = vmand %vm593, %vm657
      %vm674 = vmand %vm594, %vm658
      %vm675 = vmand %vm595, %vm659
      %vm676 = vmand %vm596, %vm660
      %vm677 = vmand %vm597, %vm661
      %vm678 = vmand %vm598, %vm662
      %vm679 = vmand %vm599, %vm663
      %vm680 = vmand %vm600, %vm664
      %vm681 = vmand %vm601, %vm665
      %vm682 = vmand %vm602, %vm666
      %vm683 = vmand %vm603, %vm667
      %vm684 = vmand %vm604, %vm668
      %vm685 = vmand %vm605, %vm669
      %v686 = vsel %vm670, 1, 0
      %v687 = vsel %vm671, 1, 0
      %v688 = vsel %vm672, 1, 0
      %v689 = vsel %vm673, 1, 0
      %v690 = vsel %vm674, 1, 0
      %v691 = vsel %vm675, 1, 0
      %v692 = vsel %vm676, 1, 0
      %v693 = vsel %vm677, 1, 0
      %v694 = vsel %vm678, 1, 0
      %v695 = vsel %vm679, 1, 0
      %v696 = vsel %vm680, 1, 0
      %v697 = vsel %vm681, 1, 0
      %v698 = vsel %vm682, 1, 0
      %v699 = vsel %vm683, 1, 0
      %v700 = vsel %vm684, 1, 0
      %v701 = vsel %vm685, 1, 0
      %v702 = vcvt.s32.f32 %v686
      %v703 = vcvt.s32.f32 %v687
      %v704 = vcvt.s32.f32 %v688
      %v705 = vcvt.s32.f32 %v689
      %v706 = vcvt.s32.f32 %v690
      %v707 = vcvt.s32.f32 %v691
      %v708 = vcvt.s32.f32 %v692
      %v709 = vcvt.s32.f32 %v693
      %v710 = vcvt.s32.f32 %v694
      %v711 = vcvt.s32.f32 %v695
      %v712 = vcvt.s32.f32 %v696
      %v713 = vcvt.s32.f32 %v697
      %v714 = vcvt.s32.f32 %v698
      %v715 = vcvt.s32.f32 %v699
      %v716 = vcvt.s32.f32 %v700
      %v717 = vcvt.s32.f32 %v701
      %v718 = vmul.u32 %v348, 8
      %v719 = vmul.u32 %v349, 8
      %v720 = vmul.u32 %v350, 8
      %v721 = vmul.u32 %v351, 8
      %v722 = vmul.u32 %v352, 8
      %v723 = vmul.u32 %v353, 8
      %v724 = vmul.u32 %v354, 8
      %v725 = vmul.u32 %v355, 8
      %v726 = vmul.u32 %v356, 8
      %v727 = vmul.u32 %v357, 8
      %v728 = vmul.u32 %v358, 8
      %v729 = vmul.u32 %v359, 8
      %v730 = vmul.u32 %v360, 8
      %v731 = vmul.u32 %v361, 8
      %v732 = vmul.u32 %v362, 8
      %v733 = vmul.u32 %v363, 8
      %734 = vrot.lane.b32.xlu0 %v348, 1
      %v735 = vpop.permute.xlu0 %734
      %736 = vrot.lane.b32.xlu0 %v349, 1
      %v737 = vpop.permute.xlu0 %736
      %738 = vrot.lane.b32.xlu0 %v350, 1
      %v739 = vpop.permute.xlu0 %738
      %740 = vrot.lane.b32.xlu0 %v351, 1
      %v741 = vpop.permute.xlu0 %740
      %742 = vrot.lane.b32.xlu0 %v352, 1
      %v743 = vpop.permute.xlu0 %742
      %744 = vrot.lane.b32.xlu0 %v353, 1
      %v745 = vpop.permute.xlu0 %744
      %746 = vrot.lane.b32.xlu0 %v354, 1
      %v747 = vpop.permute.xlu0 %746
      %748 = vrot.lane.b32.xlu0 %v355, 1
      %v749 = vpop.permute.xlu0 %748
      %750 = vrot.lane.b32.xlu0 %v356, 1
      %v751 = vpop.permute.xlu0 %750
      %752 = vrot.lane.b32.xlu0 %v357, 1
      %v753 = vpop.permute.xlu0 %752
      %754 = vrot.lane.b32.xlu0 %v358, 1
      %v755 = vpop.permute.xlu0 %754
      %756 = vrot.lane.b32.xlu0 %v359, 1
      %v757 = vpop.permute.xlu0 %756
      %758 = vrot.lane.b32.xlu0 %v360, 1
      %v759 = vpop.permute.xlu0 %758
      %760 = vrot.lane.b32.xlu0 %v361, 1
      %v761 = vpop.permute.xlu0 %760
      %762 = vrot.lane.b32.xlu0 %v362, 1
      %v763 = vpop.permute.xlu0 %762
      %764 = vrot.lane.b32.xlu0 %v363, 1
      %v765 = vpop.permute.xlu0 %764
      %v766 = vadd.s32 %v718, %v735
      %v767 = vadd.s32 %v719, %v737
      %v768 = vadd.s32 %v720, %v739
      %v769 = vadd.s32 %v721, %v741
      %v770 = vadd.s32 %v722, %v743
      %v771 = vadd.s32 %v723, %v745
      %v772 = vadd.s32 %v724, %v747
      %v773 = vadd.s32 %v725, %v749
      %v774 = vadd.s32 %v726, %v751
      %v775 = vadd.s32 %v727, %v753
      %v776 = vadd.s32 %v728, %v755
      %v777 = vadd.s32 %v729, %v757
      %v778 = vadd.s32 %v730, %v759
      %v779 = vadd.s32 %v731, %v761
      %v780 = vadd.s32 %v732, %v763
      %v781 = vadd.s32 %v733, %v765
      %782 = vset.pattern.permute.xlu0 1
      %783 = vperm.xlu0 %782, %v766
      %v784 = vpop.permute.xlu0 %783
      %785 = vset.pattern.permute.xlu0 1
      %786 = vperm.xlu0 %785, %v767
      %v787 = vpop.permute.xlu0 %786
      %788 = vset.pattern.permute.xlu0 1
      %789 = vperm.xlu0 %788, %v768
      %v790 = vpop.permute.xlu0 %789
      %791 = vset.pattern.permute.xlu0 1
      %792 = vperm.xlu0 %791, %v769
      %v793 = vpop.permute.xlu0 %792
      %794 = vset.pattern.permute.xlu0 1
      %795 = vperm.xlu0 %794, %v770
      %v796 = vpop.permute.xlu0 %795
      %797 = vset.pattern.permute.xlu0 1
      %798 = vperm.xlu0 %797, %v771
      %v799 = vpop.permute.xlu0 %798
      %800 = vset.pattern.permute.xlu0 1
      %801 = vperm.xlu0 %800, %v772
      %v802 = vpop.permute.xlu0 %801
      %803 = vset.pattern.permute.xlu0 1
      %804 = vperm.xlu0 %803, %v773
      %v805 = vpop.permute.xlu0 %804
      %806 = vset.pattern.permute.xlu0 1
      %807 = vperm.xlu0 %806, %v774
      %v808 = vpop.permute.xlu0 %807
      %809 = vset.pattern.permute.xlu0 1
      %810 = vperm.xlu0 %809, %v775
      %v811 = vpop.permute.xlu0 %810
      %812 = vset.pattern.permute.xlu0 1
      %813 = vperm.xlu0 %812, %v776
      %v814 = vpop.permute.xlu0 %813
      %815 = vset.pattern.permute.xlu0 1
      %816 = vperm.xlu0 %815, %v777
      %v817 = vpop.permute.xlu0 %816
      %818 = vset.pattern.permute.xlu0 1
      %819 = vperm.xlu0 %818, %v778
      %v820 = vpop.permute.xlu0 %819
      %821 = vset.pattern.permute.xlu0 1
      %822 = vperm.xlu0 %821, %v779
      %v823 = vpop.permute.xlu0 %822
      %824 = vset.pattern.permute.xlu0 1
      %825 = vperm.xlu0 %824, %v780
      %v826 = vpop.permute.xlu0 %825
      %827 = vset.pattern.permute.xlu0 1
      %828 = vperm.xlu0 %827, %v781
      %v829 = vpop.permute.xlu0 %828
      %vm830 = vcmp.eq.s32.totalorder %v381, %v784
      %vm831 = vcmp.eq.s32.totalorder %v381, %v787
      %vm832 = vcmp.eq.s32.totalorder %v381, %v790
      %vm833 = vcmp.eq.s32.totalorder %v381, %v793
      %vm834 = vcmp.eq.s32.totalorder %v381, %v796
      %vm835 = vcmp.eq.s32.totalorder %v381, %v799
      %vm836 = vcmp.eq.s32.totalorder %v381, %v802
      %vm837 = vcmp.eq.s32.totalorder %v381, %v805
      %vm838 = vcmp.eq.s32.totalorder %v381, %v808
      %vm839 = vcmp.eq.s32.totalorder %v381, %v811
      %vm840 = vcmp.eq.s32.totalorder %v381, %v814
      %vm841 = vcmp.eq.s32.totalorder %v381, %v817
      %vm842 = vcmp.eq.s32.totalorder %v381, %v820
      %vm843 = vcmp.eq.s32.totalorder %v381, %v823
      %vm844 = vcmp.eq.s32.totalorder %v381, %v826
      %vm845 = vcmp.eq.s32.totalorder %v381, %v829
      %v846 = vsel %vm830, 1, 0
      %v847 = vsel %vm831, 1, 0
      %v848 = vsel %vm832, 1, 0
      %v849 = vsel %vm833, 1, 0
      %v850 = vsel %vm834, 1, 0
      %v851 = vsel %vm835, 1, 0
      %v852 = vsel %vm836, 1, 0
      %v853 = vsel %vm837, 1, 0
      %v854 = vsel %vm838, 1, 0
      %v855 = vsel %vm839, 1, 0
      %v856 = vsel %vm840, 1, 0
      %v857 = vsel %vm841, 1, 0
      %v858 = vsel %vm842, 1, 0
      %v859 = vsel %vm843, 1, 0
      %v860 = vsel %vm844, 1, 0
      %v861 = vsel %vm845, 1, 0
      %v862 = vcvt.s32.f32 %v846
      %v863 = vcvt.s32.f32 %v847
      %v864 = vcvt.s32.f32 %v848
      %v865 = vcvt.s32.f32 %v849
      %v866 = vcvt.s32.f32 %v850
      %v867 = vcvt.s32.f32 %v851
      %v868 = vcvt.s32.f32 %v852
      %v869 = vcvt.s32.f32 %v853
      %v870 = vcvt.s32.f32 %v854
      %v871 = vcvt.s32.f32 %v855
      %v872 = vcvt.s32.f32 %v856
      %v873 = vcvt.s32.f32 %v857
      %v874 = vcvt.s32.f32 %v858
      %v875 = vcvt.s32.f32 %v859
      %v876 = vcvt.s32.f32 %v860
      %v877 = vcvt.s32.f32 %v861
      %v878 = vmul.f32 %v462, %v702
      %v879 = vmul.f32 %v463, %v703
      %v880 = vmul.f32 %v464, %v704
      %v881 = vmul.f32 %v465, %v705
      %v882 = vmul.f32 %v466, %v706
      %v883 = vmul.f32 %v467, %v707
      %v884 = vmul.f32 %v468, %v708
      %v885 = vmul.f32 %v469, %v709
      %v886 = vmul.f32 %v470, %v710
      %v887 = vmul.f32 %v471, %v711
      %v888 = vmul.f32 %v472, %v712
      %v889 = vmul.f32 %v473, %v713
      %v890 = vmul.f32 %v474, %v714
      %v891 = vmul.f32 %v475, %v715
      %v892 = vmul.f32 %v476, %v716
      %v893 = vmul.f32 %v477, %v717
      %895 = vset.pattern.permute.xlu0 0
      %896 = vperm.xlu0 %895, %v878
      %v897 = vpop.permute.xlu0 %896
      %900 = vset.pattern.permute.xlu0 0
      %901 = vperm.xlu0 %900, %v879
      %v902 = vpop.permute.xlu0 %901
      %905 = vset.pattern.permute.xlu0 0
      %906 = vperm.xlu0 %905, %v880
      %v907 = vpop.permute.xlu0 %906
      %910 = vset.pattern.permute.xlu0 0
      %911 = vperm.xlu0 %910, %v881
      %v912 = vpop.permute.xlu0 %911
      %915 = vset.pattern.permute.xlu0 0
      %916 = vperm.xlu0 %915, %v882
      %v917 = vpop.permute.xlu0 %916
      %920 = vset.pattern.permute.xlu0 0
      %921 = vperm.xlu0 %920, %v883
      %v922 = vpop.permute.xlu0 %921
      %925 = vset.pattern.permute.xlu0 0
      %926 = vperm.xlu0 %925, %v884
      %v927 = vpop.permute.xlu0 %926
      %930 = vset.pattern.permute.xlu0 0
      %931 = vperm.xlu0 %930, %v885
      %v932 = vpop.permute.xlu0 %931
      %935 = vset.pattern.permute.xlu0 0
      %936 = vperm.xlu0 %935, %v886
      %v937 = vpop.permute.xlu0 %936
      %940 = vset.pattern.permute.xlu0 0
      %941 = vperm.xlu0 %940, %v887
      %v942 = vpop.permute.xlu0 %941
      %945 = vset.pattern.permute.xlu0 0
      %946 = vperm.xlu0 %945, %v888
      %v947 = vpop.permute.xlu0 %946
      %950 = vset.pattern.permute.xlu0 0
      %951 = vperm.xlu0 %950, %v889
      %v952 = vpop.permute.xlu0 %951
      %955 = vset.pattern.permute.xlu0 0
      %956 = vperm.xlu0 %955, %v890
      %v957 = vpop.permute.xlu0 %956
      %960 = vset.pattern.permute.xlu0 0
      %961 = vperm.xlu0 %960, %v891
      %v962 = vpop.permute.xlu0 %961
      %965 = vset.pattern.permute.xlu0 0
      %966 = vperm.xlu0 %965, %v892
      %v967 = vpop.permute.xlu0 %966
      %970 = vset.pattern.permute.xlu0 0
      %971 = vperm.xlu0 %970, %v893
      %v972 = vpop.permute.xlu0 %971
      %v974 = vmul.f32 %v862, %v897
      %v975 = vmul.f32 %v863, %v902
      %v976 = vmul.f32 %v864, %v907
      %v977 = vmul.f32 %v865, %v912
      %v978 = vmul.f32 %v866, %v917
      %v979 = vmul.f32 %v867, %v922
      %v980 = vmul.f32 %v868, %v927
      %v981 = vmul.f32 %v869, %v932
      %v982 = vmul.f32 %v870, %v937
      %v983 = vmul.f32 %v871, %v942
      %v984 = vmul.f32 %v872, %v947
      %v985 = vmul.f32 %v873, %v952
      %v986 = vmul.f32 %v874, %v957
      %v987 = vmul.f32 %v875, %v962
      %v988 = vmul.f32 %v876, %v967
      %v989 = vmul.f32 %v877, %v972
      %v990 = vmul.f32 %v332, %v415
      %v991 = vmul.f32 %v333, %v417
      %v992 = vmul.f32 %v334, %v419
      %v993 = vmul.f32 %v335, %v421
      %v994 = vmul.f32 %v336, %v423
      %v995 = vmul.f32 %v337, %v425
      %v996 = vmul.f32 %v338, %v427
      %v997 = vmul.f32 %v339, %v429
      %v998 = vmul.f32 %v340, %v431
      %v999 = vmul.f32 %v341, %v433
      %v1000 = vmul.f32 %v342, %v435
      %v1001 = vmul.f32 %v343, %v437
      %v1002 = vmul.f32 %v344, %v439
      %v1003 = vmul.f32 %v345, %v441
      %v1004 = vmul.f32 %v346, %v443
      %v1005 = vmul.f32 %v347, %v445
      %vm1006 = vcmp.ge.s32.totalorder %v364, 0
      %vm1007 = vcmp.ge.s32.totalorder %v365, 0
      %vm1008 = vcmp.ge.s32.totalorder %v366, 0
      %vm1009 = vcmp.ge.s32.totalorder %v367, 0
      %vm1010 = vcmp.ge.s32.totalorder %v368, 0
      %vm1011 = vcmp.ge.s32.totalorder %v369, 0
      %vm1012 = vcmp.ge.s32.totalorder %v370, 0
      %vm1013 = vcmp.ge.s32.totalorder %v371, 0
      %vm1014 = vcmp.ge.s32.totalorder %v372, 0
      %vm1015 = vcmp.ge.s32.totalorder %v373, 0
      %vm1016 = vcmp.ge.s32.totalorder %v374, 0
      %vm1017 = vcmp.ge.s32.totalorder %v375, 0
      %vm1018 = vcmp.ge.s32.totalorder %v376, 0
      %vm1019 = vcmp.ge.s32.totalorder %v377, 0
      %vm1020 = vcmp.ge.s32.totalorder %v378, 0
      %vm1021 = vcmp.ge.s32.totalorder %v379, 0
      %vm1022 = vcmp.lt.s32.totalorder %v364, 8
      %vm1023 = vcmp.lt.s32.totalorder %v365, 8
      %vm1024 = vcmp.lt.s32.totalorder %v366, 8
      %vm1025 = vcmp.lt.s32.totalorder %v367, 8
      %vm1026 = vcmp.lt.s32.totalorder %v368, 8
      %vm1027 = vcmp.lt.s32.totalorder %v369, 8
      %vm1028 = vcmp.lt.s32.totalorder %v370, 8
      %vm1029 = vcmp.lt.s32.totalorder %v371, 8
      %vm1030 = vcmp.lt.s32.totalorder %v372, 8
      %vm1031 = vcmp.lt.s32.totalorder %v373, 8
      %vm1032 = vcmp.lt.s32.totalorder %v374, 8
      %vm1033 = vcmp.lt.s32.totalorder %v375, 8
      %vm1034 = vcmp.lt.s32.totalorder %v376, 8
      %vm1035 = vcmp.lt.s32.totalorder %v377, 8
      %vm1036 = vcmp.lt.s32.totalorder %v378, 8
      %vm1037 = vcmp.lt.s32.totalorder %v379, 8
      %vm1038 = vmand %vm1006, %vm1022
      %vm1039 = vmand %vm1007, %vm1023
      %vm1040 = vmand %vm1008, %vm1024
      %vm1041 = vmand %vm1009, %vm1025
      %vm1042 = vmand %vm1010, %vm1026
      %vm1043 = vmand %vm1011, %vm1027
      %vm1044 = vmand %vm1012, %vm1028
      %vm1045 = vmand %vm1013, %vm1029
      %vm1046 = vmand %vm1014, %vm1030
      %vm1047 = vmand %vm1015, %vm1031
      %vm1048 = vmand %vm1016, %vm1032
      %vm1049 = vmand %vm1017, %vm1033
      %vm1050 = vmand %vm1018, %vm1034
      %vm1051 = vmand %vm1019, %vm1035
      %vm1052 = vmand %vm1020, %vm1036
      %vm1053 = vmand %vm1021, %vm1037
      %vm1054 = vmand %vm1038, %vm574
      %vm1055 = vmand %vm1039, %vm575
      %vm1056 = vmand %vm1040, %vm576
      %vm1057 = vmand %vm1041, %vm577
      %vm1058 = vmand %vm1042, %vm578
      %vm1059 = vmand %vm1043, %vm579
      %vm1060 = vmand %vm1044, %vm580
      %vm1061 = vmand %vm1045, %vm581
      %vm1062 = vmand %vm1046, %vm582
      %vm1063 = vmand %vm1047, %vm583
      %vm1064 = vmand %vm1048, %vm584
      %vm1065 = vmand %vm1049, %vm585
      %vm1066 = vmand %vm1050, %vm586
      %vm1067 = vmand %vm1051, %vm587
      %vm1068 = vmand %vm1052, %vm588
      %vm1069 = vmand %vm1053, %vm589
      %vm1070 = vmand %vm1054, %vm654
      %vm1071 = vmand %vm1055, %vm655
      %vm1072 = vmand %vm1056, %vm656
      %vm1073 = vmand %vm1057, %vm657
      %vm1074 = vmand %vm1058, %vm658
      %vm1075 = vmand %vm1059, %vm659
      %vm1076 = vmand %vm1060, %vm660
      %vm1077 = vmand %vm1061, %vm661
      %vm1078 = vmand %vm1062, %vm662
      %vm1079 = vmand %vm1063, %vm663
      %vm1080 = vmand %vm1064, %vm664
      %vm1081 = vmand %vm1065, %vm665
      %vm1082 = vmand %vm1066, %vm666
      %vm1083 = vmand %vm1067, %vm667
      %vm1084 = vmand %vm1068, %vm668
      %vm1085 = vmand %vm1069, %vm669
      %v1086 = vsel %vm1070, 1, 0
      %v1087 = vsel %vm1071, 1, 0
      %v1088 = vsel %vm1072, 1, 0
      %v1089 = vsel %vm1073, 1, 0
      %v1090 = vsel %vm1074, 1, 0
      %v1091 = vsel %vm1075, 1, 0
      %v1092 = vsel %vm1076, 1, 0
      %v1093 = vsel %vm1077, 1, 0
      %v1094 = vsel %vm1078, 1, 0
      %v1095 = vsel %vm1079, 1, 0
      %v1096 = vsel %vm1080, 1, 0
      %v1097 = vsel %vm1081, 1, 0
      %v1098 = vsel %vm1082, 1, 0
      %v1099 = vsel %vm1083, 1, 0
      %v1100 = vsel %vm1084, 1, 0
      %v1101 = vsel %vm1085, 1, 0
      %v1102 = vcvt.s32.f32 %v1086
      %v1103 = vcvt.s32.f32 %v1087
      %v1104 = vcvt.s32.f32 %v1088
      %v1105 = vcvt.s32.f32 %v1089
      %v1106 = vcvt.s32.f32 %v1090
      %v1107 = vcvt.s32.f32 %v1091
      %v1108 = vcvt.s32.f32 %v1092
      %v1109 = vcvt.s32.f32 %v1093
      %v1110 = vcvt.s32.f32 %v1094
      %v1111 = vcvt.s32.f32 %v1095
      %v1112 = vcvt.s32.f32 %v1096
      %v1113 = vcvt.s32.f32 %v1097
      %v1114 = vcvt.s32.f32 %v1098
      %v1115 = vcvt.s32.f32 %v1099
      %v1116 = vcvt.s32.f32 %v1100
      %v1117 = vcvt.s32.f32 %v1101
      %1118 = vrot.lane.b32.xlu0 %v364, 1
      %v1119 = vpop.permute.xlu0 %1118
      %1120 = vrot.lane.b32.xlu0 %v365, 1
      %v1121 = vpop.permute.xlu0 %1120
      %1122 = vrot.lane.b32.xlu0 %v366, 1
      %v1123 = vpop.permute.xlu0 %1122
      %1124 = vrot.lane.b32.xlu0 %v367, 1
      %v1125 = vpop.permute.xlu0 %1124
      %1126 = vrot.lane.b32.xlu0 %v368, 1
      %v1127 = vpop.permute.xlu0 %1126
      %1128 = vrot.lane.b32.xlu0 %v369, 1
      %v1129 = vpop.permute.xlu0 %1128
      %1130 = vrot.lane.b32.xlu0 %v370, 1
      %v1131 = vpop.permute.xlu0 %1130
      %1132 = vrot.lane.b32.xlu0 %v371, 1
      %v1133 = vpop.permute.xlu0 %1132
      %1134 = vrot.lane.b32.xlu0 %v372, 1
      %v1135 = vpop.permute.xlu0 %1134
      %1136 = vrot.lane.b32.xlu0 %v373, 1
      %v1137 = vpop.permute.xlu0 %1136
      %1138 = vrot.lane.b32.xlu0 %v374, 1
      %v1139 = vpop.permute.xlu0 %1138
      %1140 = vrot.lane.b32.xlu0 %v375, 1
      %v1141 = vpop.permute.xlu0 %1140
      %1142 = vrot.lane.b32.xlu0 %v376, 1
      %v1143 = vpop.permute.xlu0 %1142
      %1144 = vrot.lane.b32.xlu0 %v377, 1
      %v1145 = vpop.permute.xlu0 %1144
      %1146 = vrot.lane.b32.xlu0 %v378, 1
      %v1147 = vpop.permute.xlu0 %1146
      %1148 = vrot.lane.b32.xlu0 %v379, 1
      %v1149 = vpop.permute.xlu0 %1148
      %v1150 = vadd.s32 %v718, %v1119
      %v1151 = vadd.s32 %v719, %v1121
      %v1152 = vadd.s32 %v720, %v1123
      %v1153 = vadd.s32 %v721, %v1125
      %v1154 = vadd.s32 %v722, %v1127
      %v1155 = vadd.s32 %v723, %v1129
      %v1156 = vadd.s32 %v724, %v1131
      %v1157 = vadd.s32 %v725, %v1133
      %v1158 = vadd.s32 %v726, %v1135
      %v1159 = vadd.s32 %v727, %v1137
      %v1160 = vadd.s32 %v728, %v1139
      %v1161 = vadd.s32 %v729, %v1141
      %v1162 = vadd.s32 %v730, %v1143
      %v1163 = vadd.s32 %v731, %v1145
      %v1164 = vadd.s32 %v732, %v1147
      %v1165 = vadd.s32 %v733, %v1149
      %1166 = vset.pattern.permute.xlu0 1
      %1167 = vperm.xlu0 %1166, %v1150
      %v1168 = vpop.permute.xlu0 %1167
      %1169 = vset.pattern.permute.xlu0 1
      %1170 = vperm.xlu0 %1169, %v1151
      %v1171 = vpop.permute.xlu0 %1170
      %1172 = vset.pattern.permute.xlu0 1
      %1173 = vperm.xlu0 %1172, %v1152
      %v1174 = vpop.permute.xlu0 %1173
      %1175 = vset.pattern.permute.xlu0 1
      %1176 = vperm.xlu0 %1175, %v1153
      %v1177 = vpop.permute.xlu0 %1176
      %1178 = vset.pattern.permute.xlu0 1
      %1179 = vperm.xlu0 %1178, %v1154
      %v1180 = vpop.permute.xlu0 %1179
      %1181 = vset.pattern.permute.xlu0 1
      %1182 = vperm.xlu0 %1181, %v1155
      %v1183 = vpop.permute.xlu0 %1182
      %1184 = vset.pattern.permute.xlu0 1
      %1185 = vperm.xlu0 %1184, %v1156
      %v1186 = vpop.permute.xlu0 %1185
      %1187 = vset.pattern.permute.xlu0 1
      %1188 = vperm.xlu0 %1187, %v1157
      %v1189 = vpop.permute.xlu0 %1188
      %1190 = vset.pattern.permute.xlu0 1
      %1191 = vperm.xlu0 %1190, %v1158
      %v1192 = vpop.permute.xlu0 %1191
      %1193 = vset.pattern.permute.xlu0 1
      %1194 = vperm.xlu0 %1193, %v1159
      %v1195 = vpop.permute.xlu0 %1194
      %1196 = vset.pattern.permute.xlu0 1
      %1197 = vperm.xlu0 %1196, %v1160
      %v1198 = vpop.permute.xlu0 %1197
      %1199 = vset.pattern.permute.xlu0 1
      %1200 = vperm.xlu0 %1199, %v1161
      %v1201 = vpop.permute.xlu0 %1200
      %1202 = vset.pattern.permute.xlu0 1
      %1203 = vperm.xlu0 %1202, %v1162
      %v1204 = vpop.permute.xlu0 %1203
      %1205 = vset.pattern.permute.xlu0 1
      %1206 = vperm.xlu0 %1205, %v1163
      %v1207 = vpop.permute.xlu0 %1206
      %1208 = vset.pattern.permute.xlu0 1
      %1209 = vperm.xlu0 %1208, %v1164
      %v1210 = vpop.permute.xlu0 %1209
      %1211 = vset.pattern.permute.xlu0 1
      %1212 = vperm.xlu0 %1211, %v1165
      %v1213 = vpop.permute.xlu0 %1212
      %vm1214 = vcmp.eq.s32.totalorder %v381, %v1168
      %vm1215 = vcmp.eq.s32.totalorder %v381, %v1171
      %vm1216 = vcmp.eq.s32.totalorder %v381, %v1174
      %vm1217 = vcmp.eq.s32.totalorder %v381, %v1177
      %vm1218 = vcmp.eq.s32.totalorder %v381, %v1180
      %vm1219 = vcmp.eq.s32.totalorder %v381, %v1183
      %vm1220 = vcmp.eq.s32.totalorder %v381, %v1186
      %vm1221 = vcmp.eq.s32.totalorder %v381, %v1189
      %vm1222 = vcmp.eq.s32.totalorder %v381, %v1192
      %vm1223 = vcmp.eq.s32.totalorder %v381, %v1195
      %vm1224 = vcmp.eq.s32.totalorder %v381, %v1198
      %vm1225 = vcmp.eq.s32.totalorder %v381, %v1201
      %vm1226 = vcmp.eq.s32.totalorder %v381, %v1204
      %vm1227 = vcmp.eq.s32.totalorder %v381, %v1207
      %vm1228 = vcmp.eq.s32.totalorder %v381, %v1210
      %vm1229 = vcmp.eq.s32.totalorder %v381, %v1213
      %v1230 = vsel %vm1214, 1, 0
      %v1231 = vsel %vm1215, 1, 0
      %v1232 = vsel %vm1216, 1, 0
      %v1233 = vsel %vm1217, 1, 0
      %v1234 = vsel %vm1218, 1, 0
      %v1235 = vsel %vm1219, 1, 0
      %v1236 = vsel %vm1220, 1, 0
      %v1237 = vsel %vm1221, 1, 0
      %v1238 = vsel %vm1222, 1, 0
      %v1239 = vsel %vm1223, 1, 0
      %v1240 = vsel %vm1224, 1, 0
      %v1241 = vsel %vm1225, 1, 0
      %v1242 = vsel %vm1226, 1, 0
      %v1243 = vsel %vm1227, 1, 0
      %v1244 = vsel %vm1228, 1, 0
      %v1245 = vsel %vm1229, 1, 0
      %v1246 = vcvt.s32.f32 %v1230
      %v1247 = vcvt.s32.f32 %v1231
      %v1248 = vcvt.s32.f32 %v1232
      %v1249 = vcvt.s32.f32 %v1233
      %v1250 = vcvt.s32.f32 %v1234
      %v1251 = vcvt.s32.f32 %v1235
      %v1252 = vcvt.s32.f32 %v1236
      %v1253 = vcvt.s32.f32 %v1237
      %v1254 = vcvt.s32.f32 %v1238
      %v1255 = vcvt.s32.f32 %v1239
      %v1256 = vcvt.s32.f32 %v1240
      %v1257 = vcvt.s32.f32 %v1241
      %v1258 = vcvt.s32.f32 %v1242
      %v1259 = vcvt.s32.f32 %v1243
      %v1260 = vcvt.s32.f32 %v1244
      %v1261 = vcvt.s32.f32 %v1245
      %v1262 = vmul.f32 %v990, %v1102
      %v1263 = vmul.f32 %v991, %v1103
      %v1264 = vmul.f32 %v992, %v1104
      %v1265 = vmul.f32 %v993, %v1105
      %v1266 = vmul.f32 %v994, %v1106
      %v1267 = vmul.f32 %v995, %v1107
      %v1268 = vmul.f32 %v996, %v1108
      %v1269 = vmul.f32 %v997, %v1109
      %v1270 = vmul.f32 %v998, %v1110
      %v1271 = vmul.f32 %v999, %v1111
      %v1272 = vmul.f32 %v1000, %v1112
      %v1273 = vmul.f32 %v1001, %v1113
      %v1274 = vmul.f32 %v1002, %v1114
      %v1275 = vmul.f32 %v1003, %v1115
      %v1276 = vmul.f32 %v1004, %v1116
      %v1277 = vmul.f32 %v1005, %v1117
      %1279 = vset.pattern.permute.xlu0 0
      %1280 = vperm.xlu0 %1279, %v1262
      %v1281 = vpop.permute.xlu0 %1280
      %1284 = vset.pattern.permute.xlu0 0
      %1285 = vperm.xlu0 %1284, %v1263
      %v1286 = vpop.permute.xlu0 %1285
      %1289 = vset.pattern.permute.xlu0 0
      %1290 = vperm.xlu0 %1289, %v1264
      %v1291 = vpop.permute.xlu0 %1290
      %1294 = vset.pattern.permute.xlu0 0
      %1295 = vperm.xlu0 %1294, %v1265
      %v1296 = vpop.permute.xlu0 %1295
      %1299 = vset.pattern.permute.xlu0 0
      %1300 = vperm.xlu0 %1299, %v1266
      %v1301 = vpop.permute.xlu0 %1300
      %1304 = vset.pattern.permute.xlu0 0
      %1305 = vperm.xlu0 %1304, %v1267
      %v1306 = vpop.permute.xlu0 %1305
      %1309 = vset.pattern.permute.xlu0 0
      %1310 = vperm.xlu0 %1309, %v1268
      %v1311 = vpop.permute.xlu0 %1310
      %1314 = vset.pattern.permute.xlu0 0
      %1315 = vperm.xlu0 %1314, %v1269
      %v1316 = vpop.permute.xlu0 %1315
      %1319 = vset.pattern.permute.xlu0 0
      %1320 = vperm.xlu0 %1319, %v1270
      %v1321 = vpop.permute.xlu0 %1320
      %1324 = vset.pattern.permute.xlu0 0
      %1325 = vperm.xlu0 %1324, %v1271
      %v1326 = vpop.permute.xlu0 %1325
      %1329 = vset.pattern.permute.xlu0 0
      %1330 = vperm.xlu0 %1329, %v1272
      %v1331 = vpop.permute.xlu0 %1330
      %1334 = vset.pattern.permute.xlu0 0
      %1335 = vperm.xlu0 %1334, %v1273
      %v1336 = vpop.permute.xlu0 %1335
      %1339 = vset.pattern.permute.xlu0 0
      %1340 = vperm.xlu0 %1339, %v1274
      %v1341 = vpop.permute.xlu0 %1340
      %1344 = vset.pattern.permute.xlu0 0
      %1345 = vperm.xlu0 %1344, %v1275
      %v1346 = vpop.permute.xlu0 %1345
      %1349 = vset.pattern.permute.xlu0 0
      %1350 = vperm.xlu0 %1349, %v1276
      %v1351 = vpop.permute.xlu0 %1350
      %1354 = vset.pattern.permute.xlu0 0
      %1355 = vperm.xlu0 %1354, %v1277
      %v1356 = vpop.permute.xlu0 %1355
      %v1358 = vmul.f32 %v1246, %v1281
      %v1359 = vmul.f32 %v1247, %v1286
      %v1360 = vmul.f32 %v1248, %v1291
      %v1361 = vmul.f32 %v1249, %v1296
      %v1362 = vmul.f32 %v1250, %v1301
      %v1363 = vmul.f32 %v1251, %v1306
      %v1364 = vmul.f32 %v1252, %v1311
      %v1365 = vmul.f32 %v1253, %v1316
      %v1366 = vmul.f32 %v1254, %v1321
      %v1367 = vmul.f32 %v1255, %v1326
      %v1368 = vmul.f32 %v1256, %v1331
      %v1369 = vmul.f32 %v1257, %v1336
      %v1370 = vmul.f32 %v1258, %v1341
      %v1371 = vmul.f32 %v1259, %v1346
      %v1372 = vmul.f32 %v1260, %v1351
      %v1373 = vmul.f32 %v1261, %v1356
      %v1374 = vadd.f32 %v974, %v1358
      %v1375 = vadd.f32 %v975, %v1359
      %v1376 = vadd.f32 %v976, %v1360
      %v1377 = vadd.f32 %v977, %v1361
      %v1378 = vadd.f32 %v978, %v1362
      %v1379 = vadd.f32 %v979, %v1363
      %v1380 = vadd.f32 %v980, %v1364
      %v1381 = vadd.f32 %v981, %v1365
      %v1382 = vadd.f32 %v982, %v1366
      %v1383 = vadd.f32 %v983, %v1367
      %v1384 = vadd.f32 %v984, %v1368
      %v1385 = vadd.f32 %v985, %v1369
      %v1386 = vadd.f32 %v986, %v1370
      %v1387 = vadd.f32 %v987, %v1371
      %v1388 = vadd.f32 %v988, %v1372
      %v1389 = vadd.f32 %v989, %v1373
      %1406 = vrot.lane.b32.xlu0 %v332, 127
      %v1407 = vpop.permute.xlu0 %1406
      %1408 = vrot.lane.b32.xlu0 %v333, 127
      %v1409 = vpop.permute.xlu0 %1408
      %1410 = vrot.lane.b32.xlu0 %v334, 127
      %v1411 = vpop.permute.xlu0 %1410
      %1412 = vrot.lane.b32.xlu0 %v335, 127
      %v1413 = vpop.permute.xlu0 %1412
      %1414 = vrot.lane.b32.xlu0 %v336, 127
      %v1415 = vpop.permute.xlu0 %1414
      %1416 = vrot.lane.b32.xlu0 %v337, 127
      %v1417 = vpop.permute.xlu0 %1416
      %1418 = vrot.lane.b32.xlu0 %v338, 127
      %v1419 = vpop.permute.xlu0 %1418
      %1420 = vrot.lane.b32.xlu0 %v339, 127
      %v1421 = vpop.permute.xlu0 %1420
      %1422 = vrot.lane.b32.xlu0 %v340, 127
      %v1423 = vpop.permute.xlu0 %1422
      %1424 = vrot.lane.b32.xlu0 %v341, 127
      %v1425 = vpop.permute.xlu0 %1424
      %1426 = vrot.lane.b32.xlu0 %v342, 127
      %v1427 = vpop.permute.xlu0 %1426
      %1428 = vrot.lane.b32.xlu0 %v343, 127
      %v1429 = vpop.permute.xlu0 %1428
      %1430 = vrot.lane.b32.xlu0 %v344, 127
      %v1431 = vpop.permute.xlu0 %1430
      %1432 = vrot.lane.b32.xlu0 %v345, 127
      %v1433 = vpop.permute.xlu0 %1432
      %1434 = vrot.lane.b32.xlu0 %v346, 127
      %v1435 = vpop.permute.xlu0 %1434
      %1436 = vrot.lane.b32.xlu0 %v347, 127
      %v1437 = vpop.permute.xlu0 %1436
      %v1454 = vmul.f32 %v382, %v1407
      %v1455 = vmul.f32 %v383, %v1409
      %v1456 = vmul.f32 %v384, %v1411
      %v1457 = vmul.f32 %v385, %v1413
      %v1458 = vmul.f32 %v386, %v1415
      %v1459 = vmul.f32 %v387, %v1417
      %v1460 = vmul.f32 %v388, %v1419
      %v1461 = vmul.f32 %v389, %v1421
      %v1462 = vmul.f32 %v390, %v1423
      %v1463 = vmul.f32 %v391, %v1425
      %v1464 = vmul.f32 %v392, %v1427
      %v1465 = vmul.f32 %v393, %v1429
      %v1466 = vmul.f32 %v394, %v1431
      %v1467 = vmul.f32 %v395, %v1433
      %v1468 = vmul.f32 %v396, %v1435
      %v1469 = vmul.f32 %v397, %v1437
      %v1470 = vsel %vm1006, 1, 0
      %v1471 = vsel %vm1007, 1, 0
      %v1472 = vsel %vm1008, 1, 0
      %v1473 = vsel %vm1009, 1, 0
      %v1474 = vsel %vm1010, 1, 0
      %v1475 = vsel %vm1011, 1, 0
      %v1476 = vsel %vm1012, 1, 0
      %v1477 = vsel %vm1013, 1, 0
      %v1478 = vsel %vm1014, 1, 0
      %v1479 = vsel %vm1015, 1, 0
      %v1480 = vsel %vm1016, 1, 0
      %v1481 = vsel %vm1017, 1, 0
      %v1482 = vsel %vm1018, 1, 0
      %v1483 = vsel %vm1019, 1, 0
      %v1484 = vsel %vm1020, 1, 0
      %v1485 = vsel %vm1021, 1, 0
      %1486 = vrot.lane.b32.xlu0 %v1470, 127
      %v1487 = vpop.permute.xlu0 %1486
      %1488 = vrot.lane.b32.xlu0 %v1471, 127
      %v1489 = vpop.permute.xlu0 %1488
      %1490 = vrot.lane.b32.xlu0 %v1472, 127
      %v1491 = vpop.permute.xlu0 %1490
      %1492 = vrot.lane.b32.xlu0 %v1473, 127
      %v1493 = vpop.permute.xlu0 %1492
      %1494 = vrot.lane.b32.xlu0 %v1474, 127
      %v1495 = vpop.permute.xlu0 %1494
      %1496 = vrot.lane.b32.xlu0 %v1475, 127
      %v1497 = vpop.permute.xlu0 %1496
      %1498 = vrot.lane.b32.xlu0 %v1476, 127
      %v1499 = vpop.permute.xlu0 %1498
      %1500 = vrot.lane.b32.xlu0 %v1477, 127
      %v1501 = vpop.permute.xlu0 %1500
      %1502 = vrot.lane.b32.xlu0 %v1478, 127
      %v1503 = vpop.permute.xlu0 %1502
      %1504 = vrot.lane.b32.xlu0 %v1479, 127
      %v1505 = vpop.permute.xlu0 %1504
      %1506 = vrot.lane.b32.xlu0 %v1480, 127
      %v1507 = vpop.permute.xlu0 %1506
      %1508 = vrot.lane.b32.xlu0 %v1481, 127
      %v1509 = vpop.permute.xlu0 %1508
      %1510 = vrot.lane.b32.xlu0 %v1482, 127
      %v1511 = vpop.permute.xlu0 %1510
      %1512 = vrot.lane.b32.xlu0 %v1483, 127
      %v1513 = vpop.permute.xlu0 %1512
      %1514 = vrot.lane.b32.xlu0 %v1484, 127
      %v1515 = vpop.permute.xlu0 %1514
      %1516 = vrot.lane.b32.xlu0 %v1485, 127
      %v1517 = vpop.permute.xlu0 %1516
      %vm1518 = vcmp.ne.s32.totalorder %v1487, 0
      %vm1519 = vcmp.ne.s32.totalorder %v1489, 0
      %vm1520 = vcmp.ne.s32.totalorder %v1491, 0
      %vm1521 = vcmp.ne.s32.totalorder %v1493, 0
      %vm1522 = vcmp.ne.s32.totalorder %v1495, 0
      %vm1523 = vcmp.ne.s32.totalorder %v1497, 0
      %vm1524 = vcmp.ne.s32.totalorder %v1499, 0
      %vm1525 = vcmp.ne.s32.totalorder %v1501, 0
      %vm1526 = vcmp.ne.s32.totalorder %v1503, 0
      %vm1527 = vcmp.ne.s32.totalorder %v1505, 0
      %vm1528 = vcmp.ne.s32.totalorder %v1507, 0
      %vm1529 = vcmp.ne.s32.totalorder %v1509, 0
      %vm1530 = vcmp.ne.s32.totalorder %v1511, 0
      %vm1531 = vcmp.ne.s32.totalorder %v1513, 0
      %vm1532 = vcmp.ne.s32.totalorder %v1515, 0
      %vm1533 = vcmp.ne.s32.totalorder %v1517, 0
      %vm1534 = vmand %vm510, %vm1518
      %vm1535 = vmand %vm511, %vm1519
      %vm1536 = vmand %vm512, %vm1520
      %vm1537 = vmand %vm513, %vm1521
      %vm1538 = vmand %vm514, %vm1522
      %vm1539 = vmand %vm515, %vm1523
      %vm1540 = vmand %vm516, %vm1524
      %vm1541 = vmand %vm517, %vm1525
      %vm1542 = vmand %vm518, %vm1526
      %vm1543 = vmand %vm519, %vm1527
      %vm1544 = vmand %vm520, %vm1528
      %vm1545 = vmand %vm521, %vm1529
      %vm1546 = vmand %vm522, %vm1530
      %vm1547 = vmand %vm523, %vm1531
      %vm1548 = vmand %vm524, %vm1532
      %vm1549 = vmand %vm525, %vm1533
      %v1550 = vsel %vm1022, 1, 0
      %v1551 = vsel %vm1023, 1, 0
      %v1552 = vsel %vm1024, 1, 0
      %v1553 = vsel %vm1025, 1, 0
      %v1554 = vsel %vm1026, 1, 0
      %v1555 = vsel %vm1027, 1, 0
      %v1556 = vsel %vm1028, 1, 0
      %v1557 = vsel %vm1029, 1, 0
      %v1558 = vsel %vm1030, 1, 0
      %v1559 = vsel %vm1031, 1, 0
      %v1560 = vsel %vm1032, 1, 0
      %v1561 = vsel %vm1033, 1, 0
      %v1562 = vsel %vm1034, 1, 0
      %v1563 = vsel %vm1035, 1, 0
      %v1564 = vsel %vm1036, 1, 0
      %v1565 = vsel %vm1037, 1, 0
      %1566 = vrot.lane.b32.xlu0 %v1550, 127
      %v1567 = vpop.permute.xlu0 %1566
      %1568 = vrot.lane.b32.xlu0 %v1551, 127
      %v1569 = vpop.permute.xlu0 %1568
      %1570 = vrot.lane.b32.xlu0 %v1552, 127
      %v1571 = vpop.permute.xlu0 %1570
      %1572 = vrot.lane.b32.xlu0 %v1553, 127
      %v1573 = vpop.permute.xlu0 %1572
      %1574 = vrot.lane.b32.xlu0 %v1554, 127
      %v1575 = vpop.permute.xlu0 %1574
      %1576 = vrot.lane.b32.xlu0 %v1555, 127
      %v1577 = vpop.permute.xlu0 %1576
      %1578 = vrot.lane.b32.xlu0 %v1556, 127
      %v1579 = vpop.permute.xlu0 %1578
      %1580 = vrot.lane.b32.xlu0 %v1557, 127
      %v1581 = vpop.permute.xlu0 %1580
      %1582 = vrot.lane.b32.xlu0 %v1558, 127
      %v1583 = vpop.permute.xlu0 %1582
      %1584 = vrot.lane.b32.xlu0 %v1559, 127
      %v1585 = vpop.permute.xlu0 %1584
      %1586 = vrot.lane.b32.xlu0 %v1560, 127
      %v1587 = vpop.permute.xlu0 %1586
      %1588 = vrot.lane.b32.xlu0 %v1561, 127
      %v1589 = vpop.permute.xlu0 %1588
      %1590 = vrot.lane.b32.xlu0 %v1562, 127
      %v1591 = vpop.permute.xlu0 %1590
      %1592 = vrot.lane.b32.xlu0 %v1563, 127
      %v1593 = vpop.permute.xlu0 %1592
      %1594 = vrot.lane.b32.xlu0 %v1564, 127
      %v1595 = vpop.permute.xlu0 %1594
      %1596 = vrot.lane.b32.xlu0 %v1565, 127
      %v1597 = vpop.permute.xlu0 %1596
      %vm1598 = vcmp.ne.s32.totalorder %v1567, 0
      %vm1599 = vcmp.ne.s32.totalorder %v1569, 0
      %vm1600 = vcmp.ne.s32.totalorder %v1571, 0
      %vm1601 = vcmp.ne.s32.totalorder %v1573, 0
      %vm1602 = vcmp.ne.s32.totalorder %v1575, 0
      %vm1603 = vcmp.ne.s32.totalorder %v1577, 0
      %vm1604 = vcmp.ne.s32.totalorder %v1579, 0
      %vm1605 = vcmp.ne.s32.totalorder %v1581, 0
      %vm1606 = vcmp.ne.s32.totalorder %v1583, 0
      %vm1607 = vcmp.ne.s32.totalorder %v1585, 0
      %vm1608 = vcmp.ne.s32.totalorder %v1587, 0
      %vm1609 = vcmp.ne.s32.totalorder %v1589, 0
      %vm1610 = vcmp.ne.s32.totalorder %v1591, 0
      %vm1611 = vcmp.ne.s32.totalorder %v1593, 0
      %vm1612 = vcmp.ne.s32.totalorder %v1595, 0
      %vm1613 = vcmp.ne.s32.totalorder %v1597, 0
      %vm1614 = vmand %vm1534, %vm1598
      %vm1615 = vmand %vm1535, %vm1599
      %vm1616 = vmand %vm1536, %vm1600
      %vm1617 = vmand %vm1537, %vm1601
      %vm1618 = vmand %vm1538, %vm1602
      %vm1619 = vmand %vm1539, %vm1603
      %vm1620 = vmand %vm1540, %vm1604
      %vm1621 = vmand %vm1541, %vm1605
      %vm1622 = vmand %vm1542, %vm1606
      %vm1623 = vmand %vm1543, %vm1607
      %vm1624 = vmand %vm1544, %vm1608
      %vm1625 = vmand %vm1545, %vm1609
      %vm1626 = vmand %vm1546, %vm1610
      %vm1627 = vmand %vm1547, %vm1611
      %vm1628 = vmand %vm1548, %vm1612
      %vm1629 = vmand %vm1549, %vm1613
      %v1630 = vsel %vm1614, 1, 0
      %v1631 = vsel %vm1615, 1, 0
      %v1632 = vsel %vm1616, 1, 0
      %v1633 = vsel %vm1617, 1, 0
      %v1634 = vsel %vm1618, 1, 0
      %v1635 = vsel %vm1619, 1, 0
      %v1636 = vsel %vm1620, 1, 0
      %v1637 = vsel %vm1621, 1, 0
      %v1638 = vsel %vm1622, 1, 0
      %v1639 = vsel %vm1623, 1, 0
      %v1640 = vsel %vm1624, 1, 0
      %v1641 = vsel %vm1625, 1, 0
      %v1642 = vsel %vm1626, 1, 0
      %v1643 = vsel %vm1627, 1, 0
      %v1644 = vsel %vm1628, 1, 0
      %v1645 = vsel %vm1629, 1, 0
      %v1646 = vcvt.s32.f32 %v1630
      %v1647 = vcvt.s32.f32 %v1631
      %v1648 = vcvt.s32.f32 %v1632
      %v1649 = vcvt.s32.f32 %v1633
      %v1650 = vcvt.s32.f32 %v1634
      %v1651 = vcvt.s32.f32 %v1635
      %v1652 = vcvt.s32.f32 %v1636
      %v1653 = vcvt.s32.f32 %v1637
      %v1654 = vcvt.s32.f32 %v1638
      %v1655 = vcvt.s32.f32 %v1639
      %v1656 = vcvt.s32.f32 %v1640
      %v1657 = vcvt.s32.f32 %v1641
      %v1658 = vcvt.s32.f32 %v1642
      %v1659 = vcvt.s32.f32 %v1643
      %v1660 = vcvt.s32.f32 %v1644
      %v1661 = vcvt.s32.f32 %v1645
      %v1662 = vmul.u32 %v364, 8
      %v1663 = vmul.u32 %v365, 8
      %v1664 = vmul.u32 %v366, 8
      %v1665 = vmul.u32 %v367, 8
      %v1666 = vmul.u32 %v368, 8
      %v1667 = vmul.u32 %v369, 8
      %v1668 = vmul.u32 %v370, 8
      %v1669 = vmul.u32 %v371, 8
      %v1670 = vmul.u32 %v372, 8
      %v1671 = vmul.u32 %v373, 8
      %v1672 = vmul.u32 %v374, 8
      %v1673 = vmul.u32 %v375, 8
      %v1674 = vmul.u32 %v376, 8
      %v1675 = vmul.u32 %v377, 8
      %v1676 = vmul.u32 %v378, 8
      %v1677 = vmul.u32 %v379, 8
      %v1678 = vadd.s32 %v1662, %v735
      %v1679 = vadd.s32 %v1663, %v737
      %v1680 = vadd.s32 %v1664, %v739
      %v1681 = vadd.s32 %v1665, %v741
      %v1682 = vadd.s32 %v1666, %v743
      %v1683 = vadd.s32 %v1667, %v745
      %v1684 = vadd.s32 %v1668, %v747
      %v1685 = vadd.s32 %v1669, %v749
      %v1686 = vadd.s32 %v1670, %v751
      %v1687 = vadd.s32 %v1671, %v753
      %v1688 = vadd.s32 %v1672, %v755
      %v1689 = vadd.s32 %v1673, %v757
      %v1690 = vadd.s32 %v1674, %v759
      %v1691 = vadd.s32 %v1675, %v761
      %v1692 = vadd.s32 %v1676, %v763
      %v1693 = vadd.s32 %v1677, %v765
      %1694 = vset.pattern.permute.xlu0 1
      %1695 = vperm.xlu0 %1694, %v1678
      %v1696 = vpop.permute.xlu0 %1695
      %1697 = vset.pattern.permute.xlu0 1
      %1698 = vperm.xlu0 %1697, %v1679
      %v1699 = vpop.permute.xlu0 %1698
      %1700 = vset.pattern.permute.xlu0 1
      %1701 = vperm.xlu0 %1700, %v1680
      %v1702 = vpop.permute.xlu0 %1701
      %1703 = vset.pattern.permute.xlu0 1
      %1704 = vperm.xlu0 %1703, %v1681
      %v1705 = vpop.permute.xlu0 %1704
      %1706 = vset.pattern.permute.xlu0 1
      %1707 = vperm.xlu0 %1706, %v1682
      %v1708 = vpop.permute.xlu0 %1707
      %1709 = vset.pattern.permute.xlu0 1
      %1710 = vperm.xlu0 %1709, %v1683
      %v1711 = vpop.permute.xlu0 %1710
      %1712 = vset.pattern.permute.xlu0 1
      %1713 = vperm.xlu0 %1712, %v1684
      %v1714 = vpop.permute.xlu0 %1713
      %1715 = vset.pattern.permute.xlu0 1
      %1716 = vperm.xlu0 %1715, %v1685
      %v1717 = vpop.permute.xlu0 %1716
      %1718 = vset.pattern.permute.xlu0 1
      %1719 = vperm.xlu0 %1718, %v1686
      %v1720 = vpop.permute.xlu0 %1719
      %1721 = vset.pattern.permute.xlu0 1
      %1722 = vperm.xlu0 %1721, %v1687
      %v1723 = vpop.permute.xlu0 %1722
      %1724 = vset.pattern.permute.xlu0 1
      %1725 = vperm.xlu0 %1724, %v1688
      %v1726 = vpop.permute.xlu0 %1725
      %1727 = vset.pattern.permute.xlu0 1
      %1728 = vperm.xlu0 %1727, %v1689
      %v1729 = vpop.permute.xlu0 %1728
      %1730 = vset.pattern.permute.xlu0 1
      %1731 = vperm.xlu0 %1730, %v1690
      %v1732 = vpop.permute.xlu0 %1731
      %1733 = vset.pattern.permute.xlu0 1
      %1734 = vperm.xlu0 %1733, %v1691
      %v1735 = vpop.permute.xlu0 %1734
      %1736 = vset.pattern.permute.xlu0 1
      %1737 = vperm.xlu0 %1736, %v1692
      %v1738 = vpop.permute.xlu0 %1737
      %1739 = vset.pattern.permute.xlu0 1
      %1740 = vperm.xlu0 %1739, %v1693
      %v1741 = vpop.permute.xlu0 %1740
      %vm1742 = vcmp.eq.s32.totalorder %v381, %v1696
      %vm1743 = vcmp.eq.s32.totalorder %v381, %v1699
      %vm1744 = vcmp.eq.s32.totalorder %v381, %v1702
      %vm1745 = vcmp.eq.s32.totalorder %v381, %v1705
      %vm1746 = vcmp.eq.s32.totalorder %v381, %v1708
      %vm1747 = vcmp.eq.s32.totalorder %v381, %v1711
      %vm1748 = vcmp.eq.s32.totalorder %v381, %v1714
      %vm1749 = vcmp.eq.s32.totalorder %v381, %v1717
      %vm1750 = vcmp.eq.s32.totalorder %v381, %v1720
      %vm1751 = vcmp.eq.s32.totalorder %v381, %v1723
      %vm1752 = vcmp.eq.s32.totalorder %v381, %v1726
      %vm1753 = vcmp.eq.s32.totalorder %v381, %v1729
      %vm1754 = vcmp.eq.s32.totalorder %v381, %v1732
      %vm1755 = vcmp.eq.s32.totalorder %v381, %v1735
      %vm1756 = vcmp.eq.s32.totalorder %v381, %v1738
      %vm1757 = vcmp.eq.s32.totalorder %v381, %v1741
      %v1758 = vsel %vm1742, 1, 0
      %v1759 = vsel %vm1743, 1, 0
      %v1760 = vsel %vm1744, 1, 0
      %v1761 = vsel %vm1745, 1, 0
      %v1762 = vsel %vm1746, 1, 0
      %v1763 = vsel %vm1747, 1, 0
      %v1764 = vsel %vm1748, 1, 0
      %v1765 = vsel %vm1749, 1, 0
      %v1766 = vsel %vm1750, 1, 0
      %v1767 = vsel %vm1751, 1, 0
      %v1768 = vsel %vm1752, 1, 0
      %v1769 = vsel %vm1753, 1, 0
      %v1770 = vsel %vm1754, 1, 0
      %v1771 = vsel %vm1755, 1, 0
      %v1772 = vsel %vm1756, 1, 0
      %v1773 = vsel %vm1757, 1, 0
      %v1774 = vcvt.s32.f32 %v1758
      %v1775 = vcvt.s32.f32 %v1759
      %v1776 = vcvt.s32.f32 %v1760
      %v1777 = vcvt.s32.f32 %v1761
      %v1778 = vcvt.s32.f32 %v1762
      %v1779 = vcvt.s32.f32 %v1763
      %v1780 = vcvt.s32.f32 %v1764
      %v1781 = vcvt.s32.f32 %v1765
      %v1782 = vcvt.s32.f32 %v1766
      %v1783 = vcvt.s32.f32 %v1767
      %v1784 = vcvt.s32.f32 %v1768
      %v1785 = vcvt.s32.f32 %v1769
      %v1786 = vcvt.s32.f32 %v1770
      %v1787 = vcvt.s32.f32 %v1771
      %v1788 = vcvt.s32.f32 %v1772
      %v1789 = vcvt.s32.f32 %v1773
      %v1790 = vmul.f32 %v1454, %v1646
      %v1791 = vmul.f32 %v1455, %v1647
      %v1792 = vmul.f32 %v1456, %v1648
      %v1793 = vmul.f32 %v1457, %v1649
      %v1794 = vmul.f32 %v1458, %v1650
      %v1795 = vmul.f32 %v1459, %v1651
      %v1796 = vmul.f32 %v1460, %v1652
      %v1797 = vmul.f32 %v1461, %v1653
      %v1798 = vmul.f32 %v1462, %v1654
      %v1799 = vmul.f32 %v1463, %v1655
      %v1800 = vmul.f32 %v1464, %v1656
      %v1801 = vmul.f32 %v1465, %v1657
      %v1802 = vmul.f32 %v1466, %v1658
      %v1803 = vmul.f32 %v1467, %v1659
      %v1804 = vmul.f32 %v1468, %v1660
      %v1805 = vmul.f32 %v1469, %v1661
      %1807 = vset.pattern.permute.xlu0 0
      %1808 = vperm.xlu0 %1807, %v1790
      %v1809 = vpop.permute.xlu0 %1808
      %1812 = vset.pattern.permute.xlu0 0
      %1813 = vperm.xlu0 %1812, %v1791
      %v1814 = vpop.permute.xlu0 %1813
      %1817 = vset.pattern.permute.xlu0 0
      %1818 = vperm.xlu0 %1817, %v1792
      %v1819 = vpop.permute.xlu0 %1818
      %1822 = vset.pattern.permute.xlu0 0
      %1823 = vperm.xlu0 %1822, %v1793
      %v1824 = vpop.permute.xlu0 %1823
      %1827 = vset.pattern.permute.xlu0 0
      %1828 = vperm.xlu0 %1827, %v1794
      %v1829 = vpop.permute.xlu0 %1828
      %1832 = vset.pattern.permute.xlu0 0
      %1833 = vperm.xlu0 %1832, %v1795
      %v1834 = vpop.permute.xlu0 %1833
      %1837 = vset.pattern.permute.xlu0 0
      %1838 = vperm.xlu0 %1837, %v1796
      %v1839 = vpop.permute.xlu0 %1838
      %1842 = vset.pattern.permute.xlu0 0
      %1843 = vperm.xlu0 %1842, %v1797
      %v1844 = vpop.permute.xlu0 %1843
      %1847 = vset.pattern.permute.xlu0 0
      %1848 = vperm.xlu0 %1847, %v1798
      %v1849 = vpop.permute.xlu0 %1848
      %1852 = vset.pattern.permute.xlu0 0
      %1853 = vperm.xlu0 %1852, %v1799
      %v1854 = vpop.permute.xlu0 %1853
      %1857 = vset.pattern.permute.xlu0 0
      %1858 = vperm.xlu0 %1857, %v1800
      %v1859 = vpop.permute.xlu0 %1858
      %1862 = vset.pattern.permute.xlu0 0
      %1863 = vperm.xlu0 %1862, %v1801
      %v1864 = vpop.permute.xlu0 %1863
      %1867 = vset.pattern.permute.xlu0 0
      %1868 = vperm.xlu0 %1867, %v1802
      %v1869 = vpop.permute.xlu0 %1868
      %1872 = vset.pattern.permute.xlu0 0
      %1873 = vperm.xlu0 %1872, %v1803
      %v1874 = vpop.permute.xlu0 %1873
      %1877 = vset.pattern.permute.xlu0 0
      %1878 = vperm.xlu0 %1877, %v1804
      %v1879 = vpop.permute.xlu0 %1878
      %1882 = vset.pattern.permute.xlu0 0
      %1883 = vperm.xlu0 %1882, %v1805
      %v1884 = vpop.permute.xlu0 %1883
      %v1886 = vmul.f32 %v1774, %v1809
      %v1887 = vmul.f32 %v1775, %v1814
      %v1888 = vmul.f32 %v1776, %v1819
      %v1889 = vmul.f32 %v1777, %v1824
      %v1890 = vmul.f32 %v1778, %v1829
      %v1891 = vmul.f32 %v1779, %v1834
      %v1892 = vmul.f32 %v1780, %v1839
      %v1893 = vmul.f32 %v1781, %v1844
      %v1894 = vmul.f32 %v1782, %v1849
      %v1895 = vmul.f32 %v1783, %v1854
      %v1896 = vmul.f32 %v1784, %v1859
      %v1897 = vmul.f32 %v1785, %v1864
      %v1898 = vmul.f32 %v1786, %v1869
      %v1899 = vmul.f32 %v1787, %v1874
      %v1900 = vmul.f32 %v1788, %v1879
      %v1901 = vmul.f32 %v1789, %v1884
      %v1902 = vadd.f32 %v1374, %v1886
      %v1903 = vadd.f32 %v1375, %v1887
      %v1904 = vadd.f32 %v1376, %v1888
      %v1905 = vadd.f32 %v1377, %v1889
      %v1906 = vadd.f32 %v1378, %v1890
      %v1907 = vadd.f32 %v1379, %v1891
      %v1908 = vadd.f32 %v1380, %v1892
      %v1909 = vadd.f32 %v1381, %v1893
      %v1910 = vadd.f32 %v1382, %v1894
      %v1911 = vadd.f32 %v1383, %v1895
      %v1912 = vadd.f32 %v1384, %v1896
      %v1913 = vadd.f32 %v1385, %v1897
      %v1914 = vadd.f32 %v1386, %v1898
      %v1915 = vadd.f32 %v1387, %v1899
      %v1916 = vadd.f32 %v1388, %v1900
      %v1917 = vadd.f32 %v1389, %v1901
      %v1918 = vmul.f32 %v332, %v1407
      %v1919 = vmul.f32 %v333, %v1409
      %v1920 = vmul.f32 %v334, %v1411
      %v1921 = vmul.f32 %v335, %v1413
      %v1922 = vmul.f32 %v336, %v1415
      %v1923 = vmul.f32 %v337, %v1417
      %v1924 = vmul.f32 %v338, %v1419
      %v1925 = vmul.f32 %v339, %v1421
      %v1926 = vmul.f32 %v340, %v1423
      %v1927 = vmul.f32 %v341, %v1425
      %v1928 = vmul.f32 %v342, %v1427
      %v1929 = vmul.f32 %v343, %v1429
      %v1930 = vmul.f32 %v344, %v1431
      %v1931 = vmul.f32 %v345, %v1433
      %v1932 = vmul.f32 %v346, %v1435
      %v1933 = vmul.f32 %v347, %v1437
      %vm1934 = vmand %vm1038, %vm1518
      %vm1935 = vmand %vm1039, %vm1519
      %vm1936 = vmand %vm1040, %vm1520
      %vm1937 = vmand %vm1041, %vm1521
      %vm1938 = vmand %vm1042, %vm1522
      %vm1939 = vmand %vm1043, %vm1523
      %vm1940 = vmand %vm1044, %vm1524
      %vm1941 = vmand %vm1045, %vm1525
      %vm1942 = vmand %vm1046, %vm1526
      %vm1943 = vmand %vm1047, %vm1527
      %vm1944 = vmand %vm1048, %vm1528
      %vm1945 = vmand %vm1049, %vm1529
      %vm1946 = vmand %vm1050, %vm1530
      %vm1947 = vmand %vm1051, %vm1531
      %vm1948 = vmand %vm1052, %vm1532
      %vm1949 = vmand %vm1053, %vm1533
      %vm1950 = vmand %vm1934, %vm1598
      %vm1951 = vmand %vm1935, %vm1599
      %vm1952 = vmand %vm1936, %vm1600
      %vm1953 = vmand %vm1937, %vm1601
      %vm1954 = vmand %vm1938, %vm1602
      %vm1955 = vmand %vm1939, %vm1603
      %vm1956 = vmand %vm1940, %vm1604
      %vm1957 = vmand %vm1941, %vm1605
      %vm1958 = vmand %vm1942, %vm1606
      %vm1959 = vmand %vm1943, %vm1607
      %vm1960 = vmand %vm1944, %vm1608
      %vm1961 = vmand %vm1945, %vm1609
      %vm1962 = vmand %vm1946, %vm1610
      %vm1963 = vmand %vm1947, %vm1611
      %vm1964 = vmand %vm1948, %vm1612
      %vm1965 = vmand %vm1949, %vm1613
      %v1966 = vsel %vm1950, 1, 0
      %v1967 = vsel %vm1951, 1, 0
      %v1968 = vsel %vm1952, 1, 0
      %v1969 = vsel %vm1953, 1, 0
      %v1970 = vsel %vm1954, 1, 0
      %v1971 = vsel %vm1955, 1, 0
      %v1972 = vsel %vm1956, 1, 0
      %v1973 = vsel %vm1957, 1, 0
      %v1974 = vsel %vm1958, 1, 0
      %v1975 = vsel %vm1959, 1, 0
      %v1976 = vsel %vm1960, 1, 0
      %v1977 = vsel %vm1961, 1, 0
      %v1978 = vsel %vm1962, 1, 0
      %v1979 = vsel %vm1963, 1, 0
      %v1980 = vsel %vm1964, 1, 0
      %v1981 = vsel %vm1965, 1, 0
      %v1982 = vcvt.s32.f32 %v1966
      %v1983 = vcvt.s32.f32 %v1967
      %v1984 = vcvt.s32.f32 %v1968
      %v1985 = vcvt.s32.f32 %v1969
      %v1986 = vcvt.s32.f32 %v1970
      %v1987 = vcvt.s32.f32 %v1971
      %v1988 = vcvt.s32.f32 %v1972
      %v1989 = vcvt.s32.f32 %v1973
      %v1990 = vcvt.s32.f32 %v1974
      %v1991 = vcvt.s32.f32 %v1975
      %v1992 = vcvt.s32.f32 %v1976
      %v1993 = vcvt.s32.f32 %v1977
      %v1994 = vcvt.s32.f32 %v1978
      %v1995 = vcvt.s32.f32 %v1979
      %v1996 = vcvt.s32.f32 %v1980
      %v1997 = vcvt.s32.f32 %v1981
      %v1998 = vadd.s32 %v1662, %v1119
      %v1999 = vadd.s32 %v1663, %v1121
      %v2000 = vadd.s32 %v1664, %v1123
      %v2001 = vadd.s32 %v1665, %v1125
      %v2002 = vadd.s32 %v1666, %v1127
      %v2003 = vadd.s32 %v1667, %v1129
      %v2004 = vadd.s32 %v1668, %v1131
      %v2005 = vadd.s32 %v1669, %v1133
      %v2006 = vadd.s32 %v1670, %v1135
      %v2007 = vadd.s32 %v1671, %v1137
      %v2008 = vadd.s32 %v1672, %v1139
      %v2009 = vadd.s32 %v1673, %v1141
      %v2010 = vadd.s32 %v1674, %v1143
      %v2011 = vadd.s32 %v1675, %v1145
      %v2012 = vadd.s32 %v1676, %v1147
      %v2013 = vadd.s32 %v1677, %v1149
      %2014 = vset.pattern.permute.xlu0 1
      %2015 = vperm.xlu0 %2014, %v1998
      %v2016 = vpop.permute.xlu0 %2015
      %2017 = vset.pattern.permute.xlu0 1
      %2018 = vperm.xlu0 %2017, %v1999
      %v2019 = vpop.permute.xlu0 %2018
      %2020 = vset.pattern.permute.xlu0 1
      %2021 = vperm.xlu0 %2020, %v2000
      %v2022 = vpop.permute.xlu0 %2021
      %2023 = vset.pattern.permute.xlu0 1
      %2024 = vperm.xlu0 %2023, %v2001
      %v2025 = vpop.permute.xlu0 %2024
      %2026 = vset.pattern.permute.xlu0 1
      %2027 = vperm.xlu0 %2026, %v2002
      %v2028 = vpop.permute.xlu0 %2027
      %2029 = vset.pattern.permute.xlu0 1
      %2030 = vperm.xlu0 %2029, %v2003
      %v2031 = vpop.permute.xlu0 %2030
      %2032 = vset.pattern.permute.xlu0 1
      %2033 = vperm.xlu0 %2032, %v2004
      %v2034 = vpop.permute.xlu0 %2033
      %2035 = vset.pattern.permute.xlu0 1
      %2036 = vperm.xlu0 %2035, %v2005
      %v2037 = vpop.permute.xlu0 %2036
      %2038 = vset.pattern.permute.xlu0 1
      %2039 = vperm.xlu0 %2038, %v2006
      %v2040 = vpop.permute.xlu0 %2039
      %2041 = vset.pattern.permute.xlu0 1
      %2042 = vperm.xlu0 %2041, %v2007
      %v2043 = vpop.permute.xlu0 %2042
      %2044 = vset.pattern.permute.xlu0 1
      %2045 = vperm.xlu0 %2044, %v2008
      %v2046 = vpop.permute.xlu0 %2045
      %2047 = vset.pattern.permute.xlu0 1
      %2048 = vperm.xlu0 %2047, %v2009
      %v2049 = vpop.permute.xlu0 %2048
      %2050 = vset.pattern.permute.xlu0 1
      %2051 = vperm.xlu0 %2050, %v2010
      %v2052 = vpop.permute.xlu0 %2051
      %2053 = vset.pattern.permute.xlu0 1
      %2054 = vperm.xlu0 %2053, %v2011
      %v2055 = vpop.permute.xlu0 %2054
      %2056 = vset.pattern.permute.xlu0 1
      %2057 = vperm.xlu0 %2056, %v2012
      %v2058 = vpop.permute.xlu0 %2057
      %2059 = vset.pattern.permute.xlu0 1
      %2060 = vperm.xlu0 %2059, %v2013
      %v2061 = vpop.permute.xlu0 %2060
      %vm2062 = vcmp.eq.s32.totalorder %v381, %v2016
      %vm2063 = vcmp.eq.s32.totalorder %v381, %v2019
      %vm2064 = vcmp.eq.s32.totalorder %v381, %v2022
      %vm2065 = vcmp.eq.s32.totalorder %v381, %v2025
      %vm2066 = vcmp.eq.s32.totalorder %v381, %v2028
      %vm2067 = vcmp.eq.s32.totalorder %v381, %v2031
      %vm2068 = vcmp.eq.s32.totalorder %v381, %v2034
      %vm2069 = vcmp.eq.s32.totalorder %v381, %v2037
      %vm2070 = vcmp.eq.s32.totalorder %v381, %v2040
      %vm2071 = vcmp.eq.s32.totalorder %v381, %v2043
      %vm2072 = vcmp.eq.s32.totalorder %v381, %v2046
      %vm2073 = vcmp.eq.s32.totalorder %v381, %v2049
      %vm2074 = vcmp.eq.s32.totalorder %v381, %v2052
      %vm2075 = vcmp.eq.s32.totalorder %v381, %v2055
      %vm2076 = vcmp.eq.s32.totalorder %v381, %v2058
      %vm2077 = vcmp.eq.s32.totalorder %v381, %v2061
      %v2078 = vsel %vm2062, 1, 0
      %v2079 = vsel %vm2063, 1, 0
      %v2080 = vsel %vm2064, 1, 0
      %v2081 = vsel %vm2065, 1, 0
      %v2082 = vsel %vm2066, 1, 0
      %v2083 = vsel %vm2067, 1, 0
      %v2084 = vsel %vm2068, 1, 0
      %v2085 = vsel %vm2069, 1, 0
      %v2086 = vsel %vm2070, 1, 0
      %v2087 = vsel %vm2071, 1, 0
      %v2088 = vsel %vm2072, 1, 0
      %v2089 = vsel %vm2073, 1, 0
      %v2090 = vsel %vm2074, 1, 0
      %v2091 = vsel %vm2075, 1, 0
      %v2092 = vsel %vm2076, 1, 0
      %v2093 = vsel %vm2077, 1, 0
      %v2094 = vcvt.s32.f32 %v2078
      %v2095 = vcvt.s32.f32 %v2079
      %v2096 = vcvt.s32.f32 %v2080
      %v2097 = vcvt.s32.f32 %v2081
      %v2098 = vcvt.s32.f32 %v2082
      %v2099 = vcvt.s32.f32 %v2083
      %v2100 = vcvt.s32.f32 %v2084
      %v2101 = vcvt.s32.f32 %v2085
      %v2102 = vcvt.s32.f32 %v2086
      %v2103 = vcvt.s32.f32 %v2087
      %v2104 = vcvt.s32.f32 %v2088
      %v2105 = vcvt.s32.f32 %v2089
      %v2106 = vcvt.s32.f32 %v2090
      %v2107 = vcvt.s32.f32 %v2091
      %v2108 = vcvt.s32.f32 %v2092
      %v2109 = vcvt.s32.f32 %v2093
      %v2110 = vmul.f32 %v1918, %v1982
      %v2111 = vmul.f32 %v1919, %v1983
      %v2112 = vmul.f32 %v1920, %v1984
      %v2113 = vmul.f32 %v1921, %v1985
      %v2114 = vmul.f32 %v1922, %v1986
      %v2115 = vmul.f32 %v1923, %v1987
      %v2116 = vmul.f32 %v1924, %v1988
      %v2117 = vmul.f32 %v1925, %v1989
      %v2118 = vmul.f32 %v1926, %v1990
      %v2119 = vmul.f32 %v1927, %v1991
      %v2120 = vmul.f32 %v1928, %v1992
      %v2121 = vmul.f32 %v1929, %v1993
      %v2122 = vmul.f32 %v1930, %v1994
      %v2123 = vmul.f32 %v1931, %v1995
      %v2124 = vmul.f32 %v1932, %v1996
      %v2125 = vmul.f32 %v1933, %v1997
      %2127 = vset.pattern.permute.xlu0 0
      %2128 = vperm.xlu0 %2127, %v2110
      %v2129 = vpop.permute.xlu0 %2128
      %2132 = vset.pattern.permute.xlu0 0
      %2133 = vperm.xlu0 %2132, %v2111
      %v2134 = vpop.permute.xlu0 %2133
      %2137 = vset.pattern.permute.xlu0 0
      %2138 = vperm.xlu0 %2137, %v2112
      %v2139 = vpop.permute.xlu0 %2138
      %2142 = vset.pattern.permute.xlu0 0
      %2143 = vperm.xlu0 %2142, %v2113
      %v2144 = vpop.permute.xlu0 %2143
      %2147 = vset.pattern.permute.xlu0 0
      %2148 = vperm.xlu0 %2147, %v2114
      %v2149 = vpop.permute.xlu0 %2148
      %2152 = vset.pattern.permute.xlu0 0
      %2153 = vperm.xlu0 %2152, %v2115
      %v2154 = vpop.permute.xlu0 %2153
      %2157 = vset.pattern.permute.xlu0 0
      %2158 = vperm.xlu0 %2157, %v2116
      %v2159 = vpop.permute.xlu0 %2158
      %2162 = vset.pattern.permute.xlu0 0
      %2163 = vperm.xlu0 %2162, %v2117
      %v2164 = vpop.permute.xlu0 %2163
      %2167 = vset.pattern.permute.xlu0 0
      %2168 = vperm.xlu0 %2167, %v2118
      %v2169 = vpop.permute.xlu0 %2168
      %2172 = vset.pattern.permute.xlu0 0
      %2173 = vperm.xlu0 %2172, %v2119
      %v2174 = vpop.permute.xlu0 %2173
      %2177 = vset.pattern.permute.xlu0 0
      %2178 = vperm.xlu0 %2177, %v2120
      %v2179 = vpop.permute.xlu0 %2178
      %2182 = vset.pattern.permute.xlu0 0
      %2183 = vperm.xlu0 %2182, %v2121
      %v2184 = vpop.permute.xlu0 %2183
      %2187 = vset.pattern.permute.xlu0 0
      %2188 = vperm.xlu0 %2187, %v2122
      %v2189 = vpop.permute.xlu0 %2188
      %2192 = vset.pattern.permute.xlu0 0
      %2193 = vperm.xlu0 %2192, %v2123
      %v2194 = vpop.permute.xlu0 %2193
      %2197 = vset.pattern.permute.xlu0 0
      %2198 = vperm.xlu0 %2197, %v2124
      %v2199 = vpop.permute.xlu0 %2198
      %2202 = vset.pattern.permute.xlu0 0
      %2203 = vperm.xlu0 %2202, %v2125
      %v2204 = vpop.permute.xlu0 %2203
      %v2206 = vmul.f32 %v2094, %v2129
      %v2207 = vmul.f32 %v2095, %v2134
      %v2208 = vmul.f32 %v2096, %v2139
      %v2209 = vmul.f32 %v2097, %v2144
      %v2210 = vmul.f32 %v2098, %v2149
      %v2211 = vmul.f32 %v2099, %v2154
      %v2212 = vmul.f32 %v2100, %v2159
      %v2213 = vmul.f32 %v2101, %v2164
      %v2214 = vmul.f32 %v2102, %v2169
      %v2215 = vmul.f32 %v2103, %v2174
      %v2216 = vmul.f32 %v2104, %v2179
      %v2217 = vmul.f32 %v2105, %v2184
      %v2218 = vmul.f32 %v2106, %v2189
      %v2219 = vmul.f32 %v2107, %v2194
      %v2220 = vmul.f32 %v2108, %v2199
      %v2221 = vmul.f32 %v2109, %v2204
      %v2222 = vadd.f32 %v1902, %v2206
      %v2223 = vadd.f32 %v1903, %v2207
      %v2224 = vadd.f32 %v1904, %v2208
      %v2225 = vadd.f32 %v1905, %v2209
      %v2226 = vadd.f32 %v1906, %v2210
      %v2227 = vadd.f32 %v1907, %v2211
      %v2228 = vadd.f32 %v1908, %v2212
      %v2229 = vadd.f32 %v1909, %v2213
      %v2230 = vadd.f32 %v1910, %v2214
      %v2231 = vadd.f32 %v1911, %v2215
      %v2232 = vadd.f32 %v1912, %v2216
      %v2233 = vadd.f32 %v1913, %v2217
      %v2234 = vadd.f32 %v1914, %v2218
      %v2235 = vadd.f32 %v1915, %v2219
      %v2236 = vadd.f32 %v1916, %v2220
      %v2237 = vadd.f32 %v1917, %v2221
      %v2238 = vld [vmem:[%s241] sm:$0xff]
      %v2239 = vld [vmem:[%s241 + $0x8] sm:$0xff]
      %v2240 = vld [vmem:[%s241 + $0x10] sm:$0xff]
      %v2241 = vld [vmem:[%s241 + $0x18] sm:$0xff]
      %v2242 = vld [vmem:[%s241 + $0x20] sm:$0xff]
      %v2243 = vld [vmem:[%s241 + $0x28] sm:$0xff]
      %v2244 = vld [vmem:[%s241 + $0x30] sm:$0xff]
      %v2245 = vld [vmem:[%s241 + $0x38] sm:$0xff]
      %vm2246 = vcmask 523264
      %v2248 = vsel %vm2246, %v2222, 0
      %v2251 = vsel %vm2246, %v2223, 0
      %v2254 = vsel %vm2246, %v2224, 0
      %v2257 = vsel %vm2246, %v2225, 0
      %v2260 = vsel %vm2246, %v2226, 0
      %v2263 = vsel %vm2246, %v2227, 0
      %v2266 = vsel %vm2246, %v2228, 0
      %v2269 = vsel %vm2246, %v2229, 0
      %v2272 = vsel %vm2246, %v2230, 0
      %v2275 = vsel %vm2246, %v2231, 0
      %v2278 = vsel %vm2246, %v2232, 0
      %v2281 = vsel %vm2246, %v2233, 0
      %v2284 = vsel %vm2246, %v2234, 0
      %v2287 = vsel %vm2246, %v2235, 0
      %v2290 = vsel %vm2246, %v2236, 0
      %v2293 = vsel %vm2246, %v2237, 0
      %2295 = vmatprep.subr.mxu0 0.0
      %2296 = vmatpush1.msra.mxu0 %v2238
      %2297 = vmatprep.subr.mxu0 0.0
      %2298 = vmatpush1.msra.mxu0 %v2239
      %2299 = vmatprep.subr.mxu0 0.0
      %2300 = vmatpush1.msra.mxu0 %v2240
      %2301 = vmatprep.subr.mxu0 0.0
      %2302 = vmatpush1.msra.mxu0 %v2241
      %2303 = vmatprep.subr.mxu0 0.0
      %2304 = vmatpush1.msra.mxu0 %v2242
      %2305 = vmatprep.subr.mxu0 0.0
      %2306 = vmatpush1.msra.mxu0 %v2243
      %2307 = vmatprep.subr.mxu0 0.0
      %2308 = vmatpush1.msra.mxu0 %v2244
      %2309 = vmatprep.subr.mxu0 0.0
      %2310 = vmatpush1.msra.mxu0 %v2245
      %2311 = vmatprep.subr.mxu0 0.0
      %2312 = vmatpush1.msra.mxu0 0.0
      %2313 = vmatprep.subr.mxu0 0.0
      %2314 = vmatpush1.msra.mxu0 0.0
      %2315 = vmatprep.subr.mxu0 0.0
      %2316 = vmatpush1.msra.mxu0 0.0
      %2317 = vmatprep.subr.mxu0 0.0
      %2318 = vmatpush1.msra.mxu0 0.0
      %2319 = vmatprep.subr.mxu0 0.0
      %2320 = vmatpush1.msra.mxu0 0.0
      %2321 = vmatprep.subr.mxu0 0.0
      %2322 = vmatpush1.msra.mxu0 0.0
      %2323 = vmatprep.subr.mxu0 0.0
      %2324 = vmatpush1.msra.mxu0 0.0
      %2325 = vmatprep.subr.mxu0 0.0
      %2326 = vmatpush1.msra.mxu0 0.0
      %2327 = vmatprep.subr.mxu0 0.0
      %2328 = vmatpush1.msra.mxu0 0.0
      %2329 = vmatprep.subr.mxu0 0.0
      %2330 = vmatpush1.msra.mxu0 0.0
      %2331 = vmatprep.subr.mxu0 0.0
      %2332 = vmatpush1.msra.mxu0 0.0
      %2333 = vmatprep.subr.mxu0 0.0
      %2334 = vmatpush1.msra.mxu0 0.0
      %2335 = vmatprep.subr.mxu0 0.0
      %2336 = vmatpush1.msra.mxu0 0.0
      %2337 = vmatprep.subr.mxu0 0.0
      %2338 = vmatpush1.msra.mxu0 0.0
      %2339 = vmatprep.subr.mxu0 0.0
      %2340 = vmatpush1.msra.mxu0 0.0
      %2341 = vmatprep.subr.mxu0 0.0
      %2342 = vmatpush1.msra.mxu0 0.0
      %2343 = vmatprep.subr.mxu0 0.0
      %2344 = vmatpush1.msra.mxu0 0.0
      %2345 = vmatprep.subr.mxu0 0.0
      %2346 = vmatpush1.msra.mxu0 0.0
      %2347 = vmatprep.subr.mxu0 0.0
      %2348 = vmatpush1.msra.mxu0 0.0
      %2349 = vmatprep.subr.mxu0 0.0
      %2350 = vmatpush1.msra.mxu0 0.0
      %2351 = vmatprep.subr.mxu0 0.0
      %2352 = vmatpush1.msra.mxu0 0.0
      %2353 = vmatprep.subr.mxu0 0.0
      %2354 = vmatpush1.msra.mxu0 0.0
      %2355 = vmatprep.subr.mxu0 0.0
      %2356 = vmatpush1.msra.mxu0 0.0
      %2357 = vmatprep.subr.mxu0 0.0
      %2358 = vmatpush1.msra.mxu0 0.0
      %2359 = vmatprep.mubr.f32.mxu0 0.0
      %2360 = vmatmul.mubr.f32.gmra.mrb[0].mxu0 %v2248
      %v2361 = vpop.f32.mrb[0].mxu0
      %v2362 = vadd.f32 0.0, %v2361
      %v2363 = vpop.f32.mrb[0].mxu0
      %2364 = vmatprep.mubr.f32.mxu0 0.0
      %2365 = vmatmul.mubr.f32.gmra.mrb[0].mxu0 %v2251
      %v2366 = vpop.f32.mrb[0].mxu0
      %v2367 = vadd.f32 0.0, %v2366
      %v2368 = vpop.f32.mrb[0].mxu0
      %2369 = vmatprep.mubr.f32.mxu0 0.0
      %2370 = vmatmul.mubr.f32.gmra.mrb[0].mxu0 %v2254
      %v2371 = vpop.f32.mrb[0].mxu0
      %v2372 = vadd.f32 0.0, %v2371
      %v2373 = vpop.f32.mrb[0].mxu0
      %2374 = vmatprep.mubr.f32.mxu0 0.0
      %2375 = vmatmul.mubr.f32.gmra.mrb[0].mxu0 %v2257
      %v2376 = vpop.f32.mrb[0].mxu0
      %v2377 = vadd.f32 0.0, %v2376
      %v2378 = vpop.f32.mrb[0].mxu0
      %2379 = vmatprep.mubr.f32.mxu0 0.0
      %2380 = vmatmul.mubr.f32.gmra.mrb[0].mxu0 %v2260
      %v2381 = vpop.f32.mrb[0].mxu0
      %v2382 = vadd.f32 0.0, %v2381
      %v2383 = vpop.f32.mrb[0].mxu0
      %2384 = vmatprep.mubr.f32.mxu0 0.0
      %2385 = vmatmul.mubr.f32.gmra.mrb[0].mxu0 %v2263
      %v2386 = vpop.f32.mrb[0].mxu0
      %v2387 = vadd.f32 0.0, %v2386
      %v2388 = vpop.f32.mrb[0].mxu0
      %2389 = vmatprep.mubr.f32.mxu0 0.0
      %2390 = vmatmul.mubr.f32.gmra.mrb[0].mxu0 %v2266
      %v2391 = vpop.f32.mrb[0].mxu0
      %v2392 = vadd.f32 0.0, %v2391
      %v2393 = vpop.f32.mrb[0].mxu0
      %2394 = vmatprep.mubr.f32.mxu0 0.0
      %2395 = vmatmul.mubr.f32.gmra.mrb[0].mxu0 %v2269
      %v2396 = vpop.f32.mrb[0].mxu0
      %v2397 = vadd.f32 0.0, %v2396
      %v2398 = vpop.f32.mrb[0].mxu0
      %2399 = vmatprep.mubr.f32.mxu0 0.0
      %2400 = vmatmul.mubr.f32.gmra.mrb[0].mxu0 %v2272
      %v2401 = vpop.f32.mrb[0].mxu0
      %v2402 = vadd.f32 0.0, %v2401
      %v2403 = vpop.f32.mrb[0].mxu0
      %2404 = vmatprep.mubr.f32.mxu0 0.0
      %2405 = vmatmul.mubr.f32.gmra.mrb[0].mxu0 %v2275
      %v2406 = vpop.f32.mrb[0].mxu0
      %v2407 = vadd.f32 0.0, %v2406
      %v2408 = vpop.f32.mrb[0].mxu0
      %2409 = vmatprep.mubr.f32.mxu0 0.0
      %2410 = vmatmul.mubr.f32.gmra.mrb[0].mxu0 %v2278
      %v2411 = vpop.f32.mrb[0].mxu0
      %v2412 = vadd.f32 0.0, %v2411
      %v2413 = vpop.f32.mrb[0].mxu0
      %2414 = vmatprep.mubr.f32.mxu0 0.0
      %2415 = vmatmul.mubr.f32.gmra.mrb[0].mxu0 %v2281
      %v2416 = vpop.f32.mrb[0].mxu0
      %v2417 = vadd.f32 0.0, %v2416
      %v2418 = vpop.f32.mrb[0].mxu0
      %2419 = vmatprep.mubr.f32.mxu0 0.0
      %2420 = vmatmul.mubr.f32.gmra.mrb[0].mxu0 %v2284
      %v2421 = vpop.f32.mrb[0].mxu0
      %v2422 = vadd.f32 0.0, %v2421
      %v2423 = vpop.f32.mrb[0].mxu0
      %2424 = vmatprep.mubr.f32.mxu0 0.0
      %2425 = vmatmul.mubr.f32.gmra.mrb[0].mxu0 %v2287
      %v2426 = vpop.f32.mrb[0].mxu0
      %v2427 = vadd.f32 0.0, %v2426
      %v2428 = vpop.f32.mrb[0].mxu0
      %2429 = vmatprep.mubr.f32.mxu0 0.0
      %2430 = vmatmul.mubr.f32.gmra.mrb[0].mxu0 %v2290
      %v2431 = vpop.f32.mrb[0].mxu0
      %v2432 = vadd.f32 0.0, %v2431
      %v2433 = vpop.f32.mrb[0].mxu0
      %2434 = vmatprep.mubr.f32.mxu0 0.0
      %2435 = vmatmul.mubr.f32.gmra.mrb[0].mxu0 %v2293
      %v2436 = vpop.f32.mrb[0].mxu0
      %v2437 = vadd.f32 0.0, %v2436
      %v2438 = vpop.f32.mrb[0].mxu0
      %2439 = vdwg.mxu0
      %vm2440 = vcmask 130048
      %2441 = vst.msk [vmem:[%s250] sm:$0xff] %vm2440, %v2362
      %2442 = vst.msk [vmem:[%s250 + $0x8] sm:$0xff] %vm2440, %v2367
      %2443 = vst.msk [vmem:[%s250 + $0x10] sm:$0xff] %vm2440, %v2372
      %2444 = vst.msk [vmem:[%s250 + $0x18] sm:$0xff] %vm2440, %v2377
      %2445 = vst.msk [vmem:[%s250 + $0x20] sm:$0xff] %vm2440, %v2382
      %2446 = vst.msk [vmem:[%s250 + $0x28] sm:$0xff] %vm2440, %v2387
      %2447 = vst.msk [vmem:[%s250 + $0x30] sm:$0xff] %vm2440, %v2392
      %2448 = vst.msk [vmem:[%s250 + $0x38] sm:$0xff] %vm2440, %v2397
      %2449 = vst.msk [vmem:[%s250 + $0x40] sm:$0xff] %vm2440, %v2402
      %2450 = vst.msk [vmem:[%s250 + $0x48] sm:$0xff] %vm2440, %v2407
      %2451 = vst.msk [vmem:[%s250 + $0x50] sm:$0xff] %vm2440, %v2412
      %2452 = vst.msk [vmem:[%s250 + $0x58] sm:$0xff] %vm2440, %v2417
      %2453 = vst.msk [vmem:[%s250 + $0x60] sm:$0xff] %vm2440, %v2422
      %2454 = vst.msk [vmem:[%s250 + $0x68] sm:$0xff] %vm2440, %v2427
      %2455 = vst.msk [vmem:[%s250 + $0x70] sm:$0xff] %vm2440, %v2432
      %2456 = vst.msk [vmem:[%s250 + $0x78] sm:$0xff] %vm2440, %v2437
      %s2457 = smul.u32 16, %s19
      %p2458 = scmp.lt.s32.totalorder %s18, 1
      %s2459 = scalar_select %p2458, %s18, 1
      %p2460 = scmp.lt.s32.totalorder %s2457, 31
      %s2461 = scalar_select %p2460, %s2457, 31
      %s2462 = smul.addr %s2459, 32
      %s2463 = sadd.s32 %s2461, %s2462
      %s2464 = smul.addr %s2463, 8
      %s2465 = scalar_lea.vmem %s3, %s2464
      // Predicated region
      $region33: #{aligned_module_forward.3} parent=31 // pred_check
        %p2466 = pneg %p126
      $region34: #{aligned_module_forward.3} parent=31 // pred_check_branch
        %2468 = sbr.rel (%p2466) target = $region36
      $region35: #{aligned_module_forward.3} parent=31 // pred_region
        %s2469 = smul.u32 16, %s19
      $region36: #{aligned_module_forward.3} parent=31 // pred_fallthru
        _
    $region32: #{aligned_module_forward.3} parent=5 // pred_fallthru
      _
    %p2470 = scmp.le.s32.totalorder 2, %s9
    // Predicated region
    $region37: #{aligned_module_forward.3} parent=5 // pred_check
      %p2471 = pneg %p2470
    $region38: #{aligned_module_forward.3} parent=5 // pred_check_branch
      %2473 = sbr.rel (%p2471) target = $region40
    $region39: #{aligned_module_forward.3} parent=5 // pred_region
      %s2474 = ssub.s32 %s9, 2
      // Predicated region
      $region41: #{aligned_module_forward.3} parent=39 // pred_check
        %p2475 = pneg %p132
      $region42: #{aligned_module_forward.3} parent=39 // pred_check_branch
        %2477 = sbr.rel (%p2475) target = $region44
      $region43: #{aligned_module_forward.3} parent=39 // pred_region
        %s2478 = smul.u32 16, %s21
        %p2479 = scmp.lt.s32.totalorder %s20, 1
        %s2480 = scalar_select %p2479, %s20, 1
        %p2481 = scmp.lt.s32.totalorder %s2478, 31
        %s2482 = scalar_select %p2481, %s2478, 31
        %s2483 = smul.addr %s2480, 32
        %s2484 = sadd.s32 %s2482, %s2483
        %s2485 = smul.addr %s2484, 8
        %s2486 = scalar_lea.vmem %s3, %s2485
      $region44: #{aligned_module_forward.3} parent=39 // pred_fallthru
        _
    $region40: #{aligned_module_forward.3} parent=5 // pred_fallthru
      _
  $region6: #{aligned_module_forward.3} parent=0 // loop_footer
    %s13 = sadd.s32 1, %s9
  $region7: #{aligned_module_forward.3} parent=0 // loop_footer_branch
    %8 = sbr.rel target = $region3
  $region8: #{aligned_module_forward.3} parent=0 // loop_exit
    _

// kernel: aligned_module_forward.2
$region0: #{aligned_module_forward.2}
  #allocation0 [shape = 'u32[]', space=smem, size = 0x4, offset = 0x4, fixed_abs, tag = 'smem constant byte address 0x4 - core index']
  #allocation1 [shape = 'u32[144,128]{1,0:T(1,128)}', space=vmem, size = 0x12000, scoped, tag = 'internal scratch']
  %s0 = inlined_call_operand.vmem [shape: f32[2,256,16], index: 0, kind: input, shape index: {}]
  %s1 = inlined_call_operand.vmem [shape: f32[2,64,16], index: 1, kind: input, shape index: {}]
  %s2 = inlined_call_operand.vmem [shape: f32[16,8], index: 2, kind: input, shape index: {}]
  %s3 = inlined_call_operand.vmem [shape: f32[16,8], index: 3, kind: input, shape index: {}]
  %s4 = inlined_call_operand.vmem [shape: f32[256,64], index: 4, kind: input, shape index: {}]
  %s5 = inlined_call_operand.vmem [shape: f32[9,8,2], index: 5, kind: input, shape index: {}]
  %s6 = inlined_call_operand.vmem [shape: f32[9,8,2], index: 6, kind: input, shape index: {}]
  %s7 = inlined_call_operand.vmem [shape: f32[9,256,1], index: 7, kind: input, shape index: {}]
  %s8 = inlined_call_operand.vmem [shape: f32[2,256,2], index: 8, kind: output, shape index: {}]
  %s9 = sld [smem:[#allocation0]]
  $region65: #{aligned_module_forward.2} parent=0
    _
  %s11 = ssub.s32 1, %s9
  %s12 = scalar_select 0, %s11, %s9
  loop: start=0, step=1, limit=4
  $region2: #{aligned_module_forward.2} parent=0 // loop_pre_header
    _
  $region3: #{aligned_module_forward.2} parent=0 // loop_header
    %s14 = sphi 0, %s18
    %p15 = scmp.ge.s32.totalorder %s14, 4
    %s24 = sphi 0, %s26
    %s27 = sphi 0, %s24
    %s28 = sphi 0, %s27
    %s44 = sphi 0, %s28
    %s50 = sphi 0, %s52
    %s53 = sphi 0, %s50
    %s54 = sphi 0, %s53
    %s70 = sphi 0, %s54
    %s74 = sphi 0, %s74
    %s76 = sphi 0, %s74
    %s77 = sphi 0, %s76
    %s91 = sphi 0, %s77
    %s95 = sphi 0, %s95
    %s97 = sphi 0, %s95
    %s98 = sphi 0, %s97
    %s112 = sphi 0, %s98
    %s116 = sphi 0, %s116
    %s118 = sphi 0, %s116
    %s119 = sphi 0, %s118
    %s133 = sphi 0, %s119
    %s137 = sphi 0, %s137
    %s139 = sphi 0, %s137
    %s140 = sphi 0, %s139
    %s154 = sphi 0, %s140
    %s158 = sphi 0, %s158
    %s160 = sphi 0, %s158
    %s161 = sphi 0, %s160
    %s175 = sphi 0, %s161
    %s179 = sphi 0, %s179
    %s181 = sphi 0, %s179
    %s182 = sphi 0, %s181
    %s196 = sphi 0, %s182
    %s202 = sphi 0, %s204
    %s205 = sphi 0, %s202
    %s206 = sphi 0, %s205
    %s222 = sphi 0, %s206
  $region4: #{aligned_module_forward.2} parent=0 // loop_header_branch
    %17 = sbr.rel (%p15) target = $region8
  $region5: #{aligned_module_forward.2} parent=0 // loop_body
    %s19 = ssub.s32 %s14, 1
    %s20 = ssub.s32 %s14, 2
    %s21 = sadd.s32 %s14, 1
    %s22 = ssub.s32 %s14, %s21
    %p23 = scmp.eq.s32.totalorder %s22, 0
    %s25 = sadd.s32 %s24, 1
    %s26 = scalar_select %p23, %s24, %s25
    %p29 = pneg %p23
    %p30 = scmp.eq.s32.totalorder %s14, 1
    %p31 = por %p29, %p30
    %p32 = scmp.ne.s32.totalorder %s24, %s27
    %p33 = scmp.eq.s32.totalorder %s14, 0
    %p34 = por %p32, %p33
    %p35 = scmp.ne.s32.totalorder %s24, %s27
    %p36 = scmp.eq.s32.totalorder %s19, 1
    %p37 = por %p35, %p36
    %p38 = scmp.ne.s32.totalorder %s27, %s28
    %p39 = scmp.eq.s32.totalorder %s19, 0
    %p40 = por %p38, %p39
    %p41 = scmp.ne.s32.totalorder %s27, %s28
    %p42 = scmp.eq.s32.totalorder %s20, 1
    %p43 = por %p41, %p42
    %p45 = scmp.ne.s32.totalorder %s28, %s44
    %p46 = scmp.eq.s32.totalorder %s20, 0
    %p47 = por %p45, %p46
    %s48 = ssub.s32 %s14, %s21
    %p49 = scmp.eq.s32.totalorder %s48, 0
    %s51 = sadd.s32 %s50, 1
    %s52 = scalar_select %p49, %s50, %s51
    %p55 = pneg %p49
    %p56 = scmp.eq.s32.totalorder %s14, 1
    %p57 = por %p55, %p56
    %p58 = scmp.ne.s32.totalorder %s50, %s53
    %p59 = scmp.eq.s32.totalorder %s14, 0
    %p60 = por %p58, %p59
    %p61 = scmp.ne.s32.totalorder %s50, %s53
    %p62 = scmp.eq.s32.totalorder %s19, 1
    %p63 = por %p61, %p62
    %p64 = scmp.ne.s32.totalorder %s53, %s54
    %p65 = scmp.eq.s32.totalorder %s19, 0
    %p66 = por %p64, %p65
    %p67 = scmp.ne.s32.totalorder %s53, %s54
    %p68 = scmp.eq.s32.totalorder %s20, 1
    %p69 = por %p67, %p68
    %p71 = scmp.ne.s32.totalorder %s54, %s70
    %p72 = scmp.eq.s32.totalorder %s20, 0
    %p73 = por %p71, %p72
    %s75 = sadd.s32 %s74, 1
    %p78 = scmp.eq.s32.totalorder %s14, 1
    %p79 = scmp.ne.s32.totalorder %s74, %s76
    %p80 = scmp.eq.s32.totalorder %s14, 0
    %p81 = por %p79, %p80
    %p82 = scmp.ne.s32.totalorder %s74, %s76
    %p83 = scmp.eq.s32.totalorder %s19, 1
    %p84 = por %p82, %p83
    %p85 = scmp.ne.s32.totalorder %s76, %s77
    %p86 = scmp.eq.s32.totalorder %s19, 0
    %p87 = por %p85, %p86
    %p88 = scmp.ne.s32.totalorder %s76, %s77
    %p89 = scmp.eq.s32.totalorder %s20, 1
    %p90 = por %p88, %p89
    %p92 = scmp.ne.s32.totalorder %s77, %s91
    %p93 = scmp.eq.s32.totalorder %s20, 0
    %p94 = por %p92, %p93
    %s96 = sadd.s32 %s95, 1
    %p99 = scmp.eq.s32.totalorder %s14, 1
    %p100 = scmp.ne.s32.totalorder %s95, %s97
    %p101 = scmp.eq.s32.totalorder %s14, 0
    %p102 = por %p100, %p101
    %p103 = scmp.ne.s32.totalorder %s95, %s97
    %p104 = scmp.eq.s32.totalorder %s19, 1
    %p105 = por %p103, %p104
    %p106 = scmp.ne.s32.totalorder %s97, %s98
    %p107 = scmp.eq.s32.totalorder %s19, 0
    %p108 = por %p106, %p107
    %p109 = scmp.ne.s32.totalorder %s97, %s98
    %p110 = scmp.eq.s32.totalorder %s20, 1
    %p111 = por %p109, %p110
    %p113 = scmp.ne.s32.totalorder %s98, %s112
    %p114 = scmp.eq.s32.totalorder %s20, 0
    %p115 = por %p113, %p114
    %s117 = sadd.s32 %s116, 1
    %p120 = scmp.eq.s32.totalorder %s14, 1
    %p121 = scmp.ne.s32.totalorder %s116, %s118
    %p122 = scmp.eq.s32.totalorder %s14, 0
    %p123 = por %p121, %p122
    %p124 = scmp.ne.s32.totalorder %s116, %s118
    %p125 = scmp.eq.s32.totalorder %s19, 1
    %p126 = por %p124, %p125
    %p127 = scmp.ne.s32.totalorder %s118, %s119
    %p128 = scmp.eq.s32.totalorder %s19, 0
    %p129 = por %p127, %p128
    %p130 = scmp.ne.s32.totalorder %s118, %s119
    %p131 = scmp.eq.s32.totalorder %s20, 1
    %p132 = por %p130, %p131
    %p134 = scmp.ne.s32.totalorder %s119, %s133
    %p135 = scmp.eq.s32.totalorder %s20, 0
    %p136 = por %p134, %p135
    %s138 = sadd.s32 %s137, 1
    %p141 = scmp.eq.s32.totalorder %s14, 1
    %p142 = scmp.ne.s32.totalorder %s137, %s139
    %p143 = scmp.eq.s32.totalorder %s14, 0
    %p144 = por %p142, %p143
    %p145 = scmp.ne.s32.totalorder %s137, %s139
    %p146 = scmp.eq.s32.totalorder %s19, 1
    %p147 = por %p145, %p146
    %p148 = scmp.ne.s32.totalorder %s139, %s140
    %p149 = scmp.eq.s32.totalorder %s19, 0
    %p150 = por %p148, %p149
    %p151 = scmp.ne.s32.totalorder %s139, %s140
    %p152 = scmp.eq.s32.totalorder %s20, 1
    %p153 = por %p151, %p152
    %p155 = scmp.ne.s32.totalorder %s140, %s154
    %p156 = scmp.eq.s32.totalorder %s20, 0
    %p157 = por %p155, %p156
    %s159 = sadd.s32 %s158, 1
    %p162 = scmp.eq.s32.totalorder %s14, 1
    %p163 = scmp.ne.s32.totalorder %s158, %s160
    %p164 = scmp.eq.s32.totalorder %s14, 0
    %p165 = por %p163, %p164
    %p166 = scmp.ne.s32.totalorder %s158, %s160
    %p167 = scmp.eq.s32.totalorder %s19, 1
    %p168 = por %p166, %p167
    %p169 = scmp.ne.s32.totalorder %s160, %s161
    %p170 = scmp.eq.s32.totalorder %s19, 0
    %p171 = por %p169, %p170
    %p172 = scmp.ne.s32.totalorder %s160, %s161
    %p173 = scmp.eq.s32.totalorder %s20, 1
    %p174 = por %p172, %p173
    %p176 = scmp.ne.s32.totalorder %s161, %s175
    %p177 = scmp.eq.s32.totalorder %s20, 0
    %p178 = por %p176, %p177
    %s180 = sadd.s32 %s179, 1
    %p183 = scmp.eq.s32.totalorder %s14, 1
    %p184 = scmp.ne.s32.totalorder %s179, %s181
    %p185 = scmp.eq.s32.totalorder %s14, 0
    %p186 = por %p184, %p185
    %p187 = scmp.ne.s32.totalorder %s179, %s181
    %p188 = scmp.eq.s32.totalorder %s19, 1
    %p189 = por %p187, %p188
    %p190 = scmp.ne.s32.totalorder %s181, %s182
    %p191 = scmp.eq.s32.totalorder %s19, 0
    %p192 = por %p190, %p191
    %p193 = scmp.ne.s32.totalorder %s181, %s182
    %p194 = scmp.eq.s32.totalorder %s20, 1
    %p195 = por %p193, %p194
    %p197 = scmp.ne.s32.totalorder %s182, %s196
    %p198 = scmp.eq.s32.totalorder %s20, 0
    %p199 = por %p197, %p198
    %s200 = ssub.s32 %s14, %s21
    %p201 = scmp.eq.s32.totalorder %s200, 0
    %s203 = sadd.s32 %s202, 1
    %s204 = scalar_select %p201, %s202, %s203
    %p207 = pneg %p201
    %p208 = scmp.eq.s32.totalorder %s14, 1
    %p209 = por %p207, %p208
    %p210 = scmp.ne.s32.totalorder %s202, %s205
    %p211 = scmp.eq.s32.totalorder %s14, 0
    %p212 = por %p210, %p211
    %p213 = scmp.ne.s32.totalorder %s202, %s205
    %p214 = scmp.eq.s32.totalorder %s19, 1
    %p215 = por %p213, %p214
    %p216 = scmp.ne.s32.totalorder %s205, %s206
    %p217 = scmp.eq.s32.totalorder %s19, 0
    %p218 = por %p216, %p217
    %p219 = scmp.ne.s32.totalorder %s205, %s206
    %p220 = scmp.eq.s32.totalorder %s20, 1
    %p221 = por %p219, %p220
    %p223 = scmp.ne.s32.totalorder %s206, %s222
    %p224 = scmp.eq.s32.totalorder %s20, 0
    %p225 = por %p223, %p224
    %p226 = scmp.le.s32.totalorder 1, %s14
    %p227 = scmp.lt.s32.totalorder %s14, 3
    %p228 = pnand %p226, %p227
    %p229 = pneg %p228
    // Predicated region
    $region9: #{aligned_module_forward.2} parent=5 // pred_check
      _
    $region10: #{aligned_module_forward.2} parent=5 // pred_check_branch
      %231 = sbr.rel (%p228) target = $region12
    $region11: #{aligned_module_forward.2} parent=5 // pred_region
      %s232 = ssub.s32 %s14, 1
      // Predicated region
      $region13: #{aligned_module_forward.2} parent=11 // pred_check
        %p233 = pneg %p87
      $region14: #{aligned_module_forward.2} parent=11 // pred_check_branch
        %235 = sbr.rel (%p233) target = $region16
      $region15: #{aligned_module_forward.2} parent=11 // pred_region
        _
      $region16: #{aligned_module_forward.2} parent=11 // pred_fallthru
        _
      // Predicated region
      $region17: #{aligned_module_forward.2} parent=11 // pred_check
        %p236 = pneg %p108
      $region18: #{aligned_module_forward.2} parent=11 // pred_check_branch
        %238 = sbr.rel (%p236) target = $region20
      $region19: #{aligned_module_forward.2} parent=11 // pred_region
        _
      $region20: #{aligned_module_forward.2} parent=11 // pred_fallthru
        _
      // Predicated region
      $region21: #{aligned_module_forward.2} parent=11 // pred_check
        %p239 = pneg %p129
      $region22: #{aligned_module_forward.2} parent=11 // pred_check_branch
        %241 = sbr.rel (%p239) target = $region24
      $region23: #{aligned_module_forward.2} parent=11 // pred_region
        _
      $region24: #{aligned_module_forward.2} parent=11 // pred_fallthru
        _
      // Predicated region
      $region25: #{aligned_module_forward.2} parent=11 // pred_check
        %p242 = pneg %p150
      $region26: #{aligned_module_forward.2} parent=11 // pred_check_branch
        %244 = sbr.rel (%p242) target = $region28
      $region27: #{aligned_module_forward.2} parent=11 // pred_region
        _
      $region28: #{aligned_module_forward.2} parent=11 // pred_fallthru
        _
      // Predicated region
      $region29: #{aligned_module_forward.2} parent=11 // pred_check
        %p245 = pneg %p171
      $region30: #{aligned_module_forward.2} parent=11 // pred_check_branch
        %247 = sbr.rel (%p245) target = $region32
      $region31: #{aligned_module_forward.2} parent=11 // pred_region
        _
      $region32: #{aligned_module_forward.2} parent=11 // pred_fallthru
        _
      // Predicated region
      $region33: #{aligned_module_forward.2} parent=11 // pred_check
        %p248 = pneg %p192
      $region34: #{aligned_module_forward.2} parent=11 // pred_check_branch
        %250 = sbr.rel (%p248) target = $region36
      $region35: #{aligned_module_forward.2} parent=11 // pred_region
        _
      $region36: #{aligned_module_forward.2} parent=11 // pred_fallthru
        _
    $region12: #{aligned_module_forward.2} parent=5 // pred_fallthru
      _
    %p251 = scmp.lt.s32.totalorder %s14, 2
    // Predicated region
    $region37: #{aligned_module_forward.2} parent=5 // pred_check
      %p252 = pneg %p251
    $region38: #{aligned_module_forward.2} parent=5 // pred_check_branch
      %254 = sbr.rel (%p252) target = $region40
    $region39: #{aligned_module_forward.2} parent=5 // pred_region
      // Predicated region
      $region41: #{aligned_module_forward.2} parent=39 // pred_check
        %p255 = pneg %p34
      $region42: #{aligned_module_forward.2} parent=39 // pred_check_branch
        %257 = sbr.rel (%p255) target = $region44
      $region43: #{aligned_module_forward.2} parent=39 // pred_region
        %p258 = scmp.lt.s32.totalorder %s14, 1
        %s259 = scalar_select %p258, %s14, 1
        %s260 = smul.addr %s259, 32
        %s261 = smul.addr %s260, 8
        %s262 = scalar_lea.vmem %s0, %s261
      $region44: #{aligned_module_forward.2} parent=39 // pred_fallthru
        _
      // Predicated region
      $region45: #{aligned_module_forward.2} parent=39 // pred_check
        %p263 = pneg %p60
      $region46: #{aligned_module_forward.2} parent=39 // pred_check_branch
        %265 = sbr.rel (%p263) target = $region48
      $region47: #{aligned_module_forward.2} parent=39 // pred_region
        %p266 = scmp.lt.s32.totalorder %s14, 1
        %s267 = scalar_select %p266, %s14, 1
        %s268 = smul.addr %s267, 8
        %s269 = smul.addr %s268, 8
        %s270 = scalar_lea.vmem %s1, %s269
      $region48: #{aligned_module_forward.2} parent=39 // pred_fallthru
        _
    $region40: #{aligned_module_forward.2} parent=5 // pred_fallthru
      _
    %p271 = scmp.le.s32.totalorder 1, %s14
    %p272 = scmp.lt.s32.totalorder %s14, 3
    %p273 = pnand %p271, %p272
    %p274 = pneg %p273
    // Predicated region
    $region49: #{aligned_module_forward.2} parent=5 // pred_check
      _
    $region50: #{aligned_module_forward.2} parent=5 // pred_check_branch
      %276 = sbr.rel (%p273) target = $region52
    $region51: #{aligned_module_forward.2} parent=5 // pred_region
      %s277 = ssub.s32 %s14, 1
      %p278 = scmp.lt.s32.totalorder %s19, 1
      %s279 = scalar_select %p278, %s19, 1
      %s280 = smul.addr %s279, 32
      %s281 = smul.addr %s280, 8
      %s282 = scalar_lea.vmem %s0, %s281
      %p283 = pneg %p40
      %p284 = pneg %p37
      %p285 = scmp.lt.s32.totalorder %s19, 1
      %s286 = scalar_select %p285, %s19, 1
      %s287 = smul.addr %s286, 8
      %s288 = smul.addr %s287, 8
      %s289 = scalar_lea.vmem %s1, %s288
      %p290 = pneg %p66
      %p291 = pneg %p63
      %p292 = pneg %p87
      %p293 = pneg %p84
      %p294 = pneg %p108
      %p295 = pneg %p105
      %p296 = pneg %p129
      %p297 = pneg %p126
      %p298 = pneg %p150
      %p299 = pneg %p147
      %p300 = pneg %p171
      %p301 = pneg %p168
      %p302 = pneg %p192
      %p303 = pneg %p189
      %p304 = pneg %p218
      %p305 = pneg %p215
      %p306 = scmp.lt.s32.totalorder %s19, 1
      %s307 = scalar_select %p306, %s19, 1
      %s308 = smul.addr %s307, 32
      %s309 = smul.addr %s308, 8
      %s310 = scalar_lea.vmem %s8, %s309
      %p311 = scmp.lt.s32.totalorder %s19, 1
      %s312 = scalar_select %p311, %s19, 1
      %s313 = smul.addr %s312, 32
      %s314 = smul.addr %s313, 8
      %s315 = scalar_lea.vmem %s0, %s314
      %p316 = scmp.lt.s32.totalorder %s19, 1
      %s317 = scalar_select %p316, %s19, 1
      %s318 = smul.addr %s317, 8
      %s319 = smul.addr %s318, 8
      %s320 = scalar_lea.vmem %s1, %s319
      %p321 = scmp.lt.s32.totalorder %s19, 1
      %s322 = scalar_select %p321, %s19, 1
      %s323 = smul.addr %s322, 32
      %s324 = smul.addr %s323, 8
      %s325 = scalar_lea.vmem %s8, %s324
      %v326 = vld [vmem:[%s320] sm:$0xff]
      %v327 = vld [vmem:[%s320 + $0x8] sm:$0xff]
      %v328 = vld [vmem:[%s320 + $0x10] sm:$0xff]
      %v329 = vld [vmem:[%s320 + $0x18] sm:$0xff]
      %v330 = vld [vmem:[%s320 + $0x20] sm:$0xff]
      %v331 = vld [vmem:[%s320 + $0x28] sm:$0xff]
      %v332 = vld [vmem:[%s320 + $0x30] sm:$0xff]
      %v333 = vld [vmem:[%s320 + $0x38] sm:$0xff]
      %v334 = vld [vmem:[%s3] sm:$0xff]
      %v335 = vld [vmem:[%s3 + $0x8] sm:$0xff]
      %vm336 = vcmask 130048
      %v338 = vsel %vm336, %v326, 0
      %v341 = vsel %vm336, %v327, 0
      %v344 = vsel %vm336, %v328, 0
      %v347 = vsel %vm336, %v329, 0
      %v350 = vsel %vm336, %v330, 0
      %v353 = vsel %vm336, %v331, 0
      %v356 = vsel %vm336, %v332, 0
      %v359 = vsel %vm336, %v333, 0
      %361 = vmatprep.subr.mxu0 0.0
      %362 = vmatpush1.msra.mxu0 %v334
      %363 = vmatprep.subr.mxu0 0.0
      %364 = vmatpush1.msra.mxu0 %v335
      %365 = vmatprep.subr.mxu0 0.0
      %366 = vmatpush1.msra.mxu0 0.0
      %367 = vmatprep.subr.mxu0 0.0
      %368 = vmatpush1.msra.mxu0 0.0
      %369 = vmatprep.subr.mxu0 0.0
      %370 = vmatpush1.msra.mxu0 0.0
      %371 = vmatprep.subr.mxu0 0.0
      %372 = vmatpush1.msra.mxu0 0.0
      %373 = vmatprep.subr.mxu0 0.0
      %374 = vmatpush1.msra.mxu0 0.0
      %375 = vmatprep.subr.mxu0 0.0
      %376 = vmatpush1.msra.mxu0 0.0
      %377 = vmatprep.subr.mxu0 0.0
      %378 = vmatpush1.msra.mxu0 0.0
      %379 = vmatprep.subr.mxu0 0.0
      %380 = vmatpush1.msra.mxu0 0.0
      %381 = vmatprep.subr.mxu0 0.0
      %382 = vmatpush1.msra.mxu0 0.0
      %383 = vmatprep.subr.mxu0 0.0
      %384 = vmatpush1.msra.mxu0 0.0
      %385 = vmatprep.subr.mxu0 0.0
      %386 = vmatpush1.msra.mxu0 0.0
      %387 = vmatprep.subr.mxu0 0.0
      %388 = vmatpush1.msra.mxu0 0.0
      %389 = vmatprep.subr.mxu0 0.0
      %390 = vmatpush1.msra.mxu0 0.0
      %391 = vmatprep.subr.mxu0 0.0
      %392 = vmatpush1.msra.mxu0 0.0
      %393 = vmatprep.subr.mxu0 0.0
      %394 = vmatpush1.msra.mxu0 0.0
      %395 = vmatprep.subr.mxu0 0.0
      %396 = vmatpush1.msra.mxu0 0.0
      %397 = vmatprep.subr.mxu0 0.0
      %398 = vmatpush1.msra.mxu0 0.0
      %399 = vmatprep.subr.mxu0 0.0
      %400 = vmatpush1.msra.mxu0 0.0
      %401 = vmatprep.subr.mxu0 0.0
      %402 = vmatpush1.msra.mxu0 0.0
      %403 = vmatprep.subr.mxu0 0.0
      %404 = vmatpush1.msra.mxu0 0.0
      %405 = vmatprep.subr.mxu0 0.0
      %406 = vmatpush1.msra.mxu0 0.0
      %407 = vmatprep.subr.mxu0 0.0
      %408 = vmatpush1.msra.mxu0 0.0
      %409 = vmatprep.subr.mxu0 0.0
      %410 = vmatpush1.msra.mxu0 0.0
      %411 = vmatprep.subr.mxu0 0.0
      %412 = vmatpush1.msra.mxu0 0.0
      %413 = vmatprep.subr.mxu0 0.0
      %414 = vmatpush1.msra.mxu0 0.0
      %415 = vmatprep.subr.mxu0 0.0
      %416 = vmatpush1.msra.mxu0 0.0
      %417 = vmatprep.subr.mxu0 0.0
      %418 = vmatpush1.msra.mxu0 0.0
      %419 = vmatprep.subr.mxu0 0.0
      %420 = vmatpush1.msra.mxu0 0.0
      %421 = vmatprep.subr.mxu0 0.0
      %422 = vmatpush1.msra.mxu0 0.0
      %423 = vmatprep.subr.mxu0 0.0
      %424 = vmatpush1.msra.mxu0 0.0
      %425 = vmatprep.mubr.f32.mxu0 0.0
      %426 = vmatmul.mubr.f32.gmra.mrb[0].mxu0 %v338
      %v427 = vpop.f32.mrb[0].mxu0
      %v428 = vadd.f32 0.0, %v427
      %v429 = vpop.f32.mrb[0].mxu0
      %430 = vmatprep.mubr.f32.mxu0 0.0
      %431 = vmatmul.mubr.f32.gmra.mrb[0].mxu0 %v341
      %v432 = vpop.f32.mrb[0].mxu0
      %v433 = vadd.f32 0.0, %v432
      %v434 = vpop.f32.mrb[0].mxu0
      %435 = vmatprep.mubr.f32.mxu0 0.0
      %436 = vmatmul.mubr.f32.gmra.mrb[0].mxu0 %v344
      %v437 = vpop.f32.mrb[0].mxu0
      %v438 = vadd.f32 0.0, %v437
      %v439 = vpop.f32.mrb[0].mxu0
      %440 = vmatprep.mubr.f32.mxu0 0.0
      %441 = vmatmul.mubr.f32.gmra.mrb[0].mxu0 %v347
      %v442 = vpop.f32.mrb[0].mxu0
      %v443 = vadd.f32 0.0, %v442
      %v444 = vpop.f32.mrb[0].mxu0
      %445 = vmatprep.mubr.f32.mxu0 0.0
      %446 = vmatmul.mubr.f32.gmra.mrb[0].mxu0 %v350
      %v447 = vpop.f32.mrb[0].mxu0
      %v448 = vadd.f32 0.0, %v447
      %v449 = vpop.f32.mrb[0].mxu0
      %450 = vmatprep.mubr.f32.mxu0 0.0
      %451 = vmatmul.mubr.f32.gmra.mrb[0].mxu0 %v353
      %v452 = vpop.f32.mrb[0].mxu0
      %v453 = vadd.f32 0.0, %v452
      %v454 = vpop.f32.mrb[0].mxu0
      %455 = vmatprep.mubr.f32.mxu0 0.0
      %456 = vmatmul.mubr.f32.gmra.mrb[0].mxu0 %v356
      %v457 = vpop.f32.mrb[0].mxu0
      %v458 = vadd.f32 0.0, %v457
      %v459 = vpop.f32.mrb[0].mxu0
      %460 = vmatprep.mubr.f32.mxu0 0.0
      %461 = vmatmul.mubr.f32.gmra.mrb[0].mxu0 %v359
      %v462 = vpop.f32.mrb[0].mxu0
      %v463 = vadd.f32 0.0, %v462
      %v464 = vpop.f32.mrb[0].mxu0
      %465 = vdwg.mxu0
      %v466 = vld [vmem:[%s4] sm:$0xff]
      %v467 = vld [vmem:[%s4 + $0x8] sm:$0xff]
      %v468 = vld [vmem:[%s4 + $0x10] sm:$0xff]
      %v469 = vld [vmem:[%s4 + $0x18] sm:$0xff]
      %v470 = vld [vmem:[%s4 + $0x20] sm:$0xff]
      %v471 = vld [vmem:[%s4 + $0x28] sm:$0xff]
      %v472 = vld [vmem:[%s4 + $0x30] sm:$0xff]
      %v473 = vld [vmem:[%s4 + $0x38] sm:$0xff]
      %v474 = vld [vmem:[%s4 + $0x40] sm:$0xff]
      %v475 = vld [vmem:[%s4 + $0x48] sm:$0xff]
      %v476 = vld [vmem:[%s4 + $0x50] sm:$0xff]
      %v477 = vld [vmem:[%s4 + $0x58] sm:$0xff]
      %v478 = vld [vmem:[%s4 + $0x60] sm:$0xff]
      %v479 = vld [vmem:[%s4 + $0x68] sm:$0xff]
      %v480 = vld [vmem:[%s4 + $0x70] sm:$0xff]
      %v481 = vld [vmem:[%s4 + $0x78] sm:$0xff]
      %v482 = vld [vmem:[%s4 + $0x80] sm:$0xff]
      %v483 = vld [vmem:[%s4 + $0x88] sm:$0xff]
      %v484 = vld [vmem:[%s4 + $0x90] sm:$0xff]
      %v485 = vld [vmem:[%s4 + $0x98] sm:$0xff]
      %v486 = vld [vmem:[%s4 + $0xa0] sm:$0xff]
      %v487 = vld [vmem:[%s4 + $0xa8] sm:$0xff]
      %v488 = vld [vmem:[%s4 + $0xb0] sm:$0xff]
      %v489 = vld [vmem:[%s4 + $0xb8] sm:$0xff]
      %v490 = vld [vmem:[%s4 + $0xc0] sm:$0xff]
      %v491 = vld [vmem:[%s4 + $0xc8] sm:$0xff]
      %v492 = vld [vmem:[%s4 + $0xd0] sm:$0xff]
      %v493 = vld [vmem:[%s4 + $0xd8] sm:$0xff]
      %v494 = vld [vmem:[%s4 + $0xe0] sm:$0xff]
      %v495 = vld [vmem:[%s4 + $0xe8] sm:$0xff]
      %v496 = vld [vmem:[%s4 + $0xf0] sm:$0xff]
      %v497 = vld [vmem:[%s4 + $0xf8] sm:$0xff]
      %vm498 = vcmask 523264
      %v500 = vsel %vm498, %v466, 0
      %v503 = vsel %vm498, %v467, 0
      %v506 = vsel %vm498, %v468, 0
      %v509 = vsel %vm498, %v469, 0
      %v512 = vsel %vm498, %v470, 0
      %v515 = vsel %vm498, %v471, 0
      %v518 = vsel %vm498, %v472, 0
      %v521 = vsel %vm498, %v473, 0
      %v524 = vsel %vm498, %v474, 0
      %v527 = vsel %vm498, %v475, 0
      %v530 = vsel %vm498, %v476, 0
      %v533 = vsel %vm498, %v477, 0
      %v536 = vsel %vm498, %v478, 0
      %v539 = vsel %vm498, %v479, 0
      %v542 = vsel %vm498, %v480, 0
      %v545 = vsel %vm498, %v481, 0
      %v548 = vsel %vm498, %v482, 0
      %v551 = vsel %vm498, %v483, 0
      %v554 = vsel %vm498, %v484, 0
      %v557 = vsel %vm498, %v485, 0
      %v560 = vsel %vm498, %v486, 0
      %v563 = vsel %vm498, %v487, 0
      %v566 = vsel %vm498, %v488, 0
      %v569 = vsel %vm498, %v489, 0
      %v572 = vsel %vm498, %v490, 0
      %v575 = vsel %vm498, %v491, 0
      %v578 = vsel %vm498, %v492, 0
      %v581 = vsel %vm498, %v493, 0
      %v584 = vsel %vm498, %v494, 0
      %v587 = vsel %vm498, %v495, 0
      %v590 = vsel %vm498, %v496, 0
      %v593 = vsel %vm498, %v497, 0
      %595 = vmatprep.subr.mxu0 0.0
      %596 = vmatpush1.msra.mxu0 %v428
      %597 = vmatprep.subr.mxu0 0.0
      %598 = vmatpush1.msra.mxu0 %v433
      %599 = vmatprep.subr.mxu0 0.0
      %600 = vmatpush1.msra.mxu0 %v438
      %601 = vmatprep.subr.mxu0 0.0
      %602 = vmatpush1.msra.mxu0 %v443
      %603 = vmatprep.subr.mxu0 0.0
      %604 = vmatpush1.msra.mxu0 %v448
      %605 = vmatprep.subr.mxu0 0.0
      %606 = vmatpush1.msra.mxu0 %v453
      %607 = vmatprep.subr.mxu0 0.0
      %608 = vmatpush1.msra.mxu0 %v458
      %609 = vmatprep.subr.mxu0 0.0
      %610 = vmatpush1.msra.mxu0 %v463
      %611 = vmatprep.subr.mxu0 0.0
      %612 = vmatpush1.msra.mxu0 0.0
      %613 = vmatprep.subr.mxu0 0.0
      %614 = vmatpush1.msra.mxu0 0.0
      %615 = vmatprep.subr.mxu0 0.0
      %616 = vmatpush1.msra.mxu0 0.0
      %617 = vmatprep.subr.mxu0 0.0
      %618 = vmatpush1.msra.mxu0 0.0
      %619 = vmatprep.subr.mxu0 0.0
      %620 = vmatpush1.msra.mxu0 0.0
      %621 = vmatprep.subr.mxu0 0.0
      %622 = vmatpush1.msra.mxu0 0.0
      %623 = vmatprep.subr.mxu0 0.0
      %624 = vmatpush1.msra.mxu0 0.0
      %625 = vmatprep.subr.mxu0 0.0
      %626 = vmatpush1.msra.mxu0 0.0
      %627 = vmatprep.subr.mxu0 0.0
      %628 = vmatpush1.msra.mxu0 0.0
      %629 = vmatprep.subr.mxu0 0.0
      %630 = vmatpush1.msra.mxu0 0.0
      %631 = vmatprep.subr.mxu0 0.0
      %632 = vmatpush1.msra.mxu0 0.0
      %633 = vmatprep.subr.mxu0 0.0
      %634 = vmatpush1.msra.mxu0 0.0
      %635 = vmatprep.subr.mxu0 0.0
      %636 = vmatpush1.msra.mxu0 0.0
      %637 = vmatprep.subr.mxu0 0.0
      %638 = vmatpush1.msra.mxu0 0.0
      %639 = vmatprep.subr.mxu0 0.0
      %640 = vmatpush1.msra.mxu0 0.0
      %641 = vmatprep.subr.mxu0 0.0
      %642 = vmatpush1.msra.mxu0 0.0
      %643 = vmatprep.subr.mxu0 0.0
      %644 = vmatpush1.msra.mxu0 0.0
      %645 = vmatprep.subr.mxu0 0.0
      %646 = vmatpush1.msra.mxu0 0.0
      %647 = vmatprep.subr.mxu0 0.0
      %648 = vmatpush1.msra.mxu0 0.0
      %649 = vmatprep.subr.mxu0 0.0
      %650 = vmatpush1.msra.mxu0 0.0
      %651 = vmatprep.subr.mxu0 0.0
      %652 = vmatpush1.msra.mxu0 0.0
      %653 = vmatprep.subr.mxu0 0.0
      %654 = vmatpush1.msra.mxu0 0.0
      %655 = vmatprep.subr.mxu0 0.0
      %656 = vmatpush1.msra.mxu0 0.0
      %657 = vmatprep.subr.mxu0 0.0
      %658 = vmatpush1.msra.mxu0 0.0
      %659 = vmatprep.mubr.f32.mxu0 0.0
      %660 = vmatmul.mubr.f32.gmra.mrb[0].mxu0 %v500
      %v661 = vpop.f32.mrb[0].mxu0
      %v662 = vadd.f32 0.0, %v661
      %v663 = vpop.f32.mrb[0].mxu0
      %664 = vmatprep.mubr.f32.mxu0 0.0
      %665 = vmatmul.mubr.f32.gmra.mrb[0].mxu0 %v503
      %v666 = vpop.f32.mrb[0].mxu0
      %v667 = vadd.f32 0.0, %v666
      %v668 = vpop.f32.mrb[0].mxu0
      %669 = vmatprep.mubr.f32.mxu0 0.0
      %670 = vmatmul.mubr.f32.gmra.mrb[0].mxu0 %v506
      %v671 = vpop.f32.mrb[0].mxu0
      %v672 = vadd.f32 0.0, %v671
      %v673 = vpop.f32.mrb[0].mxu0
      %674 = vmatprep.mubr.f32.mxu0 0.0
      %675 = vmatmul.mubr.f32.gmra.mrb[0].mxu0 %v509
      %v676 = vpop.f32.mrb[0].mxu0
      %v677 = vadd.f32 0.0, %v676
      %v678 = vpop.f32.mrb[0].mxu0
      %679 = vmatprep.mubr.f32.mxu0 0.0
      %680 = vmatmul.mubr.f32.gmra.mrb[0].mxu0 %v512
      %v681 = vpop.f32.mrb[0].mxu0
      %v682 = vadd.f32 0.0, %v681
      %v683 = vpop.f32.mrb[0].mxu0
      %684 = vmatprep.mubr.f32.mxu0 0.0
      %685 = vmatmul.mubr.f32.gmra.mrb[0].mxu0 %v515
      %v686 = vpop.f32.mrb[0].mxu0
      %v687 = vadd.f32 0.0, %v686
      %v688 = vpop.f32.mrb[0].mxu0
      %689 = vmatprep.mubr.f32.mxu0 0.0
      %690 = vmatmul.mubr.f32.gmra.mrb[0].mxu0 %v518
      %v691 = vpop.f32.mrb[0].mxu0
      %v692 = vadd.f32 0.0, %v691
      %v693 = vpop.f32.mrb[0].mxu0
      %694 = vmatprep.mubr.f32.mxu0 0.0
      %695 = vmatmul.mubr.f32.gmra.mrb[0].mxu0 %v521
      %v696 = vpop.f32.mrb[0].mxu0
      %v697 = vadd.f32 0.0, %v696
      %v698 = vpop.f32.mrb[0].mxu0
      %699 = vmatprep.mubr.f32.mxu0 0.0
      %700 = vmatmul.mubr.f32.gmra.mrb[0].mxu0 %v524
      %v701 = vpop.f32.mrb[0].mxu0
      %v702 = vadd.f32 0.0, %v701
      %v703 = vpop.f32.mrb[0].mxu0
      %704 = vmatprep.mubr.f32.mxu0 0.0
      %705 = vmatmul.mubr.f32.gmra.mrb[0].mxu0 %v527
      %v706 = vpop.f32.mrb[0].mxu0
      %v707 = vadd.f32 0.0, %v706
      %v708 = vpop.f32.mrb[0].mxu0
      %709 = vmatprep.mubr.f32.mxu0 0.0
      %710 = vmatmul.mubr.f32.gmra.mrb[0].mxu0 %v530
      %v711 = vpop.f32.mrb[0].mxu0
      %v712 = vadd.f32 0.0, %v711
      %v713 = vpop.f32.mrb[0].mxu0
      %714 = vmatprep.mubr.f32.mxu0 0.0
      %715 = vmatmul.mubr.f32.gmra.mrb[0].mxu0 %v533
      %v716 = vpop.f32.mrb[0].mxu0
      %v717 = vadd.f32 0.0, %v716
      %v718 = vpop.f32.mrb[0].mxu0
      %719 = vmatprep.mubr.f32.mxu0 0.0
      %720 = vmatmul.mubr.f32.gmra.mrb[0].mxu0 %v536
      %v721 = vpop.f32.mrb[0].mxu0
      %v722 = vadd.f32 0.0, %v721
      %v723 = vpop.f32.mrb[0].mxu0
      %724 = vmatprep.mubr.f32.mxu0 0.0
      %725 = vmatmul.mubr.f32.gmra.mrb[0].mxu0 %v539
      %v726 = vpop.f32.mrb[0].mxu0
      %v727 = vadd.f32 0.0, %v726
      %v728 = vpop.f32.mrb[0].mxu0
      %729 = vmatprep.mubr.f32.mxu0 0.0
      %730 = vmatmul.mubr.f32.gmra.mrb[0].mxu0 %v542
      %v731 = vpop.f32.mrb[0].mxu0
      %v732 = vadd.f32 0.0, %v731
      %v733 = vpop.f32.mrb[0].mxu0
      %734 = vmatprep.mubr.f32.mxu0 0.0
      %735 = vmatmul.mubr.f32.gmra.mrb[0].mxu0 %v545
      %v736 = vpop.f32.mrb[0].mxu0
      %v737 = vadd.f32 0.0, %v736
      %v738 = vpop.f32.mrb[0].mxu0
      %739 = vmatprep.mubr.f32.mxu0 0.0
      %740 = vmatmul.mubr.f32.gmra.mrb[0].mxu0 %v548
      %v741 = vpop.f32.mrb[0].mxu0
      %v742 = vadd.f32 0.0, %v741
      %v743 = vpop.f32.mrb[0].mxu0
      %744 = vmatprep.mubr.f32.mxu0 0.0
      %745 = vmatmul.mubr.f32.gmra.mrb[0].mxu0 %v551
      %v746 = vpop.f32.mrb[0].mxu0
      %v747 = vadd.f32 0.0, %v746
      %v748 = vpop.f32.mrb[0].mxu0
      %749 = vmatprep.mubr.f32.mxu0 0.0
      %750 = vmatmul.mubr.f32.gmra.mrb[0].mxu0 %v554
      %v751 = vpop.f32.mrb[0].mxu0
      %v752 = vadd.f32 0.0, %v751
      %v753 = vpop.f32.mrb[0].mxu0
      %754 = vmatprep.mubr.f32.mxu0 0.0
      %755 = vmatmul.mubr.f32.gmra.mrb[0].mxu0 %v557
      %v756 = vpop.f32.mrb[0].mxu0
      %v757 = vadd.f32 0.0, %v756
      %v758 = vpop.f32.mrb[0].mxu0
      %759 = vmatprep.mubr.f32.mxu0 0.0
      %760 = vmatmul.mubr.f32.gmra.mrb[0].mxu0 %v560
      %v761 = vpop.f32.mrb[0].mxu0
      %v762 = vadd.f32 0.0, %v761
      %v763 = vpop.f32.mrb[0].mxu0
      %764 = vmatprep.mubr.f32.mxu0 0.0
      %765 = vmatmul.mubr.f32.gmra.mrb[0].mxu0 %v563
      %v766 = vpop.f32.mrb[0].mxu0
      %v767 = vadd.f32 0.0, %v766
      %v768 = vpop.f32.mrb[0].mxu0
      %769 = vmatprep.mubr.f32.mxu0 0.0
      %770 = vmatmul.mubr.f32.gmra.mrb[0].mxu0 %v566
      %v771 = vpop.f32.mrb[0].mxu0
      %v772 = vadd.f32 0.0, %v771
      %v773 = vpop.f32.mrb[0].mxu0
      %774 = vmatprep.mubr.f32.mxu0 0.0
      %775 = vmatmul.mubr.f32.gmra.mrb[0].mxu0 %v569
      %v776 = vpop.f32.mrb[0].mxu0
      %v777 = vadd.f32 0.0, %v776
      %v778 = vpop.f32.mrb[0].mxu0
      %779 = vmatprep.mubr.f32.mxu0 0.0
      %780 = vmatmul.mubr.f32.gmra.mrb[0].mxu0 %v572
      %v781 = vpop.f32.mrb[0].mxu0
      %v782 = vadd.f32 0.0, %v781
      %v783 = vpop.f32.mrb[0].mxu0
      %784 = vmatprep.mubr.f32.mxu0 0.0
      %785 = vmatmul.mubr.f32.gmra.mrb[0].mxu0 %v575
      %v786 = vpop.f32.mrb[0].mxu0
      %v787 = vadd.f32 0.0, %v786
      %v788 = vpop.f32.mrb[0].mxu0
      %789 = vmatprep.mubr.f32.mxu0 0.0
      %790 = vmatmul.mubr.f32.gmra.mrb[0].mxu0 %v578
      %v791 = vpop.f32.mrb[0].mxu0
      %v792 = vadd.f32 0.0, %v791
      %v793 = vpop.f32.mrb[0].mxu0
      %794 = vmatprep.mubr.f32.mxu0 0.0
      %795 = vmatmul.mubr.f32.gmra.mrb[0].mxu0 %v581
      %v796 = vpop.f32.mrb[0].mxu0
      %v797 = vadd.f32 0.0, %v796
      %v798 = vpop.f32.mrb[0].mxu0
      %799 = vmatprep.mubr.f32.mxu0 0.0
      %800 = vmatmul.mubr.f32.gmra.mrb[0].mxu0 %v584
      %v801 = vpop.f32.mrb[0].mxu0
      %v802 = vadd.f32 0.0, %v801
      %v803 = vpop.f32.mrb[0].mxu0
      %804 = vmatprep.mubr.f32.mxu0 0.0
      %805 = vmatmul.mubr.f32.gmra.mrb[0].mxu0 %v587
      %v806 = vpop.f32.mrb[0].mxu0
      %v807 = vadd.f32 0.0, %v806
      %v808 = vpop.f32.mrb[0].mxu0
      %809 = vmatprep.mubr.f32.mxu0 0.0
      %810 = vmatmul.mubr.f32.gmra.mrb[0].mxu0 %v590
      %v811 = vpop.f32.mrb[0].mxu0
      %v812 = vadd.f32 0.0, %v811
      %v813 = vpop.f32.mrb[0].mxu0
      %814 = vmatprep.mubr.f32.mxu0 0.0
      %815 = vmatmul.mubr.f32.gmra.mrb[0].mxu0 %v593
      %v816 = vpop.f32.mrb[0].mxu0
      %v817 = vadd.f32 0.0, %v816
      %v818 = vpop.f32.mrb[0].mxu0
      %819 = vdwg.mxu0
      %v820 = vld [vmem:[%s315] sm:$0xff]
      %v821 = vld [vmem:[%s315 + $0x8] sm:$0xff]
      %v822 = vld [vmem:[%s315 + $0x10] sm:$0xff]
      %v823 = vld [vmem:[%s315 + $0x18] sm:$0xff]
      %v824 = vld [vmem:[%s315 + $0x20] sm:$0xff]
      %v825 = vld [vmem:[%s315 + $0x28] sm:$0xff]
      %v826 = vld [vmem:[%s315 + $0x30] sm:$0xff]
      %v827 = vld [vmem:[%s315 + $0x38] sm:$0xff]
      %v828 = vld [vmem:[%s315 + $0x40] sm:$0xff]
      %v829 = vld [vmem:[%s315 + $0x48] sm:$0xff]
      %v830 = vld [vmem:[%s315 + $0x50] sm:$0xff]
      %v831 = vld [vmem:[%s315 + $0x58] sm:$0xff]
      %v832 = vld [vmem:[%s315 + $0x60] sm:$0xff]
      %v833 = vld [vmem:[%s315 + $0x68] sm:$0xff]
      %v834 = vld [vmem:[%s315 + $0x70] sm:$0xff]
      %v835 = vld [vmem:[%s315 + $0x78] sm:$0xff]
      %v836 = vld [vmem:[%s315 + $0x80] sm:$0xff]
      %v837 = vld [vmem:[%s315 + $0x88] sm:$0xff]
      %v838 = vld [vmem:[%s315 + $0x90] sm:$0xff]
      %v839 = vld [vmem:[%s315 + $0x98] sm:$0xff]
      %v840 = vld [vmem:[%s315 + $0xa0] sm:$0xff]
      %v841 = vld [vmem:[%s315 + $0xa8] sm:$0xff]
      %v842 = vld [vmem:[%s315 + $0xb0] sm:$0xff]
      %v843 = vld [vmem:[%s315 + $0xb8] sm:$0xff]
      %v844 = vld [vmem:[%s315 + $0xc0] sm:$0xff]
      %v845 = vld [vmem:[%s315 + $0xc8] sm:$0xff]
      %v846 = vld [vmem:[%s315 + $0xd0] sm:$0xff]
      %v847 = vld [vmem:[%s315 + $0xd8] sm:$0xff]
      %v848 = vld [vmem:[%s315 + $0xe0] sm:$0xff]
      %v849 = vld [vmem:[%s315 + $0xe8] sm:$0xff]
      %v850 = vld [vmem:[%s315 + $0xf0] sm:$0xff]
      %v851 = vld [vmem:[%s315 + $0xf8] sm:$0xff]
      %v852 = vld [vmem:[%s2] sm:$0xff]
      %v853 = vld [vmem:[%s2 + $0x8] sm:$0xff]
      %v855 = vsel %vm336, %v820, 0
      %v858 = vsel %vm336, %v821, 0
      %v861 = vsel %vm336, %v822, 0
      %v864 = vsel %vm336, %v823, 0
      %v867 = vsel %vm336, %v824, 0
      %v870 = vsel %vm336, %v825, 0
      %v873 = vsel %vm336, %v826, 0
      %v876 = vsel %vm336, %v827, 0
      %v879 = vsel %vm336, %v828, 0
      %v882 = vsel %vm336, %v829, 0
      %v885 = vsel %vm336, %v830, 0
      %v888 = vsel %vm336, %v831, 0
      %v891 = vsel %vm336, %v832, 0
      %v894 = vsel %vm336, %v833, 0
      %v897 = vsel %vm336, %v834, 0
      %v900 = vsel %vm336, %v835, 0
      %v903 = vsel %vm336, %v836, 0
      %v906 = vsel %vm336, %v837, 0
      %v909 = vsel %vm336, %v838, 0
      %v912 = vsel %vm336, %v839, 0
      %v915 = vsel %vm336, %v840, 0
      %v918 = vsel %vm336, %v841, 0
      %v921 = vsel %vm336, %v842, 0
      %v924 = vsel %vm336, %v843, 0
      %v927 = vsel %vm336, %v844, 0
      %v930 = vsel %vm336, %v845, 0
      %v933 = vsel %vm336, %v846, 0
      %v936 = vsel %vm336, %v847, 0
      %v939 = vsel %vm336, %v848, 0
      %v942 = vsel %vm336, %v849, 0
      %v945 = vsel %vm336, %v850, 0
      %v948 = vsel %vm336, %v851, 0
      %950 = vmatprep.subr.mxu0 0.0
      %951 = vmatpush1.msra.mxu0 %v852
      %952 = vmatprep.subr.mxu0 0.0
      %953 = vmatpush1.msra.mxu0 %v853
      %954 = vmatprep.subr.mxu0 0.0
      %955 = vmatpush1.msra.mxu0 0.0
      %956 = vmatprep.subr.mxu0 0.0
      %957 = vmatpush1.msra.mxu0 0.0
      %958 = vmatprep.subr.mxu0 0.0
      %959 = vmatpush1.msra.mxu0 0.0
      %960 = vmatprep.subr.mxu0 0.0
      %961 = vmatpush1.msra.mxu0 0.0
      %962 = vmatprep.subr.mxu0 0.0
      %963 = vmatpush1.msra.mxu0 0.0
      %964 = vmatprep.subr.mxu0 0.0
      %965 = vmatpush1.msra.mxu0 0.0
      %966 = vmatprep.subr.mxu0 0.0
      %967 = vmatpush1.msra.mxu0 0.0
      %968 = vmatprep.subr.mxu0 0.0
      %969 = vmatpush1.msra.mxu0 0.0
      %970 = vmatprep.subr.mxu0 0.0
      %971 = vmatpush1.msra.mxu0 0.0
      %972 = vmatprep.subr.mxu0 0.0
      %973 = vmatpush1.msra.mxu0 0.0
      %974 = vmatprep.subr.mxu0 0.0
      %975 = vmatpush1.msra.mxu0 0.0
      %976 = vmatprep.subr.mxu0 0.0
      %977 = vmatpush1.msra.mxu0 0.0
      %978 = vmatprep.subr.mxu0 0.0
      %979 = vmatpush1.msra.mxu0 0.0
      %980 = vmatprep.subr.mxu0 0.0
      %981 = vmatpush1.msra.mxu0 0.0
      %982 = vmatprep.subr.mxu0 0.0
      %983 = vmatpush1.msra.mxu0 0.0
      %984 = vmatprep.subr.mxu0 0.0
      %985 = vmatpush1.msra.mxu0 0.0
      %986 = vmatprep.subr.mxu0 0.0
      %987 = vmatpush1.msra.mxu0 0.0
      %988 = vmatprep.subr.mxu0 0.0
      %989 = vmatpush1.msra.mxu0 0.0
      %990 = vmatprep.subr.mxu0 0.0
      %991 = vmatpush1.msra.mxu0 0.0
      %992 = vmatprep.subr.mxu0 0.0
      %993 = vmatpush1.msra.mxu0 0.0
      %994 = vmatprep.subr.mxu0 0.0
      %995 = vmatpush1.msra.mxu0 0.0
      %996 = vmatprep.subr.mxu0 0.0
      %997 = vmatpush1.msra.mxu0 0.0
      %998 = vmatprep.subr.mxu0 0.0
      %999 = vmatpush1.msra.mxu0 0.0
      %1000 = vmatprep.subr.mxu0 0.0
      %1001 = vmatpush1.msra.mxu0 0.0
      %1002 = vmatprep.subr.mxu0 0.0
      %1003 = vmatpush1.msra.mxu0 0.0
      %1004 = vmatprep.subr.mxu0 0.0
      %1005 = vmatpush1.msra.mxu0 0.0
      %1006 = vmatprep.subr.mxu0 0.0
      %1007 = vmatpush1.msra.mxu0 0.0
      %1008 = vmatprep.subr.mxu0 0.0
      %1009 = vmatpush1.msra.mxu0 0.0
      %1010 = vmatprep.subr.mxu0 0.0
      %1011 = vmatpush1.msra.mxu0 0.0
      %1012 = vmatprep.subr.mxu0 0.0
      %1013 = vmatpush1.msra.mxu0 0.0
      %1014 = vmatprep.mubr.f32.mxu0 0.0
      %1015 = vmatmul.mubr.f32.gmra.mrb[0].mxu0 %v855
      %v1016 = vpop.f32.mrb[0].mxu0
      %v1017 = vadd.f32 0.0, %v1016
      %v1018 = vpop.f32.mrb[0].mxu0
      %1019 = vmatprep.mubr.f32.mxu0 0.0
      %1020 = vmatmul.mubr.f32.gmra.mrb[0].mxu0 %v858
      %v1021 = vpop.f32.mrb[0].mxu0
      %v1022 = vadd.f32 0.0, %v1021
      %v1023 = vpop.f32.mrb[0].mxu0
      %1024 = vmatprep.mubr.f32.mxu0 0.0
      %1025 = vmatmul.mubr.f32.gmra.mrb[0].mxu0 %v861
      %v1026 = vpop.f32.mrb[0].mxu0
      %v1027 = vadd.f32 0.0, %v1026
      %v1028 = vpop.f32.mrb[0].mxu0
      %1029 = vmatprep.mubr.f32.mxu0 0.0
      %1030 = vmatmul.mubr.f32.gmra.mrb[0].mxu0 %v864
      %v1031 = vpop.f32.mrb[0].mxu0
      %v1032 = vadd.f32 0.0, %v1031
      %v1033 = vpop.f32.mrb[0].mxu0
      %1034 = vmatprep.mubr.f32.mxu0 0.0
      %1035 = vmatmul.mubr.f32.gmra.mrb[0].mxu0 %v867
      %v1036 = vpop.f32.mrb[0].mxu0
      %v1037 = vadd.f32 0.0, %v1036
      %v1038 = vpop.f32.mrb[0].mxu0
      %1039 = vmatprep.mubr.f32.mxu0 0.0
      %1040 = vmatmul.mubr.f32.gmra.mrb[0].mxu0 %v870
      %v1041 = vpop.f32.mrb[0].mxu0
      %v1042 = vadd.f32 0.0, %v1041
      %v1043 = vpop.f32.mrb[0].mxu0
      %1044 = vmatprep.mubr.f32.mxu0 0.0
      %1045 = vmatmul.mubr.f32.gmra.mrb[0].mxu0 %v873
      %v1046 = vpop.f32.mrb[0].mxu0
      %v1047 = vadd.f32 0.0, %v1046
      %v1048 = vpop.f32.mrb[0].mxu0
      %1049 = vmatprep.mubr.f32.mxu0 0.0
      %1050 = vmatmul.mubr.f32.gmra.mrb[0].mxu0 %v876
      %v1051 = vpop.f32.mrb[0].mxu0
      %v1052 = vadd.f32 0.0, %v1051
      %v1053 = vpop.f32.mrb[0].mxu0
      %1054 = vmatprep.mubr.f32.mxu0 0.0
      %1055 = vmatmul.mubr.f32.gmra.mrb[0].mxu0 %v879
      %v1056 = vpop.f32.mrb[0].mxu0
      %v1057 = vadd.f32 0.0, %v1056
      %v1058 = vpop.f32.mrb[0].mxu0
      %1059 = vmatprep.mubr.f32.mxu0 0.0
      %1060 = vmatmul.mubr.f32.gmra.mrb[0].mxu0 %v882
      %v1061 = vpop.f32.mrb[0].mxu0
      %v1062 = vadd.f32 0.0, %v1061
      %v1063 = vpop.f32.mrb[0].mxu0
      %1064 = vmatprep.mubr.f32.mxu0 0.0
      %1065 = vmatmul.mubr.f32.gmra.mrb[0].mxu0 %v885
      %v1066 = vpop.f32.mrb[0].mxu0
      %v1067 = vadd.f32 0.0, %v1066
      %v1068 = vpop.f32.mrb[0].mxu0
      %1069 = vmatprep.mubr.f32.mxu0 0.0
      %1070 = vmatmul.mubr.f32.gmra.mrb[0].mxu0 %v888
      %v1071 = vpop.f32.mrb[0].mxu0
      %v1072 = vadd.f32 0.0, %v1071
      %v1073 = vpop.f32.mrb[0].mxu0
      %1074 = vmatprep.mubr.f32.mxu0 0.0
      %1075 = vmatmul.mubr.f32.gmra.mrb[0].mxu0 %v891
      %v1076 = vpop.f32.mrb[0].mxu0
      %v1077 = vadd.f32 0.0, %v1076
      %v1078 = vpop.f32.mrb[0].mxu0
      %1079 = vmatprep.mubr.f32.mxu0 0.0
      %1080 = vmatmul.mubr.f32.gmra.mrb[0].mxu0 %v894
      %v1081 = vpop.f32.mrb[0].mxu0
      %v1082 = vadd.f32 0.0, %v1081
      %v1083 = vpop.f32.mrb[0].mxu0
      %1084 = vmatprep.mubr.f32.mxu0 0.0
      %1085 = vmatmul.mubr.f32.gmra.mrb[0].mxu0 %v897
      %v1086 = vpop.f32.mrb[0].mxu0
      %v1087 = vadd.f32 0.0, %v1086
      %v1088 = vpop.f32.mrb[0].mxu0
      %1089 = vmatprep.mubr.f32.mxu0 0.0
      %1090 = vmatmul.mubr.f32.gmra.mrb[0].mxu0 %v900
      %v1091 = vpop.f32.mrb[0].mxu0
      %v1092 = vadd.f32 0.0, %v1091
      %v1093 = vpop.f32.mrb[0].mxu0
      %1094 = vmatprep.mubr.f32.mxu0 0.0
      %1095 = vmatmul.mubr.f32.gmra.mrb[0].mxu0 %v903
      %v1096 = vpop.f32.mrb[0].mxu0
      %v1097 = vadd.f32 0.0, %v1096
      %v1098 = vpop.f32.mrb[0].mxu0
      %1099 = vmatprep.mubr.f32.mxu0 0.0
      %1100 = vmatmul.mubr.f32.gmra.mrb[0].mxu0 %v906
      %v1101 = vpop.f32.mrb[0].mxu0
      %v1102 = vadd.f32 0.0, %v1101
      %v1103 = vpop.f32.mrb[0].mxu0
      %1104 = vmatprep.mubr.f32.mxu0 0.0
      %1105 = vmatmul.mubr.f32.gmra.mrb[0].mxu0 %v909
      %v1106 = vpop.f32.mrb[0].mxu0
      %v1107 = vadd.f32 0.0, %v1106
      %v1108 = vpop.f32.mrb[0].mxu0
      %1109 = vmatprep.mubr.f32.mxu0 0.0
      %1110 = vmatmul.mubr.f32.gmra.mrb[0].mxu0 %v912
      %v1111 = vpop.f32.mrb[0].mxu0
      %v1112 = vadd.f32 0.0, %v1111
      %v1113 = vpop.f32.mrb[0].mxu0
      %1114 = vmatprep.mubr.f32.mxu0 0.0
      %1115 = vmatmul.mubr.f32.gmra.mrb[0].mxu0 %v915
      %v1116 = vpop.f32.mrb[0].mxu0
      %v1117 = vadd.f32 0.0, %v1116
      %v1118 = vpop.f32.mrb[0].mxu0
      %1119 = vmatprep.mubr.f32.mxu0 0.0
      %1120 = vmatmul.mubr.f32.gmra.mrb[0].mxu0 %v918
      %v1121 = vpop.f32.mrb[0].mxu0
      %v1122 = vadd.f32 0.0, %v1121
      %v1123 = vpop.f32.mrb[0].mxu0
      %1124 = vmatprep.mubr.f32.mxu0 0.0
      %1125 = vmatmul.mubr.f32.gmra.mrb[0].mxu0 %v921
      %v1126 = vpop.f32.mrb[0].mxu0
      %v1127 = vadd.f32 0.0, %v1126
      %v1128 = vpop.f32.mrb[0].mxu0
      %1129 = vmatprep.mubr.f32.mxu0 0.0
      %1130 = vmatmul.mubr.f32.gmra.mrb[0].mxu0 %v924
      %v1131 = vpop.f32.mrb[0].mxu0
      %v1132 = vadd.f32 0.0, %v1131
      %v1133 = vpop.f32.mrb[0].mxu0
      %1134 = vmatprep.mubr.f32.mxu0 0.0
      %1135 = vmatmul.mubr.f32.gmra.mrb[0].mxu0 %v927
      %v1136 = vpop.f32.mrb[0].mxu0
      %v1137 = vadd.f32 0.0, %v1136
      %v1138 = vpop.f32.mrb[0].mxu0
      %1139 = vmatprep.mubr.f32.mxu0 0.0
      %1140 = vmatmul.mubr.f32.gmra.mrb[0].mxu0 %v930
      %v1141 = vpop.f32.mrb[0].mxu0
      %v1142 = vadd.f32 0.0, %v1141
      %v1143 = vpop.f32.mrb[0].mxu0
      %1144 = vmatprep.mubr.f32.mxu0 0.0
      %1145 = vmatmul.mubr.f32.gmra.mrb[0].mxu0 %v933
      %v1146 = vpop.f32.mrb[0].mxu0
      %v1147 = vadd.f32 0.0, %v1146
      %v1148 = vpop.f32.mrb[0].mxu0
      %1149 = vmatprep.mubr.f32.mxu0 0.0
      %1150 = vmatmul.mubr.f32.gmra.mrb[0].mxu0 %v936
      %v1151 = vpop.f32.mrb[0].mxu0
      %v1152 = vadd.f32 0.0, %v1151
      %v1153 = vpop.f32.mrb[0].mxu0
      %1154 = vmatprep.mubr.f32.mxu0 0.0
      %1155 = vmatmul.mubr.f32.gmra.mrb[0].mxu0 %v939
      %v1156 = vpop.f32.mrb[0].mxu0
      %v1157 = vadd.f32 0.0, %v1156
      %v1158 = vpop.f32.mrb[0].mxu0
      %1159 = vmatprep.mubr.f32.mxu0 0.0
      %1160 = vmatmul.mubr.f32.gmra.mrb[0].mxu0 %v942
      %v1161 = vpop.f32.mrb[0].mxu0
      %v1162 = vadd.f32 0.0, %v1161
      %v1163 = vpop.f32.mrb[0].mxu0
      %1164 = vmatprep.mubr.f32.mxu0 0.0
      %1165 = vmatmul.mubr.f32.gmra.mrb[0].mxu0 %v945
      %v1166 = vpop.f32.mrb[0].mxu0
      %v1167 = vadd.f32 0.0, %v1166
      %v1168 = vpop.f32.mrb[0].mxu0
      %1169 = vmatprep.mubr.f32.mxu0 0.0
      %1170 = vmatmul.mubr.f32.gmra.mrb[0].mxu0 %v948
      %v1171 = vpop.f32.mrb[0].mxu0
      %v1172 = vadd.f32 0.0, %v1171
      %v1173 = vpop.f32.mrb[0].mxu0
      %1174 = vdwg.mxu0
      %v1175 = vld [vmem:[%s7] sm:$0xff]
      %v1176 = vld [vmem:[%s7 + $0x8] sm:$0xff]
      %v1177 = vld [vmem:[%s7 + $0x10] sm:$0xff]
      %v1178 = vld [vmem:[%s7 + $0x18] sm:$0xff]
      %v1179 = vld [vmem:[%s7 + $0x20] sm:$0xff]
      %v1180 = vld [vmem:[%s7 + $0x28] sm:$0xff]
      %v1181 = vld [vmem:[%s7 + $0x30] sm:$0xff]
      %v1182 = vld [vmem:[%s7 + $0x38] sm:$0xff]
      %v1183 = vld [vmem:[%s7 + $0x40] sm:$0xff]
      %v1184 = vld [vmem:[%s7 + $0x48] sm:$0xff]
      %v1185 = vld [vmem:[%s7 + $0x50] sm:$0xff]
      %v1186 = vld [vmem:[%s7 + $0x58] sm:$0xff]
      %v1187 = vld [vmem:[%s7 + $0x60] sm:$0xff]
      %v1188 = vld [vmem:[%s7 + $0x68] sm:$0xff]
      %v1189 = vld [vmem:[%s7 + $0x70] sm:$0xff]
      %v1190 = vld [vmem:[%s7 + $0x78] sm:$0xff]
      %v1191 = vld [vmem:[%s7 + $0x80] sm:$0xff]
      %v1192 = vld [vmem:[%s7 + $0x88] sm:$0xff]
      %v1193 = vld [vmem:[%s7 + $0x90] sm:$0xff]
      %v1194 = vld [vmem:[%s7 + $0x98] sm:$0xff]
      %v1195 = vld [vmem:[%s7 + $0xa0] sm:$0xff]
      %v1196 = vld [vmem:[%s7 + $0xa8] sm:$0xff]
      %v1197 = vld [vmem:[%s7 + $0xb0] sm:$0xff]
      %v1198 = vld [vmem:[%s7 + $0xb8] sm:$0xff]
      %v1199 = vld [vmem:[%s7 + $0xc0] sm:$0xff]
      %v1200 = vld [vmem:[%s7 + $0xc8] sm:$0xff]
      %v1201 = vld [vmem:[%s7 + $0xd0] sm:$0xff]
      %v1202 = vld [vmem:[%s7 + $0xd8] sm:$0xff]
      %v1203 = vld [vmem:[%s7 + $0xe0] sm:$0xff]
      %v1204 = vld [vmem:[%s7 + $0xe8] sm:$0xff]
      %v1205 = vld [vmem:[%s7 + $0xf0] sm:$0xff]
      %v1206 = vld [vmem:[%s7 + $0xf8] sm:$0xff]
      %vm1237 = vcmask 1040384
      %v1238 = vrot.slane %v662, 7
      %v1239 = vrot.slane %v667, 7
      %v1240 = vsel %vm1237, %v1238, %v1239
      %v1241 = vrot.slane %v672, 7
      %v1242 = vsel %vm1237, %v1239, %v1241
      %v1243 = vrot.slane %v677, 7
      %v1244 = vsel %vm1237, %v1241, %v1243
      %v1245 = vrot.slane %v682, 7
      %v1246 = vsel %vm1237, %v1243, %v1245
      %v1247 = vrot.slane %v687, 7
      %v1248 = vsel %vm1237, %v1245, %v1247
      %v1249 = vrot.slane %v692, 7
      %v1250 = vsel %vm1237, %v1247, %v1249
      %v1251 = vrot.slane %v697, 7
      %v1252 = vsel %vm1237, %v1249, %v1251
      %v1253 = vrot.slane %v702, 7
      %v1254 = vsel %vm1237, %v1251, %v1253
      %v1255 = vrot.slane %v707, 7
      %v1256 = vsel %vm1237, %v1253, %v1255
      %v1257 = vrot.slane %v712, 7
      %v1258 = vsel %vm1237, %v1255, %v1257
      %v1259 = vrot.slane %v717, 7
      %v1260 = vsel %vm1237, %v1257, %v1259
      %v1261 = vrot.slane %v722, 7
      %v1262 = vsel %vm1237, %v1259, %v1261
      %v1263 = vrot.slane %v727, 7
      %v1264 = vsel %vm1237, %v1261, %v1263
      %v1265 = vrot.slane %v732, 7
      %v1266 = vsel %vm1237, %v1263, %v1265
      %v1267 = vrot.slane %v737, 7
      %v1268 = vsel %vm1237, %v1265, %v1267
      %v1269 = vrot.slane %v742, 7
      %v1270 = vsel %vm1237, %v1267, %v1269
      %v1271 = vrot.slane %v747, 7
      %v1272 = vsel %vm1237, %v1269, %v1271
      %v1273 = vrot.slane %v752, 7
      %v1274 = vsel %vm1237, %v1271, %v1273
      %v1275 = vrot.slane %v757, 7
      %v1276 = vsel %vm1237, %v1273, %v1275
      %v1277 = vrot.slane %v762, 7
      %v1278 = vsel %vm1237, %v1275, %v1277
      %v1279 = vrot.slane %v767, 7
      %v1280 = vsel %vm1237, %v1277, %v1279
      %v1281 = vrot.slane %v772, 7
      %v1282 = vsel %vm1237, %v1279, %v1281
      %v1283 = vrot.slane %v777, 7
      %v1284 = vsel %vm1237, %v1281, %v1283
      %v1285 = vrot.slane %v782, 7
      %v1286 = vsel %vm1237, %v1283, %v1285
      %v1287 = vrot.slane %v787, 7
      %v1288 = vsel %vm1237, %v1285, %v1287
      %v1289 = vrot.slane %v792, 7
      %v1290 = vsel %vm1237, %v1287, %v1289
      %v1291 = vrot.slane %v797, 7
      %v1292 = vsel %vm1237, %v1289, %v1291
      %v1293 = vrot.slane %v802, 7
      %v1294 = vsel %vm1237, %v1291, %v1293
      %v1295 = vrot.slane %v807, 7
      %v1296 = vsel %vm1237, %v1293, %v1295
      %v1327 = vsel %vm1237, 0.0, %v1238
      %1329 = vset.pattern.permute.xlu0 0
      %1330 = vperm.xlu0 %1329, %v1175
      %v1331 = vpop.permute.xlu0 %1330
      %1334 = vset.pattern.permute.xlu0 0
      %1335 = vperm.xlu0 %1334, %v1176
      %v1336 = vpop.permute.xlu0 %1335
      %1339 = vset.pattern.permute.xlu0 0
      %1340 = vperm.xlu0 %1339, %v1177
      %v1341 = vpop.permute.xlu0 %1340
      %1344 = vset.pattern.permute.xlu0 0
      %1345 = vperm.xlu0 %1344, %v1178
      %v1346 = vpop.permute.xlu0 %1345
      %1349 = vset.pattern.permute.xlu0 0
      %1350 = vperm.xlu0 %1349, %v1179
      %v1351 = vpop.permute.xlu0 %1350
      %1354 = vset.pattern.permute.xlu0 0
      %1355 = vperm.xlu0 %1354, %v1180
      %v1356 = vpop.permute.xlu0 %1355
      %1359 = vset.pattern.permute.xlu0 0
      %1360 = vperm.xlu0 %1359, %v1181
      %v1361 = vpop.permute.xlu0 %1360
      %1364 = vset.pattern.permute.xlu0 0
      %1365 = vperm.xlu0 %1364, %v1182
      %v1366 = vpop.permute.xlu0 %1365
      %1369 = vset.pattern.permute.xlu0 0
      %1370 = vperm.xlu0 %1369, %v1183
      %v1371 = vpop.permute.xlu0 %1370
      %1374 = vset.pattern.permute.xlu0 0
      %1375 = vperm.xlu0 %1374, %v1184
      %v1376 = vpop.permute.xlu0 %1375
      %1379 = vset.pattern.permute.xlu0 0
      %1380 = vperm.xlu0 %1379, %v1185
      %v1381 = vpop.permute.xlu0 %1380
      %1384 = vset.pattern.permute.xlu0 0
      %1385 = vperm.xlu0 %1384, %v1186
      %v1386 = vpop.permute.xlu0 %1385
      %1389 = vset.pattern.permute.xlu0 0
      %1390 = vperm.xlu0 %1389, %v1187
      %v1391 = vpop.permute.xlu0 %1390
      %1394 = vset.pattern.permute.xlu0 0
      %1395 = vperm.xlu0 %1394, %v1188
      %v1396 = vpop.permute.xlu0 %1395
      %1399 = vset.pattern.permute.xlu0 0
      %1400 = vperm.xlu0 %1399, %v1189
      %v1401 = vpop.permute.xlu0 %1400
      %1404 = vset.pattern.permute.xlu0 0
      %1405 = vperm.xlu0 %1404, %v1190
      %v1406 = vpop.permute.xlu0 %1405
      %1409 = vset.pattern.permute.xlu0 0
      %1410 = vperm.xlu0 %1409, %v1191
      %v1411 = vpop.permute.xlu0 %1410
      %1414 = vset.pattern.permute.xlu0 0
      %1415 = vperm.xlu0 %1414, %v1192
      %v1416 = vpop.permute.xlu0 %1415
      %1419 = vset.pattern.permute.xlu0 0
      %1420 = vperm.xlu0 %1419, %v1193
      %v1421 = vpop.permute.xlu0 %1420
      %1424 = vset.pattern.permute.xlu0 0
      %1425 = vperm.xlu0 %1424, %v1194
      %v1426 = vpop.permute.xlu0 %1425
      %1429 = vset.pattern.permute.xlu0 0
      %1430 = vperm.xlu0 %1429, %v1195
      %v1431 = vpop.permute.xlu0 %1430
      %1434 = vset.pattern.permute.xlu0 0
      %1435 = vperm.xlu0 %1434, %v1196
      %v1436 = vpop.permute.xlu0 %1435
      %1439 = vset.pattern.permute.xlu0 0
      %1440 = vperm.xlu0 %1439, %v1197
      %v1441 = vpop.permute.xlu0 %1440
      %1444 = vset.pattern.permute.xlu0 0
      %1445 = vperm.xlu0 %1444, %v1198
      %v1446 = vpop.permute.xlu0 %1445
      %1449 = vset.pattern.permute.xlu0 0
      %1450 = vperm.xlu0 %1449, %v1199
      %v1451 = vpop.permute.xlu0 %1450
      %1454 = vset.pattern.permute.xlu0 0
      %1455 = vperm.xlu0 %1454, %v1200
      %v1456 = vpop.permute.xlu0 %1455
      %1459 = vset.pattern.permute.xlu0 0
      %1460 = vperm.xlu0 %1459, %v1201
      %v1461 = vpop.permute.xlu0 %1460
      %1464 = vset.pattern.permute.xlu0 0
      %1465 = vperm.xlu0 %1464, %v1202
      %v1466 = vpop.permute.xlu0 %1465
      %1469 = vset.pattern.permute.xlu0 0
      %1470 = vperm.xlu0 %1469, %v1203
      %v1471 = vpop.permute.xlu0 %1470
      %1474 = vset.pattern.permute.xlu0 0
      %1475 = vperm.xlu0 %1474, %v1204
      %v1476 = vpop.permute.xlu0 %1475
      %1479 = vset.pattern.permute.xlu0 0
      %1480 = vperm.xlu0 %1479, %v1205
      %v1481 = vpop.permute.xlu0 %1480
      %1484 = vset.pattern.permute.xlu0 0
      %1485 = vperm.xlu0 %1484, %v1206
      %v1486 = vpop.permute.xlu0 %1485
      %v1488 = vmul.f32 %v1331, 0.0
      %v1489 = vmul.f32 %v1336, 0.0
      %v1490 = vmul.f32 %v1327, %v1341
      %v1491 = vmul.f32 %v1240, %v1346
      %v1492 = vmul.f32 %v1242, %v1351
      %v1493 = vmul.f32 %v1244, %v1356
      %v1494 = vmul.f32 %v1246, %v1361
      %v1495 = vmul.f32 %v1248, %v1366
      %v1496 = vmul.f32 %v1250, %v1371
      %v1497 = vmul.f32 %v1252, %v1376
      %v1498 = vmul.f32 %v1254, %v1381
      %v1499 = vmul.f32 %v1256, %v1386
      %v1500 = vmul.f32 %v1258, %v1391
      %v1501 = vmul.f32 %v1260, %v1396
      %v1502 = vmul.f32 %v1262, %v1401
      %v1503 = vmul.f32 %v1264, %v1406
      %v1504 = vmul.f32 %v1266, %v1411
      %v1505 = vmul.f32 %v1268, %v1416
      %v1506 = vmul.f32 %v1270, %v1421
      %v1507 = vmul.f32 %v1272, %v1426
      %v1508 = vmul.f32 %v1274, %v1431
      %v1509 = vmul.f32 %v1276, %v1436
      %v1510 = vmul.f32 %v1278, %v1441
      %v1511 = vmul.f32 %v1280, %v1446
      %v1512 = vmul.f32 %v1282, %v1451
      %v1513 = vmul.f32 %v1284, %v1456
      %v1514 = vmul.f32 %v1286, %v1461
      %v1515 = vmul.f32 %v1288, %v1466
      %v1516 = vmul.f32 %v1290, %v1471
      %v1517 = vmul.f32 %v1292, %v1476
      %v1518 = vmul.f32 %v1294, %v1481
      %v1519 = vmul.f32 %v1296, %v1486
      %v1550 = vrot.slane %v1017, 7
      %v1551 = vrot.slane %v1022, 7
      %v1552 = vsel %vm1237, %v1550, %v1551
      %v1553 = vrot.slane %v1027, 7
      %v1554 = vsel %vm1237, %v1551, %v1553
      %v1555 = vrot.slane %v1032, 7
      %v1556 = vsel %vm1237, %v1553, %v1555
      %v1557 = vrot.slane %v1037, 7
      %v1558 = vsel %vm1237, %v1555, %v1557
      %v1559 = vrot.slane %v1042, 7
      %v1560 = vsel %vm1237, %v1557, %v1559
      %v1561 = vrot.slane %v1047, 7
      %v1562 = vsel %vm1237, %v1559, %v1561
      %v1563 = vrot.slane %v1052, 7
      %v1564 = vsel %vm1237, %v1561, %v1563
      %v1565 = vrot.slane %v1057, 7
      %v1566 = vsel %vm1237, %v1563, %v1565
      %v1567 = vrot.slane %v1062, 7
      %v1568 = vsel %vm1237, %v1565, %v1567
      %v1569 = vrot.slane %v1067, 7
      %v1570 = vsel %vm1237, %v1567, %v1569
      %v1571 = vrot.slane %v1072, 7
      %v1572 = vsel %vm1237, %v1569, %v1571
      %v1573 = vrot.slane %v1077, 7
      %v1574 = vsel %vm1237, %v1571, %v1573
      %v1575 = vrot.slane %v1082, 7
      %v1576 = vsel %vm1237, %v1573, %v1575
      %v1577 = vrot.slane %v1087, 7
      %v1578 = vsel %vm1237, %v1575, %v1577
      %v1579 = vrot.slane %v1092, 7
      %v1580 = vsel %vm1237, %v1577, %v1579
      %v1581 = vrot.slane %v1097, 7
      %v1582 = vsel %vm1237, %v1579, %v1581
      %v1583 = vrot.slane %v1102, 7
      %v1584 = vsel %vm1237, %v1581, %v1583
      %v1585 = vrot.slane %v1107, 7
      %v1586 = vsel %vm1237, %v1583, %v1585
      %v1587 = vrot.slane %v1112, 7
      %v1588 = vsel %vm1237, %v1585, %v1587
      %v1589 = vrot.slane %v1117, 7
      %v1590 = vsel %vm1237, %v1587, %v1589
      %v1591 = vrot.slane %v1122, 7
      %v1592 = vsel %vm1237, %v1589, %v1591
      %v1593 = vrot.slane %v1127, 7
      %v1594 = vsel %vm1237, %v1591, %v1593
      %v1595 = vrot.slane %v1132, 7
      %v1596 = vsel %vm1237, %v1593, %v1595
      %v1597 = vrot.slane %v1137, 7
      %v1598 = vsel %vm1237, %v1595, %v1597
      %v1599 = vrot.slane %v1142, 7
      %v1600 = vsel %vm1237, %v1597, %v1599
      %v1601 = vrot.slane %v1147, 7
      %v1602 = vsel %vm1237, %v1599, %v1601
      %v1603 = vrot.slane %v1152, 7
      %v1604 = vsel %vm1237, %v1601, %v1603
      %v1605 = vrot.slane %v1157, 7
      %v1606 = vsel %vm1237, %v1603, %v1605
      %v1607 = vrot.slane %v1162, 7
      %v1608 = vsel %vm1237, %v1605, %v1607
      %v1639 = vsel %vm1237, 0.0, %v1550
      %v1640 = vmul.f32 %v1639, %v1341
      %v1641 = vmul.f32 %v1552, %v1346
      %v1642 = vmul.f32 %v1554, %v1351
      %v1643 = vmul.f32 %v1556, %v1356
      %v1644 = vmul.f32 %v1558, %v1361
      %v1645 = vmul.f32 %v1560, %v1366
      %v1646 = vmul.f32 %v1562, %v1371
      %v1647 = vmul.f32 %v1564, %v1376
      %v1648 = vmul.f32 %v1566, %v1381
      %v1649 = vmul.f32 %v1568, %v1386
      %v1650 = vmul.f32 %v1570, %v1391
      %v1651 = vmul.f32 %v1572, %v1396
      %v1652 = vmul.f32 %v1574, %v1401
      %v1653 = vmul.f32 %v1576, %v1406
      %v1654 = vmul.f32 %v1578, %v1411
      %v1655 = vmul.f32 %v1580, %v1416
      %v1656 = vmul.f32 %v1582, %v1421
      %v1657 = vmul.f32 %v1584, %v1426
      %v1658 = vmul.f32 %v1586, %v1431
      %v1659 = vmul.f32 %v1588, %v1436
      %v1660 = vmul.f32 %v1590, %v1441
      %v1661 = vmul.f32 %v1592, %v1446
      %v1662 = vmul.f32 %v1594, %v1451
      %v1663 = vmul.f32 %v1596, %v1456
      %v1664 = vmul.f32 %v1598, %v1461
      %v1665 = vmul.f32 %v1600, %v1466
      %v1666 = vmul.f32 %v1602, %v1471
      %v1667 = vmul.f32 %v1604, %v1476
      %v1668 = vmul.f32 %v1606, %v1481
      %v1669 = vmul.f32 %v1608, %v1486
      %v1670 = vld [vmem:[%s5] sm:$0xff]
      %v1671 = vld [vmem:[%s6] sm:$0xff]
      %vm1672 = vcmask 64512
      %v1674 = vsel %vm1672, %v1488, 0
      %v1677 = vsel %vm1672, %v1489, 0
      %v1680 = vsel %vm1672, %v1640, 0
      %v1683 = vsel %vm1672, %v1641, 0
      %v1686 = vsel %vm1672, %v1642, 0
      %v1689 = vsel %vm1672, %v1643, 0
      %v1692 = vsel %vm1672, %v1644, 0
      %v1695 = vsel %vm1672, %v1645, 0
      %v1698 = vsel %vm1672, %v1646, 0
      %v1701 = vsel %vm1672, %v1647, 0
      %v1704 = vsel %vm1672, %v1648, 0
      %v1707 = vsel %vm1672, %v1649, 0
      %v1710 = vsel %vm1672, %v1650, 0
      %v1713 = vsel %vm1672, %v1651, 0
      %v1716 = vsel %vm1672, %v1652, 0
      %v1719 = vsel %vm1672, %v1653, 0
      %v1722 = vsel %vm1672, %v1654, 0
      %v1725 = vsel %vm1672, %v1655, 0
      %v1728 = vsel %vm1672, %v1656, 0
      %v1731 = vsel %vm1672, %v1657, 0
      %v1734 = vsel %vm1672, %v1658, 0
      %v1737 = vsel %vm1672, %v1659, 0
      %v1740 = vsel %vm1672, %v1660, 0
      %v1743 = vsel %vm1672, %v1661, 0
      %v1746 = vsel %vm1672, %v1662, 0
      %v1749 = vsel %vm1672, %v1663, 0
      %v1752 = vsel %vm1672, %v1664, 0
      %v1755 = vsel %vm1672, %v1665, 0
      %v1758 = vsel %vm1672, %v1666, 0
      %v1761 = vsel %vm1672, %v1667, 0
      %v1764 = vsel %vm1672, %v1668, 0
      %v1767 = vsel %vm1672, %v1669, 0
      %1769 = vmatprep.subr.mxu0 0.0
      %1770 = vmatpush1.msra.mxu0 %v1671
      %1771 = vmatprep.subr.mxu0 0.0
      %1772 = vmatpush1.msra.mxu0 0.0
      %1773 = vmatprep.subr.mxu0 0.0
      %1774 = vmatpush1.msra.mxu0 0.0
      %1775 = vmatprep.subr.mxu0 0.0
      %1776 = vmatpush1.msra.mxu0 0.0
      %1777 = vmatprep.subr.mxu0 0.0
      %1778 = vmatpush1.msra.mxu0 0.0
      %1779 = vmatprep.subr.mxu0 0.0
      %1780 = vmatpush1.msra.mxu0 0.0
      %1781 = vmatprep.subr.mxu0 0.0
      %1782 = vmatpush1.msra.mxu0 0.0
      %1783 = vmatprep.subr.mxu0 0.0
      %1784 = vmatpush1.msra.mxu0 0.0
      %1785 = vmatprep.subr.mxu0 0.0
      %1786 = vmatpush1.msra.mxu0 0.0
      %1787 = vmatprep.subr.mxu0 0.0
      %1788 = vmatpush1.msra.mxu0 0.0
      %1789 = vmatprep.subr.mxu0 0.0
      %1790 = vmatpush1.msra.mxu0 0.0
      %1791 = vmatprep.subr.mxu0 0.0
      %1792 = vmatpush1.msra.mxu0 0.0
      %1793 = vmatprep.subr.mxu0 0.0
      %1794 = vmatpush1.msra.mxu0 0.0
      %1795 = vmatprep.subr.mxu0 0.0
      %1796 = vmatpush1.msra.mxu0 0.0
      %1797 = vmatprep.subr.mxu0 0.0
      %1798 = vmatpush1.msra.mxu0 0.0
      %1799 = vmatprep.subr.mxu0 0.0
      %1800 = vmatpush1.msra.mxu0 0.0
      %1801 = vmatprep.subr.mxu0 0.0
      %1802 = vmatpush1.msra.mxu0 0.0
      %1803 = vmatprep.subr.mxu0 0.0
      %1804 = vmatpush1.msra.mxu0 0.0
      %1805 = vmatprep.subr.mxu0 0.0
      %1806 = vmatpush1.msra.mxu0 0.0
      %1807 = vmatprep.subr.mxu0 0.0
      %1808 = vmatpush1.msra.mxu0 0.0
      %1809 = vmatprep.subr.mxu0 0.0
      %1810 = vmatpush1.msra.mxu0 0.0
      %1811 = vmatprep.subr.mxu0 0.0
      %1812 = vmatpush1.msra.mxu0 0.0
      %1813 = vmatprep.subr.mxu0 0.0
      %1814 = vmatpush1.msra.mxu0 0.0
      %1815 = vmatprep.subr.mxu0 0.0
      %1816 = vmatpush1.msra.mxu0 0.0
      %1817 = vmatprep.subr.mxu0 0.0
      %1818 = vmatpush1.msra.mxu0 0.0
      %1819 = vmatprep.subr.mxu0 0.0
      %1820 = vmatpush1.msra.mxu0 0.0
      %1821 = vmatprep.subr.mxu0 0.0
      %1822 = vmatpush1.msra.mxu0 0.0
      %1823 = vmatprep.subr.mxu0 0.0
      %1824 = vmatpush1.msra.mxu0 0.0
      %1825 = vmatprep.subr.mxu0 0.0
      %1826 = vmatpush1.msra.mxu0 0.0
      %1827 = vmatprep.subr.mxu0 0.0
      %1828 = vmatpush1.msra.mxu0 0.0
      %1829 = vmatprep.subr.mxu0 0.0
      %1830 = vmatpush1.msra.mxu0 0.0
      %1831 = vmatprep.subr.mxu0 0.0
      %1832 = vmatpush1.msra.mxu0 0.0
      %1833 = vmatprep.mubr.f32.mxu0 0.0
      %1834 = vmatmul.mubr.f32.gmra.mrb[0].mxu0 %v1674
      %v1835 = vpop.f32.mrb[0].mxu0
      %v1836 = vadd.f32 0.0, %v1835
      %v1837 = vpop.f32.mrb[0].mxu0
      %1838 = vmatprep.mubr.f32.mxu0 0.0
      %1839 = vmatmul.mubr.f32.gmra.mrb[0].mxu0 %v1677
      %v1840 = vpop.f32.mrb[0].mxu0
      %v1841 = vadd.f32 0.0, %v1840
      %v1842 = vpop.f32.mrb[0].mxu0
      %1843 = vmatprep.mubr.f32.mxu0 0.0
      %1844 = vmatmul.mubr.f32.gmra.mrb[0].mxu0 %v1680
      %v1845 = vpop.f32.mrb[0].mxu0
      %v1846 = vadd.f32 0.0, %v1845
      %v1847 = vpop.f32.mrb[0].mxu0
      %1848 = vmatprep.mubr.f32.mxu0 0.0
      %1849 = vmatmul.mubr.f32.gmra.mrb[0].mxu0 %v1683
      %v1850 = vpop.f32.mrb[0].mxu0
      %v1851 = vadd.f32 0.0, %v1850
      %v1852 = vpop.f32.mrb[0].mxu0
      %1853 = vmatprep.mubr.f32.mxu0 0.0
      %1854 = vmatmul.mubr.f32.gmra.mrb[0].mxu0 %v1686
      %v1855 = vpop.f32.mrb[0].mxu0
      %v1856 = vadd.f32 0.0, %v1855
      %v1857 = vpop.f32.mrb[0].mxu0
      %1858 = vmatprep.mubr.f32.mxu0 0.0
      %1859 = vmatmul.mubr.f32.gmra.mrb[0].mxu0 %v1689
      %v1860 = vpop.f32.mrb[0].mxu0
      %v1861 = vadd.f32 0.0, %v1860
      %v1862 = vpop.f32.mrb[0].mxu0
      %1863 = vmatprep.mubr.f32.mxu0 0.0
      %1864 = vmatmul.mubr.f32.gmra.mrb[0].mxu0 %v1692
      %v1865 = vpop.f32.mrb[0].mxu0
      %v1866 = vadd.f32 0.0, %v1865
      %v1867 = vpop.f32.mrb[0].mxu0
      %1868 = vmatprep.mubr.f32.mxu0 0.0
      %1869 = vmatmul.mubr.f32.gmra.mrb[0].mxu0 %v1695
      %v1870 = vpop.f32.mrb[0].mxu0
      %v1871 = vadd.f32 0.0, %v1870
      %v1872 = vpop.f32.mrb[0].mxu0
      %1873 = vmatprep.mubr.f32.mxu0 0.0
      %1874 = vmatmul.mubr.f32.gmra.mrb[0].mxu0 %v1698
      %v1875 = vpop.f32.mrb[0].mxu0
      %v1876 = vadd.f32 0.0, %v1875
      %v1877 = vpop.f32.mrb[0].mxu0
      %1878 = vmatprep.mubr.f32.mxu0 0.0
      %1879 = vmatmul.mubr.f32.gmra.mrb[0].mxu0 %v1701
      %v1880 = vpop.f32.mrb[0].mxu0
      %v1881 = vadd.f32 0.0, %v1880
      %v1882 = vpop.f32.mrb[0].mxu0
      %1883 = vmatprep.mubr.f32.mxu0 0.0
      %1884 = vmatmul.mubr.f32.gmra.mrb[0].mxu0 %v1704
      %v1885 = vpop.f32.mrb[0].mxu0
      %v1886 = vadd.f32 0.0, %v1885
      %v1887 = vpop.f32.mrb[0].mxu0
      %1888 = vmatprep.mubr.f32.mxu0 0.0
      %1889 = vmatmul.mubr.f32.gmra.mrb[0].mxu0 %v1707
      %v1890 = vpop.f32.mrb[0].mxu0
      %v1891 = vadd.f32 0.0, %v1890
      %v1892 = vpop.f32.mrb[0].mxu0
      %1893 = vmatprep.mubr.f32.mxu0 0.0
      %1894 = vmatmul.mubr.f32.gmra.mrb[0].mxu0 %v1710
      %v1895 = vpop.f32.mrb[0].mxu0
      %v1896 = vadd.f32 0.0, %v1895
      %v1897 = vpop.f32.mrb[0].mxu0
      %1898 = vmatprep.mubr.f32.mxu0 0.0
      %1899 = vmatmul.mubr.f32.gmra.mrb[0].mxu0 %v1713
      %v1900 = vpop.f32.mrb[0].mxu0
      %v1901 = vadd.f32 0.0, %v1900
      %v1902 = vpop.f32.mrb[0].mxu0
      %1903 = vmatprep.mubr.f32.mxu0 0.0
      %1904 = vmatmul.mubr.f32.gmra.mrb[0].mxu0 %v1716
      %v1905 = vpop.f32.mrb[0].mxu0
      %v1906 = vadd.f32 0.0, %v1905
      %v1907 = vpop.f32.mrb[0].mxu0
      %1908 = vmatprep.mubr.f32.mxu0 0.0
      %1909 = vmatmul.mubr.f32.gmra.mrb[0].mxu0 %v1719
      %v1910 = vpop.f32.mrb[0].mxu0
      %v1911 = vadd.f32 0.0, %v1910
      %v1912 = vpop.f32.mrb[0].mxu0
      %1913 = vmatprep.mubr.f32.mxu0 0.0
      %1914 = vmatmul.mubr.f32.gmra.mrb[0].mxu0 %v1722
      %v1915 = vpop.f32.mrb[0].mxu0
      %v1916 = vadd.f32 0.0, %v1915
      %v1917 = vpop.f32.mrb[0].mxu0
      %1918 = vmatprep.mubr.f32.mxu0 0.0
      %1919 = vmatmul.mubr.f32.gmra.mrb[0].mxu0 %v1725
      %v1920 = vpop.f32.mrb[0].mxu0
      %v1921 = vadd.f32 0.0, %v1920
      %v1922 = vpop.f32.mrb[0].mxu0
      %1923 = vmatprep.mubr.f32.mxu0 0.0
      %1924 = vmatmul.mubr.f32.gmra.mrb[0].mxu0 %v1728
      %v1925 = vpop.f32.mrb[0].mxu0
      %v1926 = vadd.f32 0.0, %v1925
      %v1927 = vpop.f32.mrb[0].mxu0
      %1928 = vmatprep.mubr.f32.mxu0 0.0
      %1929 = vmatmul.mubr.f32.gmra.mrb[0].mxu0 %v1731
      %v1930 = vpop.f32.mrb[0].mxu0
      %v1931 = vadd.f32 0.0, %v1930
      %v1932 = vpop.f32.mrb[0].mxu0
      %1933 = vmatprep.mubr.f32.mxu0 0.0
      %1934 = vmatmul.mubr.f32.gmra.mrb[0].mxu0 %v1734
      %v1935 = vpop.f32.mrb[0].mxu0
      %v1936 = vadd.f32 0.0, %v1935
      %v1937 = vpop.f32.mrb[0].mxu0
      %1938 = vmatprep.mubr.f32.mxu0 0.0
      %1939 = vmatmul.mubr.f32.gmra.mrb[0].mxu0 %v1737
      %v1940 = vpop.f32.mrb[0].mxu0
      %v1941 = vadd.f32 0.0, %v1940
      %v1942 = vpop.f32.mrb[0].mxu0
      %1943 = vmatprep.mubr.f32.mxu0 0.0
      %1944 = vmatmul.mubr.f32.gmra.mrb[0].mxu0 %v1740
      %v1945 = vpop.f32.mrb[0].mxu0
      %v1946 = vadd.f32 0.0, %v1945
      %v1947 = vpop.f32.mrb[0].mxu0
      %1948 = vmatprep.mubr.f32.mxu0 0.0
      %1949 = vmatmul.mubr.f32.gmra.mrb[0].mxu0 %v1743
      %v1950 = vpop.f32.mrb[0].mxu0
      %v1951 = vadd.f32 0.0, %v1950
      %v1952 = vpop.f32.mrb[0].mxu0
      %1953 = vmatprep.mubr.f32.mxu0 0.0
      %1954 = vmatmul.mubr.f32.gmra.mrb[0].mxu0 %v1746
      %v1955 = vpop.f32.mrb[0].mxu0
      %v1956 = vadd.f32 0.0, %v1955
      %v1957 = vpop.f32.mrb[0].mxu0
      %1958 = vmatprep.mubr.f32.mxu0 0.0
      %1959 = vmatmul.mubr.f32.gmra.mrb[0].mxu0 %v1749
      %v1960 = vpop.f32.mrb[0].mxu0
      %v1961 = vadd.f32 0.0, %v1960
      %v1962 = vpop.f32.mrb[0].mxu0
      %1963 = vmatprep.mubr.f32.mxu0 0.0
      %1964 = vmatmul.mubr.f32.gmra.mrb[0].mxu0 %v1752
      %v1965 = vpop.f32.mrb[0].mxu0
      %v1966 = vadd.f32 0.0, %v1965
      %v1967 = vpop.f32.mrb[0].mxu0
      %1968 = vmatprep.mubr.f32.mxu0 0.0
      %1969 = vmatmul.mubr.f32.gmra.mrb[0].mxu0 %v1755
      %v1970 = vpop.f32.mrb[0].mxu0
      %v1971 = vadd.f32 0.0, %v1970
      %v1972 = vpop.f32.mrb[0].mxu0
      %1973 = vmatprep.mubr.f32.mxu0 0.0
      %1974 = vmatmul.mubr.f32.gmra.mrb[0].mxu0 %v1758
      %v1975 = vpop.f32.mrb[0].mxu0
      %v1976 = vadd.f32 0.0, %v1975
      %v1977 = vpop.f32.mrb[0].mxu0
      %1978 = vmatprep.mubr.f32.mxu0 0.0
      %1979 = vmatmul.mubr.f32.gmra.mrb[0].mxu0 %v1761
      %v1980 = vpop.f32.mrb[0].mxu0
      %v1981 = vadd.f32 0.0, %v1980
      %v1982 = vpop.f32.mrb[0].mxu0
      %1983 = vmatprep.mubr.f32.mxu0 0.0
      %1984 = vmatmul.mubr.f32.gmra.mrb[0].mxu0 %v1764
      %v1985 = vpop.f32.mrb[0].mxu0
      %v1986 = vadd.f32 0.0, %v1985
      %v1987 = vpop.f32.mrb[0].mxu0
      %1988 = vmatprep.mubr.f32.mxu0 0.0
      %1989 = vmatmul.mubr.f32.gmra.mrb[0].mxu0 %v1767
      %v1990 = vpop.f32.mrb[0].mxu0
      %v1991 = vadd.f32 0.0, %v1990
      %v1992 = vpop.f32.mrb[0].mxu0
      %1993 = vdwg.mxu0
      %v1995 = vsel %vm1672, %v1490, 0
      %v1998 = vsel %vm1672, %v1491, 0
      %v2001 = vsel %vm1672, %v1492, 0
      %v2004 = vsel %vm1672, %v1493, 0
      %v2007 = vsel %vm1672, %v1494, 0
      %v2010 = vsel %vm1672, %v1495, 0
      %v2013 = vsel %vm1672, %v1496, 0
      %v2016 = vsel %vm1672, %v1497, 0
      %v2019 = vsel %vm1672, %v1498, 0
      %v2022 = vsel %vm1672, %v1499, 0
      %v2025 = vsel %vm1672, %v1500, 0
      %v2028 = vsel %vm1672, %v1501, 0
      %v2031 = vsel %vm1672, %v1502, 0
      %v2034 = vsel %vm1672, %v1503, 0
      %v2037 = vsel %vm1672, %v1504, 0
      %v2040 = vsel %vm1672, %v1505, 0
      %v2043 = vsel %vm1672, %v1506, 0
      %v2046 = vsel %vm1672, %v1507, 0
      %v2049 = vsel %vm1672, %v1508, 0
      %v2052 = vsel %vm1672, %v1509, 0
      %v2055 = vsel %vm1672, %v1510, 0
      %v2058 = vsel %vm1672, %v1511, 0
      %v2061 = vsel %vm1672, %v1512, 0
      %v2064 = vsel %vm1672, %v1513, 0
      %v2067 = vsel %vm1672, %v1514, 0
      %v2070 = vsel %vm1672, %v1515, 0
      %v2073 = vsel %vm1672, %v1516, 0
      %v2076 = vsel %vm1672, %v1517, 0
      %v2079 = vsel %vm1672, %v1518, 0
      %v2082 = vsel %vm1672, %v1519, 0
      %2084 = vmatprep.subr.mxu0 0.0
      %2085 = vmatpush1.msra.mxu0 %v1670
      %2086 = vmatprep.subr.mxu0 0.0
      %2087 = vmatpush1.msra.mxu0 0.0
      %2088 = vmatprep.subr.mxu0 0.0
      %2089 = vmatpush1.msra.mxu0 0.0
      %2090 = vmatprep.subr.mxu0 0.0
      %2091 = vmatpush1.msra.mxu0 0.0
      %2092 = vmatprep.subr.mxu0 0.0
      %2093 = vmatpush1.msra.mxu0 0.0
      %2094 = vmatprep.subr.mxu0 0.0
      %2095 = vmatpush1.msra.mxu0 0.0
      %2096 = vmatprep.subr.mxu0 0.0
      %2097 = vmatpush1.msra.mxu0 0.0
      %2098 = vmatprep.subr.mxu0 0.0
      %2099 = vmatpush1.msra.mxu0 0.0
      %2100 = vmatprep.subr.mxu0 0.0
      %2101 = vmatpush1.msra.mxu0 0.0
      %2102 = vmatprep.subr.mxu0 0.0
      %2103 = vmatpush1.msra.mxu0 0.0
      %2104 = vmatprep.subr.mxu0 0.0
      %2105 = vmatpush1.msra.mxu0 0.0
      %2106 = vmatprep.subr.mxu0 0.0
      %2107 = vmatpush1.msra.mxu0 0.0
      %2108 = vmatprep.subr.mxu0 0.0
      %2109 = vmatpush1.msra.mxu0 0.0
      %2110 = vmatprep.subr.mxu0 0.0
      %2111 = vmatpush1.msra.mxu0 0.0
      %2112 = vmatprep.subr.mxu0 0.0
      %2113 = vmatpush1.msra.mxu0 0.0
      %2114 = vmatprep.subr.mxu0 0.0
      %2115 = vmatpush1.msra.mxu0 0.0
      %2116 = vmatprep.subr.mxu0 0.0
      %2117 = vmatpush1.msra.mxu0 0.0
      %2118 = vmatprep.subr.mxu0 0.0
      %2119 = vmatpush1.msra.mxu0 0.0
      %2120 = vmatprep.subr.mxu0 0.0
      %2121 = vmatpush1.msra.mxu0 0.0
      %2122 = vmatprep.subr.mxu0 0.0
      %2123 = vmatpush1.msra.mxu0 0.0
      %2124 = vmatprep.subr.mxu0 0.0
      %2125 = vmatpush1.msra.mxu0 0.0
      %2126 = vmatprep.subr.mxu0 0.0
      %2127 = vmatpush1.msra.mxu0 0.0
      %2128 = vmatprep.subr.mxu0 0.0
      %2129 = vmatpush1.msra.mxu0 0.0
      %2130 = vmatprep.subr.mxu0 0.0
      %2131 = vmatpush1.msra.mxu0 0.0
      %2132 = vmatprep.subr.mxu0 0.0
      %2133 = vmatpush1.msra.mxu0 0.0
      %2134 = vmatprep.subr.mxu0 0.0
      %2135 = vmatpush1.msra.mxu0 0.0
      %2136 = vmatprep.subr.mxu0 0.0
      %2137 = vmatpush1.msra.mxu0 0.0
      %2138 = vmatprep.subr.mxu0 0.0
      %2139 = vmatpush1.msra.mxu0 0.0
      %2140 = vmatprep.subr.mxu0 0.0
      %2141 = vmatpush1.msra.mxu0 0.0
      %2142 = vmatprep.subr.mxu0 0.0
      %2143 = vmatpush1.msra.mxu0 0.0
      %2144 = vmatprep.subr.mxu0 0.0
      %2145 = vmatpush1.msra.mxu0 0.0
      %2146 = vmatprep.subr.mxu0 0.0
      %2147 = vmatpush1.msra.mxu0 0.0
      %2148 = vmatprep.mubr.f32.mxu0 0.0
      %2149 = vmatmul.mubr.f32.gmra.mrb[0].mxu0 %v1674
      %v2150 = vpop.f32.mrb[0].mxu0
      %v2151 = vadd.f32 %v1836, %v2150
      %v2152 = vpop.f32.mrb[0].mxu0
      %2153 = vmatprep.mubr.f32.mxu0 0.0
      %2154 = vmatmul.mubr.f32.gmra.mrb[0].mxu0 %v1677
      %v2155 = vpop.f32.mrb[0].mxu0
      %v2156 = vadd.f32 %v1841, %v2155
      %v2157 = vpop.f32.mrb[0].mxu0
      %2158 = vmatprep.mubr.f32.mxu0 0.0
      %2159 = vmatmul.mubr.f32.gmra.mrb[0].mxu0 %v1995
      %v2160 = vpop.f32.mrb[0].mxu0
      %v2161 = vadd.f32 %v1846, %v2160
      %v2162 = vpop.f32.mrb[0].mxu0
      %2163 = vmatprep.mubr.f32.mxu0 0.0
      %2164 = vmatmul.mubr.f32.gmra.mrb[0].mxu0 %v1998
      %v2165 = vpop.f32.mrb[0].mxu0
      %v2166 = vadd.f32 %v1851, %v2165
      %v2167 = vpop.f32.mrb[0].mxu0
      %2168 = vmatprep.mubr.f32.mxu0 0.0
      %2169 = vmatmul.mubr.f32.gmra.mrb[0].mxu0 %v2001
      %v2170 = vpop.f32.mrb[0].mxu0
      %v2171 = vadd.f32 %v1856, %v2170
      %v2172 = vpop.f32.mrb[0].mxu0
      %2173 = vmatprep.mubr.f32.mxu0 0.0
      %2174 = vmatmul.mubr.f32.gmra.mrb[0].mxu0 %v2004
      %v2175 = vpop.f32.mrb[0].mxu0
      %v2176 = vadd.f32 %v1861, %v2175
      %v2177 = vpop.f32.mrb[0].mxu0
      %2178 = vmatprep.mubr.f32.mxu0 0.0
      %2179 = vmatmul.mubr.f32.gmra.mrb[0].mxu0 %v2007
      %v2180 = vpop.f32.mrb[0].mxu0
      %v2181 = vadd.f32 %v1866, %v2180
      %v2182 = vpop.f32.mrb[0].mxu0
      %2183 = vmatprep.mubr.f32.mxu0 0.0
      %2184 = vmatmul.mubr.f32.gmra.mrb[0].mxu0 %v2010
      %v2185 = vpop.f32.mrb[0].mxu0
      %v2186 = vadd.f32 %v1871, %v2185
      %v2187 = vpop.f32.mrb[0].mxu0
      %2188 = vmatprep.mubr.f32.mxu0 0.0
      %2189 = vmatmul.mubr.f32.gmra.mrb[0].mxu0 %v2013
      %v2190 = vpop.f32.mrb[0].mxu0
      %v2191 = vadd.f32 %v1876, %v2190
      %v2192 = vpop.f32.mrb[0].mxu0
      %2193 = vmatprep.mubr.f32.mxu0 0.0
      %2194 = vmatmul.mubr.f32.gmra.mrb[0].mxu0 %v2016
      %v2195 = vpop.f32.mrb[0].mxu0
      %v2196 = vadd.f32 %v1881, %v2195
      %v2197 = vpop.f32.mrb[0].mxu0
      %2198 = vmatprep.mubr.f32.mxu0 0.0
      %2199 = vmatmul.mubr.f32.gmra.mrb[0].mxu0 %v2019
      %v2200 = vpop.f32.mrb[0].mxu0
      %v2201 = vadd.f32 %v1886, %v2200
      %v2202 = vpop.f32.mrb[0].mxu0
      %2203 = vmatprep.mubr.f32.mxu0 0.0
      %2204 = vmatmul.mubr.f32.gmra.mrb[0].mxu0 %v2022
      %v2205 = vpop.f32.mrb[0].mxu0
      %v2206 = vadd.f32 %v1891, %v2205
      %v2207 = vpop.f32.mrb[0].mxu0
      %2208 = vmatprep.mubr.f32.mxu0 0.0
      %2209 = vmatmul.mubr.f32.gmra.mrb[0].mxu0 %v2025
      %v2210 = vpop.f32.mrb[0].mxu0
      %v2211 = vadd.f32 %v1896, %v2210
      %v2212 = vpop.f32.mrb[0].mxu0
      %2213 = vmatprep.mubr.f32.mxu0 0.0
      %2214 = vmatmul.mubr.f32.gmra.mrb[0].mxu0 %v2028
      %v2215 = vpop.f32.mrb[0].mxu0
      %v2216 = vadd.f32 %v1901, %v2215
      %v2217 = vpop.f32.mrb[0].mxu0
      %2218 = vmatprep.mubr.f32.mxu0 0.0
      %2219 = vmatmul.mubr.f32.gmra.mrb[0].mxu0 %v2031
      %v2220 = vpop.f32.mrb[0].mxu0
      %v2221 = vadd.f32 %v1906, %v2220
      %v2222 = vpop.f32.mrb[0].mxu0
      %2223 = vmatprep.mubr.f32.mxu0 0.0
      %2224 = vmatmul.mubr.f32.gmra.mrb[0].mxu0 %v2034
      %v2225 = vpop.f32.mrb[0].mxu0
      %v2226 = vadd.f32 %v1911, %v2225
      %v2227 = vpop.f32.mrb[0].mxu0
      %2228 = vmatprep.mubr.f32.mxu0 0.0
      %2229 = vmatmul.mubr.f32.gmra.mrb[0].mxu0 %v2037
      %v2230 = vpop.f32.mrb[0].mxu0
      %v2231 = vadd.f32 %v1916, %v2230
      %v2232 = vpop.f32.mrb[0].mxu0
      %2233 = vmatprep.mubr.f32.mxu0 0.0
      %2234 = vmatmul.mubr.f32.gmra.mrb[0].mxu0 %v2040
      %v2235 = vpop.f32.mrb[0].mxu0
      %v2236 = vadd.f32 %v1921, %v2235
      %v2237 = vpop.f32.mrb[0].mxu0
      %2238 = vmatprep.mubr.f32.mxu0 0.0
      %2239 = vmatmul.mubr.f32.gmra.mrb[0].mxu0 %v2043
      %v2240 = vpop.f32.mrb[0].mxu0
      %v2241 = vadd.f32 %v1926, %v2240
      %v2242 = vpop.f32.mrb[0].mxu0
      %2243 = vmatprep.mubr.f32.mxu0 0.0
      %2244 = vmatmul.mubr.f32.gmra.mrb[0].mxu0 %v2046
      %v2245 = vpop.f32.mrb[0].mxu0
      %v2246 = vadd.f32 %v1931, %v2245
      %v2247 = vpop.f32.mrb[0].mxu0
      %2248 = vmatprep.mubr.f32.mxu0 0.0
      %2249 = vmatmul.mubr.f32.gmra.mrb[0].mxu0 %v2049
      %v2250 = vpop.f32.mrb[0].mxu0
      %v2251 = vadd.f32 %v1936, %v2250
      %v2252 = vpop.f32.mrb[0].mxu0
      %2253 = vmatprep.mubr.f32.mxu0 0.0
      %2254 = vmatmul.mubr.f32.gmra.mrb[0].mxu0 %v2052
      %v2255 = vpop.f32.mrb[0].mxu0
      %v2256 = vadd.f32 %v1941, %v2255
      %v2257 = vpop.f32.mrb[0].mxu0
      %2258 = vmatprep.mubr.f32.mxu0 0.0
      %2259 = vmatmul.mubr.f32.gmra.mrb[0].mxu0 %v2055
      %v2260 = vpop.f32.mrb[0].mxu0
      %v2261 = vadd.f32 %v1946, %v2260
      %v2262 = vpop.f32.mrb[0].mxu0
      %2263 = vmatprep.mubr.f32.mxu0 0.0
      %2264 = vmatmul.mubr.f32.gmra.mrb[0].mxu0 %v2058
      %v2265 = vpop.f32.mrb[0].mxu0
      %v2266 = vadd.f32 %v1951, %v2265
      %v2267 = vpop.f32.mrb[0].mxu0
      %2268 = vmatprep.mubr.f32.mxu0 0.0
      %2269 = vmatmul.mubr.f32.gmra.mrb[0].mxu0 %v2061
      %v2270 = vpop.f32.mrb[0].mxu0
      %v2271 = vadd.f32 %v1956, %v2270
      %v2272 = vpop.f32.mrb[0].mxu0
      %2273 = vmatprep.mubr.f32.mxu0 0.0
      %2274 = vmatmul.mubr.f32.gmra.mrb[0].mxu0 %v2064
      %v2275 = vpop.f32.mrb[0].mxu0
      %v2276 = vadd.f32 %v1961, %v2275
      %v2277 = vpop.f32.mrb[0].mxu0
      %2278 = vmatprep.mubr.f32.mxu0 0.0
      %2279 = vmatmul.mubr.f32.gmra.mrb[0].mxu0 %v2067
      %v2280 = vpop.f32.mrb[0].mxu0
      %v2281 = vadd.f32 %v1966, %v2280
      %v2282 = vpop.f32.mrb[0].mxu0
      %2283 = vmatprep.mubr.f32.mxu0 0.0
      %2284 = vmatmul.mubr.f32.gmra.mrb[0].mxu0 %v2070
      %v2285 = vpop.f32.mrb[0].mxu0
      %v2286 = vadd.f32 %v1971, %v2285
      %v2287 = vpop.f32.mrb[0].mxu0
      %2288 = vmatprep.mubr.f32.mxu0 0.0
      %2289 = vmatmul.mubr.f32.gmra.mrb[0].mxu0 %v2073
      %v2290 = vpop.f32.mrb[0].mxu0
      %v2291 = vadd.f32 %v1976, %v2290
      %v2292 = vpop.f32.mrb[0].mxu0
      %2293 = vmatprep.mubr.f32.mxu0 0.0
      %2294 = vmatmul.mubr.f32.gmra.mrb[0].mxu0 %v2076
      %v2295 = vpop.f32.mrb[0].mxu0
      %v2296 = vadd.f32 %v1981, %v2295
      %v2297 = vpop.f32.mrb[0].mxu0
      %2298 = vmatprep.mubr.f32.mxu0 0.0
      %2299 = vmatmul.mubr.f32.gmra.mrb[0].mxu0 %v2079
      %v2300 = vpop.f32.mrb[0].mxu0
      %v2301 = vadd.f32 %v1986, %v2300
      %v2302 = vpop.f32.mrb[0].mxu0
      %2303 = vmatprep.mubr.f32.mxu0 0.0
      %2304 = vmatmul.mubr.f32.gmra.mrb[0].mxu0 %v2082
      %v2305 = vpop.f32.mrb[0].mxu0
      %v2306 = vadd.f32 %v1991, %v2305
      %v2307 = vpop.f32.mrb[0].mxu0
      %2308 = vdwg.mxu0
      %s2309 = scalar_lea.vmem %s7, 256
      %v2310 = vld [vmem:[%s2309] sm:$0xff]
      %v2311 = vld [vmem:[%s2309 + $0x8] sm:$0xff]
      %v2312 = vld [vmem:[%s2309 + $0x10] sm:$0xff]
      %v2313 = vld [vmem:[%s2309 + $0x18] sm:$0xff]
      %v2314 = vld [vmem:[%s2309 + $0x20] sm:$0xff]
      %v2315 = vld [vmem:[%s2309 + $0x28] sm:$0xff]
      %v2316 = vld [vmem:[%s2309 + $0x30] sm:$0xff]
      %v2317 = vld [vmem:[%s2309 + $0x38] sm:$0xff]
      %v2318 = vld [vmem:[%s2309 + $0x40] sm:$0xff]
      %v2319 = vld [vmem:[%s2309 + $0x48] sm:$0xff]
      %v2320 = vld [vmem:[%s2309 + $0x50] sm:$0xff]
      %v2321 = vld [vmem:[%s2309 + $0x58] sm:$0xff]
      %v2322 = vld [vmem:[%s2309 + $0x60] sm:$0xff]
      %v2323 = vld [vmem:[%s2309 + $0x68] sm:$0xff]
      %v2324 = vld [vmem:[%s2309 + $0x70] sm:$0xff]
      %v2325 = vld [vmem:[%s2309 + $0x78] sm:$0xff]
      %v2326 = vld [vmem:[%s2309 + $0x80] sm:$0xff]
      %v2327 = vld [vmem:[%s2309 + $0x88] sm:$0xff]
      %v2328 = vld [vmem:[%s2309 + $0x90] sm:$0xff]
      %v2329 = vld [vmem:[%s2309 + $0x98] sm:$0xff]
      %v2330 = vld [vmem:[%s2309 + $0xa0] sm:$0xff]
      %v2331 = vld [vmem:[%s2309 + $0xa8] sm:$0xff]
      %v2332 = vld [vmem:[%s2309 + $0xb0] sm:$0xff]
      %v2333 = vld [vmem:[%s2309 + $0xb8] sm:$0xff]
      %v2334 = vld [vmem:[%s2309 + $0xc0] sm:$0xff]
      %v2335 = vld [vmem:[%s2309 + $0xc8] sm:$0xff]
      %v2336 = vld [vmem:[%s2309 + $0xd0] sm:$0xff]
      %v2337 = vld [vmem:[%s2309 + $0xd8] sm:$0xff]
      %v2338 = vld [vmem:[%s2309 + $0xe0] sm:$0xff]
      %v2339 = vld [vmem:[%s2309 + $0xe8] sm:$0xff]
      %v2340 = vld [vmem:[%s2309 + $0xf0] sm:$0xff]
      %v2341 = vld [vmem:[%s2309 + $0xf8] sm:$0xff]
      %2343 = vset.pattern.permute.xlu0 0
      %2344 = vperm.xlu0 %2343, %v2310
      %v2345 = vpop.permute.xlu0 %2344
      %2348 = vset.pattern.permute.xlu0 0
      %2349 = vperm.xlu0 %2348, %v2311
      %v2350 = vpop.permute.xlu0 %2349
      %2353 = vset.pattern.permute.xlu0 0
      %2354 = vperm.xlu0 %2353, %v2312
      %v2355 = vpop.permute.xlu0 %2354
      %2358 = vset.pattern.permute.xlu0 0
      %2359 = vperm.xlu0 %2358, %v2313
      %v2360 = vpop.permute.xlu0 %2359
      %2363 = vset.pattern.permute.xlu0 0
      %2364 = vperm.xlu0 %2363, %v2314
      %v2365 = vpop.permute.xlu0 %2364
      %2368 = vset.pattern.permute.xlu0 0
      %2369 = vperm.xlu0 %2368, %v2315
      %v2370 = vpop.permute.xlu0 %2369
      %2373 = vset.pattern.permute.xlu0 0
      %2374 = vperm.xlu0 %2373, %v2316
      %v2375 = vpop.permute.xlu0 %2374
      %2378 = vset.pattern.permute.xlu0 0
      %2379 = vperm.xlu0 %2378, %v2317
      %v2380 = vpop.permute.xlu0 %2379
      %2383 = vset.pattern.permute.xlu0 0
      %2384 = vperm.xlu0 %2383, %v2318
      %v2385 = vpop.permute.xlu0 %2384
      %2388 = vset.pattern.permute.xlu0 0
      %2389 = vperm.xlu0 %2388, %v2319
      %v2390 = vpop.permute.xlu0 %2389
      %2393 = vset.pattern.permute.xlu0 0
      %2394 = vperm.xlu0 %2393, %v2320
      %v2395 = vpop.permute.xlu0 %2394
      %2398 = vset.pattern.permute.xlu0 0
      %2399 = vperm.xlu0 %2398, %v2321
      %v2400 = vpop.permute.xlu0 %2399
      %2403 = vset.pattern.permute.xlu0 0
      %2404 = vperm.xlu0 %2403, %v2322
      %v2405 = vpop.permute.xlu0 %2404
      %2408 = vset.pattern.permute.xlu0 0
      %2409 = vperm.xlu0 %2408, %v2323
      %v2410 = vpop.permute.xlu0 %2409
      %2413 = vset.pattern.permute.xlu0 0
      %2414 = vperm.xlu0 %2413, %v2324
      %v2415 = vpop.permute.xlu0 %2414
      %2418 = vset.pattern.permute.xlu0 0
      %2419 = vperm.xlu0 %2418, %v2325
      %v2420 = vpop.permute.xlu0 %2419
      %2423 = vset.pattern.permute.xlu0 0
      %2424 = vperm.xlu0 %2423, %v2326
      %v2425 = vpop.permute.xlu0 %2424
      %2428 = vset.pattern.permute.xlu0 0
      %2429 = vperm.xlu0 %2428, %v2327
      %v2430 = vpop.permute.xlu0 %2429
      %2433 = vset.pattern.permute.xlu0 0
      %2434 = vperm.xlu0 %2433, %v2328
      %v2435 = vpop.permute.xlu0 %2434
      %2438 = vset.pattern.permute.xlu0 0
      %2439 = vperm.xlu0 %2438, %v2329
      %v2440 = vpop.permute.xlu0 %2439
      %2443 = vset.pattern.permute.xlu0 0
      %2444 = vperm.xlu0 %2443, %v2330
      %v2445 = vpop.permute.xlu0 %2444
      %2448 = vset.pattern.permute.xlu0 0
      %2449 = vperm.xlu0 %2448, %v2331
      %v2450 = vpop.permute.xlu0 %2449
      %2453 = vset.pattern.permute.xlu0 0
      %2454 = vperm.xlu0 %2453, %v2332
      %v2455 = vpop.permute.xlu0 %2454
      %2458 = vset.pattern.permute.xlu0 0
      %2459 = vperm.xlu0 %2458, %v2333
      %v2460 = vpop.permute.xlu0 %2459
      %2463 = vset.pattern.permute.xlu0 0
      %2464 = vperm.xlu0 %2463, %v2334
      %v2465 = vpop.permute.xlu0 %2464
      %2468 = vset.pattern.permute.xlu0 0
      %2469 = vperm.xlu0 %2468, %v2335
      %v2470 = vpop.permute.xlu0 %2469
      %2473 = vset.pattern.permute.xlu0 0
      %2474 = vperm.xlu0 %2473, %v2336
      %v2475 = vpop.permute.xlu0 %2474
      %2478 = vset.pattern.permute.xlu0 0
      %2479 = vperm.xlu0 %2478, %v2337
      %v2480 = vpop.permute.xlu0 %2479
      %2483 = vset.pattern.permute.xlu0 0
      %2484 = vperm.xlu0 %2483, %v2338
      %v2485 = vpop.permute.xlu0 %2484
      %2488 = vset.pattern.permute.xlu0 0
      %2489 = vperm.xlu0 %2488, %v2339
      %v2490 = vpop.permute.xlu0 %2489
      %2493 = vset.pattern.permute.xlu0 0
      %2494 = vperm.xlu0 %2493, %v2340
      %v2495 = vpop.permute.xlu0 %2494
      %2498 = vset.pattern.permute.xlu0 0
      %2499 = vperm.xlu0 %2498, %v2341
      %v2500 = vpop.permute.xlu0 %2499
      %v2502 = vmul.f32 %v2345, 0.0
      %v2503 = vmul.f32 %v2350, 0.0
      %v2504 = vmul.f32 %v662, %v2355
      %v2505 = vmul.f32 %v667, %v2360
      %v2506 = vmul.f32 %v672, %v2365
      %v2507 = vmul.f32 %v677, %v2370
      %v2508 = vmul.f32 %v682, %v2375
      %v2509 = vmul.f32 %v687, %v2380
      %v2510 = vmul.f32 %v692, %v2385
      %v2511 = vmul.f32 %v697, %v2390
      %v2512 = vmul.f32 %v702, %v2395
      %v2513 = vmul.f32 %v707, %v2400
      %v2514 = vmul.f32 %v712, %v2405
      %v2515 = vmul.f32 %v717, %v2410
      %v2516 = vmul.f32 %v722, %v2415
      %v2517 = vmul.f32 %v727, %v2420
      %v2518 = vmul.f32 %v732, %v2425
      %v2519 = vmul.f32 %v737, %v2430
      %v2520 = vmul.f32 %v742, %v2435
      %v2521 = vmul.f32 %v747, %v2440
      %v2522 = vmul.f32 %v752, %v2445
      %v2523 = vmul.f32 %v757, %v2450
      %v2524 = vmul.f32 %v762, %v2455
      %v2525 = vmul.f32 %v767, %v2460
      %v2526 = vmul.f32 %v772, %v2465
      %v2527 = vmul.f32 %v777, %v2470
      %v2528 = vmul.f32 %v782, %v2475
      %v2529 = vmul.f32 %v787, %v2480
      %v2530 = vmul.f32 %v792, %v2485
      %v2531 = vmul.f32 %v797, %v2490
      %v2532 = vmul.f32 %v802, %v2495
      %v2533 = vmul.f32 %v807, %v2500
      %v2534 = vmul.f32 %v1017, %v2355
      %v2535 = vmul.f32 %v1022, %v2360
      %v2536 = vmul.f32 %v1027, %v2365
      %v2537 = vmul.f32 %v1032, %v2370
      %v2538 = vmul.f32 %v1037, %v2375
      %v2539 = vmul.f32 %v1042, %v2380
      %v2540 = vmul.f32 %v1047, %v2385
      %v2541 = vmul.f32 %v1052, %v2390
      %v2542 = vmul.f32 %v1057, %v2395
      %v2543 = vmul.f32 %v1062, %v2400
      %v2544 = vmul.f32 %v1067, %v2405
      %v2545 = vmul.f32 %v1072, %v2410
      %v2546 = vmul.f32 %v1077, %v2415
      %v2547 = vmul.f32 %v1082, %v2420
      %v2548 = vmul.f32 %v1087, %v2425
      %v2549 = vmul.f32 %v1092, %v2430
      %v2550 = vmul.f32 %v1097, %v2435
      %v2551 = vmul.f32 %v1102, %v2440
      %v2552 = vmul.f32 %v1107, %v2445
      %v2553 = vmul.f32 %v1112, %v2450
      %v2554 = vmul.f32 %v1117, %v2455
      %v2555 = vmul.f32 %v1122, %v2460
      %v2556 = vmul.f32 %v1127, %v2465
      %v2557 = vmul.f32 %v1132, %v2470
      %v2558 = vmul.f32 %v1137, %v2475
      %v2559 = vmul.f32 %v1142, %v2480
      %v2560 = vmul.f32 %v1147, %v2485
      %v2561 = vmul.f32 %v1152, %v2490
      %v2562 = vmul.f32 %v1157, %v2495
      %v2563 = vmul.f32 %v1162, %v2500
      %s2564 = scalar_lea.vmem %s5, 8
      %v2565 = vld [vmem:[%s2564] sm:$0xff]
      %v2567 = vsel %vm1672, %v2502, 0
      %v2570 = vsel %vm1672, %v2503, 0
      %v2573 = vsel %vm1672, %v2504, 0
      %v2576 = vsel %vm1672, %v2505, 0
      %v2579 = vsel %vm1672, %v2506, 0
      %v2582 = vsel %vm1672, %v2507, 0
      %v2585 = vsel %vm1672, %v2508, 0
      %v2588 = vsel %vm1672, %v2509, 0
      %v2591 = vsel %vm1672, %v2510, 0
      %v2594 = vsel %vm1672, %v2511, 0
      %v2597 = vsel %vm1672, %v2512, 0
      %v2600 = vsel %vm1672, %v2513, 0
      %v2603 = vsel %vm1672, %v2514, 0
      %v2606 = vsel %vm1672, %v2515, 0
      %v2609 = vsel %vm1672, %v2516, 0
      %v2612 = vsel %vm1672, %v2517, 0
      %v2615 = vsel %vm1672, %v2518, 0
      %v2618 = vsel %vm1672, %v2519, 0
      %v2621 = vsel %vm1672, %v2520, 0
      %v2624 = vsel %vm1672, %v2521, 0
      %v2627 = vsel %vm1672, %v2522, 0
      %v2630 = vsel %vm1672, %v2523, 0
      %v2633 = vsel %vm1672, %v2524, 0
      %v2636 = vsel %vm1672, %v2525, 0
      %v2639 = vsel %vm1672, %v2526, 0
      %v2642 = vsel %vm1672, %v2527, 0
      %v2645 = vsel %vm1672, %v2528, 0
      %v2648 = vsel %vm1672, %v2529, 0
      %v2651 = vsel %vm1672, %v2530, 0
      %v2654 = vsel %vm1672, %v2531, 0
      %v2657 = vsel %vm1672, %v2532, 0
      %v2660 = vsel %vm1672, %v2533, 0
      %2662 = vmatprep.subr.mxu0 0.0
      %2663 = vmatpush1.msra.mxu0 %v2565
      %2664 = vmatprep.subr.mxu0 0.0
      %2665 = vmatpush1.msra.mxu0 0.0
      %2666 = vmatprep.subr.mxu0 0.0
      %2667 = vmatpush1.msra.mxu0 0.0
      %2668 = vmatprep.subr.mxu0 0.0
      %2669 = vmatpush1.msra.mxu0 0.0
      %2670 = vmatprep.subr.mxu0 0.0
      %2671 = vmatpush1.msra.mxu0 0.0
      %2672 = vmatprep.subr.mxu0 0.0
      %2673 = vmatpush1.msra.mxu0 0.0
      %2674 = vmatprep.subr.mxu0 0.0
      %2675 = vmatpush1.msra.mxu0 0.0
      %2676 = vmatprep.subr.mxu0 0.0
      %2677 = vmatpush1.msra.mxu0 0.0
      %2678 = vmatprep.subr.mxu0 0.0
      %2679 = vmatpush1.msra.mxu0 0.0
      %2680 = vmatprep.subr.mxu0 0.0
      %2681 = vmatpush1.msra.mxu0 0.0
      %2682 = vmatprep.subr.mxu0 0.0
      %2683 = vmatpush1.msra.mxu0 0.0
      %2684 = vmatprep.subr.mxu0 0.0
      %2685 = vmatpush1.msra.mxu0 0.0
      %2686 = vmatprep.subr.mxu0 0.0
      %2687 = vmatpush1.msra.mxu0 0.0
      %2688 = vmatprep.subr.mxu0 0.0
      %2689 = vmatpush1.msra.mxu0 0.0
      %2690 = vmatprep.subr.mxu0 0.0
      %2691 = vmatpush1.msra.mxu0 0.0
      %2692 = vmatprep.subr.mxu0 0.0
      %2693 = vmatpush1.msra.mxu0 0.0
      %2694 = vmatprep.subr.mxu0 0.0
      %2695 = vmatpush1.msra.mxu0 0.0
      %2696 = vmatprep.subr.mxu0 0.0
      %2697 = vmatpush1.msra.mxu0 0.0
      %2698 = vmatprep.subr.mxu0 0.0
      %2699 = vmatpush1.msra.mxu0 0.0
      %2700 = vmatprep.subr.mxu0 0.0
      %2701 = vmatpush1.msra.mxu0 0.0
      %2702 = vmatprep.subr.mxu0 0.0
      %2703 = vmatpush1.msra.mxu0 0.0
      %2704 = vmatprep.subr.mxu0 0.0
      %2705 = vmatpush1.msra.mxu0 0.0
      %2706 = vmatprep.subr.mxu0 0.0
      %2707 = vmatpush1.msra.mxu0 0.0
      %2708 = vmatprep.subr.mxu0 0.0
      %2709 = vmatpush1.msra.mxu0 0.0
      %2710 = vmatprep.subr.mxu0 0.0
      %2711 = vmatpush1.msra.mxu0 0.0
      %2712 = vmatprep.subr.mxu0 0.0
      %2713 = vmatpush1.msra.mxu0 0.0
      %2714 = vmatprep.subr.mxu0 0.0
      %2715 = vmatpush1.msra.mxu0 0.0
      %2716 = vmatprep.subr.mxu0 0.0
      %2717 = vmatpush1.msra.mxu0 0.0
      %2718 = vmatprep.subr.mxu0 0.0
      %2719 = vmatpush1.msra.mxu0 0.0
      %2720 = vmatprep.subr.mxu0 0.0
      %2721 = vmatpush1.msra.mxu0 0.0
      %2722 = vmatprep.subr.mxu0 0.0
      %2723 = vmatpush1.msra.mxu0 0.0
      %2724 = vmatprep.subr.mxu0 0.0
      %2725 = vmatpush1.msra.mxu0 0.0
      %2726 = vmatprep.mubr.f32.mxu0 0.0
      %2727 = vmatmul.mubr.f32.gmra.mrb[0].mxu0 %v2567
      %v2728 = vpop.f32.mrb[0].mxu0
      %v2729 = vadd.f32 0.0, %v2728
      %v2730 = vpop.f32.mrb[0].mxu0
      %2731 = vmatprep.mubr.f32.mxu0 0.0
      %2732 = vmatmul.mubr.f32.gmra.mrb[0].mxu0 %v2570
      %v2733 = vpop.f32.mrb[0].mxu0
      %v2734 = vadd.f32 0.0, %v2733
      %v2735 = vpop.f32.mrb[0].mxu0
      %2736 = vmatprep.mubr.f32.mxu0 0.0
      %2737 = vmatmul.mubr.f32.gmra.mrb[0].mxu0 %v2573
      %v2738 = vpop.f32.mrb[0].mxu0
      %v2739 = vadd.f32 0.0, %v2738
      %v2740 = vpop.f32.mrb[0].mxu0
      %2741 = vmatprep.mubr.f32.mxu0 0.0
      %2742 = vmatmul.mubr.f32.gmra.mrb[0].mxu0 %v2576
      %v2743 = vpop.f32.mrb[0].mxu0
      %v2744 = vadd.f32 0.0, %v2743
      %v2745 = vpop.f32.mrb[0].mxu0
      %2746 = vmatprep.mubr.f32.mxu0 0.0
      %2747 = vmatmul.mubr.f32.gmra.mrb[0].mxu0 %v2579
      %v2748 = vpop.f32.mrb[0].mxu0
      %v2749 = vadd.f32 0.0, %v2748
      %v2750 = vpop.f32.mrb[0].mxu0
      %2751 = vmatprep.mubr.f32.mxu0 0.0
      %2752 = vmatmul.mubr.f32.gmra.mrb[0].mxu0 %v2582
      %v2753 = vpop.f32.mrb[0].mxu0
      %v2754 = vadd.f32 0.0, %v2753
      %v2755 = vpop.f32.mrb[0].mxu0
      %2756 = vmatprep.mubr.f32.mxu0 0.0
      %2757 = vmatmul.mubr.f32.gmra.mrb[0].mxu0 %v2585
      %v2758 = vpop.f32.mrb[0].mxu0
      %v2759 = vadd.f32 0.0, %v2758
      %v2760 = vpop.f32.mrb[0].mxu0
      %2761 = vmatprep.mubr.f32.mxu0 0.0
      %2762 = vmatmul.mubr.f32.gmra.mrb[0].mxu0 %v2588
      %v2763 = vpop.f32.mrb[0].mxu0
      %v2764 = vadd.f32 0.0, %v2763
      %v2765 = vpop.f32.mrb[0].mxu0
      %2766 = vmatprep.mubr.f32.mxu0 0.0
      %2767 = vmatmul.mubr.f32.gmra.mrb[0].mxu0 %v2591
      %v2768 = vpop.f32.mrb[0].mxu0
      %v2769 = vadd.f32 0.0, %v2768
      %v2770 = vpop.f32.mrb[0].mxu0
      %2771 = vmatprep.mubr.f32.mxu0 0.0
      %2772 = vmatmul.mubr.f32.gmra.mrb[0].mxu0 %v2594
      %v2773 = vpop.f32.mrb[0].mxu0
      %v2774 = vadd.f32 0.0, %v2773
      %v2775 = vpop.f32.mrb[0].mxu0
      %2776 = vmatprep.mubr.f32.mxu0 0.0
      %2777 = vmatmul.mubr.f32.gmra.mrb[0].mxu0 %v2597
      %v2778 = vpop.f32.mrb[0].mxu0
      %v2779 = vadd.f32 0.0, %v2778
      %v2780 = vpop.f32.mrb[0].mxu0
      %2781 = vmatprep.mubr.f32.mxu0 0.0
      %2782 = vmatmul.mubr.f32.gmra.mrb[0].mxu0 %v2600
      %v2783 = vpop.f32.mrb[0].mxu0
      %v2784 = vadd.f32 0.0, %v2783
      %v2785 = vpop.f32.mrb[0].mxu0
      %2786 = vmatprep.mubr.f32.mxu0 0.0
      %2787 = vmatmul.mubr.f32.gmra.mrb[0].mxu0 %v2603
      %v2788 = vpop.f32.mrb[0].mxu0
      %v2789 = vadd.f32 0.0, %v2788
      %v2790 = vpop.f32.mrb[0].mxu0
      %2791 = vmatprep.mubr.f32.mxu0 0.0
      %2792 = vmatmul.mubr.f32.gmra.mrb[0].mxu0 %v2606
      %v2793 = vpop.f32.mrb[0].mxu0
      %v2794 = vadd.f32 0.0, %v2793
      %v2795 = vpop.f32.mrb[0].mxu0
      %2796 = vmatprep.mubr.f32.mxu0 0.0
      %2797 = vmatmul.mubr.f32.gmra.mrb[0].mxu0 %v2609
      %v2798 = vpop.f32.mrb[0].mxu0
      %v2799 = vadd.f32 0.0, %v2798
      %v2800 = vpop.f32.mrb[0].mxu0
      %2801 = vmatprep.mubr.f32.mxu0 0.0
      %2802 = vmatmul.mubr.f32.gmra.mrb[0].mxu0 %v2612
      %v2803 = vpop.f32.mrb[0].mxu0
      %v2804 = vadd.f32 0.0, %v2803
      %v2805 = vpop.f32.mrb[0].mxu0
      %2806 = vmatprep.mubr.f32.mxu0 0.0
      %2807 = vmatmul.mubr.f32.gmra.mrb[0].mxu0 %v2615
      %v2808 = vpop.f32.mrb[0].mxu0
      %v2809 = vadd.f32 0.0, %v2808
      %v2810 = vpop.f32.mrb[0].mxu0
      %2811 = vmatprep.mubr.f32.mxu0 0.0
      %2812 = vmatmul.mubr.f32.gmra.mrb[0].mxu0 %v2618
      %v2813 = vpop.f32.mrb[0].mxu0
      %v2814 = vadd.f32 0.0, %v2813
      %v2815 = vpop.f32.mrb[0].mxu0
      %2816 = vmatprep.mubr.f32.mxu0 0.0
      %2817 = vmatmul.mubr.f32.gmra.mrb[0].mxu0 %v2621
      %v2818 = vpop.f32.mrb[0].mxu0
      %v2819 = vadd.f32 0.0, %v2818
      %v2820 = vpop.f32.mrb[0].mxu0
      %2821 = vmatprep.mubr.f32.mxu0 0.0
      %2822 = vmatmul.mubr.f32.gmra.mrb[0].mxu0 %v2624
      %v2823 = vpop.f32.mrb[0].mxu0
      %v2824 = vadd.f32 0.0, %v2823
      %v2825 = vpop.f32.mrb[0].mxu0
      %2826 = vmatprep.mubr.f32.mxu0 0.0
      %2827 = vmatmul.mubr.f32.gmra.mrb[0].mxu0 %v2627
      %v2828 = vpop.f32.mrb[0].mxu0
      %v2829 = vadd.f32 0.0, %v2828
      %v2830 = vpop.f32.mrb[0].mxu0
      %2831 = vmatprep.mubr.f32.mxu0 0.0
      %2832 = vmatmul.mubr.f32.gmra.mrb[0].mxu0 %v2630
      %v2833 = vpop.f32.mrb[0].mxu0
      %v2834 = vadd.f32 0.0, %v2833
      %v2835 = vpop.f32.mrb[0].mxu0
      %2836 = vmatprep.mubr.f32.mxu0 0.0
      %2837 = vmatmul.mubr.f32.gmra.mrb[0].mxu0 %v2633
      %v2838 = vpop.f32.mrb[0].mxu0
      %v2839 = vadd.f32 0.0, %v2838
      %v2840 = vpop.f32.mrb[0].mxu0
      %2841 = vmatprep.mubr.f32.mxu0 0.0
      %2842 = vmatmul.mubr.f32.gmra.mrb[0].mxu0 %v2636
      %v2843 = vpop.f32.mrb[0].mxu0
      %v2844 = vadd.f32 0.0, %v2843
      %v2845 = vpop.f32.mrb[0].mxu0
      %2846 = vmatprep.mubr.f32.mxu0 0.0
      %2847 = vmatmul.mubr.f32.gmra.mrb[0].mxu0 %v2639
      %v2848 = vpop.f32.mrb[0].mxu0
      %v2849 = vadd.f32 0.0, %v2848
      %v2850 = vpop.f32.mrb[0].mxu0
      %2851 = vmatprep.mubr.f32.mxu0 0.0
      %2852 = vmatmul.mubr.f32.gmra.mrb[0].mxu0 %v2642
      %v2853 = vpop.f32.mrb[0].mxu0
      %v2854 = vadd.f32 0.0, %v2853
      %v2855 = vpop.f32.mrb[0].mxu0
      %2856 = vmatprep.mubr.f32.mxu0 0.0
      %2857 = vmatmul.mubr.f32.gmra.mrb[0].mxu0 %v2645
      %v2858 = vpop.f32.mrb[0].mxu0
      %v2859 = vadd.f32 0.0, %v2858
      %v2860 = vpop.f32.mrb[0].mxu0
      %2861 = vmatprep.mubr.f32.mxu0 0.0
      %2862 = vmatmul.mubr.f32.gmra.mrb[0].mxu0 %v2648
      %v2863 = vpop.f32.mrb[0].mxu0
      %v2864 = vadd.f32 0.0, %v2863
      %v2865 = vpop.f32.mrb[0].mxu0
      %2866 = vmatprep.mubr.f32.mxu0 0.0
      %2867 = vmatmul.mubr.f32.gmra.mrb[0].mxu0 %v2651
      %v2868 = vpop.f32.mrb[0].mxu0
      %v2869 = vadd.f32 0.0, %v2868
      %v2870 = vpop.f32.mrb[0].mxu0
      %2871 = vmatprep.mubr.f32.mxu0 0.0
      %2872 = vmatmul.mubr.f32.gmra.mrb[0].mxu0 %v2654
      %v2873 = vpop.f32.mrb[0].mxu0
      %v2874 = vadd.f32 0.0, %v2873
      %v2875 = vpop.f32.mrb[0].mxu0
      %2876 = vmatprep.mubr.f32.mxu0 0.0
      %2877 = vmatmul.mubr.f32.gmra.mrb[0].mxu0 %v2657
      %v2878 = vpop.f32.mrb[0].mxu0
      %v2879 = vadd.f32 0.0, %v2878
      %v2880 = vpop.f32.mrb[0].mxu0
      %2881 = vmatprep.mubr.f32.mxu0 0.0
      %2882 = vmatmul.mubr.f32.gmra.mrb[0].mxu0 %v2660
      %v2883 = vpop.f32.mrb[0].mxu0
      %v2884 = vadd.f32 0.0, %v2883
      %v2885 = vpop.f32.mrb[0].mxu0
      %2886 = vdwg.mxu0
      %v2887 = vadd.f32 %v2151, %v2729
      %v2888 = vadd.f32 %v2156, %v2734
      %v2889 = vadd.f32 %v2161, %v2739
      %v2890 = vadd.f32 %v2166, %v2744
      %v2891 = vadd.f32 %v2171, %v2749
      %v2892 = vadd.f32 %v2176, %v2754
      %v2893 = vadd.f32 %v2181, %v2759
      %v2894 = vadd.f32 %v2186, %v2764
      %v2895 = vadd.f32 %v2191, %v2769
      %v2896 = vadd.f32 %v2196, %v2774
      %v2897 = vadd.f32 %v2201, %v2779
      %v2898 = vadd.f32 %v2206, %v2784
      %v2899 = vadd.f32 %v2211, %v2789
      %v2900 = vadd.f32 %v2216, %v2794
      %v2901 = vadd.f32 %v2221, %v2799
      %v2902 = vadd.f32 %v2226, %v2804
      %v2903 = vadd.f32 %v2231, %v2809
      %v2904 = vadd.f32 %v2236, %v2814
      %v2905 = vadd.f32 %v2241, %v2819
      %v2906 = vadd.f32 %v2246, %v2824
      %v2907 = vadd.f32 %v2251, %v2829
      %v2908 = vadd.f32 %v2256, %v2834
      %v2909 = vadd.f32 %v2261, %v2839
      %v2910 = vadd.f32 %v2266, %v2844
      %v2911 = vadd.f32 %v2271, %v2849
      %v2912 = vadd.f32 %v2276, %v2854
      %v2913 = vadd.f32 %v2281, %v2859
      %v2914 = vadd.f32 %v2286, %v2864
      %v2915 = vadd.f32 %v2291, %v2869
      %v2916 = vadd.f32 %v2296, %v2874
      %v2917 = vadd.f32 %v2301, %v2879
      %v2918 = vadd.f32 %v2306, %v2884
      %s2919 = scalar_lea.vmem %s6, 8
      %v2920 = vld [vmem:[%s2919] sm:$0xff]
      %v2922 = vsel %vm1672, %v2534, 0
      %v2925 = vsel %vm1672, %v2535, 0
      %v2928 = vsel %vm1672, %v2536, 0
      %v2931 = vsel %vm1672, %v2537, 0
      %v2934 = vsel %vm1672, %v2538, 0
      %v2937 = vsel %vm1672, %v2539, 0
      %v2940 = vsel %vm1672, %v2540, 0
      %v2943 = vsel %vm1672, %v2541, 0
      %v2946 = vsel %vm1672, %v2542, 0
      %v2949 = vsel %vm1672, %v2543, 0
      %v2952 = vsel %vm1672, %v2544, 0
      %v2955 = vsel %vm1672, %v2545, 0
      %v2958 = vsel %vm1672, %v2546, 0
      %v2961 = vsel %vm1672, %v2547, 0
      %v2964 = vsel %vm1672, %v2548, 0
      %v2967 = vsel %vm1672, %v2549, 0
      %v2970 = vsel %vm1672, %v2550, 0
      %v2973 = vsel %vm1672, %v2551, 0
      %v2976 = vsel %vm1672, %v2552, 0
      %v2979 = vsel %vm1672, %v2553, 0
      %v2982 = vsel %vm1672, %v2554, 0
      %v2985 = vsel %vm1672, %v2555, 0
      %v2988 = vsel %vm1672, %v2556, 0
      %v2991 = vsel %vm1672, %v2557, 0
      %v2994 = vsel %vm1672, %v2558, 0
      %v2997 = vsel %vm1672, %v2559, 0
      %v3000 = vsel %vm1672, %v2560, 0
      %v3003 = vsel %vm1672, %v2561, 0
      %v3006 = vsel %vm1672, %v2562, 0
      %v3009 = vsel %vm1672, %v2563, 0
      %3011 = vmatprep.subr.mxu0 0.0
      %3012 = vmatpush1.msra.mxu0 %v2920
      %3013 = vmatprep.subr.mxu0 0.0
      %3014 = vmatpush1.msra.mxu0 0.0
      %3015 = vmatprep.subr.mxu0 0.0
      %3016 = vmatpush1.msra.mxu0 0.0
      %3017 = vmatprep.subr.mxu0 0.0
      %3018 = vmatpush1.msra.mxu0 0.0
      %3019 = vmatprep.subr.mxu0 0.0
      %3020 = vmatpush1.msra.mxu0 0.0
      %3021 = vmatprep.subr.mxu0 0.0
      %3022 = vmatpush1.msra.mxu0 0.0
      %3023 = vmatprep.subr.mxu0 0.0
      %3024 = vmatpush1.msra.mxu0 0.0
      %3025 = vmatprep.subr.mxu0 0.0
      %3026 = vmatpush1.msra.mxu0 0.0
      %3027 = vmatprep.subr.mxu0 0.0
      %3028 = vmatpush1.msra.mxu0 0.0
      %3029 = vmatprep.subr.mxu0 0.0
      %3030 = vmatpush1.msra.mxu0 0.0
      %3031 = vmatprep.subr.mxu0 0.0
      %3032 = vmatpush1.msra.mxu0 0.0
      %3033 = vmatprep.subr.mxu0 0.0
      %3034 = vmatpush1.msra.mxu0 0.0
      %3035 = vmatprep.subr.mxu0 0.0
      %3036 = vmatpush1.msra.mxu0 0.0
      %3037 = vmatprep.subr.mxu0 0.0
      %3038 = vmatpush1.msra.mxu0 0.0
      %3039 = vmatprep.subr.mxu0 0.0
      %3040 = vmatpush1.msra.mxu0 0.0
      %3041 = vmatprep.subr.mxu0 0.0
      %3042 = vmatpush1.msra.mxu0 0.0
      %3043 = vmatprep.subr.mxu0 0.0
      %3044 = vmatpush1.msra.mxu0 0.0
      %3045 = vmatprep.subr.mxu0 0.0
      %3046 = vmatpush1.msra.mxu0 0.0
      %3047 = vmatprep.subr.mxu0 0.0
      %3048 = vmatpush1.msra.mxu0 0.0
      %3049 = vmatprep.subr.mxu0 0.0
      %3050 = vmatpush1.msra.mxu0 0.0
      %3051 = vmatprep.subr.mxu0 0.0
      %3052 = vmatpush1.msra.mxu0 0.0
      %3053 = vmatprep.subr.mxu0 0.0
      %3054 = vmatpush1.msra.mxu0 0.0
      %3055 = vmatprep.subr.mxu0 0.0
      %3056 = vmatpush1.msra.mxu0 0.0
      %3057 = vmatprep.subr.mxu0 0.0
      %3058 = vmatpush1.msra.mxu0 0.0
      %3059 = vmatprep.subr.mxu0 0.0
      %3060 = vmatpush1.msra.mxu0 0.0
      %3061 = vmatprep.subr.mxu0 0.0
      %3062 = vmatpush1.msra.mxu0 0.0
      %3063 = vmatprep.subr.mxu0 0.0
      %3064 = vmatpush1.msra.mxu0 0.0
      %3065 = vmatprep.subr.mxu0 0.0
      %3066 = vmatpush1.msra.mxu0 0.0
      %3067 = vmatprep.subr.mxu0 0.0
      %3068 = vmatpush1.msra.mxu0 0.0
      %3069 = vmatprep.subr.mxu0 0.0
      %3070 = vmatpush1.msra.mxu0 0.0
      %3071 = vmatprep.subr.mxu0 0.0
      %3072 = vmatpush1.msra.mxu0 0.0
      %3073 = vmatprep.subr.mxu0 0.0
      %3074 = vmatpush1.msra.mxu0 0.0
      %3075 = vmatprep.mubr.f32.mxu0 0.0
      %3076 = vmatmul.mubr.f32.gmra.mrb[0].mxu0 %v2567
      %v3077 = vpop.f32.mrb[0].mxu0
      %v3078 = vadd.f32 0.0, %v3077
      %v3079 = vpop.f32.mrb[0].mxu0
      %3080 = vmatprep.mubr.f32.mxu0 0.0
      %3081 = vmatmul.mubr.f32.gmra.mrb[0].mxu0 %v2570
      %v3082 = vpop.f32.mrb[0].mxu0
      %v3083 = vadd.f32 0.0, %v3082
      %v3084 = vpop.f32.mrb[0].mxu0
      %3085 = vmatprep.mubr.f32.mxu0 0.0
      %3086 = vmatmul.mubr.f32.gmra.mrb[0].mxu0 %v2922
      %v3087 = vpop.f32.mrb[0].mxu0
      %v3088 = vadd.f32 0.0, %v3087
      %v3089 = vpop.f32.mrb[0].mxu0
      %3090 = vmatprep.mubr.f32.mxu0 0.0
      %3091 = vmatmul.mubr.f32.gmra.mrb[0].mxu0 %v2925
      %v3092 = vpop.f32.mrb[0].mxu0
      %v3093 = vadd.f32 0.0, %v3092
      %v3094 = vpop.f32.mrb[0].mxu0
      %3095 = vmatprep.mubr.f32.mxu0 0.0
      %3096 = vmatmul.mubr.f32.gmra.mrb[0].mxu0 %v2928
      %v3097 = vpop.f32.mrb[0].mxu0
      %v3098 = vadd.f32 0.0, %v3097
      %v3099 = vpop.f32.mrb[0].mxu0
      %3100 = vmatprep.mubr.f32.mxu0 0.0
      %3101 = vmatmul.mubr.f32.gmra.mrb[0].mxu0 %v2931
      %v3102 = vpop.f32.mrb[0].mxu0
      %v3103 = vadd.f32 0.0, %v3102
      %v3104 = vpop.f32.mrb[0].mxu0
      %3105 = vmatprep.mubr.f32.mxu0 0.0
      %3106 = vmatmul.mubr.f32.gmra.mrb[0].mxu0 %v2934
      %v3107 = vpop.f32.mrb[0].mxu0
      %v3108 = vadd.f32 0.0, %v3107
      %v3109 = vpop.f32.mrb[0].mxu0
      %3110 = vmatprep.mubr.f32.mxu0 0.0
      %3111 = vmatmul.mubr.f32.gmra.mrb[0].mxu0 %v2937
      %v3112 = vpop.f32.mrb[0].mxu0
      %v3113 = vadd.f32 0.0, %v3112
      %v3114 = vpop.f32.mrb[0].mxu0
      %3115 = vmatprep.mubr.f32.mxu0 0.0
      %3116 = vmatmul.mubr.f32.gmra.mrb[0].mxu0 %v2940
      %v3117 = vpop.f32.mrb[0].mxu0
      %v3118 = vadd.f32 0.0, %v3117
      %v3119 = vpop.f32.mrb[0].mxu0
      %3120 = vmatprep.mubr.f32.mxu0 0.0
      %3121 = vmatmul.mubr.f32.gmra.mrb[0].mxu0 %v2943
      %v3122 = vpop.f32.mrb[0].mxu0
      %v3123 = vadd.f32 0.0, %v3122
      %v3124 = vpop.f32.mrb[0].mxu0
      %3125 = vmatprep.mubr.f32.mxu0 0.0
      %3126 = vmatmul.mubr.f32.gmra.mrb[0].mxu0 %v2946
      %v3127 = vpop.f32.mrb[0].mxu0
      %v3128 = vadd.f32 0.0, %v3127
      %v3129 = vpop.f32.mrb[0].mxu0
      %3130 = vmatprep.mubr.f32.mxu0 0.0
      %3131 = vmatmul.mubr.f32.gmra.mrb[0].mxu0 %v2949
      %v3132 = vpop.f32.mrb[0].mxu0
      %v3133 = vadd.f32 0.0, %v3132
      %v3134 = vpop.f32.mrb[0].mxu0
      %3135 = vmatprep.mubr.f32.mxu0 0.0
      %3136 = vmatmul.mubr.f32.gmra.mrb[0].mxu0 %v2952
      %v3137 = vpop.f32.mrb[0].mxu0
      %v3138 = vadd.f32 0.0, %v3137
      %v3139 = vpop.f32.mrb[0].mxu0
      %3140 = vmatprep.mubr.f32.mxu0 0.0
      %3141 = vmatmul.mubr.f32.gmra.mrb[0].mxu0 %v2955
      %v3142 = vpop.f32.mrb[0].mxu0
      %v3143 = vadd.f32 0.0, %v3142
      %v3144 = vpop.f32.mrb[0].mxu0
      %3145 = vmatprep.mubr.f32.mxu0 0.0
      %3146 = vmatmul.mubr.f32.gmra.mrb[0].mxu0 %v2958
      %v3147 = vpop.f32.mrb[0].mxu0
      %v3148 = vadd.f32 0.0, %v3147
      %v3149 = vpop.f32.mrb[0].mxu0
      %3150 = vmatprep.mubr.f32.mxu0 0.0
      %3151 = vmatmul.mubr.f32.gmra.mrb[0].mxu0 %v2961
      %v3152 = vpop.f32.mrb[0].mxu0
      %v3153 = vadd.f32 0.0, %v3152
      %v3154 = vpop.f32.mrb[0].mxu0
      %3155 = vmatprep.mubr.f32.mxu0 0.0
      %3156 = vmatmul.mubr.f32.gmra.mrb[0].mxu0 %v2964
      %v3157 = vpop.f32.mrb[0].mxu0
      %v3158 = vadd.f32 0.0, %v3157
      %v3159 = vpop.f32.mrb[0].mxu0
      %3160 = vmatprep.mubr.f32.mxu0 0.0
      %3161 = vmatmul.mubr.f32.gmra.mrb[0].mxu0 %v2967
      %v3162 = vpop.f32.mrb[0].mxu0
      %v3163 = vadd.f32 0.0, %v3162
      %v3164 = vpop.f32.mrb[0].mxu0
      %3165 = vmatprep.mubr.f32.mxu0 0.0
      %3166 = vmatmul.mubr.f32.gmra.mrb[0].mxu0 %v2970
      %v3167 = vpop.f32.mrb[0].mxu0
      %v3168 = vadd.f32 0.0, %v3167
      %v3169 = vpop.f32.mrb[0].mxu0
      %3170 = vmatprep.mubr.f32.mxu0 0.0
      %3171 = vmatmul.mubr.f32.gmra.mrb[0].mxu0 %v2973
      %v3172 = vpop.f32.mrb[0].mxu0
      %v3173 = vadd.f32 0.0, %v3172
      %v3174 = vpop.f32.mrb[0].mxu0
      %3175 = vmatprep.mubr.f32.mxu0 0.0
      %3176 = vmatmul.mubr.f32.gmra.mrb[0].mxu0 %v2976
      %v3177 = vpop.f32.mrb[0].mxu0
      %v3178 = vadd.f32 0.0, %v3177
      %v3179 = vpop.f32.mrb[0].mxu0
      %3180 = vmatprep.mubr.f32.mxu0 0.0
      %3181 = vmatmul.mubr.f32.gmra.mrb[0].mxu0 %v2979
      %v3182 = vpop.f32.mrb[0].mxu0
      %v3183 = vadd.f32 0.0, %v3182
      %v3184 = vpop.f32.mrb[0].mxu0
      %3185 = vmatprep.mubr.f32.mxu0 0.0
      %3186 = vmatmul.mubr.f32.gmra.mrb[0].mxu0 %v2982
      %v3187 = vpop.f32.mrb[0].mxu0
      %v3188 = vadd.f32 0.0, %v3187
      %v3189 = vpop.f32.mrb[0].mxu0
      %3190 = vmatprep.mubr.f32.mxu0 0.0
      %3191 = vmatmul.mubr.f32.gmra.mrb[0].mxu0 %v2985
      %v3192 = vpop.f32.mrb[0].mxu0
      %v3193 = vadd.f32 0.0, %v3192
      %v3194 = vpop.f32.mrb[0].mxu0
      %3195 = vmatprep.mubr.f32.mxu0 0.0
      %3196 = vmatmul.mubr.f32.gmra.mrb[0].mxu0 %v2988
      %v3197 = vpop.f32.mrb[0].mxu0
      %v3198 = vadd.f32 0.0, %v3197
      %v3199 = vpop.f32.mrb[0].mxu0
      %3200 = vmatprep.mubr.f32.mxu0 0.0
      %3201 = vmatmul.mubr.f32.gmra.mrb[0].mxu0 %v2991
      %v3202 = vpop.f32.mrb[0].mxu0
      %v3203 = vadd.f32 0.0, %v3202
      %v3204 = vpop.f32.mrb[0].mxu0
      %3205 = vmatprep.mubr.f32.mxu0 0.0
      %3206 = vmatmul.mubr.f32.gmra.mrb[0].mxu0 %v2994
      %v3207 = vpop.f32.mrb[0].mxu0
      %v3208 = vadd.f32 0.0, %v3207
      %v3209 = vpop.f32.mrb[0].mxu0
      %3210 = vmatprep.mubr.f32.mxu0 0.0
      %3211 = vmatmul.mubr.f32.gmra.mrb[0].mxu0 %v2997
      %v3212 = vpop.f32.mrb[0].mxu0
      %v3213 = vadd.f32 0.0, %v3212
      %v3214 = vpop.f32.mrb[0].mxu0
      %3215 = vmatprep.mubr.f32.mxu0 0.0
      %3216 = vmatmul.mubr.f32.gmra.mrb[0].mxu0 %v3000
      %v3217 = vpop.f32.mrb[0].mxu0
      %v3218 = vadd.f32 0.0, %v3217
      %v3219 = vpop.f32.mrb[0].mxu0
      %3220 = vmatprep.mubr.f32.mxu0 0.0
      %3221 = vmatmul.mubr.f32.gmra.mrb[0].mxu0 %v3003
      %v3222 = vpop.f32.mrb[0].mxu0
      %v3223 = vadd.f32 0.0, %v3222
      %v3224 = vpop.f32.mrb[0].mxu0
      %3225 = vmatprep.mubr.f32.mxu0 0.0
      %3226 = vmatmul.mubr.f32.gmra.mrb[0].mxu0 %v3006
      %v3227 = vpop.f32.mrb[0].mxu0
      %v3228 = vadd.f32 0.0, %v3227
      %v3229 = vpop.f32.mrb[0].mxu0
      %3230 = vmatprep.mubr.f32.mxu0 0.0
      %3231 = vmatmul.mubr.f32.gmra.mrb[0].mxu0 %v3009
      %v3232 = vpop.f32.mrb[0].mxu0
      %v3233 = vadd.f32 0.0, %v3232
      %v3234 = vpop.f32.mrb[0].mxu0
      %3235 = vdwg.mxu0
      %v3236 = vadd.f32 %v2887, %v3078
      %v3237 = vadd.f32 %v2888, %v3083
      %v3238 = vadd.f32 %v2889, %v3088
      %v3239 = vadd.f32 %v2890, %v3093
      %v3240 = vadd.f32 %v2891, %v3098
      %v3241 = vadd.f32 %v2892, %v3103
      %v3242 = vadd.f32 %v2893, %v3108
      %v3243 = vadd.f32 %v2894, %v3113
      %v3244 = vadd.f32 %v2895, %v3118
      %v3245 = vadd.f32 %v2896, %v3123
      %v3246 = vadd.f32 %v2897, %v3128
      %v3247 = vadd.f32 %v2898, %v3133
      %v3248 = vadd.f32 %v2899, %v3138
      %v3249 = vadd.f32 %v2900, %v3143
      %v3250 = vadd.f32 %v2901, %v3148
      %v3251 = vadd.f32 %v2902, %v3153
      %v3252 = vadd.f32 %v2903, %v3158
      %v3253 = vadd.f32 %v2904, %v3163
      %v3254 = vadd.f32 %v2905, %v3168
      %v3255 = vadd.f32 %v2906, %v3173
      %v3256 = vadd.f32 %v2907, %v3178
      %v3257 = vadd.f32 %v2908, %v3183
      %v3258 = vadd.f32 %v2909, %v3188
      %v3259 = vadd.f32 %v2910, %v3193
      %v3260 = vadd.f32 %v2911, %v3198
      %v3261 = vadd.f32 %v2912, %v3203
      %v3262 = vadd.f32 %v2913, %v3208
      %v3263 = vadd.f32 %v2914, %v3213
      %v3264 = vadd.f32 %v2915, %v3218
      %v3265 = vadd.f32 %v2916, %v3223
      %v3266 = vadd.f32 %v2917, %v3228
      %v3267 = vadd.f32 %v2918, %v3233
      %s3268 = scalar_lea.vmem %s7, 512
      %v3269 = vld [vmem:[%s3268] sm:$0xff]
      %v3270 = vld [vmem:[%s3268 + $0x8] sm:$0xff]
      %v3271 = vld [vmem:[%s3268 + $0x10] sm:$0xff]
      %v3272 = vld [vmem:[%s3268 + $0x18] sm:$0xff]
      %v3273 = vld [vmem:[%s3268 + $0x20] sm:$0xff]
      %v3274 = vld [vmem:[%s3268 + $0x28] sm:$0xff]
      %v3275 = vld [vmem:[%s3268 + $0x30] sm:$0xff]
      %v3276 = vld [vmem:[%s3268 + $0x38] sm:$0xff]
      %v3277 = vld [vmem:[%s3268 + $0x40] sm:$0xff]
      %v3278 = vld [vmem:[%s3268 + $0x48] sm:$0xff]
      %v3279 = vld [vmem:[%s3268 + $0x50] sm:$0xff]
      %v3280 = vld [vmem:[%s3268 + $0x58] sm:$0xff]
      %v3281 = vld [vmem:[%s3268 + $0x60] sm:$0xff]
      %v3282 = vld [vmem:[%s3268 + $0x68] sm:$0xff]
      %v3283 = vld [vmem:[%s3268 + $0x70] sm:$0xff]
      %v3284 = vld [vmem:[%s3268 + $0x78] sm:$0xff]
      %v3285 = vld [vmem:[%s3268 + $0x80] sm:$0xff]
      %v3286 = vld [vmem:[%s3268 + $0x88] sm:$0xff]
      %v3287 = vld [vmem:[%s3268 + $0x90] sm:$0xff]
      %v3288 = vld [vmem:[%s3268 + $0x98] sm:$0xff]
      %v3289 = vld [vmem:[%s3268 + $0xa0] sm:$0xff]
      %v3290 = vld [vmem:[%s3268 + $0xa8] sm:$0xff]
      %v3291 = vld [vmem:[%s3268 + $0xb0] sm:$0xff]
      %v3292 = vld [vmem:[%s3268 + $0xb8] sm:$0xff]
      %v3293 = vld [vmem:[%s3268 + $0xc0] sm:$0xff]
      %v3294 = vld [vmem:[%s3268 + $0xc8] sm:$0xff]
      %v3295 = vld [vmem:[%s3268 + $0xd0] sm:$0xff]
      %v3296 = vld [vmem:[%s3268 + $0xd8] sm:$0xff]
      %v3297 = vld [vmem:[%s3268 + $0xe0] sm:$0xff]
      %v3298 = vld [vmem:[%s3268 + $0xe8] sm:$0xff]
      %v3299 = vld [vmem:[%s3268 + $0xf0] sm:$0xff]
      %v3300 = vld [vmem:[%s3268 + $0xf8] sm:$0xff]
      %vm3302 = vcmask 1046528
      %v3303 = vrot.slane %v662, 1
      %v3304 = vrot.slane %v667, 1
      %v3305 = vsel %vm3302, %v3303, %v3304
      %v3306 = vrot.slane %v672, 1
      %v3307 = vsel %vm3302, %v3304, %v3306
      %v3308 = vrot.slane %v677, 1
      %v3309 = vsel %vm3302, %v3306, %v3308
      %v3310 = vrot.slane %v682, 1
      %v3311 = vsel %vm3302, %v3308, %v3310
      %v3312 = vrot.slane %v687, 1
      %v3313 = vsel %vm3302, %v3310, %v3312
      %v3314 = vrot.slane %v692, 1
      %v3315 = vsel %vm3302, %v3312, %v3314
      %v3316 = vrot.slane %v697, 1
      %v3317 = vsel %vm3302, %v3314, %v3316
      %v3318 = vrot.slane %v702, 1
      %v3319 = vsel %vm3302, %v3316, %v3318
      %v3320 = vrot.slane %v707, 1
      %v3321 = vsel %vm3302, %v3318, %v3320
      %v3322 = vrot.slane %v712, 1
      %v3323 = vsel %vm3302, %v3320, %v3322
      %v3324 = vrot.slane %v717, 1
      %v3325 = vsel %vm3302, %v3322, %v3324
      %v3326 = vrot.slane %v722, 1
      %v3327 = vsel %vm3302, %v3324, %v3326
      %v3328 = vrot.slane %v727, 1
      %v3329 = vsel %vm3302, %v3326, %v3328
      %v3330 = vrot.slane %v732, 1
      %v3331 = vsel %vm3302, %v3328, %v3330
      %v3332 = vrot.slane %v737, 1
      %v3333 = vsel %vm3302, %v3330, %v3332
      %v3334 = vrot.slane %v742, 1
      %v3335 = vsel %vm3302, %v3332, %v3334
      %v3336 = vrot.slane %v747, 1
      %v3337 = vsel %vm3302, %v3334, %v3336
      %v3338 = vrot.slane %v752, 1
      %v3339 = vsel %vm3302, %v3336, %v3338
      %v3340 = vrot.slane %v757, 1
      %v3341 = vsel %vm3302, %v3338, %v3340
      %v3342 = vrot.slane %v762, 1
      %v3343 = vsel %vm3302, %v3340, %v3342
      %v3344 = vrot.slane %v767, 1
      %v3345 = vsel %vm3302, %v3342, %v3344
      %v3346 = vrot.slane %v772, 1
      %v3347 = vsel %vm3302, %v3344, %v3346
      %v3348 = vrot.slane %v777, 1
      %v3349 = vsel %vm3302, %v3346, %v3348
      %v3350 = vrot.slane %v782, 1
      %v3351 = vsel %vm3302, %v3348, %v3350
      %v3352 = vrot.slane %v787, 1
      %v3353 = vsel %vm3302, %v3350, %v3352
      %v3354 = vrot.slane %v792, 1
      %v3355 = vsel %vm3302, %v3352, %v3354
      %v3356 = vrot.slane %v797, 1
      %v3357 = vsel %vm3302, %v3354, %v3356
      %v3358 = vrot.slane %v802, 1
      %v3359 = vsel %vm3302, %v3356, %v3358
      %v3360 = vrot.slane %v807, 1
      %v3361 = vsel %vm3302, %v3358, %v3360
      %v3362 = vrot.slane %v812, 1
      %v3363 = vsel %vm3302, %v3360, %v3362
      %v3395 = vsel %vm3302, 0.0, %v3303
      %3397 = vset.pattern.permute.xlu0 0
      %3398 = vperm.xlu0 %3397, %v3269
      %v3399 = vpop.permute.xlu0 %3398
      %3402 = vset.pattern.permute.xlu0 0
      %3403 = vperm.xlu0 %3402, %v3270
      %v3404 = vpop.permute.xlu0 %3403
      %3407 = vset.pattern.permute.xlu0 0
      %3408 = vperm.xlu0 %3407, %v3271
      %v3409 = vpop.permute.xlu0 %3408
      %3412 = vset.pattern.permute.xlu0 0
      %3413 = vperm.xlu0 %3412, %v3272
      %v3414 = vpop.permute.xlu0 %3413
      %3417 = vset.pattern.permute.xlu0 0
      %3418 = vperm.xlu0 %3417, %v3273
      %v3419 = vpop.permute.xlu0 %3418
      %3422 = vset.pattern.permute.xlu0 0
      %3423 = vperm.xlu0 %3422, %v3274
      %v3424 = vpop.permute.xlu0 %3423
      %3427 = vset.pattern.permute.xlu0 0
      %3428 = vperm.xlu0 %3427, %v3275
      %v3429 = vpop.permute.xlu0 %3428
      %3432 = vset.pattern.permute.xlu0 0
      %3433 = vperm.xlu0 %3432, %v3276
      %v3434 = vpop.permute.xlu0 %3433
      %3437 = vset.pattern.permute.xlu0 0
      %3438 = vperm.xlu0 %3437, %v3277
      %v3439 = vpop.permute.xlu0 %3438
      %3442 = vset.pattern.permute.xlu0 0
      %3443 = vperm.xlu0 %3442, %v3278
      %v3444 = vpop.permute.xlu0 %3443
      %3447 = vset.pattern.permute.xlu0 0
      %3448 = vperm.xlu0 %3447, %v3279
      %v3449 = vpop.permute.xlu0 %3448
      %3452 = vset.pattern.permute.xlu0 0
      %3453 = vperm.xlu0 %3452, %v3280
      %v3454 = vpop.permute.xlu0 %3453
      %3457 = vset.pattern.permute.xlu0 0
      %3458 = vperm.xlu0 %3457, %v3281
      %v3459 = vpop.permute.xlu0 %3458
      %3462 = vset.pattern.permute.xlu0 0
      %3463 = vperm.xlu0 %3462, %v3282
      %v3464 = vpop.permute.xlu0 %3463
      %3467 = vset.pattern.permute.xlu0 0
      %3468 = vperm.xlu0 %3467, %v3283
      %v3469 = vpop.permute.xlu0 %3468
      %3472 = vset.pattern.permute.xlu0 0
      %3473 = vperm.xlu0 %3472, %v3284
      %v3474 = vpop.permute.xlu0 %3473
      %3477 = vset.pattern.permute.xlu0 0
      %3478 = vperm.xlu0 %3477, %v3285
      %v3479 = vpop.permute.xlu0 %3478
      %3482 = vset.pattern.permute.xlu0 0
      %3483 = vperm.xlu0 %3482, %v3286
      %v3484 = vpop.permute.xlu0 %3483
      %3487 = vset.pattern.permute.xlu0 0
      %3488 = vperm.xlu0 %3487, %v3287
      %v3489 = vpop.permute.xlu0 %3488
      %3492 = vset.pattern.permute.xlu0 0
      %3493 = vperm.xlu0 %3492, %v3288
      %v3494 = vpop.permute.xlu0 %3493
      %3497 = vset.pattern.permute.xlu0 0
      %3498 = vperm.xlu0 %3497, %v3289
      %v3499 = vpop.permute.xlu0 %3498
      %3502 = vset.pattern.permute.xlu0 0
      %3503 = vperm.xlu0 %3502, %v3290
      %v3504 = vpop.permute.xlu0 %3503
      %3507 = vset.pattern.permute.xlu0 0
      %3508 = vperm.xlu0 %3507, %v3291
      %v3509 = vpop.permute.xlu0 %3508
      %3512 = vset.pattern.permute.xlu0 0
      %3513 = vperm.xlu0 %3512, %v3292
      %v3514 = vpop.permute.xlu0 %3513
      %3517 = vset.pattern.permute.xlu0 0
      %3518 = vperm.xlu0 %3517, %v3293
      %v3519 = vpop.permute.xlu0 %3518
      %3522 = vset.pattern.permute.xlu0 0
      %3523 = vperm.xlu0 %3522, %v3294
      %v3524 = vpop.permute.xlu0 %3523
      %3527 = vset.pattern.permute.xlu0 0
      %3528 = vperm.xlu0 %3527, %v3295
      %v3529 = vpop.permute.xlu0 %3528
      %3532 = vset.pattern.permute.xlu0 0
      %3533 = vperm.xlu0 %3532, %v3296
      %v3534 = vpop.permute.xlu0 %3533
      %3537 = vset.pattern.permute.xlu0 0
      %3538 = vperm.xlu0 %3537, %v3297
      %v3539 = vpop.permute.xlu0 %3538
      %3542 = vset.pattern.permute.xlu0 0
      %3543 = vperm.xlu0 %3542, %v3298
      %v3544 = vpop.permute.xlu0 %3543
      %3547 = vset.pattern.permute.xlu0 0
      %3548 = vperm.xlu0 %3547, %v3299
      %v3549 = vpop.permute.xlu0 %3548
      %3552 = vset.pattern.permute.xlu0 0
      %3553 = vperm.xlu0 %3552, %v3300
      %v3554 = vpop.permute.xlu0 %3553
      %v3556 = vmul.f32 %v3399, 0.0
      %v3557 = vmul.f32 %v3395, %v3404
      %v3558 = vmul.f32 %v3305, %v3409
      %v3559 = vmul.f32 %v3307, %v3414
      %v3560 = vmul.f32 %v3309, %v3419
      %v3561 = vmul.f32 %v3311, %v3424
      %v3562 = vmul.f32 %v3313, %v3429
      %v3563 = vmul.f32 %v3315, %v3434
      %v3564 = vmul.f32 %v3317, %v3439
      %v3565 = vmul.f32 %v3319, %v3444
      %v3566 = vmul.f32 %v3321, %v3449
      %v3567 = vmul.f32 %v3323, %v3454
      %v3568 = vmul.f32 %v3325, %v3459
      %v3569 = vmul.f32 %v3327, %v3464
      %v3570 = vmul.f32 %v3329, %v3469
      %v3571 = vmul.f32 %v3331, %v3474
      %v3572 = vmul.f32 %v3333, %v3479
      %v3573 = vmul.f32 %v3335, %v3484
      %v3574 = vmul.f32 %v3337, %v3489
      %v3575 = vmul.f32 %v3339, %v3494
      %v3576 = vmul.f32 %v3341, %v3499
      %v3577 = vmul.f32 %v3343, %v3504
      %v3578 = vmul.f32 %v3345, %v3509
      %v3579 = vmul.f32 %v3347, %v3514
      %v3580 = vmul.f32 %v3349, %v3519
      %v3581 = vmul.f32 %v3351, %v3524
      %v3582 = vmul.f32 %v3353, %v3529
      %v3583 = vmul.f32 %v3355, %v3534
      %v3584 = vmul.f32 %v3357, %v3539
      %v3585 = vmul.f32 %v3359, %v3544
      %v3586 = vmul.f32 %v3361, %v3549
      %v3587 = vmul.f32 %v3363, %v3554
      %v3589 = vrot.slane %v1017, 1
      %v3590 = vrot.slane %v1022, 1
      %v3591 = vsel %vm3302, %v3589, %v3590
      %v3592 = vrot.slane %v1027, 1
      %v3593 = vsel %vm3302, %v3590, %v3592
      %v3594 = vrot.slane %v1032, 1
      %v3595 = vsel %vm3302, %v3592, %v3594
      %v3596 = vrot.slane %v1037, 1
      %v3597 = vsel %vm3302, %v3594, %v3596
      %v3598 = vrot.slane %v1042, 1
      %v3599 = vsel %vm3302, %v3596, %v3598
      %v3600 = vrot.slane %v1047, 1
      %v3601 = vsel %vm3302, %v3598, %v3600
      %v3602 = vrot.slane %v1052, 1
      %v3603 = vsel %vm3302, %v3600, %v3602
      %v3604 = vrot.slane %v1057, 1
      %v3605 = vsel %vm3302, %v3602, %v3604
      %v3606 = vrot.slane %v1062, 1
      %v3607 = vsel %vm3302, %v3604, %v3606
      %v3608 = vrot.slane %v1067, 1
      %v3609 = vsel %vm3302, %v3606, %v3608
      %v3610 = vrot.slane %v1072, 1
      %v3611 = vsel %vm3302, %v3608, %v3610
      %v3612 = vrot.slane %v1077, 1
      %v3613 = vsel %vm3302, %v3610, %v3612
      %v3614 = vrot.slane %v1082, 1
      %v3615 = vsel %vm3302, %v3612, %v3614
      %v3616 = vrot.slane %v1087, 1
      %v3617 = vsel %vm3302, %v3614, %v3616
      %v3618 = vrot.slane %v1092, 1
      %v3619 = vsel %vm3302, %v3616, %v3618
      %v3620 = vrot.slane %v1097, 1
      %v3621 = vsel %vm3302, %v3618, %v3620
      %v3622 = vrot.slane %v1102, 1
      %v3623 = vsel %vm3302, %v3620, %v3622
      %v3624 = vrot.slane %v1107, 1
      %v3625 = vsel %vm3302, %v3622, %v3624
      %v3626 = vrot.slane %v1112, 1
      %v3627 = vsel %vm3302, %v3624, %v3626
      %v3628 = vrot.slane %v1117, 1
      %v3629 = vsel %vm3302, %v3626, %v3628
      %v3630 = vrot.slane %v1122, 1
      %v3631 = vsel %vm3302, %v3628, %v3630
      %v3632 = vrot.slane %v1127, 1
      %v3633 = vsel %vm3302, %v3630, %v3632
      %v3634 = vrot.slane %v1132, 1
      %v3635 = vsel %vm3302, %v3632, %v3634
      %v3636 = vrot.slane %v1137, 1
      %v3637 = vsel %vm3302, %v3634, %v3636
      %v3638 = vrot.slane %v1142, 1
      %v3639 = vsel %vm3302, %v3636, %v3638
      %v3640 = vrot.slane %v1147, 1
      %v3641 = vsel %vm3302, %v3638, %v3640
      %v3642 = vrot.slane %v1152, 1
      %v3643 = vsel %vm3302, %v3640, %v3642
      %v3644 = vrot.slane %v1157, 1
      %v3645 = vsel %vm3302, %v3642, %v3644
      %v3646 = vrot.slane %v1162, 1
      %v3647 = vsel %vm3302, %v3644, %v3646
      %v3648 = vrot.slane %v1167, 1
      %v3649 = vsel %vm3302, %v3646, %v3648
      %v3681 = vsel %vm3302, 0.0, %v3589
      %v3682 = vmul.f32 %v3681, %v3404
      %v3683 = vmul.f32 %v3591, %v3409
      %v3684 = vmul.f32 %v3593, %v3414
      %v3685 = vmul.f32 %v3595, %v3419
      %v3686 = vmul.f32 %v3597, %v3424
      %v3687 = vmul.f32 %v3599, %v3429
      %v3688 = vmul.f32 %v3601, %v3434
      %v3689 = vmul.f32 %v3603, %v3439
      %v3690 = vmul.f32 %v3605, %v3444
      %v3691 = vmul.f32 %v3607, %v3449
      %v3692 = vmul.f32 %v3609, %v3454
      %v3693 = vmul.f32 %v3611, %v3459
      %v3694 = vmul.f32 %v3613, %v3464
      %v3695 = vmul.f32 %v3615, %v3469
      %v3696 = vmul.f32 %v3617, %v3474
      %v3697 = vmul.f32 %v3619, %v3479
      %v3698 = vmul.f32 %v3621, %v3484
      %v3699 = vmul.f32 %v3623, %v3489
      %v3700 = vmul.f32 %v3625, %v3494
      %v3701 = vmul.f32 %v3627, %v3499
      %v3702 = vmul.f32 %v3629, %v3504
      %v3703 = vmul.f32 %v3631, %v3509
      %v3704 = vmul.f32 %v3633, %v3514
      %v3705 = vmul.f32 %v3635, %v3519
      %v3706 = vmul.f32 %v3637, %v3524
      %v3707 = vmul.f32 %v3639, %v3529
      %v3708 = vmul.f32 %v3641, %v3534
      %v3709 = vmul.f32 %v3643, %v3539
      %v3710 = vmul.f32 %v3645, %v3544
      %v3711 = vmul.f32 %v3647, %v3549
      %v3712 = vmul.f32 %v3649, %v3554
      %s3713 = scalar_lea.vmem %s5, 16
      %v3714 = vld [vmem:[%s3713] sm:$0xff]
      %v3716 = vsel %vm1672, %v3556, 0
      %v3719 = vsel %vm1672, %v3557, 0
      %v3722 = vsel %vm1672, %v3558, 0
      %v3725 = vsel %vm1672, %v3559, 0
      %v3728 = vsel %vm1672, %v3560, 0
      %v3731 = vsel %vm1672, %v3561, 0
      %v3734 = vsel %vm1672, %v3562, 0
      %v3737 = vsel %vm1672, %v3563, 0
      %v3740 = vsel %vm1672, %v3564, 0
      %v3743 = vsel %vm1672, %v3565, 0
      %v3746 = vsel %vm1672, %v3566, 0
      %v3749 = vsel %vm1672, %v3567, 0
      %v3752 = vsel %vm1672, %v3568, 0
      %v3755 = vsel %vm1672, %v3569, 0
      %v3758 = vsel %vm1672, %v3570, 0
      %v3761 = vsel %vm1672, %v3571, 0
      %v3764 = vsel %vm1672, %v3572, 0
      %v3767 = vsel %vm1672, %v3573, 0
      %v3770 = vsel %vm1672, %v3574, 0
      %v3773 = vsel %vm1672, %v3575, 0
      %v3776 = vsel %vm1672, %v3576, 0
      %v3779 = vsel %vm1672, %v3577, 0
      %v3782 = vsel %vm1672, %v3578, 0
      %v3785 = vsel %vm1672, %v3579, 0
      %v3788 = vsel %vm1672, %v3580, 0
      %v3791 = vsel %vm1672, %v3581, 0
      %v3794 = vsel %vm1672, %v3582, 0
      %v3797 = vsel %vm1672, %v3583, 0
      %v3800 = vsel %vm1672, %v3584, 0
      %v3803 = vsel %vm1672, %v3585, 0
      %v3806 = vsel %vm1672, %v3586, 0
      %v3809 = vsel %vm1672, %v3587, 0
      %3811 = vmatprep.subr.mxu0 0.0
      %3812 = vmatpush1.msra.mxu0 %v3714
      %3813 = vmatprep.subr.mxu0 0.0
      %3814 = vmatpush1.msra.mxu0 0.0
      %3815 = vmatprep.subr.mxu0 0.0
      %3816 = vmatpush1.msra.mxu0 0.0
      %3817 = vmatprep.subr.mxu0 0.0
      %3818 = vmatpush1.msra.mxu0 0.0
      %3819 = vmatprep.subr.mxu0 0.0
      %3820 = vmatpush1.msra.mxu0 0.0
      %3821 = vmatprep.subr.mxu0 0.0
      %3822 = vmatpush1.msra.mxu0 0.0
      %3823 = vmatprep.subr.mxu0 0.0
      %3824 = vmatpush1.msra.mxu0 0.0
      %3825 = vmatprep.subr.mxu0 0.0
      %3826 = vmatpush1.msra.mxu0 0.0
      %3827 = vmatprep.subr.mxu0 0.0
      %3828 = vmatpush1.msra.mxu0 0.0
      %3829 = vmatprep.subr.mxu0 0.0
      %3830 = vmatpush1.msra.mxu0 0.0
      %3831 = vmatprep.subr.mxu0 0.0
      %3832 = vmatpush1.msra.mxu0 0.0
      %3833 = vmatprep.subr.mxu0 0.0
      %3834 = vmatpush1.msra.mxu0 0.0
      %3835 = vmatprep.subr.mxu0 0.0
      %3836 = vmatpush1.msra.mxu0 0.0
      %3837 = vmatprep.subr.mxu0 0.0
      %3838 = vmatpush1.msra.mxu0 0.0
      %3839 = vmatprep.subr.mxu0 0.0
      %3840 = vmatpush1.msra.mxu0 0.0
      %3841 = vmatprep.subr.mxu0 0.0
      %3842 = vmatpush1.msra.mxu0 0.0
      %3843 = vmatprep.subr.mxu0 0.0
      %3844 = vmatpush1.msra.mxu0 0.0
      %3845 = vmatprep.subr.mxu0 0.0
      %3846 = vmatpush1.msra.mxu0 0.0
      %3847 = vmatprep.subr.mxu0 0.0
      %3848 = vmatpush1.msra.mxu0 0.0
      %3849 = vmatprep.subr.mxu0 0.0
      %3850 = vmatpush1.msra.mxu0 0.0
      %3851 = vmatprep.subr.mxu0 0.0
      %3852 = vmatpush1.msra.mxu0 0.0
      %3853 = vmatprep.subr.mxu0 0.0
      %3854 = vmatpush1.msra.mxu0 0.0
      %3855 = vmatprep.subr.mxu0 0.0
      %3856 = vmatpush1.msra.mxu0 0.0
      %3857 = vmatprep.subr.mxu0 0.0
      %3858 = vmatpush1.msra.mxu0 0.0
      %3859 = vmatprep.subr.mxu0 0.0
      %3860 = vmatpush1.msra.mxu0 0.0
      %3861 = vmatprep.subr.mxu0 0.0
      %3862 = vmatpush1.msra.mxu0 0.0
      %3863 = vmatprep.subr.mxu0 0.0
      %3864 = vmatpush1.msra.mxu0 0.0
      %3865 = vmatprep.subr.mxu0 0.0
      %3866 = vmatpush1.msra.mxu0 0.0
      %3867 = vmatprep.subr.mxu0 0.0
      %3868 = vmatpush1.msra.mxu0 0.0
      %3869 = vmatprep.subr.mxu0 0.0
      %3870 = vmatpush1.msra.mxu0 0.0
      %3871 = vmatprep.subr.mxu0 0.0
      %3872 = vmatpush1.msra.mxu0 0.0
      %3873 = vmatprep.subr.mxu0 0.0
      %3874 = vmatpush1.msra.mxu0 0.0
      %3875 = vmatprep.mubr.f32.mxu0 0.0
      %3876 = vmatmul.mubr.f32.gmra.mrb[0].mxu0 %v3716
      %v3877 = vpop.f32.mrb[0].mxu0
      %v3878 = vadd.f32 0.0, %v3877
      %v3879 = vpop.f32.mrb[0].mxu0
      %3880 = vmatprep.mubr.f32.mxu0 0.0
      %3881 = vmatmul.mubr.f32.gmra.mrb[0].mxu0 %v3719
      %v3882 = vpop.f32.mrb[0].mxu0
      %v3883 = vadd.f32 0.0, %v3882
      %v3884 = vpop.f32.mrb[0].mxu0
      %3885 = vmatprep.mubr.f32.mxu0 0.0
      %3886 = vmatmul.mubr.f32.gmra.mrb[0].mxu0 %v3722
      %v3887 = vpop.f32.mrb[0].mxu0
      %v3888 = vadd.f32 0.0, %v3887
      %v3889 = vpop.f32.mrb[0].mxu0
      %3890 = vmatprep.mubr.f32.mxu0 0.0
      %3891 = vmatmul.mubr.f32.gmra.mrb[0].mxu0 %v3725
      %v3892 = vpop.f32.mrb[0].mxu0
      %v3893 = vadd.f32 0.0, %v3892
      %v3894 = vpop.f32.mrb[0].mxu0
      %3895 = vmatprep.mubr.f32.mxu0 0.0
      %3896 = vmatmul.mubr.f32.gmra.mrb[0].mxu0 %v3728
      %v3897 = vpop.f32.mrb[0].mxu0
      %v3898 = vadd.f32 0.0, %v3897
      %v3899 = vpop.f32.mrb[0].mxu0
      %3900 = vmatprep.mubr.f32.mxu0 0.0
      %3901 = vmatmul.mubr.f32.gmra.mrb[0].mxu0 %v3731
      %v3902 = vpop.f32.mrb[0].mxu0
      %v3903 = vadd.f32 0.0, %v3902
      %v3904 = vpop.f32.mrb[0].mxu0
      %3905 = vmatprep.mubr.f32.mxu0 0.0
      %3906 = vmatmul.mubr.f32.gmra.mrb[0].mxu0 %v3734
      %v3907 = vpop.f32.mrb[0].mxu0
      %v3908 = vadd.f32 0.0, %v3907
      %v3909 = vpop.f32.mrb[0].mxu0
      %3910 = vmatprep.mubr.f32.mxu0 0.0
      %3911 = vmatmul.mubr.f32.gmra.mrb[0].mxu0 %v3737
      %v3912 = vpop.f32.mrb[0].mxu0
      %v3913 = vadd.f32 0.0, %v3912
      %v3914 = vpop.f32.mrb[0].mxu0
      %3915 = vmatprep.mubr.f32.mxu0 0.0
      %3916 = vmatmul.mubr.f32.gmra.mrb[0].mxu0 %v3740
      %v3917 = vpop.f32.mrb[0].mxu0
      %v3918 = vadd.f32 0.0, %v3917
      %v3919 = vpop.f32.mrb[0].mxu0
      %3920 = vmatprep.mubr.f32.mxu0 0.0
      %3921 = vmatmul.mubr.f32.gmra.mrb[0].mxu0 %v3743
      %v3922 = vpop.f32.mrb[0].mxu0
      %v3923 = vadd.f32 0.0, %v3922
      %v3924 = vpop.f32.mrb[0].mxu0
      %3925 = vmatprep.mubr.f32.mxu0 0.0
      %3926 = vmatmul.mubr.f32.gmra.mrb[0].mxu0 %v3746
      %v3927 = vpop.f32.mrb[0].mxu0
      %v3928 = vadd.f32 0.0, %v3927
      %v3929 = vpop.f32.mrb[0].mxu0
      %3930 = vmatprep.mubr.f32.mxu0 0.0
      %3931 = vmatmul.mubr.f32.gmra.mrb[0].mxu0 %v3749
      %v3932 = vpop.f32.mrb[0].mxu0
      %v3933 = vadd.f32 0.0, %v3932
      %v3934 = vpop.f32.mrb[0].mxu0
      %3935 = vmatprep.mubr.f32.mxu0 0.0
      %3936 = vmatmul.mubr.f32.gmra.mrb[0].mxu0 %v3752
      %v3937 = vpop.f32.mrb[0].mxu0
      %v3938 = vadd.f32 0.0, %v3937
      %v3939 = vpop.f32.mrb[0].mxu0
      %3940 = vmatprep.mubr.f32.mxu0 0.0
      %3941 = vmatmul.mubr.f32.gmra.mrb[0].mxu0 %v3755
      %v3942 = vpop.f32.mrb[0].mxu0
      %v3943 = vadd.f32 0.0, %v3942
      %v3944 = vpop.f32.mrb[0].mxu0
      %3945 = vmatprep.mubr.f32.mxu0 0.0
      %3946 = vmatmul.mubr.f32.gmra.mrb[0].mxu0 %v3758
      %v3947 = vpop.f32.mrb[0].mxu0
      %v3948 = vadd.f32 0.0, %v3947
      %v3949 = vpop.f32.mrb[0].mxu0
      %3950 = vmatprep.mubr.f32.mxu0 0.0
      %3951 = vmatmul.mubr.f32.gmra.mrb[0].mxu0 %v3761
      %v3952 = vpop.f32.mrb[0].mxu0
      %v3953 = vadd.f32 0.0, %v3952
      %v3954 = vpop.f32.mrb[0].mxu0
      %3955 = vmatprep.mubr.f32.mxu0 0.0
      %3956 = vmatmul.mubr.f32.gmra.mrb[0].mxu0 %v3764
      %v3957 = vpop.f32.mrb[0].mxu0
      %v3958 = vadd.f32 0.0, %v3957
      %v3959 = vpop.f32.mrb[0].mxu0
      %3960 = vmatprep.mubr.f32.mxu0 0.0
      %3961 = vmatmul.mubr.f32.gmra.mrb[0].mxu0 %v3767
      %v3962 = vpop.f32.mrb[0].mxu0
      %v3963 = vadd.f32 0.0, %v3962
      %v3964 = vpop.f32.mrb[0].mxu0
      %3965 = vmatprep.mubr.f32.mxu0 0.0
      %3966 = vmatmul.mubr.f32.gmra.mrb[0].mxu0 %v3770
      %v3967 = vpop.f32.mrb[0].mxu0
      %v3968 = vadd.f32 0.0, %v3967
      %v3969 = vpop.f32.mrb[0].mxu0
      %3970 = vmatprep.mubr.f32.mxu0 0.0
      %3971 = vmatmul.mubr.f32.gmra.mrb[0].mxu0 %v3773
      %v3972 = vpop.f32.mrb[0].mxu0
      %v3973 = vadd.f32 0.0, %v3972
      %v3974 = vpop.f32.mrb[0].mxu0
      %3975 = vmatprep.mubr.f32.mxu0 0.0
      %3976 = vmatmul.mubr.f32.gmra.mrb[0].mxu0 %v3776
      %v3977 = vpop.f32.mrb[0].mxu0
      %v3978 = vadd.f32 0.0, %v3977
      %v3979 = vpop.f32.mrb[0].mxu0
      %3980 = vmatprep.mubr.f32.mxu0 0.0
      %3981 = vmatmul.mubr.f32.gmra.mrb[0].mxu0 %v3779
      %v3982 = vpop.f32.mrb[0].mxu0
      %v3983 = vadd.f32 0.0, %v3982
      %v3984 = vpop.f32.mrb[0].mxu0
      %3985 = vmatprep.mubr.f32.mxu0 0.0
      %3986 = vmatmul.mubr.f32.gmra.mrb[0].mxu0 %v3782
      %v3987 = vpop.f32.mrb[0].mxu0
      %v3988 = vadd.f32 0.0, %v3987
      %v3989 = vpop.f32.mrb[0].mxu0
      %3990 = vmatprep.mubr.f32.mxu0 0.0
      %3991 = vmatmul.mubr.f32.gmra.mrb[0].mxu0 %v3785
      %v3992 = vpop.f32.mrb[0].mxu0
      %v3993 = vadd.f32 0.0, %v3992
      %v3994 = vpop.f32.mrb[0].mxu0
      %3995 = vmatprep.mubr.f32.mxu0 0.0
      %3996 = vmatmul.mubr.f32.gmra.mrb[0].mxu0 %v3788
      %v3997 = vpop.f32.mrb[0].mxu0
      %v3998 = vadd.f32 0.0, %v3997
      %v3999 = vpop.f32.mrb[0].mxu0
      %4000 = vmatprep.mubr.f32.mxu0 0.0
      %4001 = vmatmul.mubr.f32.gmra.mrb[0].mxu0 %v3791
      %v4002 = vpop.f32.mrb[0].mxu0
      %v4003 = vadd.f32 0.0, %v4002
      %v4004 = vpop.f32.mrb[0].mxu0
      %4005 = vmatprep.mubr.f32.mxu0 0.0
      %4006 = vmatmul.mubr.f32.gmra.mrb[0].mxu0 %v3794
      %v4007 = vpop.f32.mrb[0].mxu0
      %v4008 = vadd.f32 0.0, %v4007
      %v4009 = vpop.f32.mrb[0].mxu0
      %4010 = vmatprep.mubr.f32.mxu0 0.0
      %4011 = vmatmul.mubr.f32.gmra.mrb[0].mxu0 %v3797
      %v4012 = vpop.f32.mrb[0].mxu0
      %v4013 = vadd.f32 0.0, %v4012
      %v4014 = vpop.f32.mrb[0].mxu0
      %4015 = vmatprep.mubr.f32.mxu0 0.0
      %4016 = vmatmul.mubr.f32.gmra.mrb[0].mxu0 %v3800
      %v4017 = vpop.f32.mrb[0].mxu0
      %v4018 = vadd.f32 0.0, %v4017
      %v4019 = vpop.f32.mrb[0].mxu0
      %4020 = vmatprep.mubr.f32.mxu0 0.0
      %4021 = vmatmul.mubr.f32.gmra.mrb[0].mxu0 %v3803
      %v4022 = vpop.f32.mrb[0].mxu0
      %v4023 = vadd.f32 0.0, %v4022
      %v4024 = vpop.f32.mrb[0].mxu0
      %4025 = vmatprep.mubr.f32.mxu0 0.0
      %4026 = vmatmul.mubr.f32.gmra.mrb[0].mxu0 %v3806
      %v4027 = vpop.f32.mrb[0].mxu0
      %v4028 = vadd.f32 0.0, %v4027
      %v4029 = vpop.f32.mrb[0].mxu0
      %4030 = vmatprep.mubr.f32.mxu0 0.0
      %4031 = vmatmul.mubr.f32.gmra.mrb[0].mxu0 %v3809
      %v4032 = vpop.f32.mrb[0].mxu0
      %v4033 = vadd.f32 0.0, %v4032
      %v4034 = vpop.f32.mrb[0].mxu0
      %4035 = vdwg.mxu0
      %v4036 = vadd.f32 %v3236, %v3878
      %v4037 = vadd.f32 %v3237, %v3883
      %v4038 = vadd.f32 %v3238, %v3888
      %v4039 = vadd.f32 %v3239, %v3893
      %v4040 = vadd.f32 %v3240, %v3898
      %v4041 = vadd.f32 %v3241, %v3903
      %v4042 = vadd.f32 %v3242, %v3908
      %v4043 = vadd.f32 %v3243, %v3913
      %v4044 = vadd.f32 %v3244, %v3918
      %v4045 = vadd.f32 %v3245, %v3923
      %v4046 = vadd.f32 %v3246, %v3928
      %v4047 = vadd.f32 %v3247, %v3933
      %v4048 = vadd.f32 %v3248, %v3938
      %v4049 = vadd.f32 %v3249, %v3943
      %v4050 = vadd.f32 %v3250, %v3948
      %v4051 = vadd.f32 %v3251, %v3953
      %v4052 = vadd.f32 %v3252, %v3958
      %v4053 = vadd.f32 %v3253, %v3963
      %v4054 = vadd.f32 %v3254, %v3968
      %v4055 = vadd.f32 %v3255, %v3973
      %v4056 = vadd.f32 %v3256, %v3978
      %v4057 = vadd.f32 %v3257, %v3983
      %v4058 = vadd.f32 %v3258, %v3988
      %v4059 = vadd.f32 %v3259, %v3993
      %v4060 = vadd.f32 %v3260, %v3998
      %v4061 = vadd.f32 %v3261, %v4003
      %v4062 = vadd.f32 %v3262, %v4008
      %v4063 = vadd.f32 %v3263, %v4013
      %v4064 = vadd.f32 %v3264, %v4018
      %v4065 = vadd.f32 %v3265, %v4023
      %v4066 = vadd.f32 %v3266, %v4028
      %v4067 = vadd.f32 %v3267, %v4033
      %s4068 = scalar_lea.vmem %s6, 16
      %v4069 = vld [vmem:[%s4068] sm:$0xff]
      %v4071 = vsel %vm1672, %v3682, 0
      %v4074 = vsel %vm1672, %v3683, 0
      %v4077 = vsel %vm1672, %v3684, 0
      %v4080 = vsel %vm1672, %v3685, 0
      %v4083 = vsel %vm1672, %v3686, 0
      %v4086 = vsel %vm1672, %v3687, 0
      %v4089 = vsel %vm1672, %v3688, 0
      %v4092 = vsel %vm1672, %v3689, 0
      %v4095 = vsel %vm1672, %v3690, 0
      %v4098 = vsel %vm1672, %v3691, 0
      %v4101 = vsel %vm1672, %v3692, 0
      %v4104 = vsel %vm1672, %v3693, 0
      %v4107 = vsel %vm1672, %v3694, 0
      %v4110 = vsel %vm1672, %v3695, 0
      %v4113 = vsel %vm1672, %v3696, 0
      %v4116 = vsel %vm1672, %v3697, 0
      %v4119 = vsel %vm1672, %v3698, 0
      %v4122 = vsel %vm1672, %v3699, 0
      %v4125 = vsel %vm1672, %v3700, 0
      %v4128 = vsel %vm1672, %v3701, 0
      %v4131 = vsel %vm1672, %v3702, 0
      %v4134 = vsel %vm1672, %v3703, 0
      %v4137 = vsel %vm1672, %v3704, 0
      %v4140 = vsel %vm1672, %v3705, 0
      %v4143 = vsel %vm1672, %v3706, 0
      %v4146 = vsel %vm1672, %v3707, 0
      %v4149 = vsel %vm1672, %v3708, 0
      %v4152 = vsel %vm1672, %v3709, 0
      %v4155 = vsel %vm1672, %v3710, 0
      %v4158 = vsel %vm1672, %v3711, 0
      %v4161 = vsel %vm1672, %v3712, 0
      %4163 = vmatprep.subr.mxu0 0.0
      %4164 = vmatpush1.msra.mxu0 %v4069
      %4165 = vmatprep.subr.mxu0 0.0
      %4166 = vmatpush1.msra.mxu0 0.0
      %4167 = vmatprep.subr.mxu0 0.0
      %4168 = vmatpush1.msra.mxu0 0.0
      %4169 = vmatprep.subr.mxu0 0.0
      %4170 = vmatpush1.msra.mxu0 0.0
      %4171 = vmatprep.subr.mxu0 0.0
      %4172 = vmatpush1.msra.mxu0 0.0
      %4173 = vmatprep.subr.mxu0 0.0
      %4174 = vmatpush1.msra.mxu0 0.0
      %4175 = vmatprep.subr.mxu0 0.0
      %4176 = vmatpush1.msra.mxu0 0.0
      %4177 = vmatprep.subr.mxu0 0.0
      %4178 = vmatpush1.msra.mxu0 0.0
      %4179 = vmatprep.subr.mxu0 0.0
      %4180 = vmatpush1.msra.mxu0 0.0
      %4181 = vmatprep.subr.mxu0 0.0
      %4182 = vmatpush1.msra.mxu0 0.0
      %4183 = vmatprep.subr.mxu0 0.0
      %4184 = vmatpush1.msra.mxu0 0.0
      %4185 = vmatprep.subr.mxu0 0.0
      %4186 = vmatpush1.msra.mxu0 0.0
      %4187 = vmatprep.subr.mxu0 0.0
      %4188 = vmatpush1.msra.mxu0 0.0
      %4189 = vmatprep.subr.mxu0 0.0
      %4190 = vmatpush1.msra.mxu0 0.0
      %4191 = vmatprep.subr.mxu0 0.0
      %4192 = vmatpush1.msra.mxu0 0.0
      %4193 = vmatprep.subr.mxu0 0.0
      %4194 = vmatpush1.msra.mxu0 0.0
      %4195 = vmatprep.subr.mxu0 0.0
      %4196 = vmatpush1.msra.mxu0 0.0
      %4197 = vmatprep.subr.mxu0 0.0
      %4198 = vmatpush1.msra.mxu0 0.0
      %4199 = vmatprep.subr.mxu0 0.0
      %4200 = vmatpush1.msra.mxu0 0.0
      %4201 = vmatprep.subr.mxu0 0.0
      %4202 = vmatpush1.msra.mxu0 0.0
      %4203 = vmatprep.subr.mxu0 0.0
      %4204 = vmatpush1.msra.mxu0 0.0
      %4205 = vmatprep.subr.mxu0 0.0
      %4206 = vmatpush1.msra.mxu0 0.0
      %4207 = vmatprep.subr.mxu0 0.0
      %4208 = vmatpush1.msra.mxu0 0.0
      %4209 = vmatprep.subr.mxu0 0.0
      %4210 = vmatpush1.msra.mxu0 0.0
      %4211 = vmatprep.subr.mxu0 0.0
      %4212 = vmatpush1.msra.mxu0 0.0
      %4213 = vmatprep.subr.mxu0 0.0
      %4214 = vmatpush1.msra.mxu0 0.0
      %4215 = vmatprep.subr.mxu0 0.0
      %4216 = vmatpush1.msra.mxu0 0.0
      %4217 = vmatprep.subr.mxu0 0.0
      %4218 = vmatpush1.msra.mxu0 0.0
      %4219 = vmatprep.subr.mxu0 0.0
      %4220 = vmatpush1.msra.mxu0 0.0
      %4221 = vmatprep.subr.mxu0 0.0
      %4222 = vmatpush1.msra.mxu0 0.0
      %4223 = vmatprep.subr.mxu0 0.0
      %4224 = vmatpush1.msra.mxu0 0.0
      %4225 = vmatprep.subr.mxu0 0.0
      %4226 = vmatpush1.msra.mxu0 0.0
      %4227 = vmatprep.mubr.f32.mxu0 0.0
      %4228 = vmatmul.mubr.f32.gmra.mrb[0].mxu0 %v3716
      %v4229 = vpop.f32.mrb[0].mxu0
      %v4230 = vadd.f32 0.0, %v4229
      %v4231 = vpop.f32.mrb[0].mxu0
      %4232 = vmatprep.mubr.f32.mxu0 0.0
      %4233 = vmatmul.mubr.f32.gmra.mrb[0].mxu0 %v4071
      %v4234 = vpop.f32.mrb[0].mxu0
      %v4235 = vadd.f32 0.0, %v4234
      %v4236 = vpop.f32.mrb[0].mxu0
      %4237 = vmatprep.mubr.f32.mxu0 0.0
      %4238 = vmatmul.mubr.f32.gmra.mrb[0].mxu0 %v4074
      %v4239 = vpop.f32.mrb[0].mxu0
      %v4240 = vadd.f32 0.0, %v4239
      %v4241 = vpop.f32.mrb[0].mxu0
      %4242 = vmatprep.mubr.f32.mxu0 0.0
      %4243 = vmatmul.mubr.f32.gmra.mrb[0].mxu0 %v4077
      %v4244 = vpop.f32.mrb[0].mxu0
      %v4245 = vadd.f32 0.0, %v4244
      %v4246 = vpop.f32.mrb[0].mxu0
      %4247 = vmatprep.mubr.f32.mxu0 0.0
      %4248 = vmatmul.mubr.f32.gmra.mrb[0].mxu0 %v4080
      %v4249 = vpop.f32.mrb[0].mxu0
      %v4250 = vadd.f32 0.0, %v4249
      %v4251 = vpop.f32.mrb[0].mxu0
      %4252 = vmatprep.mubr.f32.mxu0 0.0
      %4253 = vmatmul.mubr.f32.gmra.mrb[0].mxu0 %v4083
      %v4254 = vpop.f32.mrb[0].mxu0
      %v4255 = vadd.f32 0.0, %v4254
      %v4256 = vpop.f32.mrb[0].mxu0
      %4257 = vmatprep.mubr.f32.mxu0 0.0
      %4258 = vmatmul.mubr.f32.gmra.mrb[0].mxu0 %v4086
      %v4259 = vpop.f32.mrb[0].mxu0
      %v4260 = vadd.f32 0.0, %v4259
      %v4261 = vpop.f32.mrb[0].mxu0
      %4262 = vmatprep.mubr.f32.mxu0 0.0
      %4263 = vmatmul.mubr.f32.gmra.mrb[0].mxu0 %v4089
      %v4264 = vpop.f32.mrb[0].mxu0
      %v4265 = vadd.f32 0.0, %v4264
      %v4266 = vpop.f32.mrb[0].mxu0
      %4267 = vmatprep.mubr.f32.mxu0 0.0
      %4268 = vmatmul.mubr.f32.gmra.mrb[0].mxu0 %v4092
      %v4269 = vpop.f32.mrb[0].mxu0
      %v4270 = vadd.f32 0.0, %v4269
      %v4271 = vpop.f32.mrb[0].mxu0
      %4272 = vmatprep.mubr.f32.mxu0 0.0
      %4273 = vmatmul.mubr.f32.gmra.mrb[0].mxu0 %v4095
      %v4274 = vpop.f32.mrb[0].mxu0
      %v4275 = vadd.f32 0.0, %v4274
      %v4276 = vpop.f32.mrb[0].mxu0
      %4277 = vmatprep.mubr.f32.mxu0 0.0
      %4278 = vmatmul.mubr.f32.gmra.mrb[0].mxu0 %v4098
      %v4279 = vpop.f32.mrb[0].mxu0
      %v4280 = vadd.f32 0.0, %v4279
      %v4281 = vpop.f32.mrb[0].mxu0
      %4282 = vmatprep.mubr.f32.mxu0 0.0
      %4283 = vmatmul.mubr.f32.gmra.mrb[0].mxu0 %v4101
      %v4284 = vpop.f32.mrb[0].mxu0
      %v4285 = vadd.f32 0.0, %v4284
      %v4286 = vpop.f32.mrb[0].mxu0
      %4287 = vmatprep.mubr.f32.mxu0 0.0
      %4288 = vmatmul.mubr.f32.gmra.mrb[0].mxu0 %v4104
      %v4289 = vpop.f32.mrb[0].mxu0
      %v4290 = vadd.f32 0.0, %v4289
      %v4291 = vpop.f32.mrb[0].mxu0
      %4292 = vmatprep.mubr.f32.mxu0 0.0
      %4293 = vmatmul.mubr.f32.gmra.mrb[0].mxu0 %v4107
      %v4294 = vpop.f32.mrb[0].mxu0
      %v4295 = vadd.f32 0.0, %v4294
      %v4296 = vpop.f32.mrb[0].mxu0
      %4297 = vmatprep.mubr.f32.mxu0 0.0
      %4298 = vmatmul.mubr.f32.gmra.mrb[0].mxu0 %v4110
      %v4299 = vpop.f32.mrb[0].mxu0
      %v4300 = vadd.f32 0.0, %v4299
      %v4301 = vpop.f32.mrb[0].mxu0
      %4302 = vmatprep.mubr.f32.mxu0 0.0
      %4303 = vmatmul.mubr.f32.gmra.mrb[0].mxu0 %v4113
      %v4304 = vpop.f32.mrb[0].mxu0
      %v4305 = vadd.f32 0.0, %v4304
      %v4306 = vpop.f32.mrb[0].mxu0
      %4307 = vmatprep.mubr.f32.mxu0 0.0
      %4308 = vmatmul.mubr.f32.gmra.mrb[0].mxu0 %v4116
      %v4309 = vpop.f32.mrb[0].mxu0
      %v4310 = vadd.f32 0.0, %v4309
      %v4311 = vpop.f32.mrb[0].mxu0
      %4312 = vmatprep.mubr.f32.mxu0 0.0
      %4313 = vmatmul.mubr.f32.gmra.mrb[0].mxu0 %v4119
      %v4314 = vpop.f32.mrb[0].mxu0
      %v4315 = vadd.f32 0.0, %v4314
      %v4316 = vpop.f32.mrb[0].mxu0
      %4317 = vmatprep.mubr.f32.mxu0 0.0
      %4318 = vmatmul.mubr.f32.gmra.mrb[0].mxu0 %v4122
      %v4319 = vpop.f32.mrb[0].mxu0
      %v4320 = vadd.f32 0.0, %v4319
      %v4321 = vpop.f32.mrb[0].mxu0
      %4322 = vmatprep.mubr.f32.mxu0 0.0
      %4323 = vmatmul.mubr.f32.gmra.mrb[0].mxu0 %v4125
      %v4324 = vpop.f32.mrb[0].mxu0
      %v4325 = vadd.f32 0.0, %v4324
      %v4326 = vpop.f32.mrb[0].mxu0
      %4327 = vmatprep.mubr.f32.mxu0 0.0
      %4328 = vmatmul.mubr.f32.gmra.mrb[0].mxu0 %v4128
      %v4329 = vpop.f32.mrb[0].mxu0
      %v4330 = vadd.f32 0.0, %v4329
      %v4331 = vpop.f32.mrb[0].mxu0
      %4332 = vmatprep.mubr.f32.mxu0 0.0
      %4333 = vmatmul.mubr.f32.gmra.mrb[0].mxu0 %v4131
      %v4334 = vpop.f32.mrb[0].mxu0
      %v4335 = vadd.f32 0.0, %v4334
      %v4336 = vpop.f32.mrb[0].mxu0
      %4337 = vmatprep.mubr.f32.mxu0 0.0
      %4338 = vmatmul.mubr.f32.gmra.mrb[0].mxu0 %v4134
      %v4339 = vpop.f32.mrb[0].mxu0
      %v4340 = vadd.f32 0.0, %v4339
      %v4341 = vpop.f32.mrb[0].mxu0
      %4342 = vmatprep.mubr.f32.mxu0 0.0
      %4343 = vmatmul.mubr.f32.gmra.mrb[0].mxu0 %v4137
      %v4344 = vpop.f32.mrb[0].mxu0
      %v4345 = vadd.f32 0.0, %v4344
      %v4346 = vpop.f32.mrb[0].mxu0
      %4347 = vmatprep.mubr.f32.mxu0 0.0
      %4348 = vmatmul.mubr.f32.gmra.mrb[0].mxu0 %v4140
      %v4349 = vpop.f32.mrb[0].mxu0
      %v4350 = vadd.f32 0.0, %v4349
      %v4351 = vpop.f32.mrb[0].mxu0
      %4352 = vmatprep.mubr.f32.mxu0 0.0
      %4353 = vmatmul.mubr.f32.gmra.mrb[0].mxu0 %v4143
      %v4354 = vpop.f32.mrb[0].mxu0
      %v4355 = vadd.f32 0.0, %v4354
      %v4356 = vpop.f32.mrb[0].mxu0
      %4357 = vmatprep.mubr.f32.mxu0 0.0
      %4358 = vmatmul.mubr.f32.gmra.mrb[0].mxu0 %v4146
      %v4359 = vpop.f32.mrb[0].mxu0
      %v4360 = vadd.f32 0.0, %v4359
      %v4361 = vpop.f32.mrb[0].mxu0
      %4362 = vmatprep.mubr.f32.mxu0 0.0
      %4363 = vmatmul.mubr.f32.gmra.mrb[0].mxu0 %v4149
      %v4364 = vpop.f32.mrb[0].mxu0
      %v4365 = vadd.f32 0.0, %v4364
      %v4366 = vpop.f32.mrb[0].mxu0
      %4367 = vmatprep.mubr.f32.mxu0 0.0
      %4368 = vmatmul.mubr.f32.gmra.mrb[0].mxu0 %v4152
      %v4369 = vpop.f32.mrb[0].mxu0
      %v4370 = vadd.f32 0.0, %v4369
      %v4371 = vpop.f32.mrb[0].mxu0
      %4372 = vmatprep.mubr.f32.mxu0 0.0
      %4373 = vmatmul.mubr.f32.gmra.mrb[0].mxu0 %v4155
      %v4374 = vpop.f32.mrb[0].mxu0
      %v4375 = vadd.f32 0.0, %v4374
      %v4376 = vpop.f32.mrb[0].mxu0
      %4377 = vmatprep.mubr.f32.mxu0 0.0
      %4378 = vmatmul.mubr.f32.gmra.mrb[0].mxu0 %v4158
      %v4379 = vpop.f32.mrb[0].mxu0
      %v4380 = vadd.f32 0.0, %v4379
      %v4381 = vpop.f32.mrb[0].mxu0
      %4382 = vmatprep.mubr.f32.mxu0 0.0
      %4383 = vmatmul.mubr.f32.gmra.mrb[0].mxu0 %v4161
      %v4384 = vpop.f32.mrb[0].mxu0
      %v4385 = vadd.f32 0.0, %v4384
      %v4386 = vpop.f32.mrb[0].mxu0
      %4387 = vdwg.mxu0
      %v4388 = vadd.f32 %v4036, %v4230
      %v4389 = vadd.f32 %v4037, %v4235
      %v4390 = vadd.f32 %v4038, %v4240
      %v4391 = vadd.f32 %v4039, %v4245
      %v4392 = vadd.f32 %v4040, %v4250
      %v4393 = vadd.f32 %v4041, %v4255
      %v4394 = vadd.f32 %v4042, %v4260
      %v4395 = vadd.f32 %v4043, %v4265
      %v4396 = vadd.f32 %v4044, %v4270
      %v4397 = vadd.f32 %v4045, %v4275
      %v4398 = vadd.f32 %v4046, %v4280
      %v4399 = vadd.f32 %v4047, %v4285
      %v4400 = vadd.f32 %v4048, %v4290
      %v4401 = vadd.f32 %v4049, %v4295
      %v4402 = vadd.f32 %v4050, %v4300
      %v4403 = vadd.f32 %v4051, %v4305
      %v4404 = vadd.f32 %v4052, %v4310
      %v4405 = vadd.f32 %v4053, %v4315
      %v4406 = vadd.f32 %v4054, %v4320
      %v4407 = vadd.f32 %v4055, %v4325
      %v4408 = vadd.f32 %v4056, %v4330
      %v4409 = vadd.f32 %v4057, %v4335
      %v4410 = vadd.f32 %v4058, %v4340
      %v4411 = vadd.f32 %v4059, %v4345
      %v4412 = vadd.f32 %v4060, %v4350
      %v4413 = vadd.f32 %v4061, %v4355
      %v4414 = vadd.f32 %v4062, %v4360
      %v4415 = vadd.f32 %v4063, %v4365
      %v4416 = vadd.f32 %v4064, %v4370
      %v4417 = vadd.f32 %v4065, %v4375
      %v4418 = vadd.f32 %v4066, %v4380
      %v4419 = vadd.f32 %v4067, %v4385
      %s4420 = scalar_lea.vmem %s7, 768
      %v4421 = vld [vmem:[%s4420] sm:$0xff]
      %v4422 = vld [vmem:[%s4420 + $0x8] sm:$0xff]
      %v4423 = vld [vmem:[%s4420 + $0x10] sm:$0xff]
      %v4424 = vld [vmem:[%s4420 + $0x18] sm:$0xff]
      %v4425 = vld [vmem:[%s4420 + $0x20] sm:$0xff]
      %v4426 = vld [vmem:[%s4420 + $0x28] sm:$0xff]
      %v4427 = vld [vmem:[%s4420 + $0x30] sm:$0xff]
      %v4428 = vld [vmem:[%s4420 + $0x38] sm:$0xff]
      %v4429 = vld [vmem:[%s4420 + $0x40] sm:$0xff]
      %v4430 = vld [vmem:[%s4420 + $0x48] sm:$0xff]
      %v4431 = vld [vmem:[%s4420 + $0x50] sm:$0xff]
      %v4432 = vld [vmem:[%s4420 + $0x58] sm:$0xff]
      %v4433 = vld [vmem:[%s4420 + $0x60] sm:$0xff]
      %v4434 = vld [vmem:[%s4420 + $0x68] sm:$0xff]
      %v4435 = vld [vmem:[%s4420 + $0x70] sm:$0xff]
      %v4436 = vld [vmem:[%s4420 + $0x78] sm:$0xff]
      %v4437 = vld [vmem:[%s4420 + $0x80] sm:$0xff]
      %v4438 = vld [vmem:[%s4420 + $0x88] sm:$0xff]
      %v4439 = vld [vmem:[%s4420 + $0x90] sm:$0xff]
      %v4440 = vld [vmem:[%s4420 + $0x98] sm:$0xff]
      %v4441 = vld [vmem:[%s4420 + $0xa0] sm:$0xff]
      %v4442 = vld [vmem:[%s4420 + $0xa8] sm:$0xff]
      %v4443 = vld [vmem:[%s4420 + $0xb0] sm:$0xff]
      %v4444 = vld [vmem:[%s4420 + $0xb8] sm:$0xff]
      %v4445 = vld [vmem:[%s4420 + $0xc0] sm:$0xff]
      %v4446 = vld [vmem:[%s4420 + $0xc8] sm:$0xff]
      %v4447 = vld [vmem:[%s4420 + $0xd0] sm:$0xff]
      %v4448 = vld [vmem:[%s4420 + $0xd8] sm:$0xff]
      %v4449 = vld [vmem:[%s4420 + $0xe0] sm:$0xff]
      %v4450 = vld [vmem:[%s4420 + $0xe8] sm:$0xff]
      %v4451 = vld [vmem:[%s4420 + $0xf0] sm:$0xff]
      %v4452 = vld [vmem:[%s4420 + $0xf8] sm:$0xff]
      %v4454 = vrot.slane %v812, 7
      %v4455 = vsel %vm1237, %v1295, %v4454
      %v4456 = vrot.slane %v817, 7
      %v4457 = vsel %vm1237, %v4454, %v4456
      %4461 = vset.pattern.permute.xlu0 0
      %4462 = vperm.xlu0 %4461, %v4421
      %v4463 = vpop.permute.xlu0 %4462
      %4466 = vset.pattern.permute.xlu0 0
      %4467 = vperm.xlu0 %4466, %v4422
      %v4468 = vpop.permute.xlu0 %4467
      %4471 = vset.pattern.permute.xlu0 0
      %4472 = vperm.xlu0 %4471, %v4423
      %v4473 = vpop.permute.xlu0 %4472
      %4476 = vset.pattern.permute.xlu0 0
      %4477 = vperm.xlu0 %4476, %v4424
      %v4478 = vpop.permute.xlu0 %4477
      %4481 = vset.pattern.permute.xlu0 0
      %4482 = vperm.xlu0 %4481, %v4425
      %v4483 = vpop.permute.xlu0 %4482
      %4486 = vset.pattern.permute.xlu0 0
      %4487 = vperm.xlu0 %4486, %v4426
      %v4488 = vpop.permute.xlu0 %4487
      %4491 = vset.pattern.permute.xlu0 0
      %4492 = vperm.xlu0 %4491, %v4427
      %v4493 = vpop.permute.xlu0 %4492
      %4496 = vset.pattern.permute.xlu0 0
      %4497 = vperm.xlu0 %4496, %v4428
      %v4498 = vpop.permute.xlu0 %4497
      %4501 = vset.pattern.permute.xlu0 0
      %4502 = vperm.xlu0 %4501, %v4429
      %v4503 = vpop.permute.xlu0 %4502
      %4506 = vset.pattern.permute.xlu0 0
      %4507 = vperm.xlu0 %4506, %v4430
      %v4508 = vpop.permute.xlu0 %4507
      %4511 = vset.pattern.permute.xlu0 0
      %4512 = vperm.xlu0 %4511, %v4431
      %v4513 = vpop.permute.xlu0 %4512
      %4516 = vset.pattern.permute.xlu0 0
      %4517 = vperm.xlu0 %4516, %v4432
      %v4518 = vpop.permute.xlu0 %4517
      %4521 = vset.pattern.permute.xlu0 0
      %4522 = vperm.xlu0 %4521, %v4433
      %v4523 = vpop.permute.xlu0 %4522
      %4526 = vset.pattern.permute.xlu0 0
      %4527 = vperm.xlu0 %4526, %v4434
      %v4528 = vpop.permute.xlu0 %4527
      %4531 = vset.pattern.permute.xlu0 0
      %4532 = vperm.xlu0 %4531, %v4435
      %v4533 = vpop.permute.xlu0 %4532
      %4536 = vset.pattern.permute.xlu0 0
      %4537 = vperm.xlu0 %4536, %v4436
      %v4538 = vpop.permute.xlu0 %4537
      %4541 = vset.pattern.permute.xlu0 0
      %4542 = vperm.xlu0 %4541, %v4437
      %v4543 = vpop.permute.xlu0 %4542
      %4546 = vset.pattern.permute.xlu0 0
      %4547 = vperm.xlu0 %4546, %v4438
      %v4548 = vpop.permute.xlu0 %4547
      %4551 = vset.pattern.permute.xlu0 0
      %4552 = vperm.xlu0 %4551, %v4439
      %v4553 = vpop.permute.xlu0 %4552
      %4556 = vset.pattern.permute.xlu0 0
      %4557 = vperm.xlu0 %4556, %v4440
      %v4558 = vpop.permute.xlu0 %4557
      %4561 = vset.pattern.permute.xlu0 0
      %4562 = vperm.xlu0 %4561, %v4441
      %v4563 = vpop.permute.xlu0 %4562
      %4566 = vset.pattern.permute.xlu0 0
      %4567 = vperm.xlu0 %4566, %v4442
      %v4568 = vpop.permute.xlu0 %4567
      %4571 = vset.pattern.permute.xlu0 0
      %4572 = vperm.xlu0 %4571, %v4443
      %v4573 = vpop.permute.xlu0 %4572
      %4576 = vset.pattern.permute.xlu0 0
      %4577 = vperm.xlu0 %4576, %v4444
      %v4578 = vpop.permute.xlu0 %4577
      %4581 = vset.pattern.permute.xlu0 0
      %4582 = vperm.xlu0 %4581, %v4445
      %v4583 = vpop.permute.xlu0 %4582
      %4586 = vset.pattern.permute.xlu0 0
      %4587 = vperm.xlu0 %4586, %v4446
      %v4588 = vpop.permute.xlu0 %4587
      %4591 = vset.pattern.permute.xlu0 0
      %4592 = vperm.xlu0 %4591, %v4447
      %v4593 = vpop.permute.xlu0 %4592
      %4596 = vset.pattern.permute.xlu0 0
      %4597 = vperm.xlu0 %4596, %v4448
      %v4598 = vpop.permute.xlu0 %4597
      %4601 = vset.pattern.permute.xlu0 0
      %4602 = vperm.xlu0 %4601, %v4449
      %v4603 = vpop.permute.xlu0 %4602
      %4606 = vset.pattern.permute.xlu0 0
      %4607 = vperm.xlu0 %4606, %v4450
      %v4608 = vpop.permute.xlu0 %4607
      %4611 = vset.pattern.permute.xlu0 0
      %4612 = vperm.xlu0 %4611, %v4451
      %v4613 = vpop.permute.xlu0 %4612
      %4616 = vset.pattern.permute.xlu0 0
      %4617 = vperm.xlu0 %4616, %v4452
      %v4618 = vpop.permute.xlu0 %4617
      %v4620 = vmul.f32 %v1327, %v4463
      %v4621 = vmul.f32 %v1240, %v4468
      %v4622 = vmul.f32 %v1242, %v4473
      %v4623 = vmul.f32 %v1244, %v4478
      %v4624 = vmul.f32 %v1246, %v4483
      %v4625 = vmul.f32 %v1248, %v4488
      %v4626 = vmul.f32 %v1250, %v4493
      %v4627 = vmul.f32 %v1252, %v4498
      %v4628 = vmul.f32 %v1254, %v4503
      %v4629 = vmul.f32 %v1256, %v4508
      %v4630 = vmul.f32 %v1258, %v4513
      %v4631 = vmul.f32 %v1260, %v4518
      %v4632 = vmul.f32 %v1262, %v4523
      %v4633 = vmul.f32 %v1264, %v4528
      %v4634 = vmul.f32 %v1266, %v4533
      %v4635 = vmul.f32 %v1268, %v4538
      %v4636 = vmul.f32 %v1270, %v4543
      %v4637 = vmul.f32 %v1272, %v4548
      %v4638 = vmul.f32 %v1274, %v4553
      %v4639 = vmul.f32 %v1276, %v4558
      %v4640 = vmul.f32 %v1278, %v4563
      %v4641 = vmul.f32 %v1280, %v4568
      %v4642 = vmul.f32 %v1282, %v4573
      %v4643 = vmul.f32 %v1284, %v4578
      %v4644 = vmul.f32 %v1286, %v4583
      %v4645 = vmul.f32 %v1288, %v4588
      %v4646 = vmul.f32 %v1290, %v4593
      %v4647 = vmul.f32 %v1292, %v4598
      %v4648 = vmul.f32 %v1294, %v4603
      %v4649 = vmul.f32 %v1296, %v4608
      %v4650 = vmul.f32 %v4455, %v4613
      %v4651 = vmul.f32 %v4457, %v4618
      %v4653 = vrot.slane %v1167, 7
      %v4654 = vsel %vm1237, %v1607, %v4653
      %v4655 = vrot.slane %v1172, 7
      %v4656 = vsel %vm1237, %v4653, %v4655
      %v4659 = vmul.f32 %v1639, %v4463
      %v4660 = vmul.f32 %v1552, %v4468
      %v4661 = vmul.f32 %v1554, %v4473
      %v4662 = vmul.f32 %v1556, %v4478
      %v4663 = vmul.f32 %v1558, %v4483
      %v4664 = vmul.f32 %v1560, %v4488
      %v4665 = vmul.f32 %v1562, %v4493
      %v4666 = vmul.f32 %v1564, %v4498
      %v4667 = vmul.f32 %v1566, %v4503
      %v4668 = vmul.f32 %v1568, %v4508
      %v4669 = vmul.f32 %v1570, %v4513
      %v4670 = vmul.f32 %v1572, %v4518
      %v4671 = vmul.f32 %v1574, %v4523
      %v4672 = vmul.f32 %v1576, %v4528
      %v4673 = vmul.f32 %v1578, %v4533
      %v4674 = vmul.f32 %v1580, %v4538
      %v4675 = vmul.f32 %v1582, %v4543
      %v4676 = vmul.f32 %v1584, %v4548
      %v4677 = vmul.f32 %v1586, %v4553
      %v4678 = vmul.f32 %v1588, %v4558
      %v4679 = vmul.f32 %v1590, %v4563
      %v4680 = vmul.f32 %v1592, %v4568
      %v4681 = vmul.f32 %v1594, %v4573
      %v4682 = vmul.f32 %v1596, %v4578
      %v4683 = vmul.f32 %v1598, %v4583
      %v4684 = vmul.f32 %v1600, %v4588
      %v4685 = vmul.f32 %v1602, %v4593
      %v4686 = vmul.f32 %v1604, %v4598
      %v4687 = vmul.f32 %v1606, %v4603
      %v4688 = vmul.f32 %v1608, %v4608
      %v4689 = vmul.f32 %v4654, %v4613
      %v4690 = vmul.f32 %v4656, %v4618
      %s4691 = scalar_lea.vmem %s5, 24
      %v4692 = vld [vmem:[%s4691] sm:$0xff]
      %v4694 = vsel %vm1672, %v4620, 0
      %v4697 = vsel %vm1672, %v4621, 0
      %v4700 = vsel %vm1672, %v4622, 0
      %v4703 = vsel %vm1672, %v4623, 0
      %v4706 = vsel %vm1672, %v4624, 0
      %v4709 = vsel %vm1672, %v4625, 0
      %v4712 = vsel %vm1672, %v4626, 0
      %v4715 = vsel %vm1672, %v4627, 0
      %v4718 = vsel %vm1672, %v4628, 0
      %v4721 = vsel %vm1672, %v4629, 0
      %v4724 = vsel %vm1672, %v4630, 0
      %v4727 = vsel %vm1672, %v4631, 0
      %v4730 = vsel %vm1672, %v4632, 0
      %v4733 = vsel %vm1672, %v4633, 0
      %v4736 = vsel %vm1672, %v4634, 0
      %v4739 = vsel %vm1672, %v4635, 0
      %v4742 = vsel %vm1672, %v4636, 0
      %v4745 = vsel %vm1672, %v4637, 0
      %v4748 = vsel %vm1672, %v4638, 0
      %v4751 = vsel %vm1672, %v4639, 0
      %v4754 = vsel %vm1672, %v4640, 0
      %v4757 = vsel %vm1672, %v4641, 0
      %v4760 = vsel %vm1672, %v4642, 0
      %v4763 = vsel %vm1672, %v4643, 0
      %v4766 = vsel %vm1672, %v4644, 0
      %v4769 = vsel %vm1672, %v4645, 0
      %v4772 = vsel %vm1672, %v4646, 0
      %v4775 = vsel %vm1672, %v4647, 0
      %v4778 = vsel %vm1672, %v4648, 0
      %v4781 = vsel %vm1672, %v4649, 0
      %v4784 = vsel %vm1672, %v4650, 0
      %v4787 = vsel %vm1672, %v4651, 0
      %4789 = vmatprep.subr.mxu0 0.0
      %4790 = vmatpush1.msra.mxu0 %v4692
      %4791 = vmatprep.subr.mxu0 0.0
      %4792 = vmatpush1.msra.mxu0 0.0
      %4793 = vmatprep.subr.mxu0 0.0
      %4794 = vmatpush1.msra.mxu0 0.0
      %4795 = vmatprep.subr.mxu0 0.0
      %4796 = vmatpush1.msra.mxu0 0.0
      %4797 = vmatprep.subr.mxu0 0.0
      %4798 = vmatpush1.msra.mxu0 0.0
      %4799 = vmatprep.subr.mxu0 0.0
      %4800 = vmatpush1.msra.mxu0 0.0
      %4801 = vmatprep.subr.mxu0 0.0
      %4802 = vmatpush1.msra.mxu0 0.0
      %4803 = vmatprep.subr.mxu0 0.0
      %4804 = vmatpush1.msra.mxu0 0.0
      %4805 = vmatprep.subr.mxu0 0.0
      %4806 = vmatpush1.msra.mxu0 0.0
      %4807 = vmatprep.subr.mxu0 0.0
      %4808 = vmatpush1.msra.mxu0 0.0
      %4809 = vmatprep.subr.mxu0 0.0
      %4810 = vmatpush1.msra.mxu0 0.0
      %4811 = vmatprep.subr.mxu0 0.0
      %4812 = vmatpush1.msra.mxu0 0.0
      %4813 = vmatprep.subr.mxu0 0.0
      %4814 = vmatpush1.msra.mxu0 0.0
      %4815 = vmatprep.subr.mxu0 0.0
      %4816 = vmatpush1.msra.mxu0 0.0
      %4817 = vmatprep.subr.mxu0 0.0
      %4818 = vmatpush1.msra.mxu0 0.0
      %4819 = vmatprep.subr.mxu0 0.0
      %4820 = vmatpush1.msra.mxu0 0.0
      %4821 = vmatprep.subr.mxu0 0.0
      %4822 = vmatpush1.msra.mxu0 0.0
      %4823 = vmatprep.subr.mxu0 0.0
      %4824 = vmatpush1.msra.mxu0 0.0
      %4825 = vmatprep.subr.mxu0 0.0
      %4826 = vmatpush1.msra.mxu0 0.0
      %4827 = vmatprep.subr.mxu0 0.0
      %4828 = vmatpush1.msra.mxu0 0.0
      %4829 = vmatprep.subr.mxu0 0.0
      %4830 = vmatpush1.msra.mxu0 0.0
      %4831 = vmatprep.subr.mxu0 0.0
      %4832 = vmatpush1.msra.mxu0 0.0
      %4833 = vmatprep.subr.mxu0 0.0
      %4834 = vmatpush1.msra.mxu0 0.0
      %4835 = vmatprep.subr.mxu0 0.0
      %4836 = vmatpush1.msra.mxu0 0.0
      %4837 = vmatprep.subr.mxu0 0.0
      %4838 = vmatpush1.msra.mxu0 0.0
      %4839 = vmatprep.subr.mxu0 0.0
      %4840 = vmatpush1.msra.mxu0 0.0
      %4841 = vmatprep.subr.mxu0 0.0
      %4842 = vmatpush1.msra.mxu0 0.0
      %4843 = vmatprep.subr.mxu0 0.0
      %4844 = vmatpush1.msra.mxu0 0.0
      %4845 = vmatprep.subr.mxu0 0.0
      %4846 = vmatpush1.msra.mxu0 0.0
      %4847 = vmatprep.subr.mxu0 0.0
      %4848 = vmatpush1.msra.mxu0 0.0
      %4849 = vmatprep.subr.mxu0 0.0
      %4850 = vmatpush1.msra.mxu0 0.0
      %4851 = vmatprep.subr.mxu0 0.0
      %4852 = vmatpush1.msra.mxu0 0.0
      %4853 = vmatprep.mubr.f32.mxu0 0.0
      %4854 = vmatmul.mubr.f32.gmra.mrb[0].mxu0 %v4694
      %v4855 = vpop.f32.mrb[0].mxu0
      %v4856 = vadd.f32 0.0, %v4855
      %v4857 = vpop.f32.mrb[0].mxu0
      %4858 = vmatprep.mubr.f32.mxu0 0.0
      %4859 = vmatmul.mubr.f32.gmra.mrb[0].mxu0 %v4697
      %v4860 = vpop.f32.mrb[0].mxu0
      %v4861 = vadd.f32 0.0, %v4860
      %v4862 = vpop.f32.mrb[0].mxu0
      %4863 = vmatprep.mubr.f32.mxu0 0.0
      %4864 = vmatmul.mubr.f32.gmra.mrb[0].mxu0 %v4700
      %v4865 = vpop.f32.mrb[0].mxu0
      %v4866 = vadd.f32 0.0, %v4865
      %v4867 = vpop.f32.mrb[0].mxu0
      %4868 = vmatprep.mubr.f32.mxu0 0.0
      %4869 = vmatmul.mubr.f32.gmra.mrb[0].mxu0 %v4703
      %v4870 = vpop.f32.mrb[0].mxu0
      %v4871 = vadd.f32 0.0, %v4870
      %v4872 = vpop.f32.mrb[0].mxu0
      %4873 = vmatprep.mubr.f32.mxu0 0.0
      %4874 = vmatmul.mubr.f32.gmra.mrb[0].mxu0 %v4706
      %v4875 = vpop.f32.mrb[0].mxu0
      %v4876 = vadd.f32 0.0, %v4875
      %v4877 = vpop.f32.mrb[0].mxu0
      %4878 = vmatprep.mubr.f32.mxu0 0.0
      %4879 = vmatmul.mubr.f32.gmra.mrb[0].mxu0 %v4709
      %v4880 = vpop.f32.mrb[0].mxu0
      %v4881 = vadd.f32 0.0, %v4880
      %v4882 = vpop.f32.mrb[0].mxu0
      %4883 = vmatprep.mubr.f32.mxu0 0.0
      %4884 = vmatmul.mubr.f32.gmra.mrb[0].mxu0 %v4712
      %v4885 = vpop.f32.mrb[0].mxu0
      %v4886 = vadd.f32 0.0, %v4885
      %v4887 = vpop.f32.mrb[0].mxu0
      %4888 = vmatprep.mubr.f32.mxu0 0.0
      %4889 = vmatmul.mubr.f32.gmra.mrb[0].mxu0 %v4715
      %v4890 = vpop.f32.mrb[0].mxu0
      %v4891 = vadd.f32 0.0, %v4890
      %v4892 = vpop.f32.mrb[0].mxu0
      %4893 = vmatprep.mubr.f32.mxu0 0.0
      %4894 = vmatmul.mubr.f32.gmra.mrb[0].mxu0 %v4718
      %v4895 = vpop.f32.mrb[0].mxu0
      %v4896 = vadd.f32 0.0, %v4895
      %v4897 = vpop.f32.mrb[0].mxu0
      %4898 = vmatprep.mubr.f32.mxu0 0.0
      %4899 = vmatmul.mubr.f32.gmra.mrb[0].mxu0 %v4721
      %v4900 = vpop.f32.mrb[0].mxu0
      %v4901 = vadd.f32 0.0, %v4900
      %v4902 = vpop.f32.mrb[0].mxu0
      %4903 = vmatprep.mubr.f32.mxu0 0.0
      %4904 = vmatmul.mubr.f32.gmra.mrb[0].mxu0 %v4724
      %v4905 = vpop.f32.mrb[0].mxu0
      %v4906 = vadd.f32 0.0, %v4905
      %v4907 = vpop.f32.mrb[0].mxu0
      %4908 = vmatprep.mubr.f32.mxu0 0.0
      %4909 = vmatmul.mubr.f32.gmra.mrb[0].mxu0 %v4727
      %v4910 = vpop.f32.mrb[0].mxu0
      %v4911 = vadd.f32 0.0, %v4910
      %v4912 = vpop.f32.mrb[0].mxu0
      %4913 = vmatprep.mubr.f32.mxu0 0.0
      %4914 = vmatmul.mubr.f32.gmra.mrb[0].mxu0 %v4730
      %v4915 = vpop.f32.mrb[0].mxu0
      %v4916 = vadd.f32 0.0, %v4915
      %v4917 = vpop.f32.mrb[0].mxu0
      %4918 = vmatprep.mubr.f32.mxu0 0.0
      %4919 = vmatmul.mubr.f32.gmra.mrb[0].mxu0 %v4733
      %v4920 = vpop.f32.mrb[0].mxu0
      %v4921 = vadd.f32 0.0, %v4920
      %v4922 = vpop.f32.mrb[0].mxu0
      %4923 = vmatprep.mubr.f32.mxu0 0.0
      %4924 = vmatmul.mubr.f32.gmra.mrb[0].mxu0 %v4736
      %v4925 = vpop.f32.mrb[0].mxu0
      %v4926 = vadd.f32 0.0, %v4925
      %v4927 = vpop.f32.mrb[0].mxu0
      %4928 = vmatprep.mubr.f32.mxu0 0.0
      %4929 = vmatmul.mubr.f32.gmra.mrb[0].mxu0 %v4739
      %v4930 = vpop.f32.mrb[0].mxu0
      %v4931 = vadd.f32 0.0, %v4930
      %v4932 = vpop.f32.mrb[0].mxu0
      %4933 = vmatprep.mubr.f32.mxu0 0.0
      %4934 = vmatmul.mubr.f32.gmra.mrb[0].mxu0 %v4742
      %v4935 = vpop.f32.mrb[0].mxu0
      %v4936 = vadd.f32 0.0, %v4935
      %v4937 = vpop.f32.mrb[0].mxu0
      %4938 = vmatprep.mubr.f32.mxu0 0.0
      %4939 = vmatmul.mubr.f32.gmra.mrb[0].mxu0 %v4745
      %v4940 = vpop.f32.mrb[0].mxu0
      %v4941 = vadd.f32 0.0, %v4940
      %v4942 = vpop.f32.mrb[0].mxu0
      %4943 = vmatprep.mubr.f32.mxu0 0.0
      %4944 = vmatmul.mubr.f32.gmra.mrb[0].mxu0 %v4748
      %v4945 = vpop.f32.mrb[0].mxu0
      %v4946 = vadd.f32 0.0, %v4945
      %v4947 = vpop.f32.mrb[0].mxu0
      %4948 = vmatprep.mubr.f32.mxu0 0.0
      %4949 = vmatmul.mubr.f32.gmra.mrb[0].mxu0 %v4751
      %v4950 = vpop.f32.mrb[0].mxu0
      %v4951 = vadd.f32 0.0, %v4950
      %v4952 = vpop.f32.mrb[0].mxu0
      %4953 = vmatprep.mubr.f32.mxu0 0.0
      %4954 = vmatmul.mubr.f32.gmra.mrb[0].mxu0 %v4754
      %v4955 = vpop.f32.mrb[0].mxu0
      %v4956 = vadd.f32 0.0, %v4955
      %v4957 = vpop.f32.mrb[0].mxu0
      %4958 = vmatprep.mubr.f32.mxu0 0.0
      %4959 = vmatmul.mubr.f32.gmra.mrb[0].mxu0 %v4757
      %v4960 = vpop.f32.mrb[0].mxu0
      %v4961 = vadd.f32 0.0, %v4960
      %v4962 = vpop.f32.mrb[0].mxu0
      %4963 = vmatprep.mubr.f32.mxu0 0.0
      %4964 = vmatmul.mubr.f32.gmra.mrb[0].mxu0 %v4760
      %v4965 = vpop.f32.mrb[0].mxu0
      %v4966 = vadd.f32 0.0, %v4965
      %v4967 = vpop.f32.mrb[0].mxu0
      %4968 = vmatprep.mubr.f32.mxu0 0.0
      %4969 = vmatmul.mubr.f32.gmra.mrb[0].mxu0 %v4763
      %v4970 = vpop.f32.mrb[0].mxu0
      %v4971 = vadd.f32 0.0, %v4970
      %v4972 = vpop.f32.mrb[0].mxu0
      %4973 = vmatprep.mubr.f32.mxu0 0.0
      %4974 = vmatmul.mubr.f32.gmra.mrb[0].mxu0 %v4766
      %v4975 = vpop.f32.mrb[0].mxu0
      %v4976 = vadd.f32 0.0, %v4975
      %v4977 = vpop.f32.mrb[0].mxu0
      %4978 = vmatprep.mubr.f32.mxu0 0.0
      %4979 = vmatmul.mubr.f32.gmra.mrb[0].mxu0 %v4769
      %v4980 = vpop.f32.mrb[0].mxu0
      %v4981 = vadd.f32 0.0, %v4980
      %v4982 = vpop.f32.mrb[0].mxu0
      %4983 = vmatprep.mubr.f32.mxu0 0.0
      %4984 = vmatmul.mubr.f32.gmra.mrb[0].mxu0 %v4772
      %v4985 = vpop.f32.mrb[0].mxu0
      %v4986 = vadd.f32 0.0, %v4985
      %v4987 = vpop.f32.mrb[0].mxu0
      %4988 = vmatprep.mubr.f32.mxu0 0.0
      %4989 = vmatmul.mubr.f32.gmra.mrb[0].mxu0 %v4775
      %v4990 = vpop.f32.mrb[0].mxu0
      %v4991 = vadd.f32 0.0, %v4990
      %v4992 = vpop.f32.mrb[0].mxu0
      %4993 = vmatprep.mubr.f32.mxu0 0.0
      %4994 = vmatmul.mubr.f32.gmra.mrb[0].mxu0 %v4778
      %v4995 = vpop.f32.mrb[0].mxu0
      %v4996 = vadd.f32 0.0, %v4995
      %v4997 = vpop.f32.mrb[0].mxu0
      %4998 = vmatprep.mubr.f32.mxu0 0.0
      %4999 = vmatmul.mubr.f32.gmra.mrb[0].mxu0 %v4781
      %v5000 = vpop.f32.mrb[0].mxu0
      %v5001 = vadd.f32 0.0, %v5000
      %v5002 = vpop.f32.mrb[0].mxu0
      %5003 = vmatprep.mubr.f32.mxu0 0.0
      %5004 = vmatmul.mubr.f32.gmra.mrb[0].mxu0 %v4784
      %v5005 = vpop.f32.mrb[0].mxu0
      %v5006 = vadd.f32 0.0, %v5005
      %v5007 = vpop.f32.mrb[0].mxu0
      %5008 = vmatprep.mubr.f32.mxu0 0.0
      %5009 = vmatmul.mubr.f32.gmra.mrb[0].mxu0 %v4787
      %v5010 = vpop.f32.mrb[0].mxu0
      %v5011 = vadd.f32 0.0, %v5010
      %v5012 = vpop.f32.mrb[0].mxu0
      %5013 = vdwg.mxu0
      %v5014 = vadd.f32 %v4388, %v4856
      %v5015 = vadd.f32 %v4389, %v4861
      %v5016 = vadd.f32 %v4390, %v4866
      %v5017 = vadd.f32 %v4391, %v4871
      %v5018 = vadd.f32 %v4392, %v4876
      %v5019 = vadd.f32 %v4393, %v4881
      %v5020 = vadd.f32 %v4394, %v4886
      %v5021 = vadd.f32 %v4395, %v4891
      %v5022 = vadd.f32 %v4396, %v4896
      %v5023 = vadd.f32 %v4397, %v4901
      %v5024 = vadd.f32 %v4398, %v4906
      %v5025 = vadd.f32 %v4399, %v4911
      %v5026 = vadd.f32 %v4400, %v4916
      %v5027 = vadd.f32 %v4401, %v4921
      %v5028 = vadd.f32 %v4402, %v4926
      %v5029 = vadd.f32 %v4403, %v4931
      %v5030 = vadd.f32 %v4404, %v4936
      %v5031 = vadd.f32 %v4405, %v4941
      %v5032 = vadd.f32 %v4406, %v4946
      %v5033 = vadd.f32 %v4407, %v4951
      %v5034 = vadd.f32 %v4408, %v4956
      %v5035 = vadd.f32 %v4409, %v4961
      %v5036 = vadd.f32 %v4410, %v4966
      %v5037 = vadd.f32 %v4411, %v4971
      %v5038 = vadd.f32 %v4412, %v4976
      %v5039 = vadd.f32 %v4413, %v4981
      %v5040 = vadd.f32 %v4414, %v4986
      %v5041 = vadd.f32 %v4415, %v4991
      %v5042 = vadd.f32 %v4416, %v4996
      %v5043 = vadd.f32 %v4417, %v5001
      %v5044 = vadd.f32 %v4418, %v5006
      %v5045 = vadd.f32 %v4419, %v5011
      %s5046 = scalar_lea.vmem %s6, 24
      %v5047 = vld [vmem:[%s5046] sm:$0xff]
      %v5049 = vsel %vm1672, %v4659, 0
      %v5052 = vsel %vm1672, %v4660, 0
      %v5055 = vsel %vm1672, %v4661, 0
      %v5058 = vsel %vm1672, %v4662, 0
      %v5061 = vsel %vm1672, %v4663, 0
      %v5064 = vsel %vm1672, %v4664, 0
      %v5067 = vsel %vm1672, %v4665, 0
      %v5070 = vsel %vm1672, %v4666, 0
      %v5073 = vsel %vm1672, %v4667, 0
      %v5076 = vsel %vm1672, %v4668, 0
      %v5079 = vsel %vm1672, %v4669, 0
      %v5082 = vsel %vm1672, %v4670, 0
      %v5085 = vsel %vm1672, %v4671, 0
      %v5088 = vsel %vm1672, %v4672, 0
      %v5091 = vsel %vm1672, %v4673, 0
      %v5094 = vsel %vm1672, %v4674, 0
      %v5097 = vsel %vm1672, %v4675, 0
      %v5100 = vsel %vm1672, %v4676, 0
      %v5103 = vsel %vm1672, %v4677, 0
      %v5106 = vsel %vm1672, %v4678, 0
      %v5109 = vsel %vm1672, %v4679, 0
      %v5112 = vsel %vm1672, %v4680, 0
      %v5115 = vsel %vm1672, %v4681, 0
      %v5118 = vsel %vm1672, %v4682, 0
      %v5121 = vsel %vm1672, %v4683, 0
      %v5124 = vsel %vm1672, %v4684, 0
      %v5127 = vsel %vm1672, %v4685, 0
      %v5130 = vsel %vm1672, %v4686, 0
      %v5133 = vsel %vm1672, %v4687, 0
      %v5136 = vsel %vm1672, %v4688, 0
      %v5139 = vsel %vm1672, %v4689, 0
      %v5142 = vsel %vm1672, %v4690, 0
      %5144 = vmatprep.subr.mxu0 0.0
      %5145 = vmatpush1.msra.mxu0 %v5047
      %5146 = vmatprep.subr.mxu0 0.0
      %5147 = vmatpush1.msra.mxu0 0.0
      %5148 = vmatprep.subr.mxu0 0.0
      %5149 = vmatpush1.msra.mxu0 0.0
      %5150 = vmatprep.subr.mxu0 0.0
      %5151 = vmatpush1.msra.mxu0 0.0
      %5152 = vmatprep.subr.mxu0 0.0
      %5153 = vmatpush1.msra.mxu0 0.0
      %5154 = vmatprep.subr.mxu0 0.0
      %5155 = vmatpush1.msra.mxu0 0.0
      %5156 = vmatprep.subr.mxu0 0.0
      %5157 = vmatpush1.msra.mxu0 0.0
      %5158 = vmatprep.subr.mxu0 0.0
      %5159 = vmatpush1.msra.mxu0 0.0
      %5160 = vmatprep.subr.mxu0 0.0
      %5161 = vmatpush1.msra.mxu0 0.0
      %5162 = vmatprep.subr.mxu0 0.0
      %5163 = vmatpush1.msra.mxu0 0.0
      %5164 = vmatprep.subr.mxu0 0.0
      %5165 = vmatpush1.msra.mxu0 0.0
      %5166 = vmatprep.subr.mxu0 0.0
      %5167 = vmatpush1.msra.mxu0 0.0
      %5168 = vmatprep.subr.mxu0 0.0
      %5169 = vmatpush1.msra.mxu0 0.0
      %5170 = vmatprep.subr.mxu0 0.0
      %5171 = vmatpush1.msra.mxu0 0.0
      %5172 = vmatprep.subr.mxu0 0.0
      %5173 = vmatpush1.msra.mxu0 0.0
      %5174 = vmatprep.subr.mxu0 0.0
      %5175 = vmatpush1.msra.mxu0 0.0
      %5176 = vmatprep.subr.mxu0 0.0
      %5177 = vmatpush1.msra.mxu0 0.0
      %5178 = vmatprep.subr.mxu0 0.0
      %5179 = vmatpush1.msra.mxu0 0.0
      %5180 = vmatprep.subr.mxu0 0.0
      %5181 = vmatpush1.msra.mxu0 0.0
      %5182 = vmatprep.subr.mxu0 0.0
      %5183 = vmatpush1.msra.mxu0 0.0
      %5184 = vmatprep.subr.mxu0 0.0
      %5185 = vmatpush1.msra.mxu0 0.0
      %5186 = vmatprep.subr.mxu0 0.0
      %5187 = vmatpush1.msra.mxu0 0.0
      %5188 = vmatprep.subr.mxu0 0.0
      %5189 = vmatpush1.msra.mxu0 0.0
      %5190 = vmatprep.subr.mxu0 0.0
      %5191 = vmatpush1.msra.mxu0 0.0
      %5192 = vmatprep.subr.mxu0 0.0
      %5193 = vmatpush1.msra.mxu0 0.0
      %5194 = vmatprep.subr.mxu0 0.0
      %5195 = vmatpush1.msra.mxu0 0.0
      %5196 = vmatprep.subr.mxu0 0.0
      %5197 = vmatpush1.msra.mxu0 0.0
      %5198 = vmatprep.subr.mxu0 0.0
      %5199 = vmatpush1.msra.mxu0 0.0
      %5200 = vmatprep.subr.mxu0 0.0
      %5201 = vmatpush1.msra.mxu0 0.0
      %5202 = vmatprep.subr.mxu0 0.0
      %5203 = vmatpush1.msra.mxu0 0.0
      %5204 = vmatprep.subr.mxu0 0.0
      %5205 = vmatpush1.msra.mxu0 0.0
      %5206 = vmatprep.subr.mxu0 0.0
      %5207 = vmatpush1.msra.mxu0 0.0
      %5208 = vmatprep.mubr.f32.mxu0 0.0
      %5209 = vmatmul.mubr.f32.gmra.mrb[0].mxu0 %v5049
      %v5210 = vpop.f32.mrb[0].mxu0
      %v5211 = vadd.f32 0.0, %v5210
      %v5212 = vpop.f32.mrb[0].mxu0
      %5213 = vmatprep.mubr.f32.mxu0 0.0
      %5214 = vmatmul.mubr.f32.gmra.mrb[0].mxu0 %v5052
      %v5215 = vpop.f32.mrb[0].mxu0
      %v5216 = vadd.f32 0.0, %v5215
      %v5217 = vpop.f32.mrb[0].mxu0
      %5218 = vmatprep.mubr.f32.mxu0 0.0
      %5219 = vmatmul.mubr.f32.gmra.mrb[0].mxu0 %v5055
      %v5220 = vpop.f32.mrb[0].mxu0
      %v5221 = vadd.f32 0.0, %v5220
      %v5222 = vpop.f32.mrb[0].mxu0
      %5223 = vmatprep.mubr.f32.mxu0 0.0
      %5224 = vmatmul.mubr.f32.gmra.mrb[0].mxu0 %v5058
      %v5225 = vpop.f32.mrb[0].mxu0
      %v5226 = vadd.f32 0.0, %v5225
      %v5227 = vpop.f32.mrb[0].mxu0
      %5228 = vmatprep.mubr.f32.mxu0 0.0
      %5229 = vmatmul.mubr.f32.gmra.mrb[0].mxu0 %v5061
      %v5230 = vpop.f32.mrb[0].mxu0
      %v5231 = vadd.f32 0.0, %v5230
      %v5232 = vpop.f32.mrb[0].mxu0
      %5233 = vmatprep.mubr.f32.mxu0 0.0
      %5234 = vmatmul.mubr.f32.gmra.mrb[0].mxu0 %v5064
      %v5235 = vpop.f32.mrb[0].mxu0
      %v5236 = vadd.f32 0.0, %v5235
      %v5237 = vpop.f32.mrb[0].mxu0
      %5238 = vmatprep.mubr.f32.mxu0 0.0
      %5239 = vmatmul.mubr.f32.gmra.mrb[0].mxu0 %v5067
      %v5240 = vpop.f32.mrb[0].mxu0
      %v5241 = vadd.f32 0.0, %v5240
      %v5242 = vpop.f32.mrb[0].mxu0
      %5243 = vmatprep.mubr.f32.mxu0 0.0
      %5244 = vmatmul.mubr.f32.gmra.mrb[0].mxu0 %v5070
      %v5245 = vpop.f32.mrb[0].mxu0
      %v5246 = vadd.f32 0.0, %v5245
      %v5247 = vpop.f32.mrb[0].mxu0
      %5248 = vmatprep.mubr.f32.mxu0 0.0
      %5249 = vmatmul.mubr.f32.gmra.mrb[0].mxu0 %v5073
      %v5250 = vpop.f32.mrb[0].mxu0
      %v5251 = vadd.f32 0.0, %v5250
      %v5252 = vpop.f32.mrb[0].mxu0
      %5253 = vmatprep.mubr.f32.mxu0 0.0
      %5254 = vmatmul.mubr.f32.gmra.mrb[0].mxu0 %v5076
      %v5255 = vpop.f32.mrb[0].mxu0
      %v5256 = vadd.f32 0.0, %v5255
      %v5257 = vpop.f32.mrb[0].mxu0
      %5258 = vmatprep.mubr.f32.mxu0 0.0
      %5259 = vmatmul.mubr.f32.gmra.mrb[0].mxu0 %v5079
      %v5260 = vpop.f32.mrb[0].mxu0
      %v5261 = vadd.f32 0.0, %v5260
      %v5262 = vpop.f32.mrb[0].mxu0
      %5263 = vmatprep.mubr.f32.mxu0 0.0
      %5264 = vmatmul.mubr.f32.gmra.mrb[0].mxu0 %v5082
      %v5265 = vpop.f32.mrb[0].mxu0
      %v5266 = vadd.f32 0.0, %v5265
      %v5267 = vpop.f32.mrb[0].mxu0
      %5268 = vmatprep.mubr.f32.mxu0 0.0
      %5269 = vmatmul.mubr.f32.gmra.mrb[0].mxu0 %v5085
      %v5270 = vpop.f32.mrb[0].mxu0
      %v5271 = vadd.f32 0.0, %v5270
      %v5272 = vpop.f32.mrb[0].mxu0
      %5273 = vmatprep.mubr.f32.mxu0 0.0
      %5274 = vmatmul.mubr.f32.gmra.mrb[0].mxu0 %v5088
      %v5275 = vpop.f32.mrb[0].mxu0
      %v5276 = vadd.f32 0.0, %v5275
      %v5277 = vpop.f32.mrb[0].mxu0
      %5278 = vmatprep.mubr.f32.mxu0 0.0
      %5279 = vmatmul.mubr.f32.gmra.mrb[0].mxu0 %v5091
      %v5280 = vpop.f32.mrb[0].mxu0
      %v5281 = vadd.f32 0.0, %v5280
      %v5282 = vpop.f32.mrb[0].mxu0
      %5283 = vmatprep.mubr.f32.mxu0 0.0
      %5284 = vmatmul.mubr.f32.gmra.mrb[0].mxu0 %v5094
      %v5285 = vpop.f32.mrb[0].mxu0
      %v5286 = vadd.f32 0.0, %v5285
      %v5287 = vpop.f32.mrb[0].mxu0
      %5288 = vmatprep.mubr.f32.mxu0 0.0
      %5289 = vmatmul.mubr.f32.gmra.mrb[0].mxu0 %v5097
      %v5290 = vpop.f32.mrb[0].mxu0
      %v5291 = vadd.f32 0.0, %v5290
      %v5292 = vpop.f32.mrb[0].mxu0
      %5293 = vmatprep.mubr.f32.mxu0 0.0
      %5294 = vmatmul.mubr.f32.gmra.mrb[0].mxu0 %v5100
      %v5295 = vpop.f32.mrb[0].mxu0
      %v5296 = vadd.f32 0.0, %v5295
      %v5297 = vpop.f32.mrb[0].mxu0
      %5298 = vmatprep.mubr.f32.mxu0 0.0
      %5299 = vmatmul.mubr.f32.gmra.mrb[0].mxu0 %v5103
      %v5300 = vpop.f32.mrb[0].mxu0
      %v5301 = vadd.f32 0.0, %v5300
      %v5302 = vpop.f32.mrb[0].mxu0
      %5303 = vmatprep.mubr.f32.mxu0 0.0
      %5304 = vmatmul.mubr.f32.gmra.mrb[0].mxu0 %v5106
      %v5305 = vpop.f32.mrb[0].mxu0
      %v5306 = vadd.f32 0.0, %v5305
      %v5307 = vpop.f32.mrb[0].mxu0
      %5308 = vmatprep.mubr.f32.mxu0 0.0
      %5309 = vmatmul.mubr.f32.gmra.mrb[0].mxu0 %v5109
      %v5310 = vpop.f32.mrb[0].mxu0
      %v5311 = vadd.f32 0.0, %v5310
      %v5312 = vpop.f32.mrb[0].mxu0
      %5313 = vmatprep.mubr.f32.mxu0 0.0
      %5314 = vmatmul.mubr.f32.gmra.mrb[0].mxu0 %v5112
      %v5315 = vpop.f32.mrb[0].mxu0
      %v5316 = vadd.f32 0.0, %v5315
      %v5317 = vpop.f32.mrb[0].mxu0
      %5318 = vmatprep.mubr.f32.mxu0 0.0
      %5319 = vmatmul.mubr.f32.gmra.mrb[0].mxu0 %v5115
      %v5320 = vpop.f32.mrb[0].mxu0
      %v5321 = vadd.f32 0.0, %v5320
      %v5322 = vpop.f32.mrb[0].mxu0
      %5323 = vmatprep.mubr.f32.mxu0 0.0
      %5324 = vmatmul.mubr.f32.gmra.mrb[0].mxu0 %v5118
      %v5325 = vpop.f32.mrb[0].mxu0
      %v5326 = vadd.f32 0.0, %v5325
      %v5327 = vpop.f32.mrb[0].mxu0
      %5328 = vmatprep.mubr.f32.mxu0 0.0
      %5329 = vmatmul.mubr.f32.gmra.mrb[0].mxu0 %v5121
      %v5330 = vpop.f32.mrb[0].mxu0
      %v5331 = vadd.f32 0.0, %v5330
      %v5332 = vpop.f32.mrb[0].mxu0
      %5333 = vmatprep.mubr.f32.mxu0 0.0
      %5334 = vmatmul.mubr.f32.gmra.mrb[0].mxu0 %v5124
      %v5335 = vpop.f32.mrb[0].mxu0
      %v5336 = vadd.f32 0.0, %v5335
      %v5337 = vpop.f32.mrb[0].mxu0
      %5338 = vmatprep.mubr.f32.mxu0 0.0
      %5339 = vmatmul.mubr.f32.gmra.mrb[0].mxu0 %v5127
      %v5340 = vpop.f32.mrb[0].mxu0
      %v5341 = vadd.f32 0.0, %v5340
      %v5342 = vpop.f32.mrb[0].mxu0
      %5343 = vmatprep.mubr.f32.mxu0 0.0
      %5344 = vmatmul.mubr.f32.gmra.mrb[0].mxu0 %v5130
      %v5345 = vpop.f32.mrb[0].mxu0
      %v5346 = vadd.f32 0.0, %v5345
      %v5347 = vpop.f32.mrb[0].mxu0
      %5348 = vmatprep.mubr.f32.mxu0 0.0
      %5349 = vmatmul.mubr.f32.gmra.mrb[0].mxu0 %v5133
      %v5350 = vpop.f32.mrb[0].mxu0
      %v5351 = vadd.f32 0.0, %v5350
      %v5352 = vpop.f32.mrb[0].mxu0
      %5353 = vmatprep.mubr.f32.mxu0 0.0
      %5354 = vmatmul.mubr.f32.gmra.mrb[0].mxu0 %v5136
      %v5355 = vpop.f32.mrb[0].mxu0
      %v5356 = vadd.f32 0.0, %v5355
      %v5357 = vpop.f32.mrb[0].mxu0
      %5358 = vmatprep.mubr.f32.mxu0 0.0
      %5359 = vmatmul.mubr.f32.gmra.mrb[0].mxu0 %v5139
      %v5360 = vpop.f32.mrb[0].mxu0
      %v5361 = vadd.f32 0.0, %v5360
      %v5362 = vpop.f32.mrb[0].mxu0
      %5363 = vmatprep.mubr.f32.mxu0 0.0
      %5364 = vmatmul.mubr.f32.gmra.mrb[0].mxu0 %v5142
      %v5365 = vpop.f32.mrb[0].mxu0
      %v5366 = vadd.f32 0.0, %v5365
      %v5367 = vpop.f32.mrb[0].mxu0
      %5368 = vdwg.mxu0
      %v5369 = vadd.f32 %v5014, %v5211
      %v5370 = vadd.f32 %v5015, %v5216
      %v5371 = vadd.f32 %v5016, %v5221
      %v5372 = vadd.f32 %v5017, %v5226
      %v5373 = vadd.f32 %v5018, %v5231
      %v5374 = vadd.f32 %v5019, %v5236
      %v5375 = vadd.f32 %v5020, %v5241
      %v5376 = vadd.f32 %v5021, %v5246
      %v5377 = vadd.f32 %v5022, %v5251
      %v5378 = vadd.f32 %v5023, %v5256
      %v5379 = vadd.f32 %v5024, %v5261
      %v5380 = vadd.f32 %v5025, %v5266
      %v5381 = vadd.f32 %v5026, %v5271
      %v5382 = vadd.f32 %v5027, %v5276
      %v5383 = vadd.f32 %v5028, %v5281
      %v5384 = vadd.f32 %v5029, %v5286
      %v5385 = vadd.f32 %v5030, %v5291
      %v5386 = vadd.f32 %v5031, %v5296
      %v5387 = vadd.f32 %v5032, %v5301
      %v5388 = vadd.f32 %v5033, %v5306
      %v5389 = vadd.f32 %v5034, %v5311
      %v5390 = vadd.f32 %v5035, %v5316
      %v5391 = vadd.f32 %v5036, %v5321
      %v5392 = vadd.f32 %v5037, %v5326
      %v5393 = vadd.f32 %v5038, %v5331
      %v5394 = vadd.f32 %v5039, %v5336
      %v5395 = vadd.f32 %v5040, %v5341
      %v5396 = vadd.f32 %v5041, %v5346
      %v5397 = vadd.f32 %v5042, %v5351
      %v5398 = vadd.f32 %v5043, %v5356
      %v5399 = vadd.f32 %v5044, %v5361
      %v5400 = vadd.f32 %v5045, %v5366
      %s5401 = scalar_lea.vmem %s7, 1024
      %v5402 = vld [vmem:[%s5401] sm:$0xff]
      %v5403 = vld [vmem:[%s5401 + $0x8] sm:$0xff]
      %v5404 = vld [vmem:[%s5401 + $0x10] sm:$0xff]
      %v5405 = vld [vmem:[%s5401 + $0x18] sm:$0xff]
      %v5406 = vld [vmem:[%s5401 + $0x20] sm:$0xff]
      %v5407 = vld [vmem:[%s5401 + $0x28] sm:$0xff]
      %v5408 = vld [vmem:[%s5401 + $0x30] sm:$0xff]
      %v5409 = vld [vmem:[%s5401 + $0x38] sm:$0xff]
      %v5410 = vld [vmem:[%s5401 + $0x40] sm:$0xff]
      %v5411 = vld [vmem:[%s5401 + $0x48] sm:$0xff]
      %v5412 = vld [vmem:[%s5401 + $0x50] sm:$0xff]
      %v5413 = vld [vmem:[%s5401 + $0x58] sm:$0xff]
      %v5414 = vld [vmem:[%s5401 + $0x60] sm:$0xff]
      %v5415 = vld [vmem:[%s5401 + $0x68] sm:$0xff]
      %v5416 = vld [vmem:[%s5401 + $0x70] sm:$0xff]
      %v5417 = vld [vmem:[%s5401 + $0x78] sm:$0xff]
      %v5418 = vld [vmem:[%s5401 + $0x80] sm:$0xff]
      %v5419 = vld [vmem:[%s5401 + $0x88] sm:$0xff]
      %v5420 = vld [vmem:[%s5401 + $0x90] sm:$0xff]
      %v5421 = vld [vmem:[%s5401 + $0x98] sm:$0xff]
      %v5422 = vld [vmem:[%s5401 + $0xa0] sm:$0xff]
      %v5423 = vld [vmem:[%s5401 + $0xa8] sm:$0xff]
      %v5424 = vld [vmem:[%s5401 + $0xb0] sm:$0xff]
      %v5425 = vld [vmem:[%s5401 + $0xb8] sm:$0xff]
      %v5426 = vld [vmem:[%s5401 + $0xc0] sm:$0xff]
      %v5427 = vld [vmem:[%s5401 + $0xc8] sm:$0xff]
      %v5428 = vld [vmem:[%s5401 + $0xd0] sm:$0xff]
      %v5429 = vld [vmem:[%s5401 + $0xd8] sm:$0xff]
      %v5430 = vld [vmem:[%s5401 + $0xe0] sm:$0xff]
      %v5431 = vld [vmem:[%s5401 + $0xe8] sm:$0xff]
      %v5432 = vld [vmem:[%s5401 + $0xf0] sm:$0xff]
      %v5433 = vld [vmem:[%s5401 + $0xf8] sm:$0xff]
      %5435 = vset.pattern.permute.xlu0 0
      %5436 = vperm.xlu0 %5435, %v5402
      %v5437 = vpop.permute.xlu0 %5436
      %5440 = vset.pattern.permute.xlu0 0
      %5441 = vperm.xlu0 %5440, %v5403
      %v5442 = vpop.permute.xlu0 %5441
      %5445 = vset.pattern.permute.xlu0 0
      %5446 = vperm.xlu0 %5445, %v5404
      %v5447 = vpop.permute.xlu0 %5446
      %5450 = vset.pattern.permute.xlu0 0
      %5451 = vperm.xlu0 %5450, %v5405
      %v5452 = vpop.permute.xlu0 %5451
      %5455 = vset.pattern.permute.xlu0 0
      %5456 = vperm.xlu0 %5455, %v5406
      %v5457 = vpop.permute.xlu0 %5456
      %5460 = vset.pattern.permute.xlu0 0
      %5461 = vperm.xlu0 %5460, %v5407
      %v5462 = vpop.permute.xlu0 %5461
      %5465 = vset.pattern.permute.xlu0 0
      %5466 = vperm.xlu0 %5465, %v5408
      %v5467 = vpop.permute.xlu0 %5466
      %5470 = vset.pattern.permute.xlu0 0
      %5471 = vperm.xlu0 %5470, %v5409
      %v5472 = vpop.permute.xlu0 %5471
      %5475 = vset.pattern.permute.xlu0 0
      %5476 = vperm.xlu0 %5475, %v5410
      %v5477 = vpop.permute.xlu0 %5476
      %5480 = vset.pattern.permute.xlu0 0
      %5481 = vperm.xlu0 %5480, %v5411
      %v5482 = vpop.permute.xlu0 %5481
      %5485 = vset.pattern.permute.xlu0 0
      %5486 = vperm.xlu0 %5485, %v5412
      %v5487 = vpop.permute.xlu0 %5486
      %5490 = vset.pattern.permute.xlu0 0
      %5491 = vperm.xlu0 %5490, %v5413
      %v5492 = vpop.permute.xlu0 %5491
      %5495 = vset.pattern.permute.xlu0 0
      %5496 = vperm.xlu0 %5495, %v5414
      %v5497 = vpop.permute.xlu0 %5496
      %5500 = vset.pattern.permute.xlu0 0
      %5501 = vperm.xlu0 %5500, %v5415
      %v5502 = vpop.permute.xlu0 %5501
      %5505 = vset.pattern.permute.xlu0 0
      %5506 = vperm.xlu0 %5505, %v5416
      %v5507 = vpop.permute.xlu0 %5506
      %5510 = vset.pattern.permute.xlu0 0
      %5511 = vperm.xlu0 %5510, %v5417
      %v5512 = vpop.permute.xlu0 %5511
      %5515 = vset.pattern.permute.xlu0 0
      %5516 = vperm.xlu0 %5515, %v5418
      %v5517 = vpop.permute.xlu0 %5516
      %5520 = vset.pattern.permute.xlu0 0
      %5521 = vperm.xlu0 %5520, %v5419
      %v5522 = vpop.permute.xlu0 %5521
      %5525 = vset.pattern.permute.xlu0 0
      %5526 = vperm.xlu0 %5525, %v5420
      %v5527 = vpop.permute.xlu0 %5526
      %5530 = vset.pattern.permute.xlu0 0
      %5531 = vperm.xlu0 %5530, %v5421
      %v5532 = vpop.permute.xlu0 %5531
      %5535 = vset.pattern.permute.xlu0 0
      %5536 = vperm.xlu0 %5535, %v5422
      %v5537 = vpop.permute.xlu0 %5536
      %5540 = vset.pattern.permute.xlu0 0
      %5541 = vperm.xlu0 %5540, %v5423
      %v5542 = vpop.permute.xlu0 %5541
      %5545 = vset.pattern.permute.xlu0 0
      %5546 = vperm.xlu0 %5545, %v5424
      %v5547 = vpop.permute.xlu0 %5546
      %5550 = vset.pattern.permute.xlu0 0
      %5551 = vperm.xlu0 %5550, %v5425
      %v5552 = vpop.permute.xlu0 %5551
      %5555 = vset.pattern.permute.xlu0 0
      %5556 = vperm.xlu0 %5555, %v5426
      %v5557 = vpop.permute.xlu0 %5556
      %5560 = vset.pattern.permute.xlu0 0
      %5561 = vperm.xlu0 %5560, %v5427
      %v5562 = vpop.permute.xlu0 %5561
      %5565 = vset.pattern.permute.xlu0 0
      %5566 = vperm.xlu0 %5565, %v5428
      %v5567 = vpop.permute.xlu0 %5566
      %5570 = vset.pattern.permute.xlu0 0
      %5571 = vperm.xlu0 %5570, %v5429
      %v5572 = vpop.permute.xlu0 %5571
      %5575 = vset.pattern.permute.xlu0 0
      %5576 = vperm.xlu0 %5575, %v5430
      %v5577 = vpop.permute.xlu0 %5576
      %5580 = vset.pattern.permute.xlu0 0
      %5581 = vperm.xlu0 %5580, %v5431
      %v5582 = vpop.permute.xlu0 %5581
      %5585 = vset.pattern.permute.xlu0 0
      %5586 = vperm.xlu0 %5585, %v5432
      %v5587 = vpop.permute.xlu0 %5586
      %5590 = vset.pattern.permute.xlu0 0
      %5591 = vperm.xlu0 %5590, %v5433
      %v5592 = vpop.permute.xlu0 %5591
      %v5594 = vmul.f32 %v662, %v5437
      %v5595 = vmul.f32 %v667, %v5442
      %v5596 = vmul.f32 %v672, %v5447
      %v5597 = vmul.f32 %v677, %v5452
      %v5598 = vmul.f32 %v682, %v5457
      %v5599 = vmul.f32 %v687, %v5462
      %v5600 = vmul.f32 %v692, %v5467
      %v5601 = vmul.f32 %v697, %v5472
      %v5602 = vmul.f32 %v702, %v5477
      %v5603 = vmul.f32 %v707, %v5482
      %v5604 = vmul.f32 %v712, %v5487
      %v5605 = vmul.f32 %v717, %v5492
      %v5606 = vmul.f32 %v722, %v5497
      %v5607 = vmul.f32 %v727, %v5502
      %v5608 = vmul.f32 %v732, %v5507
      %v5609 = vmul.f32 %v737, %v5512
      %v5610 = vmul.f32 %v742, %v5517
      %v5611 = vmul.f32 %v747, %v5522
      %v5612 = vmul.f32 %v752, %v5527
      %v5613 = vmul.f32 %v757, %v5532
      %v5614 = vmul.f32 %v762, %v5537
      %v5615 = vmul.f32 %v767, %v5542
      %v5616 = vmul.f32 %v772, %v5547
      %v5617 = vmul.f32 %v777, %v5552
      %v5618 = vmul.f32 %v782, %v5557
      %v5619 = vmul.f32 %v787, %v5562
      %v5620 = vmul.f32 %v792, %v5567
      %v5621 = vmul.f32 %v797, %v5572
      %v5622 = vmul.f32 %v802, %v5577
      %v5623 = vmul.f32 %v807, %v5582
      %v5624 = vmul.f32 %v812, %v5587
      %v5625 = vmul.f32 %v817, %v5592
      %v5626 = vmul.f32 %v1017, %v5437
      %v5627 = vmul.f32 %v1022, %v5442
      %v5628 = vmul.f32 %v1027, %v5447
      %v5629 = vmul.f32 %v1032, %v5452
      %v5630 = vmul.f32 %v1037, %v5457
      %v5631 = vmul.f32 %v1042, %v5462
      %v5632 = vmul.f32 %v1047, %v5467
      %v5633 = vmul.f32 %v1052, %v5472
      %v5634 = vmul.f32 %v1057, %v5477
      %v5635 = vmul.f32 %v1062, %v5482
      %v5636 = vmul.f32 %v1067, %v5487
      %v5637 = vmul.f32 %v1072, %v5492
      %v5638 = vmul.f32 %v1077, %v5497
      %v5639 = vmul.f32 %v1082, %v5502
      %v5640 = vmul.f32 %v1087, %v5507
      %v5641 = vmul.f32 %v1092, %v5512
      %v5642 = vmul.f32 %v1097, %v5517
      %v5643 = vmul.f32 %v1102, %v5522
      %v5644 = vmul.f32 %v1107, %v5527
      %v5645 = vmul.f32 %v1112, %v5532
      %v5646 = vmul.f32 %v1117, %v5537
      %v5647 = vmul.f32 %v1122, %v5542
      %v5648 = vmul.f32 %v1127, %v5547
      %v5649 = vmul.f32 %v1132, %v5552
      %v5650 = vmul.f32 %v1137, %v5557
      %v5651 = vmul.f32 %v1142, %v5562
      %v5652 = vmul.f32 %v1147, %v5567
      %v5653 = vmul.f32 %v1152, %v5572
      %v5654 = vmul.f32 %v1157, %v5577
      %v5655 = vmul.f32 %v1162, %v5582
      %v5656 = vmul.f32 %v1167, %v5587
      %v5657 = vmul.f32 %v1172, %v5592
      %s5658 = scalar_lea.vmem %s5, 32
      %v5659 = vld [vmem:[%s5658] sm:$0xff]
      %v5661 = vsel %vm1672, %v5594, 0
      %v5664 = vsel %vm1672, %v5595, 0
      %v5667 = vsel %vm1672, %v5596, 0
      %v5670 = vsel %vm1672, %v5597, 0
      %v5673 = vsel %vm1672, %v5598, 0
      %v5676 = vsel %vm1672, %v5599, 0
      %v5679 = vsel %vm1672, %v5600, 0
      %v5682 = vsel %vm1672, %v5601, 0
      %v5685 = vsel %vm1672, %v5602, 0
      %v5688 = vsel %vm1672, %v5603, 0
      %v5691 = vsel %vm1672, %v5604, 0
      %v5694 = vsel %vm1672, %v5605, 0
      %v5697 = vsel %vm1672, %v5606, 0
      %v5700 = vsel %vm1672, %v5607, 0
      %v5703 = vsel %vm1672, %v5608, 0
      %v5706 = vsel %vm1672, %v5609, 0
      %v5709 = vsel %vm1672, %v5610, 0
      %v5712 = vsel %vm1672, %v5611, 0
      %v5715 = vsel %vm1672, %v5612, 0
      %v5718 = vsel %vm1672, %v5613, 0
      %v5721 = vsel %vm1672, %v5614, 0
      %v5724 = vsel %vm1672, %v5615, 0
      %v5727 = vsel %vm1672, %v5616, 0
      %v5730 = vsel %vm1672, %v5617, 0
      %v5733 = vsel %vm1672, %v5618, 0
      %v5736 = vsel %vm1672, %v5619, 0
      %v5739 = vsel %vm1672, %v5620, 0
      %v5742 = vsel %vm1672, %v5621, 0
      %v5745 = vsel %vm1672, %v5622, 0
      %v5748 = vsel %vm1672, %v5623, 0
      %v5751 = vsel %vm1672, %v5624, 0
      %v5754 = vsel %vm1672, %v5625, 0
      %5756 = vmatprep.subr.mxu0 0.0
      %5757 = vmatpush1.msra.mxu0 %v5659
      %5758 = vmatprep.subr.mxu0 0.0
      %5759 = vmatpush1.msra.mxu0 0.0
      %5760 = vmatprep.subr.mxu0 0.0
      %5761 = vmatpush1.msra.mxu0 0.0
      %5762 = vmatprep.subr.mxu0 0.0
      %5763 = vmatpush1.msra.mxu0 0.0
      %5764 = vmatprep.subr.mxu0 0.0
      %5765 = vmatpush1.msra.mxu0 0.0
      %5766 = vmatprep.subr.mxu0 0.0
      %5767 = vmatpush1.msra.mxu0 0.0
      %5768 = vmatprep.subr.mxu0 0.0
      %5769 = vmatpush1.msra.mxu0 0.0
      %5770 = vmatprep.subr.mxu0 0.0
      %5771 = vmatpush1.msra.mxu0 0.0
      %5772 = vmatprep.subr.mxu0 0.0
      %5773 = vmatpush1.msra.mxu0 0.0
      %5774 = vmatprep.subr.mxu0 0.0
      %5775 = vmatpush1.msra.mxu0 0.0
      %5776 = vmatprep.subr.mxu0 0.0
      %5777 = vmatpush1.msra.mxu0 0.0
      %5778 = vmatprep.subr.mxu0 0.0
      %5779 = vmatpush1.msra.mxu0 0.0
      %5780 = vmatprep.subr.mxu0 0.0
      %5781 = vmatpush1.msra.mxu0 0.0
      %5782 = vmatprep.subr.mxu0 0.0
      %5783 = vmatpush1.msra.mxu0 0.0
      %5784 = vmatprep.subr.mxu0 0.0
      %5785 = vmatpush1.msra.mxu0 0.0
      %5786 = vmatprep.subr.mxu0 0.0
      %5787 = vmatpush1.msra.mxu0 0.0
      %5788 = vmatprep.subr.mxu0 0.0
      %5789 = vmatpush1.msra.mxu0 0.0
      %5790 = vmatprep.subr.mxu0 0.0
      %5791 = vmatpush1.msra.mxu0 0.0
      %5792 = vmatprep.subr.mxu0 0.0
      %5793 = vmatpush1.msra.mxu0 0.0
      %5794 = vmatprep.subr.mxu0 0.0
      %5795 = vmatpush1.msra.mxu0 0.0
      %5796 = vmatprep.subr.mxu0 0.0
      %5797 = vmatpush1.msra.mxu0 0.0
      %5798 = vmatprep.subr.mxu0 0.0
      %5799 = vmatpush1.msra.mxu0 0.0
      %5800 = vmatprep.subr.mxu0 0.0
      %5801 = vmatpush1.msra.mxu0 0.0
      %5802 = vmatprep.subr.mxu0 0.0
      %5803 = vmatpush1.msra.mxu0 0.0
      %5804 = vmatprep.subr.mxu0 0.0
      %5805 = vmatpush1.msra.mxu0 0.0
      %5806 = vmatprep.subr.mxu0 0.0
      %5807 = vmatpush1.msra.mxu0 0.0
      %5808 = vmatprep.subr.mxu0 0.0
      %5809 = vmatpush1.msra.mxu0 0.0
      %5810 = vmatprep.subr.mxu0 0.0
      %5811 = vmatpush1.msra.mxu0 0.0
      %5812 = vmatprep.subr.mxu0 0.0
      %5813 = vmatpush1.msra.mxu0 0.0
      %5814 = vmatprep.subr.mxu0 0.0
      %5815 = vmatpush1.msra.mxu0 0.0
      %5816 = vmatprep.subr.mxu0 0.0
      %5817 = vmatpush1.msra.mxu0 0.0
      %5818 = vmatprep.subr.mxu0 0.0
      %5819 = vmatpush1.msra.mxu0 0.0
      %5820 = vmatprep.mubr.f32.mxu0 0.0
      %5821 = vmatmul.mubr.f32.gmra.mrb[0].mxu0 %v5661
      %v5822 = vpop.f32.mrb[0].mxu0
      %v5823 = vadd.f32 0.0, %v5822
      %v5824 = vpop.f32.mrb[0].mxu0
      %5825 = vmatprep.mubr.f32.mxu0 0.0
      %5826 = vmatmul.mubr.f32.gmra.mrb[0].mxu0 %v5664
      %v5827 = vpop.f32.mrb[0].mxu0
      %v5828 = vadd.f32 0.0, %v5827
      %v5829 = vpop.f32.mrb[0].mxu0
      %5830 = vmatprep.mubr.f32.mxu0 0.0
      %5831 = vmatmul.mubr.f32.gmra.mrb[0].mxu0 %v5667
      %v5832 = vpop.f32.mrb[0].mxu0
      %v5833 = vadd.f32 0.0, %v5832
      %v5834 = vpop.f32.mrb[0].mxu0
      %5835 = vmatprep.mubr.f32.mxu0 0.0
      %5836 = vmatmul.mubr.f32.gmra.mrb[0].mxu0 %v5670
      %v5837 = vpop.f32.mrb[0].mxu0
      %v5838 = vadd.f32 0.0, %v5837
      %v5839 = vpop.f32.mrb[0].mxu0
      %5840 = vmatprep.mubr.f32.mxu0 0.0
      %5841 = vmatmul.mubr.f32.gmra.mrb[0].mxu0 %v5673
      %v5842 = vpop.f32.mrb[0].mxu0
      %v5843 = vadd.f32 0.0, %v5842
      %v5844 = vpop.f32.mrb[0].mxu0
      %5845 = vmatprep.mubr.f32.mxu0 0.0
      %5846 = vmatmul.mubr.f32.gmra.mrb[0].mxu0 %v5676
      %v5847 = vpop.f32.mrb[0].mxu0
      %v5848 = vadd.f32 0.0, %v5847
      %v5849 = vpop.f32.mrb[0].mxu0
      %5850 = vmatprep.mubr.f32.mxu0 0.0
      %5851 = vmatmul.mubr.f32.gmra.mrb[0].mxu0 %v5679
      %v5852 = vpop.f32.mrb[0].mxu0
      %v5853 = vadd.f32 0.0, %v5852
      %v5854 = vpop.f32.mrb[0].mxu0
      %5855 = vmatprep.mubr.f32.mxu0 0.0
      %5856 = vmatmul.mubr.f32.gmra.mrb[0].mxu0 %v5682
      %v5857 = vpop.f32.mrb[0].mxu0
      %v5858 = vadd.f32 0.0, %v5857
      %v5859 = vpop.f32.mrb[0].mxu0
      %5860 = vmatprep.mubr.f32.mxu0 0.0
      %5861 = vmatmul.mubr.f32.gmra.mrb[0].mxu0 %v5685
      %v5862 = vpop.f32.mrb[0].mxu0
      %v5863 = vadd.f32 0.0, %v5862
      %v5864 = vpop.f32.mrb[0].mxu0
      %5865 = vmatprep.mubr.f32.mxu0 0.0
      %5866 = vmatmul.mubr.f32.gmra.mrb[0].mxu0 %v5688
      %v5867 = vpop.f32.mrb[0].mxu0
      %v5868 = vadd.f32 0.0, %v5867
      %v5869 = vpop.f32.mrb[0].mxu0
      %5870 = vmatprep.mubr.f32.mxu0 0.0
      %5871 = vmatmul.mubr.f32.gmra.mrb[0].mxu0 %v5691
      %v5872 = vpop.f32.mrb[0].mxu0
      %v5873 = vadd.f32 0.0, %v5872
      %v5874 = vpop.f32.mrb[0].mxu0
      %5875 = vmatprep.mubr.f32.mxu0 0.0
      %5876 = vmatmul.mubr.f32.gmra.mrb[0].mxu0 %v5694
      %v5877 = vpop.f32.mrb[0].mxu0
      %v5878 = vadd.f32 0.0, %v5877
      %v5879 = vpop.f32.mrb[0].mxu0
      %5880 = vmatprep.mubr.f32.mxu0 0.0
      %5881 = vmatmul.mubr.f32.gmra.mrb[0].mxu0 %v5697
      %v5882 = vpop.f32.mrb[0].mxu0
      %v5883 = vadd.f32 0.0, %v5882
      %v5884 = vpop.f32.mrb[0].mxu0
      %5885 = vmatprep.mubr.f32.mxu0 0.0
      %5886 = vmatmul.mubr.f32.gmra.mrb[0].mxu0 %v5700
      %v5887 = vpop.f32.mrb[0].mxu0
      %v5888 = vadd.f32 0.0, %v5887
      %v5889 = vpop.f32.mrb[0].mxu0
      %5890 = vmatprep.mubr.f32.mxu0 0.0
      %5891 = vmatmul.mubr.f32.gmra.mrb[0].mxu0 %v5703
      %v5892 = vpop.f32.mrb[0].mxu0
      %v5893 = vadd.f32 0.0, %v5892
      %v5894 = vpop.f32.mrb[0].mxu0
      %5895 = vmatprep.mubr.f32.mxu0 0.0
      %5896 = vmatmul.mubr.f32.gmra.mrb[0].mxu0 %v5706
      %v5897 = vpop.f32.mrb[0].mxu0
      %v5898 = vadd.f32 0.0, %v5897
      %v5899 = vpop.f32.mrb[0].mxu0
      %5900 = vmatprep.mubr.f32.mxu0 0.0
      %5901 = vmatmul.mubr.f32.gmra.mrb[0].mxu0 %v5709
      %v5902 = vpop.f32.mrb[0].mxu0
      %v5903 = vadd.f32 0.0, %v5902
      %v5904 = vpop.f32.mrb[0].mxu0
      %5905 = vmatprep.mubr.f32.mxu0 0.0
      %5906 = vmatmul.mubr.f32.gmra.mrb[0].mxu0 %v5712
      %v5907 = vpop.f32.mrb[0].mxu0
      %v5908 = vadd.f32 0.0, %v5907
      %v5909 = vpop.f32.mrb[0].mxu0
      %5910 = vmatprep.mubr.f32.mxu0 0.0
      %5911 = vmatmul.mubr.f32.gmra.mrb[0].mxu0 %v5715
      %v5912 = vpop.f32.mrb[0].mxu0
      %v5913 = vadd.f32 0.0, %v5912
      %v5914 = vpop.f32.mrb[0].mxu0
      %5915 = vmatprep.mubr.f32.mxu0 0.0
      %5916 = vmatmul.mubr.f32.gmra.mrb[0].mxu0 %v5718
      %v5917 = vpop.f32.mrb[0].mxu0
      %v5918 = vadd.f32 0.0, %v5917
      %v5919 = vpop.f32.mrb[0].mxu0
      %5920 = vmatprep.mubr.f32.mxu0 0.0
      %5921 = vmatmul.mubr.f32.gmra.mrb[0].mxu0 %v5721
      %v5922 = vpop.f32.mrb[0].mxu0
      %v5923 = vadd.f32 0.0, %v5922
      %v5924 = vpop.f32.mrb[0].mxu0
      %5925 = vmatprep.mubr.f32.mxu0 0.0
      %5926 = vmatmul.mubr.f32.gmra.mrb[0].mxu0 %v5724
      %v5927 = vpop.f32.mrb[0].mxu0
      %v5928 = vadd.f32 0.0, %v5927
      %v5929 = vpop.f32.mrb[0].mxu0
      %5930 = vmatprep.mubr.f32.mxu0 0.0
      %5931 = vmatmul.mubr.f32.gmra.mrb[0].mxu0 %v5727
      %v5932 = vpop.f32.mrb[0].mxu0
      %v5933 = vadd.f32 0.0, %v5932
      %v5934 = vpop.f32.mrb[0].mxu0
      %5935 = vmatprep.mubr.f32.mxu0 0.0
      %5936 = vmatmul.mubr.f32.gmra.mrb[0].mxu0 %v5730
      %v5937 = vpop.f32.mrb[0].mxu0
      %v5938 = vadd.f32 0.0, %v5937
      %v5939 = vpop.f32.mrb[0].mxu0
      %5940 = vmatprep.mubr.f32.mxu0 0.0
      %5941 = vmatmul.mubr.f32.gmra.mrb[0].mxu0 %v5733
      %v5942 = vpop.f32.mrb[0].mxu0
      %v5943 = vadd.f32 0.0, %v5942
      %v5944 = vpop.f32.mrb[0].mxu0
      %5945 = vmatprep.mubr.f32.mxu0 0.0
      %5946 = vmatmul.mubr.f32.gmra.mrb[0].mxu0 %v5736
      %v5947 = vpop.f32.mrb[0].mxu0
      %v5948 = vadd.f32 0.0, %v5947
      %v5949 = vpop.f32.mrb[0].mxu0
      %5950 = vmatprep.mubr.f32.mxu0 0.0
      %5951 = vmatmul.mubr.f32.gmra.mrb[0].mxu0 %v5739
      %v5952 = vpop.f32.mrb[0].mxu0
      %v5953 = vadd.f32 0.0, %v5952
      %v5954 = vpop.f32.mrb[0].mxu0
      %5955 = vmatprep.mubr.f32.mxu0 0.0
      %5956 = vmatmul.mubr.f32.gmra.mrb[0].mxu0 %v5742
      %v5957 = vpop.f32.mrb[0].mxu0
      %v5958 = vadd.f32 0.0, %v5957
      %v5959 = vpop.f32.mrb[0].mxu0
      %5960 = vmatprep.mubr.f32.mxu0 0.0
      %5961 = vmatmul.mubr.f32.gmra.mrb[0].mxu0 %v5745
      %v5962 = vpop.f32.mrb[0].mxu0
      %v5963 = vadd.f32 0.0, %v5962
      %v5964 = vpop.f32.mrb[0].mxu0
      %5965 = vmatprep.mubr.f32.mxu0 0.0
      %5966 = vmatmul.mubr.f32.gmra.mrb[0].mxu0 %v5748
      %v5967 = vpop.f32.mrb[0].mxu0
      %v5968 = vadd.f32 0.0, %v5967
      %v5969 = vpop.f32.mrb[0].mxu0
      %5970 = vmatprep.mubr.f32.mxu0 0.0
      %5971 = vmatmul.mubr.f32.gmra.mrb[0].mxu0 %v5751
      %v5972 = vpop.f32.mrb[0].mxu0
      %v5973 = vadd.f32 0.0, %v5972
      %v5974 = vpop.f32.mrb[0].mxu0
      %5975 = vmatprep.mubr.f32.mxu0 0.0
      %5976 = vmatmul.mubr.f32.gmra.mrb[0].mxu0 %v5754
      %v5977 = vpop.f32.mrb[0].mxu0
      %v5978 = vadd.f32 0.0, %v5977
      %v5979 = vpop.f32.mrb[0].mxu0
      %5980 = vdwg.mxu0
      %v5981 = vadd.f32 %v5369, %v5823
      %v5982 = vadd.f32 %v5370, %v5828
      %v5983 = vadd.f32 %v5371, %v5833
      %v5984 = vadd.f32 %v5372, %v5838
      %v5985 = vadd.f32 %v5373, %v5843
      %v5986 = vadd.f32 %v5374, %v5848
      %v5987 = vadd.f32 %v5375, %v5853
      %v5988 = vadd.f32 %v5376, %v5858
      %v5989 = vadd.f32 %v5377, %v5863
      %v5990 = vadd.f32 %v5378, %v5868
      %v5991 = vadd.f32 %v5379, %v5873
      %v5992 = vadd.f32 %v5380, %v5878
      %v5993 = vadd.f32 %v5381, %v5883
      %v5994 = vadd.f32 %v5382, %v5888
      %v5995 = vadd.f32 %v5383, %v5893
      %v5996 = vadd.f32 %v5384, %v5898
      %v5997 = vadd.f32 %v5385, %v5903
      %v5998 = vadd.f32 %v5386, %v5908
      %v5999 = vadd.f32 %v5387, %v5913
      %v6000 = vadd.f32 %v5388, %v5918
      %v6001 = vadd.f32 %v5389, %v5923
      %v6002 = vadd.f32 %v5390, %v5928
      %v6003 = vadd.f32 %v5391, %v5933
      %v6004 = vadd.f32 %v5392, %v5938
      %v6005 = vadd.f32 %v5393, %v5943
      %v6006 = vadd.f32 %v5394, %v5948
      %v6007 = vadd.f32 %v5395, %v5953
      %v6008 = vadd.f32 %v5396, %v5958
      %v6009 = vadd.f32 %v5397, %v5963
      %v6010 = vadd.f32 %v5398, %v5968
      %v6011 = vadd.f32 %v5399, %v5973
      %v6012 = vadd.f32 %v5400, %v5978
      %s6013 = scalar_lea.vmem %s6, 32
      %v6014 = vld [vmem:[%s6013] sm:$0xff]
      %v6016 = vsel %vm1672, %v5626, 0
      %v6019 = vsel %vm1672, %v5627, 0
      %v6022 = vsel %vm1672, %v5628, 0
      %v6025 = vsel %vm1672, %v5629, 0
      %v6028 = vsel %vm1672, %v5630, 0
      %v6031 = vsel %vm1672, %v5631, 0
      %v6034 = vsel %vm1672, %v5632, 0
      %v6037 = vsel %vm1672, %v5633, 0
      %v6040 = vsel %vm1672, %v5634, 0
      %v6043 = vsel %vm1672, %v5635, 0
      %v6046 = vsel %vm1672, %v5636, 0
      %v6049 = vsel %vm1672, %v5637, 0
      %v6052 = vsel %vm1672, %v5638, 0
      %v6055 = vsel %vm1672, %v5639, 0
      %v6058 = vsel %vm1672, %v5640, 0
      %v6061 = vsel %vm1672, %v5641, 0
      %v6064 = vsel %vm1672, %v5642, 0
      %v6067 = vsel %vm1672, %v5643, 0
      %v6070 = vsel %vm1672, %v5644, 0
      %v6073 = vsel %vm1672, %v5645, 0
      %v6076 = vsel %vm1672, %v5646, 0
      %v6079 = vsel %vm1672, %v5647, 0
      %v6082 = vsel %vm1672, %v5648, 0
      %v6085 = vsel %vm1672, %v5649, 0
      %v6088 = vsel %vm1672, %v5650, 0
      %v6091 = vsel %vm1672, %v5651, 0
      %v6094 = vsel %vm1672, %v5652, 0
      %v6097 = vsel %vm1672, %v5653, 0
      %v6100 = vsel %vm1672, %v5654, 0
      %v6103 = vsel %vm1672, %v5655, 0
      %v6106 = vsel %vm1672, %v5656, 0
      %v6109 = vsel %vm1672, %v5657, 0
      %6111 = vmatprep.subr.mxu0 0.0
      %6112 = vmatpush1.msra.mxu0 %v6014
      %6113 = vmatprep.subr.mxu0 0.0
      %6114 = vmatpush1.msra.mxu0 0.0
      %6115 = vmatprep.subr.mxu0 0.0
      %6116 = vmatpush1.msra.mxu0 0.0
      %6117 = vmatprep.subr.mxu0 0.0
      %6118 = vmatpush1.msra.mxu0 0.0
      %6119 = vmatprep.subr.mxu0 0.0
      %6120 = vmatpush1.msra.mxu0 0.0
      %6121 = vmatprep.subr.mxu0 0.0
      %6122 = vmatpush1.msra.mxu0 0.0
      %6123 = vmatprep.subr.mxu0 0.0
      %6124 = vmatpush1.msra.mxu0 0.0
      %6125 = vmatprep.subr.mxu0 0.0
      %6126 = vmatpush1.msra.mxu0 0.0
      %6127 = vmatprep.subr.mxu0 0.0
      %6128 = vmatpush1.msra.mxu0 0.0
      %6129 = vmatprep.subr.mxu0 0.0
      %6130 = vmatpush1.msra.mxu0 0.0
      %6131 = vmatprep.subr.mxu0 0.0
      %6132 = vmatpush1.msra.mxu0 0.0
      %6133 = vmatprep.subr.mxu0 0.0
      %6134 = vmatpush1.msra.mxu0 0.0
      %6135 = vmatprep.subr.mxu0 0.0
      %6136 = vmatpush1.msra.mxu0 0.0
      %6137 = vmatprep.subr.mxu0 0.0
      %6138 = vmatpush1.msra.mxu0 0.0
      %6139 = vmatprep.subr.mxu0 0.0
      %6140 = vmatpush1.msra.mxu0 0.0
      %6141 = vmatprep.subr.mxu0 0.0
      %6142 = vmatpush1.msra.mxu0 0.0
      %6143 = vmatprep.subr.mxu0 0.0
      %6144 = vmatpush1.msra.mxu0 0.0
      %6145 = vmatprep.subr.mxu0 0.0
      %6146 = vmatpush1.msra.mxu0 0.0
      %6147 = vmatprep.subr.mxu0 0.0
      %6148 = vmatpush1.msra.mxu0 0.0
      %6149 = vmatprep.subr.mxu0 0.0
      %6150 = vmatpush1.msra.mxu0 0.0
      %6151 = vmatprep.subr.mxu0 0.0
      %6152 = vmatpush1.msra.mxu0 0.0
      %6153 = vmatprep.subr.mxu0 0.0
      %6154 = vmatpush1.msra.mxu0 0.0
      %6155 = vmatprep.subr.mxu0 0.0
      %6156 = vmatpush1.msra.mxu0 0.0
      %6157 = vmatprep.subr.mxu0 0.0
      %6158 = vmatpush1.msra.mxu0 0.0
      %6159 = vmatprep.subr.mxu0 0.0
      %6160 = vmatpush1.msra.mxu0 0.0
      %6161 = vmatprep.subr.mxu0 0.0
      %6162 = vmatpush1.msra.mxu0 0.0
      %6163 = vmatprep.subr.mxu0 0.0
      %6164 = vmatpush1.msra.mxu0 0.0
      %6165 = vmatprep.subr.mxu0 0.0
      %6166 = vmatpush1.msra.mxu0 0.0
      %6167 = vmatprep.subr.mxu0 0.0
      %6168 = vmatpush1.msra.mxu0 0.0
      %6169 = vmatprep.subr.mxu0 0.0
      %6170 = vmatpush1.msra.mxu0 0.0
      %6171 = vmatprep.subr.mxu0 0.0
      %6172 = vmatpush1.msra.mxu0 0.0
      %6173 = vmatprep.subr.mxu0 0.0
      %6174 = vmatpush1.msra.mxu0 0.0
      %6175 = vmatprep.mubr.f32.mxu0 0.0
      %6176 = vmatmul.mubr.f32.gmra.mrb[0].mxu0 %v6016
      %v6177 = vpop.f32.mrb[0].mxu0
      %v6178 = vadd.f32 0.0, %v6177
      %v6179 = vpop.f32.mrb[0].mxu0
      %6180 = vmatprep.mubr.f32.mxu0 0.0
      %6181 = vmatmul.mubr.f32.gmra.mrb[0].mxu0 %v6019
      %v6182 = vpop.f32.mrb[0].mxu0
      %v6183 = vadd.f32 0.0, %v6182
      %v6184 = vpop.f32.mrb[0].mxu0
      %6185 = vmatprep.mubr.f32.mxu0 0.0
      %6186 = vmatmul.mubr.f32.gmra.mrb[0].mxu0 %v6022
      %v6187 = vpop.f32.mrb[0].mxu0
      %v6188 = vadd.f32 0.0, %v6187
      %v6189 = vpop.f32.mrb[0].mxu0
      %6190 = vmatprep.mubr.f32.mxu0 0.0
      %6191 = vmatmul.mubr.f32.gmra.mrb[0].mxu0 %v6025
      %v6192 = vpop.f32.mrb[0].mxu0
      %v6193 = vadd.f32 0.0, %v6192
      %v6194 = vpop.f32.mrb[0].mxu0
      %6195 = vmatprep.mubr.f32.mxu0 0.0
      %6196 = vmatmul.mubr.f32.gmra.mrb[0].mxu0 %v6028
      %v6197 = vpop.f32.mrb[0].mxu0
      %v6198 = vadd.f32 0.0, %v6197
      %v6199 = vpop.f32.mrb[0].mxu0
      %6200 = vmatprep.mubr.f32.mxu0 0.0
      %6201 = vmatmul.mubr.f32.gmra.mrb[0].mxu0 %v6031
      %v6202 = vpop.f32.mrb[0].mxu0
      %v6203 = vadd.f32 0.0, %v6202
      %v6204 = vpop.f32.mrb[0].mxu0
      %6205 = vmatprep.mubr.f32.mxu0 0.0
      %6206 = vmatmul.mubr.f32.gmra.mrb[0].mxu0 %v6034
      %v6207 = vpop.f32.mrb[0].mxu0
      %v6208 = vadd.f32 0.0, %v6207
      %v6209 = vpop.f32.mrb[0].mxu0
      %6210 = vmatprep.mubr.f32.mxu0 0.0
      %6211 = vmatmul.mubr.f32.gmra.mrb[0].mxu0 %v6037
      %v6212 = vpop.f32.mrb[0].mxu0
      %v6213 = vadd.f32 0.0, %v6212
      %v6214 = vpop.f32.mrb[0].mxu0
      %6215 = vmatprep.mubr.f32.mxu0 0.0
      %6216 = vmatmul.mubr.f32.gmra.mrb[0].mxu0 %v6040
      %v6217 = vpop.f32.mrb[0].mxu0
      %v6218 = vadd.f32 0.0, %v6217
      %v6219 = vpop.f32.mrb[0].mxu0
      %6220 = vmatprep.mubr.f32.mxu0 0.0
      %6221 = vmatmul.mubr.f32.gmra.mrb[0].mxu0 %v6043
      %v6222 = vpop.f32.mrb[0].mxu0
      %v6223 = vadd.f32 0.0, %v6222
      %v6224 = vpop.f32.mrb[0].mxu0
      %6225 = vmatprep.mubr.f32.mxu0 0.0
      %6226 = vmatmul.mubr.f32.gmra.mrb[0].mxu0 %v6046
      %v6227 = vpop.f32.mrb[0].mxu0
      %v6228 = vadd.f32 0.0, %v6227
      %v6229 = vpop.f32.mrb[0].mxu0
      %6230 = vmatprep.mubr.f32.mxu0 0.0
      %6231 = vmatmul.mubr.f32.gmra.mrb[0].mxu0 %v6049
      %v6232 = vpop.f32.mrb[0].mxu0
      %v6233 = vadd.f32 0.0, %v6232
      %v6234 = vpop.f32.mrb[0].mxu0
      %6235 = vmatprep.mubr.f32.mxu0 0.0
      %6236 = vmatmul.mubr.f32.gmra.mrb[0].mxu0 %v6052
      %v6237 = vpop.f32.mrb[0].mxu0
      %v6238 = vadd.f32 0.0, %v6237
      %v6239 = vpop.f32.mrb[0].mxu0
      %6240 = vmatprep.mubr.f32.mxu0 0.0
      %6241 = vmatmul.mubr.f32.gmra.mrb[0].mxu0 %v6055
      %v6242 = vpop.f32.mrb[0].mxu0
      %v6243 = vadd.f32 0.0, %v6242
      %v6244 = vpop.f32.mrb[0].mxu0
      %6245 = vmatprep.mubr.f32.mxu0 0.0
      %6246 = vmatmul.mubr.f32.gmra.mrb[0].mxu0 %v6058
      %v6247 = vpop.f32.mrb[0].mxu0
      %v6248 = vadd.f32 0.0, %v6247
      %v6249 = vpop.f32.mrb[0].mxu0
      %6250 = vmatprep.mubr.f32.mxu0 0.0
      %6251 = vmatmul.mubr.f32.gmra.mrb[0].mxu0 %v6061
      %v6252 = vpop.f32.mrb[0].mxu0
      %v6253 = vadd.f32 0.0, %v6252
      %v6254 = vpop.f32.mrb[0].mxu0
      %6255 = vmatprep.mubr.f32.mxu0 0.0
      %6256 = vmatmul.mubr.f32.gmra.mrb[0].mxu0 %v6064
      %v6257 = vpop.f32.mrb[0].mxu0
      %v6258 = vadd.f32 0.0, %v6257
      %v6259 = vpop.f32.mrb[0].mxu0
      %6260 = vmatprep.mubr.f32.mxu0 0.0
      %6261 = vmatmul.mubr.f32.gmra.mrb[0].mxu0 %v6067
      %v6262 = vpop.f32.mrb[0].mxu0
      %v6263 = vadd.f32 0.0, %v6262
      %v6264 = vpop.f32.mrb[0].mxu0
      %6265 = vmatprep.mubr.f32.mxu0 0.0
      %6266 = vmatmul.mubr.f32.gmra.mrb[0].mxu0 %v6070
      %v6267 = vpop.f32.mrb[0].mxu0
      %v6268 = vadd.f32 0.0, %v6267
      %v6269 = vpop.f32.mrb[0].mxu0
      %6270 = vmatprep.mubr.f32.mxu0 0.0
      %6271 = vmatmul.mubr.f32.gmra.mrb[0].mxu0 %v6073
      %v6272 = vpop.f32.mrb[0].mxu0
      %v6273 = vadd.f32 0.0, %v6272
      %v6274 = vpop.f32.mrb[0].mxu0
      %6275 = vmatprep.mubr.f32.mxu0 0.0
      %6276 = vmatmul.mubr.f32.gmra.mrb[0].mxu0 %v6076
      %v6277 = vpop.f32.mrb[0].mxu0
      %v6278 = vadd.f32 0.0, %v6277
      %v6279 = vpop.f32.mrb[0].mxu0
      %6280 = vmatprep.mubr.f32.mxu0 0.0
      %6281 = vmatmul.mubr.f32.gmra.mrb[0].mxu0 %v6079
      %v6282 = vpop.f32.mrb[0].mxu0
      %v6283 = vadd.f32 0.0, %v6282
      %v6284 = vpop.f32.mrb[0].mxu0
      %6285 = vmatprep.mubr.f32.mxu0 0.0
      %6286 = vmatmul.mubr.f32.gmra.mrb[0].mxu0 %v6082
      %v6287 = vpop.f32.mrb[0].mxu0
      %v6288 = vadd.f32 0.0, %v6287
      %v6289 = vpop.f32.mrb[0].mxu0
      %6290 = vmatprep.mubr.f32.mxu0 0.0
      %6291 = vmatmul.mubr.f32.gmra.mrb[0].mxu0 %v6085
      %v6292 = vpop.f32.mrb[0].mxu0
      %v6293 = vadd.f32 0.0, %v6292
      %v6294 = vpop.f32.mrb[0].mxu0
      %6295 = vmatprep.mubr.f32.mxu0 0.0
      %6296 = vmatmul.mubr.f32.gmra.mrb[0].mxu0 %v6088
      %v6297 = vpop.f32.mrb[0].mxu0
      %v6298 = vadd.f32 0.0, %v6297
      %v6299 = vpop.f32.mrb[0].mxu0
      %6300 = vmatprep.mubr.f32.mxu0 0.0
      %6301 = vmatmul.mubr.f32.gmra.mrb[0].mxu0 %v6091
      %v6302 = vpop.f32.mrb[0].mxu0
      %v6303 = vadd.f32 0.0, %v6302
      %v6304 = vpop.f32.mrb[0].mxu0
      %6305 = vmatprep.mubr.f32.mxu0 0.0
      %6306 = vmatmul.mubr.f32.gmra.mrb[0].mxu0 %v6094
      %v6307 = vpop.f32.mrb[0].mxu0
      %v6308 = vadd.f32 0.0, %v6307
      %v6309 = vpop.f32.mrb[0].mxu0
      %6310 = vmatprep.mubr.f32.mxu0 0.0
      %6311 = vmatmul.mubr.f32.gmra.mrb[0].mxu0 %v6097
      %v6312 = vpop.f32.mrb[0].mxu0
      %v6313 = vadd.f32 0.0, %v6312
      %v6314 = vpop.f32.mrb[0].mxu0
      %6315 = vmatprep.mubr.f32.mxu0 0.0
      %6316 = vmatmul.mubr.f32.gmra.mrb[0].mxu0 %v6100
      %v6317 = vpop.f32.mrb[0].mxu0
      %v6318 = vadd.f32 0.0, %v6317
      %v6319 = vpop.f32.mrb[0].mxu0
      %6320 = vmatprep.mubr.f32.mxu0 0.0
      %6321 = vmatmul.mubr.f32.gmra.mrb[0].mxu0 %v6103
      %v6322 = vpop.f32.mrb[0].mxu0
      %v6323 = vadd.f32 0.0, %v6322
      %v6324 = vpop.f32.mrb[0].mxu0
      %6325 = vmatprep.mubr.f32.mxu0 0.0
      %6326 = vmatmul.mubr.f32.gmra.mrb[0].mxu0 %v6106
      %v6327 = vpop.f32.mrb[0].mxu0
      %v6328 = vadd.f32 0.0, %v6327
      %v6329 = vpop.f32.mrb[0].mxu0
      %6330 = vmatprep.mubr.f32.mxu0 0.0
      %6331 = vmatmul.mubr.f32.gmra.mrb[0].mxu0 %v6109
      %v6332 = vpop.f32.mrb[0].mxu0
      %v6333 = vadd.f32 0.0, %v6332
      %v6334 = vpop.f32.mrb[0].mxu0
      %6335 = vdwg.mxu0
      %v6336 = vadd.f32 %v5981, %v6178
      %v6337 = vadd.f32 %v5982, %v6183
      %v6338 = vadd.f32 %v5983, %v6188
      %v6339 = vadd.f32 %v5984, %v6193
      %v6340 = vadd.f32 %v5985, %v6198
      %v6341 = vadd.f32 %v5986, %v6203
      %v6342 = vadd.f32 %v5987, %v6208
      %v6343 = vadd.f32 %v5988, %v6213
      %v6344 = vadd.f32 %v5989, %v6218
      %v6345 = vadd.f32 %v5990, %v6223
      %v6346 = vadd.f32 %v5991, %v6228
      %v6347 = vadd.f32 %v5992, %v6233
      %v6348 = vadd.f32 %v5993, %v6238
      %v6349 = vadd.f32 %v5994, %v6243
      %v6350 = vadd.f32 %v5995, %v6248
      %v6351 = vadd.f32 %v5996, %v6253
      %v6352 = vadd.f32 %v5997, %v6258
      %v6353 = vadd.f32 %v5998, %v6263
      %v6354 = vadd.f32 %v5999, %v6268
      %v6355 = vadd.f32 %v6000, %v6273
      %v6356 = vadd.f32 %v6001, %v6278
      %v6357 = vadd.f32 %v6002, %v6283
      %v6358 = vadd.f32 %v6003, %v6288
      %v6359 = vadd.f32 %v6004, %v6293
      %v6360 = vadd.f32 %v6005, %v6298
      %v6361 = vadd.f32 %v6006, %v6303
      %v6362 = vadd.f32 %v6007, %v6308
      %v6363 = vadd.f32 %v6008, %v6313
      %v6364 = vadd.f32 %v6009, %v6318
      %v6365 = vadd.f32 %v6010, %v6323
      %v6366 = vadd.f32 %v6011, %v6328
      %v6367 = vadd.f32 %v6012, %v6333
      %s6368 = scalar_lea.vmem %s7, 1280
      %v6369 = vld [vmem:[%s6368] sm:$0xff]
      %v6370 = vld [vmem:[%s6368 + $0x8] sm:$0xff]
      %v6371 = vld [vmem:[%s6368 + $0x10] sm:$0xff]
      %v6372 = vld [vmem:[%s6368 + $0x18] sm:$0xff]
      %v6373 = vld [vmem:[%s6368 + $0x20] sm:$0xff]
      %v6374 = vld [vmem:[%s6368 + $0x28] sm:$0xff]
      %v6375 = vld [vmem:[%s6368 + $0x30] sm:$0xff]
      %v6376 = vld [vmem:[%s6368 + $0x38] sm:$0xff]
      %v6377 = vld [vmem:[%s6368 + $0x40] sm:$0xff]
      %v6378 = vld [vmem:[%s6368 + $0x48] sm:$0xff]
      %v6379 = vld [vmem:[%s6368 + $0x50] sm:$0xff]
      %v6380 = vld [vmem:[%s6368 + $0x58] sm:$0xff]
      %v6381 = vld [vmem:[%s6368 + $0x60] sm:$0xff]
      %v6382 = vld [vmem:[%s6368 + $0x68] sm:$0xff]
      %v6383 = vld [vmem:[%s6368 + $0x70] sm:$0xff]
      %v6384 = vld [vmem:[%s6368 + $0x78] sm:$0xff]
      %v6385 = vld [vmem:[%s6368 + $0x80] sm:$0xff]
      %v6386 = vld [vmem:[%s6368 + $0x88] sm:$0xff]
      %v6387 = vld [vmem:[%s6368 + $0x90] sm:$0xff]
      %v6388 = vld [vmem:[%s6368 + $0x98] sm:$0xff]
      %v6389 = vld [vmem:[%s6368 + $0xa0] sm:$0xff]
      %v6390 = vld [vmem:[%s6368 + $0xa8] sm:$0xff]
      %v6391 = vld [vmem:[%s6368 + $0xb0] sm:$0xff]
      %v6392 = vld [vmem:[%s6368 + $0xb8] sm:$0xff]
      %v6393 = vld [vmem:[%s6368 + $0xc0] sm:$0xff]
      %v6394 = vld [vmem:[%s6368 + $0xc8] sm:$0xff]
      %v6395 = vld [vmem:[%s6368 + $0xd0] sm:$0xff]
      %v6396 = vld [vmem:[%s6368 + $0xd8] sm:$0xff]
      %v6397 = vld [vmem:[%s6368 + $0xe0] sm:$0xff]
      %v6398 = vld [vmem:[%s6368 + $0xe8] sm:$0xff]
      %v6399 = vld [vmem:[%s6368 + $0xf0] sm:$0xff]
      %v6400 = vld [vmem:[%s6368 + $0xf8] sm:$0xff]
      %v6401 = vrot.slane %v817, 1
      %v6402 = vsel %vm3302, %v3362, %v6401
      %v6405 = vsel %vm3302, %v6401, 0.0
      %6407 = vset.pattern.permute.xlu0 0
      %6408 = vperm.xlu0 %6407, %v6369
      %v6409 = vpop.permute.xlu0 %6408
      %6412 = vset.pattern.permute.xlu0 0
      %6413 = vperm.xlu0 %6412, %v6370
      %v6414 = vpop.permute.xlu0 %6413
      %6417 = vset.pattern.permute.xlu0 0
      %6418 = vperm.xlu0 %6417, %v6371
      %v6419 = vpop.permute.xlu0 %6418
      %6422 = vset.pattern.permute.xlu0 0
      %6423 = vperm.xlu0 %6422, %v6372
      %v6424 = vpop.permute.xlu0 %6423
      %6427 = vset.pattern.permute.xlu0 0
      %6428 = vperm.xlu0 %6427, %v6373
      %v6429 = vpop.permute.xlu0 %6428
      %6432 = vset.pattern.permute.xlu0 0
      %6433 = vperm.xlu0 %6432, %v6374
      %v6434 = vpop.permute.xlu0 %6433
      %6437 = vset.pattern.permute.xlu0 0
      %6438 = vperm.xlu0 %6437, %v6375
      %v6439 = vpop.permute.xlu0 %6438
      %6442 = vset.pattern.permute.xlu0 0
      %6443 = vperm.xlu0 %6442, %v6376
      %v6444 = vpop.permute.xlu0 %6443
      %6447 = vset.pattern.permute.xlu0 0
      %6448 = vperm.xlu0 %6447, %v6377
      %v6449 = vpop.permute.xlu0 %6448
      %6452 = vset.pattern.permute.xlu0 0
      %6453 = vperm.xlu0 %6452, %v6378
      %v6454 = vpop.permute.xlu0 %6453
      %6457 = vset.pattern.permute.xlu0 0
      %6458 = vperm.xlu0 %6457, %v6379
      %v6459 = vpop.permute.xlu0 %6458
      %6462 = vset.pattern.permute.xlu0 0
      %6463 = vperm.xlu0 %6462, %v6380
      %v6464 = vpop.permute.xlu0 %6463
      %6467 = vset.pattern.permute.xlu0 0
      %6468 = vperm.xlu0 %6467, %v6381
      %v6469 = vpop.permute.xlu0 %6468
      %6472 = vset.pattern.permute.xlu0 0
      %6473 = vperm.xlu0 %6472, %v6382
      %v6474 = vpop.permute.xlu0 %6473
      %6477 = vset.pattern.permute.xlu0 0
      %6478 = vperm.xlu0 %6477, %v6383
      %v6479 = vpop.permute.xlu0 %6478
      %6482 = vset.pattern.permute.xlu0 0
      %6483 = vperm.xlu0 %6482, %v6384
      %v6484 = vpop.permute.xlu0 %6483
      %6487 = vset.pattern.permute.xlu0 0
      %6488 = vperm.xlu0 %6487, %v6385
      %v6489 = vpop.permute.xlu0 %6488
      %6492 = vset.pattern.permute.xlu0 0
      %6493 = vperm.xlu0 %6492, %v6386
      %v6494 = vpop.permute.xlu0 %6493
      %6497 = vset.pattern.permute.xlu0 0
      %6498 = vperm.xlu0 %6497, %v6387
      %v6499 = vpop.permute.xlu0 %6498
      %6502 = vset.pattern.permute.xlu0 0
      %6503 = vperm.xlu0 %6502, %v6388
      %v6504 = vpop.permute.xlu0 %6503
      %6507 = vset.pattern.permute.xlu0 0
      %6508 = vperm.xlu0 %6507, %v6389
      %v6509 = vpop.permute.xlu0 %6508
      %6512 = vset.pattern.permute.xlu0 0
      %6513 = vperm.xlu0 %6512, %v6390
      %v6514 = vpop.permute.xlu0 %6513
      %6517 = vset.pattern.permute.xlu0 0
      %6518 = vperm.xlu0 %6517, %v6391
      %v6519 = vpop.permute.xlu0 %6518
      %6522 = vset.pattern.permute.xlu0 0
      %6523 = vperm.xlu0 %6522, %v6392
      %v6524 = vpop.permute.xlu0 %6523
      %6527 = vset.pattern.permute.xlu0 0
      %6528 = vperm.xlu0 %6527, %v6393
      %v6529 = vpop.permute.xlu0 %6528
      %6532 = vset.pattern.permute.xlu0 0
      %6533 = vperm.xlu0 %6532, %v6394
      %v6534 = vpop.permute.xlu0 %6533
      %6537 = vset.pattern.permute.xlu0 0
      %6538 = vperm.xlu0 %6537, %v6395
      %v6539 = vpop.permute.xlu0 %6538
      %6542 = vset.pattern.permute.xlu0 0
      %6543 = vperm.xlu0 %6542, %v6396
      %v6544 = vpop.permute.xlu0 %6543
      %6547 = vset.pattern.permute.xlu0 0
      %6548 = vperm.xlu0 %6547, %v6397
      %v6549 = vpop.permute.xlu0 %6548
      %6552 = vset.pattern.permute.xlu0 0
      %6553 = vperm.xlu0 %6552, %v6398
      %v6554 = vpop.permute.xlu0 %6553
      %6557 = vset.pattern.permute.xlu0 0
      %6558 = vperm.xlu0 %6557, %v6399
      %v6559 = vpop.permute.xlu0 %6558
      %6562 = vset.pattern.permute.xlu0 0
      %6563 = vperm.xlu0 %6562, %v6400
      %v6564 = vpop.permute.xlu0 %6563
      %v6566 = vmul.f32 %v3305, %v6409
      %v6567 = vmul.f32 %v3307, %v6414
      %v6568 = vmul.f32 %v3309, %v6419
      %v6569 = vmul.f32 %v3311, %v6424
      %v6570 = vmul.f32 %v3313, %v6429
      %v6571 = vmul.f32 %v3315, %v6434
      %v6572 = vmul.f32 %v3317, %v6439
      %v6573 = vmul.f32 %v3319, %v6444
      %v6574 = vmul.f32 %v3321, %v6449
      %v6575 = vmul.f32 %v3323, %v6454
      %v6576 = vmul.f32 %v3325, %v6459
      %v6577 = vmul.f32 %v3327, %v6464
      %v6578 = vmul.f32 %v3329, %v6469
      %v6579 = vmul.f32 %v3331, %v6474
      %v6580 = vmul.f32 %v3333, %v6479
      %v6581 = vmul.f32 %v3335, %v6484
      %v6582 = vmul.f32 %v3337, %v6489
      %v6583 = vmul.f32 %v3339, %v6494
      %v6584 = vmul.f32 %v3341, %v6499
      %v6585 = vmul.f32 %v3343, %v6504
      %v6586 = vmul.f32 %v3345, %v6509
      %v6587 = vmul.f32 %v3347, %v6514
      %v6588 = vmul.f32 %v3349, %v6519
      %v6589 = vmul.f32 %v3351, %v6524
      %v6590 = vmul.f32 %v3353, %v6529
      %v6591 = vmul.f32 %v3355, %v6534
      %v6592 = vmul.f32 %v3357, %v6539
      %v6593 = vmul.f32 %v3359, %v6544
      %v6594 = vmul.f32 %v3361, %v6549
      %v6595 = vmul.f32 %v3363, %v6554
      %v6596 = vmul.f32 %v6402, %v6559
      %v6597 = vmul.f32 %v6405, %v6564
      %v6598 = vrot.slane %v1172, 1
      %v6599 = vsel %vm3302, %v3648, %v6598
      %v6602 = vsel %vm3302, %v6598, 0.0
      %v6603 = vmul.f32 %v3591, %v6409
      %v6604 = vmul.f32 %v3593, %v6414
      %v6605 = vmul.f32 %v3595, %v6419
      %v6606 = vmul.f32 %v3597, %v6424
      %v6607 = vmul.f32 %v3599, %v6429
      %v6608 = vmul.f32 %v3601, %v6434
      %v6609 = vmul.f32 %v3603, %v6439
      %v6610 = vmul.f32 %v3605, %v6444
      %v6611 = vmul.f32 %v3607, %v6449
      %v6612 = vmul.f32 %v3609, %v6454
      %v6613 = vmul.f32 %v3611, %v6459
      %v6614 = vmul.f32 %v3613, %v6464
      %v6615 = vmul.f32 %v3615, %v6469
      %v6616 = vmul.f32 %v3617, %v6474
      %v6617 = vmul.f32 %v3619, %v6479
      %v6618 = vmul.f32 %v3621, %v6484
      %v6619 = vmul.f32 %v3623, %v6489
      %v6620 = vmul.f32 %v3625, %v6494
      %v6621 = vmul.f32 %v3627, %v6499
      %v6622 = vmul.f32 %v3629, %v6504
      %v6623 = vmul.f32 %v3631, %v6509
      %v6624 = vmul.f32 %v3633, %v6514
      %v6625 = vmul.f32 %v3635, %v6519
      %v6626 = vmul.f32 %v3637, %v6524
      %v6627 = vmul.f32 %v3639, %v6529
      %v6628 = vmul.f32 %v3641, %v6534
      %v6629 = vmul.f32 %v3643, %v6539
      %v6630 = vmul.f32 %v3645, %v6544
      %v6631 = vmul.f32 %v3647, %v6549
      %v6632 = vmul.f32 %v3649, %v6554
      %v6633 = vmul.f32 %v6599, %v6559
      %v6634 = vmul.f32 %v6602, %v6564
      %s6635 = scalar_lea.vmem %s5, 40
      %v6636 = vld [vmem:[%s6635] sm:$0xff]
      %v6638 = vsel %vm1672, %v6566, 0
      %v6641 = vsel %vm1672, %v6567, 0
      %v6644 = vsel %vm1672, %v6568, 0
      %v6647 = vsel %vm1672, %v6569, 0
      %v6650 = vsel %vm1672, %v6570, 0
      %v6653 = vsel %vm1672, %v6571, 0
      %v6656 = vsel %vm1672, %v6572, 0
      %v6659 = vsel %vm1672, %v6573, 0
      %v6662 = vsel %vm1672, %v6574, 0
      %v6665 = vsel %vm1672, %v6575, 0
      %v6668 = vsel %vm1672, %v6576, 0
      %v6671 = vsel %vm1672, %v6577, 0
      %v6674 = vsel %vm1672, %v6578, 0
      %v6677 = vsel %vm1672, %v6579, 0
      %v6680 = vsel %vm1672, %v6580, 0
      %v6683 = vsel %vm1672, %v6581, 0
      %v6686 = vsel %vm1672, %v6582, 0
      %v6689 = vsel %vm1672, %v6583, 0
      %v6692 = vsel %vm1672, %v6584, 0
      %v6695 = vsel %vm1672, %v6585, 0
      %v6698 = vsel %vm1672, %v6586, 0
      %v6701 = vsel %vm1672, %v6587, 0
      %v6704 = vsel %vm1672, %v6588, 0
      %v6707 = vsel %vm1672, %v6589, 0
      %v6710 = vsel %vm1672, %v6590, 0
      %v6713 = vsel %vm1672, %v6591, 0
      %v6716 = vsel %vm1672, %v6592, 0
      %v6719 = vsel %vm1672, %v6593, 0
      %v6722 = vsel %vm1672, %v6594, 0
      %v6725 = vsel %vm1672, %v6595, 0
      %v6728 = vsel %vm1672, %v6596, 0
      %v6731 = vsel %vm1672, %v6597, 0
      %6733 = vmatprep.subr.mxu0 0.0
      %6734 = vmatpush1.msra.mxu0 %v6636
      %6735 = vmatprep.subr.mxu0 0.0
      %6736 = vmatpush1.msra.mxu0 0.0
      %6737 = vmatprep.subr.mxu0 0.0
      %6738 = vmatpush1.msra.mxu0 0.0
      %6739 = vmatprep.subr.mxu0 0.0
      %6740 = vmatpush1.msra.mxu0 0.0
      %6741 = vmatprep.subr.mxu0 0.0
      %6742 = vmatpush1.msra.mxu0 0.0
      %6743 = vmatprep.subr.mxu0 0.0
      %6744 = vmatpush1.msra.mxu0 0.0
      %6745 = vmatprep.subr.mxu0 0.0
      %6746 = vmatpush1.msra.mxu0 0.0
      %6747 = vmatprep.subr.mxu0 0.0
      %6748 = vmatpush1.msra.mxu0 0.0
      %6749 = vmatprep.subr.mxu0 0.0
      %6750 = vmatpush1.msra.mxu0 0.0
      %6751 = vmatprep.subr.mxu0 0.0
      %6752 = vmatpush1.msra.mxu0 0.0
      %6753 = vmatprep.subr.mxu0 0.0
      %6754 = vmatpush1.msra.mxu0 0.0
      %6755 = vmatprep.subr.mxu0 0.0
      %6756 = vmatpush1.msra.mxu0 0.0
      %6757 = vmatprep.subr.mxu0 0.0
      %6758 = vmatpush1.msra.mxu0 0.0
      %6759 = vmatprep.subr.mxu0 0.0
      %6760 = vmatpush1.msra.mxu0 0.0
      %6761 = vmatprep.subr.mxu0 0.0
      %6762 = vmatpush1.msra.mxu0 0.0
      %6763 = vmatprep.subr.mxu0 0.0
      %6764 = vmatpush1.msra.mxu0 0.0
      %6765 = vmatprep.subr.mxu0 0.0
      %6766 = vmatpush1.msra.mxu0 0.0
      %6767 = vmatprep.subr.mxu0 0.0
      %6768 = vmatpush1.msra.mxu0 0.0
      %6769 = vmatprep.subr.mxu0 0.0
      %6770 = vmatpush1.msra.mxu0 0.0
      %6771 = vmatprep.subr.mxu0 0.0
      %6772 = vmatpush1.msra.mxu0 0.0
      %6773 = vmatprep.subr.mxu0 0.0
      %6774 = vmatpush1.msra.mxu0 0.0
      %6775 = vmatprep.subr.mxu0 0.0
      %6776 = vmatpush1.msra.mxu0 0.0
      %6777 = vmatprep.subr.mxu0 0.0
      %6778 = vmatpush1.msra.mxu0 0.0
      %6779 = vmatprep.subr.mxu0 0.0
      %6780 = vmatpush1.msra.mxu0 0.0
      %6781 = vmatprep.subr.mxu0 0.0
      %6782 = vmatpush1.msra.mxu0 0.0
      %6783 = vmatprep.subr.mxu0 0.0
      %6784 = vmatpush1.msra.mxu0 0.0
      %6785 = vmatprep.subr.mxu0 0.0
      %6786 = vmatpush1.msra.mxu0 0.0
      %6787 = vmatprep.subr.mxu0 0.0
      %6788 = vmatpush1.msra.mxu0 0.0
      %6789 = vmatprep.subr.mxu0 0.0
      %6790 = vmatpush1.msra.mxu0 0.0
      %6791 = vmatprep.subr.mxu0 0.0
      %6792 = vmatpush1.msra.mxu0 0.0
      %6793 = vmatprep.subr.mxu0 0.0
      %6794 = vmatpush1.msra.mxu0 0.0
      %6795 = vmatprep.subr.mxu0 0.0
      %6796 = vmatpush1.msra.mxu0 0.0
      %6797 = vmatprep.mubr.f32.mxu0 0.0
      %6798 = vmatmul.mubr.f32.gmra.mrb[0].mxu0 %v6638
      %v6799 = vpop.f32.mrb[0].mxu0
      %v6800 = vadd.f32 0.0, %v6799
      %v6801 = vpop.f32.mrb[0].mxu0
      %6802 = vmatprep.mubr.f32.mxu0 0.0
      %6803 = vmatmul.mubr.f32.gmra.mrb[0].mxu0 %v6641
      %v6804 = vpop.f32.mrb[0].mxu0
      %v6805 = vadd.f32 0.0, %v6804
      %v6806 = vpop.f32.mrb[0].mxu0
      %6807 = vmatprep.mubr.f32.mxu0 0.0
      %6808 = vmatmul.mubr.f32.gmra.mrb[0].mxu0 %v6644
      %v6809 = vpop.f32.mrb[0].mxu0
      %v6810 = vadd.f32 0.0, %v6809
      %v6811 = vpop.f32.mrb[0].mxu0
      %6812 = vmatprep.mubr.f32.mxu0 0.0
      %6813 = vmatmul.mubr.f32.gmra.mrb[0].mxu0 %v6647
      %v6814 = vpop.f32.mrb[0].mxu0
      %v6815 = vadd.f32 0.0, %v6814
      %v6816 = vpop.f32.mrb[0].mxu0
      %6817 = vmatprep.mubr.f32.mxu0 0.0
      %6818 = vmatmul.mubr.f32.gmra.mrb[0].mxu0 %v6650
      %v6819 = vpop.f32.mrb[0].mxu0
      %v6820 = vadd.f32 0.0, %v6819
      %v6821 = vpop.f32.mrb[0].mxu0
      %6822 = vmatprep.mubr.f32.mxu0 0.0
      %6823 = vmatmul.mubr.f32.gmra.mrb[0].mxu0 %v6653
      %v6824 = vpop.f32.mrb[0].mxu0
      %v6825 = vadd.f32 0.0, %v6824
      %v6826 = vpop.f32.mrb[0].mxu0
      %6827 = vmatprep.mubr.f32.mxu0 0.0
      %6828 = vmatmul.mubr.f32.gmra.mrb[0].mxu0 %v6656
      %v6829 = vpop.f32.mrb[0].mxu0
      %v6830 = vadd.f32 0.0, %v6829
      %v6831 = vpop.f32.mrb[0].mxu0
      %6832 = vmatprep.mubr.f32.mxu0 0.0
      %6833 = vmatmul.mubr.f32.gmra.mrb[0].mxu0 %v6659
      %v6834 = vpop.f32.mrb[0].mxu0
      %v6835 = vadd.f32 0.0, %v6834
      %v6836 = vpop.f32.mrb[0].mxu0
      %6837 = vmatprep.mubr.f32.mxu0 0.0
      %6838 = vmatmul.mubr.f32.gmra.mrb[0].mxu0 %v6662
      %v6839 = vpop.f32.mrb[0].mxu0
      %v6840 = vadd.f32 0.0, %v6839
      %v6841 = vpop.f32.mrb[0].mxu0
      %6842 = vmatprep.mubr.f32.mxu0 0.0
      %6843 = vmatmul.mubr.f32.gmra.mrb[0].mxu0 %v6665
      %v6844 = vpop.f32.mrb[0].mxu0
      %v6845 = vadd.f32 0.0, %v6844
      %v6846 = vpop.f32.mrb[0].mxu0
      %6847 = vmatprep.mubr.f32.mxu0 0.0
      %6848 = vmatmul.mubr.f32.gmra.mrb[0].mxu0 %v6668
      %v6849 = vpop.f32.mrb[0].mxu0
      %v6850 = vadd.f32 0.0, %v6849
      %v6851 = vpop.f32.mrb[0].mxu0
      %6852 = vmatprep.mubr.f32.mxu0 0.0
      %6853 = vmatmul.mubr.f32.gmra.mrb[0].mxu0 %v6671
      %v6854 = vpop.f32.mrb[0].mxu0
      %v6855 = vadd.f32 0.0, %v6854
      %v6856 = vpop.f32.mrb[0].mxu0
      %6857 = vmatprep.mubr.f32.mxu0 0.0
      %6858 = vmatmul.mubr.f32.gmra.mrb[0].mxu0 %v6674
      %v6859 = vpop.f32.mrb[0].mxu0
      %v6860 = vadd.f32 0.0, %v6859
      %v6861 = vpop.f32.mrb[0].mxu0
      %6862 = vmatprep.mubr.f32.mxu0 0.0
      %6863 = vmatmul.mubr.f32.gmra.mrb[0].mxu0 %v6677
      %v6864 = vpop.f32.mrb[0].mxu0
      %v6865 = vadd.f32 0.0, %v6864
      %v6866 = vpop.f32.mrb[0].mxu0
      %6867 = vmatprep.mubr.f32.mxu0 0.0
      %6868 = vmatmul.mubr.f32.gmra.mrb[0].mxu0 %v6680
      %v6869 = vpop.f32.mrb[0].mxu0
      %v6870 = vadd.f32 0.0, %v6869
      %v6871 = vpop.f32.mrb[0].mxu0
      %6872 = vmatprep.mubr.f32.mxu0 0.0
      %6873 = vmatmul.mubr.f32.gmra.mrb[0].mxu0 %v6683
      %v6874 = vpop.f32.mrb[0].mxu0
      %v6875 = vadd.f32 0.0, %v6874
      %v6876 = vpop.f32.mrb[0].mxu0
      %6877 = vmatprep.mubr.f32.mxu0 0.0
      %6878 = vmatmul.mubr.f32.gmra.mrb[0].mxu0 %v6686
      %v6879 = vpop.f32.mrb[0].mxu0
      %v6880 = vadd.f32 0.0, %v6879
      %v6881 = vpop.f32.mrb[0].mxu0
      %6882 = vmatprep.mubr.f32.mxu0 0.0
      %6883 = vmatmul.mubr.f32.gmra.mrb[0].mxu0 %v6689
      %v6884 = vpop.f32.mrb[0].mxu0
      %v6885 = vadd.f32 0.0, %v6884
      %v6886 = vpop.f32.mrb[0].mxu0
      %6887 = vmatprep.mubr.f32.mxu0 0.0
      %6888 = vmatmul.mubr.f32.gmra.mrb[0].mxu0 %v6692
      %v6889 = vpop.f32.mrb[0].mxu0
      %v6890 = vadd.f32 0.0, %v6889
      %v6891 = vpop.f32.mrb[0].mxu0
      %6892 = vmatprep.mubr.f32.mxu0 0.0
      %6893 = vmatmul.mubr.f32.gmra.mrb[0].mxu0 %v6695
      %v6894 = vpop.f32.mrb[0].mxu0
      %v6895 = vadd.f32 0.0, %v6894
      %v6896 = vpop.f32.mrb[0].mxu0
      %6897 = vmatprep.mubr.f32.mxu0 0.0
      %6898 = vmatmul.mubr.f32.gmra.mrb[0].mxu0 %v6698
      %v6899 = vpop.f32.mrb[0].mxu0
      %v6900 = vadd.f32 0.0, %v6899
      %v6901 = vpop.f32.mrb[0].mxu0
      %6902 = vmatprep.mubr.f32.mxu0 0.0
      %6903 = vmatmul.mubr.f32.gmra.mrb[0].mxu0 %v6701
      %v6904 = vpop.f32.mrb[0].mxu0
      %v6905 = vadd.f32 0.0, %v6904
      %v6906 = vpop.f32.mrb[0].mxu0
      %6907 = vmatprep.mubr.f32.mxu0 0.0
      %6908 = vmatmul.mubr.f32.gmra.mrb[0].mxu0 %v6704
      %v6909 = vpop.f32.mrb[0].mxu0
      %v6910 = vadd.f32 0.0, %v6909
      %v6911 = vpop.f32.mrb[0].mxu0
      %6912 = vmatprep.mubr.f32.mxu0 0.0
      %6913 = vmatmul.mubr.f32.gmra.mrb[0].mxu0 %v6707
      %v6914 = vpop.f32.mrb[0].mxu0
      %v6915 = vadd.f32 0.0, %v6914
      %v6916 = vpop.f32.mrb[0].mxu0
      %6917 = vmatprep.mubr.f32.mxu0 0.0
      %6918 = vmatmul.mubr.f32.gmra.mrb[0].mxu0 %v6710
      %v6919 = vpop.f32.mrb[0].mxu0
      %v6920 = vadd.f32 0.0, %v6919
      %v6921 = vpop.f32.mrb[0].mxu0
      %6922 = vmatprep.mubr.f32.mxu0 0.0
      %6923 = vmatmul.mubr.f32.gmra.mrb[0].mxu0 %v6713
      %v6924 = vpop.f32.mrb[0].mxu0
      %v6925 = vadd.f32 0.0, %v6924
      %v6926 = vpop.f32.mrb[0].mxu0
      %6927 = vmatprep.mubr.f32.mxu0 0.0
      %6928 = vmatmul.mubr.f32.gmra.mrb[0].mxu0 %v6716
      %v6929 = vpop.f32.mrb[0].mxu0
      %v6930 = vadd.f32 0.0, %v6929
      %v6931 = vpop.f32.mrb[0].mxu0
      %6932 = vmatprep.mubr.f32.mxu0 0.0
      %6933 = vmatmul.mubr.f32.gmra.mrb[0].mxu0 %v6719
      %v6934 = vpop.f32.mrb[0].mxu0
      %v6935 = vadd.f32 0.0, %v6934
      %v6936 = vpop.f32.mrb[0].mxu0
      %6937 = vmatprep.mubr.f32.mxu0 0.0
      %6938 = vmatmul.mubr.f32.gmra.mrb[0].mxu0 %v6722
      %v6939 = vpop.f32.mrb[0].mxu0
      %v6940 = vadd.f32 0.0, %v6939
      %v6941 = vpop.f32.mrb[0].mxu0
      %6942 = vmatprep.mubr.f32.mxu0 0.0
      %6943 = vmatmul.mubr.f32.gmra.mrb[0].mxu0 %v6725
      %v6944 = vpop.f32.mrb[0].mxu0
      %v6945 = vadd.f32 0.0, %v6944
      %v6946 = vpop.f32.mrb[0].mxu0
      %6947 = vmatprep.mubr.f32.mxu0 0.0
      %6948 = vmatmul.mubr.f32.gmra.mrb[0].mxu0 %v6728
      %v6949 = vpop.f32.mrb[0].mxu0
      %v6950 = vadd.f32 0.0, %v6949
      %v6951 = vpop.f32.mrb[0].mxu0
      %6952 = vmatprep.mubr.f32.mxu0 0.0
      %6953 = vmatmul.mubr.f32.gmra.mrb[0].mxu0 %v6731
      %v6954 = vpop.f32.mrb[0].mxu0
      %v6955 = vadd.f32 0.0, %v6954
      %v6956 = vpop.f32.mrb[0].mxu0
      %6957 = vdwg.mxu0
      %v6958 = vadd.f32 %v6336, %v6800
      %v6959 = vadd.f32 %v6337, %v6805
      %v6960 = vadd.f32 %v6338, %v6810
      %v6961 = vadd.f32 %v6339, %v6815
      %v6962 = vadd.f32 %v6340, %v6820
      %v6963 = vadd.f32 %v6341, %v6825
      %v6964 = vadd.f32 %v6342, %v6830
      %v6965 = vadd.f32 %v6343, %v6835
      %v6966 = vadd.f32 %v6344, %v6840
      %v6967 = vadd.f32 %v6345, %v6845
      %v6968 = vadd.f32 %v6346, %v6850
      %v6969 = vadd.f32 %v6347, %v6855
      %v6970 = vadd.f32 %v6348, %v6860
      %v6971 = vadd.f32 %v6349, %v6865
      %v6972 = vadd.f32 %v6350, %v6870
      %v6973 = vadd.f32 %v6351, %v6875
      %v6974 = vadd.f32 %v6352, %v6880
      %v6975 = vadd.f32 %v6353, %v6885
      %v6976 = vadd.f32 %v6354, %v6890
      %v6977 = vadd.f32 %v6355, %v6895
      %v6978 = vadd.f32 %v6356, %v6900
      %v6979 = vadd.f32 %v6357, %v6905
      %v6980 = vadd.f32 %v6358, %v6910
      %v6981 = vadd.f32 %v6359, %v6915
      %v6982 = vadd.f32 %v6360, %v6920
      %v6983 = vadd.f32 %v6361, %v6925
      %v6984 = vadd.f32 %v6362, %v6930
      %v6985 = vadd.f32 %v6363, %v6935
      %v6986 = vadd.f32 %v6364, %v6940
      %v6987 = vadd.f32 %v6365, %v6945
      %v6988 = vadd.f32 %v6366, %v6950
      %v6989 = vadd.f32 %v6367, %v6955
      %s6990 = scalar_lea.vmem %s6, 40
      %v6991 = vld [vmem:[%s6990] sm:$0xff]
      %v6993 = vsel %vm1672, %v6603, 0
      %v6996 = vsel %vm1672, %v6604, 0
      %v6999 = vsel %vm1672, %v6605, 0
      %v7002 = vsel %vm1672, %v6606, 0
      %v7005 = vsel %vm1672, %v6607, 0
      %v7008 = vsel %vm1672, %v6608, 0
      %v7011 = vsel %vm1672, %v6609, 0
      %v7014 = vsel %vm1672, %v6610, 0
      %v7017 = vsel %vm1672, %v6611, 0
      %v7020 = vsel %vm1672, %v6612, 0
      %v7023 = vsel %vm1672, %v6613, 0
      %v7026 = vsel %vm1672, %v6614, 0
      %v7029 = vsel %vm1672, %v6615, 0
      %v7032 = vsel %vm1672, %v6616, 0
      %v7035 = vsel %vm1672, %v6617, 0
      %v7038 = vsel %vm1672, %v6618, 0
      %v7041 = vsel %vm1672, %v6619, 0
      %v7044 = vsel %vm1672, %v6620, 0
      %v7047 = vsel %vm1672, %v6621, 0
      %v7050 = vsel %vm1672, %v6622, 0
      %v7053 = vsel %vm1672, %v6623, 0
      %v7056 = vsel %vm1672, %v6624, 0
      %v7059 = vsel %vm1672, %v6625, 0
      %v7062 = vsel %vm1672, %v6626, 0
      %v7065 = vsel %vm1672, %v6627, 0
      %v7068 = vsel %vm1672, %v6628, 0
      %v7071 = vsel %vm1672, %v6629, 0
      %v7074 = vsel %vm1672, %v6630, 0
      %v7077 = vsel %vm1672, %v6631, 0
      %v7080 = vsel %vm1672, %v6632, 0
      %v7083 = vsel %vm1672, %v6633, 0
      %v7086 = vsel %vm1672, %v6634, 0
      %7088 = vmatprep.subr.mxu0 0.0
      %7089 = vmatpush1.msra.mxu0 %v6991
      %7090 = vmatprep.subr.mxu0 0.0
      %7091 = vmatpush1.msra.mxu0 0.0
      %7092 = vmatprep.subr.mxu0 0.0
      %7093 = vmatpush1.msra.mxu0 0.0
      %7094 = vmatprep.subr.mxu0 0.0
      %7095 = vmatpush1.msra.mxu0 0.0
      %7096 = vmatprep.subr.mxu0 0.0
      %7097 = vmatpush1.msra.mxu0 0.0
      %7098 = vmatprep.subr.mxu0 0.0
      %7099 = vmatpush1.msra.mxu0 0.0
      %7100 = vmatprep.subr.mxu0 0.0
      %7101 = vmatpush1.msra.mxu0 0.0
      %7102 = vmatprep.subr.mxu0 0.0
      %7103 = vmatpush1.msra.mxu0 0.0
      %7104 = vmatprep.subr.mxu0 0.0
      %7105 = vmatpush1.msra.mxu0 0.0
      %7106 = vmatprep.subr.mxu0 0.0
      %7107 = vmatpush1.msra.mxu0 0.0
      %7108 = vmatprep.subr.mxu0 0.0
      %7109 = vmatpush1.msra.mxu0 0.0
      %7110 = vmatprep.subr.mxu0 0.0
      %7111 = vmatpush1.msra.mxu0 0.0
      %7112 = vmatprep.subr.mxu0 0.0
      %7113 = vmatpush1.msra.mxu0 0.0
      %7114 = vmatprep.subr.mxu0 0.0
      %7115 = vmatpush1.msra.mxu0 0.0
      %7116 = vmatprep.subr.mxu0 0.0
      %7117 = vmatpush1.msra.mxu0 0.0
      %7118 = vmatprep.subr.mxu0 0.0
      %7119 = vmatpush1.msra.mxu0 0.0
      %7120 = vmatprep.subr.mxu0 0.0
      %7121 = vmatpush1.msra.mxu0 0.0
      %7122 = vmatprep.subr.mxu0 0.0
      %7123 = vmatpush1.msra.mxu0 0.0
      %7124 = vmatprep.subr.mxu0 0.0
      %7125 = vmatpush1.msra.mxu0 0.0
      %7126 = vmatprep.subr.mxu0 0.0
      %7127 = vmatpush1.msra.mxu0 0.0
      %7128 = vmatprep.subr.mxu0 0.0
      %7129 = vmatpush1.msra.mxu0 0.0
      %7130 = vmatprep.subr.mxu0 0.0
      %7131 = vmatpush1.msra.mxu0 0.0
      %7132 = vmatprep.subr.mxu0 0.0
      %7133 = vmatpush1.msra.mxu0 0.0
      %7134 = vmatprep.subr.mxu0 0.0
      %7135 = vmatpush1.msra.mxu0 0.0
      %7136 = vmatprep.subr.mxu0 0.0
      %7137 = vmatpush1.msra.mxu0 0.0
      %7138 = vmatprep.subr.mxu0 0.0
      %7139 = vmatpush1.msra.mxu0 0.0
      %7140 = vmatprep.subr.mxu0 0.0
      %7141 = vmatpush1.msra.mxu0 0.0
      %7142 = vmatprep.subr.mxu0 0.0
      %7143 = vmatpush1.msra.mxu0 0.0
      %7144 = vmatprep.subr.mxu0 0.0
      %7145 = vmatpush1.msra.mxu0 0.0
      %7146 = vmatprep.subr.mxu0 0.0
      %7147 = vmatpush1.msra.mxu0 0.0
      %7148 = vmatprep.subr.mxu0 0.0
      %7149 = vmatpush1.msra.mxu0 0.0
      %7150 = vmatprep.subr.mxu0 0.0
      %7151 = vmatpush1.msra.mxu0 0.0
      %7152 = vmatprep.mubr.f32.mxu0 0.0
      %7153 = vmatmul.mubr.f32.gmra.mrb[0].mxu0 %v6993
      %v7154 = vpop.f32.mrb[0].mxu0
      %v7155 = vadd.f32 0.0, %v7154
      %v7156 = vpop.f32.mrb[0].mxu0
      %7157 = vmatprep.mubr.f32.mxu0 0.0
      %7158 = vmatmul.mubr.f32.gmra.mrb[0].mxu0 %v6996
      %v7159 = vpop.f32.mrb[0].mxu0
      %v7160 = vadd.f32 0.0, %v7159
      %v7161 = vpop.f32.mrb[0].mxu0
      %7162 = vmatprep.mubr.f32.mxu0 0.0
      %7163 = vmatmul.mubr.f32.gmra.mrb[0].mxu0 %v6999
      %v7164 = vpop.f32.mrb[0].mxu0
      %v7165 = vadd.f32 0.0, %v7164
      %v7166 = vpop.f32.mrb[0].mxu0
      %7167 = vmatprep.mubr.f32.mxu0 0.0
      %7168 = vmatmul.mubr.f32.gmra.mrb[0].mxu0 %v7002
      %v7169 = vpop.f32.mrb[0].mxu0
      %v7170 = vadd.f32 0.0, %v7169
      %v7171 = vpop.f32.mrb[0].mxu0
      %7172 = vmatprep.mubr.f32.mxu0 0.0
      %7173 = vmatmul.mubr.f32.gmra.mrb[0].mxu0 %v7005
      %v7174 = vpop.f32.mrb[0].mxu0
      %v7175 = vadd.f32 0.0, %v7174
      %v7176 = vpop.f32.mrb[0].mxu0
      %7177 = vmatprep.mubr.f32.mxu0 0.0
      %7178 = vmatmul.mubr.f32.gmra.mrb[0].mxu0 %v7008
      %v7179 = vpop.f32.mrb[0].mxu0
      %v7180 = vadd.f32 0.0, %v7179
      %v7181 = vpop.f32.mrb[0].mxu0
      %7182 = vmatprep.mubr.f32.mxu0 0.0
      %7183 = vmatmul.mubr.f32.gmra.mrb[0].mxu0 %v7011
      %v7184 = vpop.f32.mrb[0].mxu0
      %v7185 = vadd.f32 0.0, %v7184
      %v7186 = vpop.f32.mrb[0].mxu0
      %7187 = vmatprep.mubr.f32.mxu0 0.0
      %7188 = vmatmul.mubr.f32.gmra.mrb[0].mxu0 %v7014
      %v7189 = vpop.f32.mrb[0].mxu0
      %v7190 = vadd.f32 0.0, %v7189
      %v7191 = vpop.f32.mrb[0].mxu0
      %7192 = vmatprep.mubr.f32.mxu0 0.0
      %7193 = vmatmul.mubr.f32.gmra.mrb[0].mxu0 %v7017
      %v7194 = vpop.f32.mrb[0].mxu0
      %v7195 = vadd.f32 0.0, %v7194
      %v7196 = vpop.f32.mrb[0].mxu0
      %7197 = vmatprep.mubr.f32.mxu0 0.0
      %7198 = vmatmul.mubr.f32.gmra.mrb[0].mxu0 %v7020
      %v7199 = vpop.f32.mrb[0].mxu0
      %v7200 = vadd.f32 0.0, %v7199
      %v7201 = vpop.f32.mrb[0].mxu0
      %7202 = vmatprep.mubr.f32.mxu0 0.0
      %7203 = vmatmul.mubr.f32.gmra.mrb[0].mxu0 %v7023
      %v7204 = vpop.f32.mrb[0].mxu0
      %v7205 = vadd.f32 0.0, %v7204
      %v7206 = vpop.f32.mrb[0].mxu0
      %7207 = vmatprep.mubr.f32.mxu0 0.0
      %7208 = vmatmul.mubr.f32.gmra.mrb[0].mxu0 %v7026
      %v7209 = vpop.f32.mrb[0].mxu0
      %v7210 = vadd.f32 0.0, %v7209
      %v7211 = vpop.f32.mrb[0].mxu0
      %7212 = vmatprep.mubr.f32.mxu0 0.0
      %7213 = vmatmul.mubr.f32.gmra.mrb[0].mxu0 %v7029
      %v7214 = vpop.f32.mrb[0].mxu0
      %v7215 = vadd.f32 0.0, %v7214
      %v7216 = vpop.f32.mrb[0].mxu0
      %7217 = vmatprep.mubr.f32.mxu0 0.0
      %7218 = vmatmul.mubr.f32.gmra.mrb[0].mxu0 %v7032
      %v7219 = vpop.f32.mrb[0].mxu0
      %v7220 = vadd.f32 0.0, %v7219
      %v7221 = vpop.f32.mrb[0].mxu0
      %7222 = vmatprep.mubr.f32.mxu0 0.0
      %7223 = vmatmul.mubr.f32.gmra.mrb[0].mxu0 %v7035
      %v7224 = vpop.f32.mrb[0].mxu0
      %v7225 = vadd.f32 0.0, %v7224
      %v7226 = vpop.f32.mrb[0].mxu0
      %7227 = vmatprep.mubr.f32.mxu0 0.0
      %7228 = vmatmul.mubr.f32.gmra.mrb[0].mxu0 %v7038
      %v7229 = vpop.f32.mrb[0].mxu0
      %v7230 = vadd.f32 0.0, %v7229
      %v7231 = vpop.f32.mrb[0].mxu0
      %7232 = vmatprep.mubr.f32.mxu0 0.0
      %7233 = vmatmul.mubr.f32.gmra.mrb[0].mxu0 %v7041
      %v7234 = vpop.f32.mrb[0].mxu0
      %v7235 = vadd.f32 0.0, %v7234
      %v7236 = vpop.f32.mrb[0].mxu0
      %7237 = vmatprep.mubr.f32.mxu0 0.0
      %7238 = vmatmul.mubr.f32.gmra.mrb[0].mxu0 %v7044
      %v7239 = vpop.f32.mrb[0].mxu0
      %v7240 = vadd.f32 0.0, %v7239
      %v7241 = vpop.f32.mrb[0].mxu0
      %7242 = vmatprep.mubr.f32.mxu0 0.0
      %7243 = vmatmul.mubr.f32.gmra.mrb[0].mxu0 %v7047
      %v7244 = vpop.f32.mrb[0].mxu0
      %v7245 = vadd.f32 0.0, %v7244
      %v7246 = vpop.f32.mrb[0].mxu0
      %7247 = vmatprep.mubr.f32.mxu0 0.0
      %7248 = vmatmul.mubr.f32.gmra.mrb[0].mxu0 %v7050
      %v7249 = vpop.f32.mrb[0].mxu0
      %v7250 = vadd.f32 0.0, %v7249
      %v7251 = vpop.f32.mrb[0].mxu0
      %7252 = vmatprep.mubr.f32.mxu0 0.0
      %7253 = vmatmul.mubr.f32.gmra.mrb[0].mxu0 %v7053
      %v7254 = vpop.f32.mrb[0].mxu0
      %v7255 = vadd.f32 0.0, %v7254
      %v7256 = vpop.f32.mrb[0].mxu0
      %7257 = vmatprep.mubr.f32.mxu0 0.0
      %7258 = vmatmul.mubr.f32.gmra.mrb[0].mxu0 %v7056
      %v7259 = vpop.f32.mrb[0].mxu0
      %v7260 = vadd.f32 0.0, %v7259
      %v7261 = vpop.f32.mrb[0].mxu0
      %7262 = vmatprep.mubr.f32.mxu0 0.0
      %7263 = vmatmul.mubr.f32.gmra.mrb[0].mxu0 %v7059
      %v7264 = vpop.f32.mrb[0].mxu0
      %v7265 = vadd.f32 0.0, %v7264
      %v7266 = vpop.f32.mrb[0].mxu0
      %7267 = vmatprep.mubr.f32.mxu0 0.0
      %7268 = vmatmul.mubr.f32.gmra.mrb[0].mxu0 %v7062
      %v7269 = vpop.f32.mrb[0].mxu0
      %v7270 = vadd.f32 0.0, %v7269
      %v7271 = vpop.f32.mrb[0].mxu0
      %7272 = vmatprep.mubr.f32.mxu0 0.0
      %7273 = vmatmul.mubr.f32.gmra.mrb[0].mxu0 %v7065
      %v7274 = vpop.f32.mrb[0].mxu0
      %v7275 = vadd.f32 0.0, %v7274
      %v7276 = vpop.f32.mrb[0].mxu0
      %7277 = vmatprep.mubr.f32.mxu0 0.0
      %7278 = vmatmul.mubr.f32.gmra.mrb[0].mxu0 %v7068
      %v7279 = vpop.f32.mrb[0].mxu0
      %v7280 = vadd.f32 0.0, %v7279
      %v7281 = vpop.f32.mrb[0].mxu0
      %7282 = vmatprep.mubr.f32.mxu0 0.0
      %7283 = vmatmul.mubr.f32.gmra.mrb[0].mxu0 %v7071
      %v7284 = vpop.f32.mrb[0].mxu0
      %v7285 = vadd.f32 0.0, %v7284
      %v7286 = vpop.f32.mrb[0].mxu0
      %7287 = vmatprep.mubr.f32.mxu0 0.0
      %7288 = vmatmul.mubr.f32.gmra.mrb[0].mxu0 %v7074
      %v7289 = vpop.f32.mrb[0].mxu0
      %v7290 = vadd.f32 0.0, %v7289
      %v7291 = vpop.f32.mrb[0].mxu0
      %7292 = vmatprep.mubr.f32.mxu0 0.0
      %7293 = vmatmul.mubr.f32.gmra.mrb[0].mxu0 %v7077
      %v7294 = vpop.f32.mrb[0].mxu0
      %v7295 = vadd.f32 0.0, %v7294
      %v7296 = vpop.f32.mrb[0].mxu0
      %7297 = vmatprep.mubr.f32.mxu0 0.0
      %7298 = vmatmul.mubr.f32.gmra.mrb[0].mxu0 %v7080
      %v7299 = vpop.f32.mrb[0].mxu0
      %v7300 = vadd.f32 0.0, %v7299
      %v7301 = vpop.f32.mrb[0].mxu0
      %7302 = vmatprep.mubr.f32.mxu0 0.0
      %7303 = vmatmul.mubr.f32.gmra.mrb[0].mxu0 %v7083
      %v7304 = vpop.f32.mrb[0].mxu0
      %v7305 = vadd.f32 0.0, %v7304
      %v7306 = vpop.f32.mrb[0].mxu0
      %7307 = vmatprep.mubr.f32.mxu0 0.0
      %7308 = vmatmul.mubr.f32.gmra.mrb[0].mxu0 %v7086
      %v7309 = vpop.f32.mrb[0].mxu0
      %v7310 = vadd.f32 0.0, %v7309
      %v7311 = vpop.f32.mrb[0].mxu0
      %7312 = vdwg.mxu0
      %v7313 = vadd.f32 %v6958, %v7155
      %v7314 = vadd.f32 %v6959, %v7160
      %v7315 = vadd.f32 %v6960, %v7165
      %v7316 = vadd.f32 %v6961, %v7170
      %v7317 = vadd.f32 %v6962, %v7175
      %v7318 = vadd.f32 %v6963, %v7180
      %v7319 = vadd.f32 %v6964, %v7185
      %v7320 = vadd.f32 %v6965, %v7190
      %v7321 = vadd.f32 %v6966, %v7195
      %v7322 = vadd.f32 %v6967, %v7200
      %v7323 = vadd.f32 %v6968, %v7205
      %v7324 = vadd.f32 %v6969, %v7210
      %v7325 = vadd.f32 %v6970, %v7215
      %v7326 = vadd.f32 %v6971, %v7220
      %v7327 = vadd.f32 %v6972, %v7225
      %v7328 = vadd.f32 %v6973, %v7230
      %v7329 = vadd.f32 %v6974, %v7235
      %v7330 = vadd.f32 %v6975, %v7240
      %v7331 = vadd.f32 %v6976, %v7245
      %v7332 = vadd.f32 %v6977, %v7250
      %v7333 = vadd.f32 %v6978, %v7255
      %v7334 = vadd.f32 %v6979, %v7260
      %v7335 = vadd.f32 %v6980, %v7265
      %v7336 = vadd.f32 %v6981, %v7270
      %v7337 = vadd.f32 %v6982, %v7275
      %v7338 = vadd.f32 %v6983, %v7280
      %v7339 = vadd.f32 %v6984, %v7285
      %v7340 = vadd.f32 %v6985, %v7290
      %v7341 = vadd.f32 %v6986, %v7295
      %v7342 = vadd.f32 %v6987, %v7300
      %v7343 = vadd.f32 %v6988, %v7305
      %v7344 = vadd.f32 %v6989, %v7310
      %s7345 = scalar_lea.vmem %s7, 1536
      %v7346 = vld [vmem:[%s7345] sm:$0xff]
      %v7347 = vld [vmem:[%s7345 + $0x8] sm:$0xff]
      %v7348 = vld [vmem:[%s7345 + $0x10] sm:$0xff]
      %v7349 = vld [vmem:[%s7345 + $0x18] sm:$0xff]
      %v7350 = vld [vmem:[%s7345 + $0x20] sm:$0xff]
      %v7351 = vld [vmem:[%s7345 + $0x28] sm:$0xff]
      %v7352 = vld [vmem:[%s7345 + $0x30] sm:$0xff]
      %v7353 = vld [vmem:[%s7345 + $0x38] sm:$0xff]
      %v7354 = vld [vmem:[%s7345 + $0x40] sm:$0xff]
      %v7355 = vld [vmem:[%s7345 + $0x48] sm:$0xff]
      %v7356 = vld [vmem:[%s7345 + $0x50] sm:$0xff]
      %v7357 = vld [vmem:[%s7345 + $0x58] sm:$0xff]
      %v7358 = vld [vmem:[%s7345 + $0x60] sm:$0xff]
      %v7359 = vld [vmem:[%s7345 + $0x68] sm:$0xff]
      %v7360 = vld [vmem:[%s7345 + $0x70] sm:$0xff]
      %v7361 = vld [vmem:[%s7345 + $0x78] sm:$0xff]
      %v7362 = vld [vmem:[%s7345 + $0x80] sm:$0xff]
      %v7363 = vld [vmem:[%s7345 + $0x88] sm:$0xff]
      %v7364 = vld [vmem:[%s7345 + $0x90] sm:$0xff]
      %v7365 = vld [vmem:[%s7345 + $0x98] sm:$0xff]
      %v7366 = vld [vmem:[%s7345 + $0xa0] sm:$0xff]
      %v7367 = vld [vmem:[%s7345 + $0xa8] sm:$0xff]
      %v7368 = vld [vmem:[%s7345 + $0xb0] sm:$0xff]
      %v7369 = vld [vmem:[%s7345 + $0xb8] sm:$0xff]
      %v7370 = vld [vmem:[%s7345 + $0xc0] sm:$0xff]
      %v7371 = vld [vmem:[%s7345 + $0xc8] sm:$0xff]
      %v7372 = vld [vmem:[%s7345 + $0xd0] sm:$0xff]
      %v7373 = vld [vmem:[%s7345 + $0xd8] sm:$0xff]
      %v7374 = vld [vmem:[%s7345 + $0xe0] sm:$0xff]
      %v7375 = vld [vmem:[%s7345 + $0xe8] sm:$0xff]
      %v7376 = vld [vmem:[%s7345 + $0xf0] sm:$0xff]
      %v7377 = vld [vmem:[%s7345 + $0xf8] sm:$0xff]
      %v7379 = vsel %vm1237, %v4456, 0.0
      %7381 = vset.pattern.permute.xlu0 0
      %7382 = vperm.xlu0 %7381, %v7346
      %v7383 = vpop.permute.xlu0 %7382
      %7386 = vset.pattern.permute.xlu0 0
      %7387 = vperm.xlu0 %7386, %v7347
      %v7388 = vpop.permute.xlu0 %7387
      %7391 = vset.pattern.permute.xlu0 0
      %7392 = vperm.xlu0 %7391, %v7348
      %v7393 = vpop.permute.xlu0 %7392
      %7396 = vset.pattern.permute.xlu0 0
      %7397 = vperm.xlu0 %7396, %v7349
      %v7398 = vpop.permute.xlu0 %7397
      %7401 = vset.pattern.permute.xlu0 0
      %7402 = vperm.xlu0 %7401, %v7350
      %v7403 = vpop.permute.xlu0 %7402
      %7406 = vset.pattern.permute.xlu0 0
      %7407 = vperm.xlu0 %7406, %v7351
      %v7408 = vpop.permute.xlu0 %7407
      %7411 = vset.pattern.permute.xlu0 0
      %7412 = vperm.xlu0 %7411, %v7352
      %v7413 = vpop.permute.xlu0 %7412
      %7416 = vset.pattern.permute.xlu0 0
      %7417 = vperm.xlu0 %7416, %v7353
      %v7418 = vpop.permute.xlu0 %7417
      %7421 = vset.pattern.permute.xlu0 0
      %7422 = vperm.xlu0 %7421, %v7354
      %v7423 = vpop.permute.xlu0 %7422
      %7426 = vset.pattern.permute.xlu0 0
      %7427 = vperm.xlu0 %7426, %v7355
      %v7428 = vpop.permute.xlu0 %7427
      %7431 = vset.pattern.permute.xlu0 0
      %7432 = vperm.xlu0 %7431, %v7356
      %v7433 = vpop.permute.xlu0 %7432
      %7436 = vset.pattern.permute.xlu0 0
      %7437 = vperm.xlu0 %7436, %v7357
      %v7438 = vpop.permute.xlu0 %7437
      %7441 = vset.pattern.permute.xlu0 0
      %7442 = vperm.xlu0 %7441, %v7358
      %v7443 = vpop.permute.xlu0 %7442
      %7446 = vset.pattern.permute.xlu0 0
      %7447 = vperm.xlu0 %7446, %v7359
      %v7448 = vpop.permute.xlu0 %7447
      %7451 = vset.pattern.permute.xlu0 0
      %7452 = vperm.xlu0 %7451, %v7360
      %v7453 = vpop.permute.xlu0 %7452
      %7456 = vset.pattern.permute.xlu0 0
      %7457 = vperm.xlu0 %7456, %v7361
      %v7458 = vpop.permute.xlu0 %7457
      %7461 = vset.pattern.permute.xlu0 0
      %7462 = vperm.xlu0 %7461, %v7362
      %v7463 = vpop.permute.xlu0 %7462
      %7466 = vset.pattern.permute.xlu0 0
      %7467 = vperm.xlu0 %7466, %v7363
      %v7468 = vpop.permute.xlu0 %7467
      %7471 = vset.pattern.permute.xlu0 0
      %7472 = vperm.xlu0 %7471, %v7364
      %v7473 = vpop.permute.xlu0 %7472
      %7476 = vset.pattern.permute.xlu0 0
      %7477 = vperm.xlu0 %7476, %v7365
      %v7478 = vpop.permute.xlu0 %7477
      %7481 = vset.pattern.permute.xlu0 0
      %7482 = vperm.xlu0 %7481, %v7366
      %v7483 = vpop.permute.xlu0 %7482
      %7486 = vset.pattern.permute.xlu0 0
      %7487 = vperm.xlu0 %7486, %v7367
      %v7488 = vpop.permute.xlu0 %7487
      %7491 = vset.pattern.permute.xlu0 0
      %7492 = vperm.xlu0 %7491, %v7368
      %v7493 = vpop.permute.xlu0 %7492
      %7496 = vset.pattern.permute.xlu0 0
      %7497 = vperm.xlu0 %7496, %v7369
      %v7498 = vpop.permute.xlu0 %7497
      %7501 = vset.pattern.permute.xlu0 0
      %7502 = vperm.xlu0 %7501, %v7370
      %v7503 = vpop.permute.xlu0 %7502
      %7506 = vset.pattern.permute.xlu0 0
      %7507 = vperm.xlu0 %7506, %v7371
      %v7508 = vpop.permute.xlu0 %7507
      %7511 = vset.pattern.permute.xlu0 0
      %7512 = vperm.xlu0 %7511, %v7372
      %v7513 = vpop.permute.xlu0 %7512
      %7516 = vset.pattern.permute.xlu0 0
      %7517 = vperm.xlu0 %7516, %v7373
      %v7518 = vpop.permute.xlu0 %7517
      %7521 = vset.pattern.permute.xlu0 0
      %7522 = vperm.xlu0 %7521, %v7374
      %v7523 = vpop.permute.xlu0 %7522
      %7526 = vset.pattern.permute.xlu0 0
      %7527 = vperm.xlu0 %7526, %v7375
      %v7528 = vpop.permute.xlu0 %7527
      %7531 = vset.pattern.permute.xlu0 0
      %7532 = vperm.xlu0 %7531, %v7376
      %v7533 = vpop.permute.xlu0 %7532
      %7536 = vset.pattern.permute.xlu0 0
      %7537 = vperm.xlu0 %7536, %v7377
      %v7538 = vpop.permute.xlu0 %7537
      %v7540 = vmul.f32 %v1242, %v7383
      %v7541 = vmul.f32 %v1244, %v7388
      %v7542 = vmul.f32 %v1246, %v7393
      %v7543 = vmul.f32 %v1248, %v7398
      %v7544 = vmul.f32 %v1250, %v7403
      %v7545 = vmul.f32 %v1252, %v7408
      %v7546 = vmul.f32 %v1254, %v7413
      %v7547 = vmul.f32 %v1256, %v7418
      %v7548 = vmul.f32 %v1258, %v7423
      %v7549 = vmul.f32 %v1260, %v7428
      %v7550 = vmul.f32 %v1262, %v7433
      %v7551 = vmul.f32 %v1264, %v7438
      %v7552 = vmul.f32 %v1266, %v7443
      %v7553 = vmul.f32 %v1268, %v7448
      %v7554 = vmul.f32 %v1270, %v7453
      %v7555 = vmul.f32 %v1272, %v7458
      %v7556 = vmul.f32 %v1274, %v7463
      %v7557 = vmul.f32 %v1276, %v7468
      %v7558 = vmul.f32 %v1278, %v7473
      %v7559 = vmul.f32 %v1280, %v7478
      %v7560 = vmul.f32 %v1282, %v7483
      %v7561 = vmul.f32 %v1284, %v7488
      %v7562 = vmul.f32 %v1286, %v7493
      %v7563 = vmul.f32 %v1288, %v7498
      %v7564 = vmul.f32 %v1290, %v7503
      %v7565 = vmul.f32 %v1292, %v7508
      %v7566 = vmul.f32 %v1294, %v7513
      %v7567 = vmul.f32 %v1296, %v7518
      %v7568 = vmul.f32 %v4455, %v7523
      %v7569 = vmul.f32 %v4457, %v7528
      %v7570 = vmul.f32 %v7379, %v7533
      %v7571 = vmul.f32 %v7538, 0.0
      %v7573 = vsel %vm1237, %v4655, 0.0
      %v7574 = vmul.f32 %v1554, %v7383
      %v7575 = vmul.f32 %v1556, %v7388
      %v7576 = vmul.f32 %v1558, %v7393
      %v7577 = vmul.f32 %v1560, %v7398
      %v7578 = vmul.f32 %v1562, %v7403
      %v7579 = vmul.f32 %v1564, %v7408
      %v7580 = vmul.f32 %v1566, %v7413
      %v7581 = vmul.f32 %v1568, %v7418
      %v7582 = vmul.f32 %v1570, %v7423
      %v7583 = vmul.f32 %v1572, %v7428
      %v7584 = vmul.f32 %v1574, %v7433
      %v7585 = vmul.f32 %v1576, %v7438
      %v7586 = vmul.f32 %v1578, %v7443
      %v7587 = vmul.f32 %v1580, %v7448
      %v7588 = vmul.f32 %v1582, %v7453
      %v7589 = vmul.f32 %v1584, %v7458
      %v7590 = vmul.f32 %v1586, %v7463
      %v7591 = vmul.f32 %v1588, %v7468
      %v7592 = vmul.f32 %v1590, %v7473
      %v7593 = vmul.f32 %v1592, %v7478
      %v7594 = vmul.f32 %v1594, %v7483
      %v7595 = vmul.f32 %v1596, %v7488
      %v7596 = vmul.f32 %v1598, %v7493
      %v7597 = vmul.f32 %v1600, %v7498
      %v7598 = vmul.f32 %v1602, %v7503
      %v7599 = vmul.f32 %v1604, %v7508
      %v7600 = vmul.f32 %v1606, %v7513
      %v7601 = vmul.f32 %v1608, %v7518
      %v7602 = vmul.f32 %v4654, %v7523
      %v7603 = vmul.f32 %v4656, %v7528
      %v7604 = vmul.f32 %v7573, %v7533
      %s7605 = scalar_lea.vmem %s5, 48
      %v7606 = vld [vmem:[%s7605] sm:$0xff]
      %v7608 = vsel %vm1672, %v7540, 0
      %v7611 = vsel %vm1672, %v7541, 0
      %v7614 = vsel %vm1672, %v7542, 0
      %v7617 = vsel %vm1672, %v7543, 0
      %v7620 = vsel %vm1672, %v7544, 0
      %v7623 = vsel %vm1672, %v7545, 0
      %v7626 = vsel %vm1672, %v7546, 0
      %v7629 = vsel %vm1672, %v7547, 0
      %v7632 = vsel %vm1672, %v7548, 0
      %v7635 = vsel %vm1672, %v7549, 0
      %v7638 = vsel %vm1672, %v7550, 0
      %v7641 = vsel %vm1672, %v7551, 0
      %v7644 = vsel %vm1672, %v7552, 0
      %v7647 = vsel %vm1672, %v7553, 0
      %v7650 = vsel %vm1672, %v7554, 0
      %v7653 = vsel %vm1672, %v7555, 0
      %v7656 = vsel %vm1672, %v7556, 0
      %v7659 = vsel %vm1672, %v7557, 0
      %v7662 = vsel %vm1672, %v7558, 0
      %v7665 = vsel %vm1672, %v7559, 0
      %v7668 = vsel %vm1672, %v7560, 0
      %v7671 = vsel %vm1672, %v7561, 0
      %v7674 = vsel %vm1672, %v7562, 0
      %v7677 = vsel %vm1672, %v7563, 0
      %v7680 = vsel %vm1672, %v7564, 0
      %v7683 = vsel %vm1672, %v7565, 0
      %v7686 = vsel %vm1672, %v7566, 0
      %v7689 = vsel %vm1672, %v7567, 0
      %v7692 = vsel %vm1672, %v7568, 0
      %v7695 = vsel %vm1672, %v7569, 0
      %v7698 = vsel %vm1672, %v7570, 0
      %v7701 = vsel %vm1672, %v7571, 0
      %7703 = vmatprep.subr.mxu0 0.0
      %7704 = vmatpush1.msra.mxu0 %v7606
      %7705 = vmatprep.subr.mxu0 0.0
      %7706 = vmatpush1.msra.mxu0 0.0
      %7707 = vmatprep.subr.mxu0 0.0
      %7708 = vmatpush1.msra.mxu0 0.0
      %7709 = vmatprep.subr.mxu0 0.0
      %7710 = vmatpush1.msra.mxu0 0.0
      %7711 = vmatprep.subr.mxu0 0.0
      %7712 = vmatpush1.msra.mxu0 0.0
      %7713 = vmatprep.subr.mxu0 0.0
      %7714 = vmatpush1.msra.mxu0 0.0
      %7715 = vmatprep.subr.mxu0 0.0
      %7716 = vmatpush1.msra.mxu0 0.0
      %7717 = vmatprep.subr.mxu0 0.0
      %7718 = vmatpush1.msra.mxu0 0.0
      %7719 = vmatprep.subr.mxu0 0.0
      %7720 = vmatpush1.msra.mxu0 0.0
      %7721 = vmatprep.subr.mxu0 0.0
      %7722 = vmatpush1.msra.mxu0 0.0
      %7723 = vmatprep.subr.mxu0 0.0
      %7724 = vmatpush1.msra.mxu0 0.0
      %7725 = vmatprep.subr.mxu0 0.0
      %7726 = vmatpush1.msra.mxu0 0.0
      %7727 = vmatprep.subr.mxu0 0.0
      %7728 = vmatpush1.msra.mxu0 0.0
      %7729 = vmatprep.subr.mxu0 0.0
      %7730 = vmatpush1.msra.mxu0 0.0
      %7731 = vmatprep.subr.mxu0 0.0
      %7732 = vmatpush1.msra.mxu0 0.0
      %7733 = vmatprep.subr.mxu0 0.0
      %7734 = vmatpush1.msra.mxu0 0.0
      %7735 = vmatprep.subr.mxu0 0.0
      %7736 = vmatpush1.msra.mxu0 0.0
      %7737 = vmatprep.subr.mxu0 0.0
      %7738 = vmatpush1.msra.mxu0 0.0
      %7739 = vmatprep.subr.mxu0 0.0
      %7740 = vmatpush1.msra.mxu0 0.0
      %7741 = vmatprep.subr.mxu0 0.0
      %7742 = vmatpush1.msra.mxu0 0.0
      %7743 = vmatprep.subr.mxu0 0.0
      %7744 = vmatpush1.msra.mxu0 0.0
      %7745 = vmatprep.subr.mxu0 0.0
      %7746 = vmatpush1.msra.mxu0 0.0
      %7747 = vmatprep.subr.mxu0 0.0
      %7748 = vmatpush1.msra.mxu0 0.0
      %7749 = vmatprep.subr.mxu0 0.0
      %7750 = vmatpush1.msra.mxu0 0.0
      %7751 = vmatprep.subr.mxu0 0.0
      %7752 = vmatpush1.msra.mxu0 0.0
      %7753 = vmatprep.subr.mxu0 0.0
      %7754 = vmatpush1.msra.mxu0 0.0
      %7755 = vmatprep.subr.mxu0 0.0
      %7756 = vmatpush1.msra.mxu0 0.0
      %7757 = vmatprep.subr.mxu0 0.0
      %7758 = vmatpush1.msra.mxu0 0.0
      %7759 = vmatprep.subr.mxu0 0.0
      %7760 = vmatpush1.msra.mxu0 0.0
      %7761 = vmatprep.subr.mxu0 0.0
      %7762 = vmatpush1.msra.mxu0 0.0
      %7763 = vmatprep.subr.mxu0 0.0
      %7764 = vmatpush1.msra.mxu0 0.0
      %7765 = vmatprep.subr.mxu0 0.0
      %7766 = vmatpush1.msra.mxu0 0.0
      %7767 = vmatprep.mubr.f32.mxu0 0.0
      %7768 = vmatmul.mubr.f32.gmra.mrb[0].mxu0 %v7608
      %v7769 = vpop.f32.mrb[0].mxu0
      %v7770 = vadd.f32 0.0, %v7769
      %v7771 = vpop.f32.mrb[0].mxu0
      %7772 = vmatprep.mubr.f32.mxu0 0.0
      %7773 = vmatmul.mubr.f32.gmra.mrb[0].mxu0 %v7611
      %v7774 = vpop.f32.mrb[0].mxu0
      %v7775 = vadd.f32 0.0, %v7774
      %v7776 = vpop.f32.mrb[0].mxu0
      %7777 = vmatprep.mubr.f32.mxu0 0.0
      %7778 = vmatmul.mubr.f32.gmra.mrb[0].mxu0 %v7614
      %v7779 = vpop.f32.mrb[0].mxu0
      %v7780 = vadd.f32 0.0, %v7779
      %v7781 = vpop.f32.mrb[0].mxu0
      %7782 = vmatprep.mubr.f32.mxu0 0.0
      %7783 = vmatmul.mubr.f32.gmra.mrb[0].mxu0 %v7617
      %v7784 = vpop.f32.mrb[0].mxu0
      %v7785 = vadd.f32 0.0, %v7784
      %v7786 = vpop.f32.mrb[0].mxu0
      %7787 = vmatprep.mubr.f32.mxu0 0.0
      %7788 = vmatmul.mubr.f32.gmra.mrb[0].mxu0 %v7620
      %v7789 = vpop.f32.mrb[0].mxu0
      %v7790 = vadd.f32 0.0, %v7789
      %v7791 = vpop.f32.mrb[0].mxu0
      %7792 = vmatprep.mubr.f32.mxu0 0.0
      %7793 = vmatmul.mubr.f32.gmra.mrb[0].mxu0 %v7623
      %v7794 = vpop.f32.mrb[0].mxu0
      %v7795 = vadd.f32 0.0, %v7794
      %v7796 = vpop.f32.mrb[0].mxu0
      %7797 = vmatprep.mubr.f32.mxu0 0.0
      %7798 = vmatmul.mubr.f32.gmra.mrb[0].mxu0 %v7626
      %v7799 = vpop.f32.mrb[0].mxu0
      %v7800 = vadd.f32 0.0, %v7799
      %v7801 = vpop.f32.mrb[0].mxu0
      %7802 = vmatprep.mubr.f32.mxu0 0.0
      %7803 = vmatmul.mubr.f32.gmra.mrb[0].mxu0 %v7629
      %v7804 = vpop.f32.mrb[0].mxu0
      %v7805 = vadd.f32 0.0, %v7804
      %v7806 = vpop.f32.mrb[0].mxu0
      %7807 = vmatprep.mubr.f32.mxu0 0.0
      %7808 = vmatmul.mubr.f32.gmra.mrb[0].mxu0 %v7632
      %v7809 = vpop.f32.mrb[0].mxu0
      %v7810 = vadd.f32 0.0, %v7809
      %v7811 = vpop.f32.mrb[0].mxu0
      %7812 = vmatprep.mubr.f32.mxu0 0.0
      %7813 = vmatmul.mubr.f32.gmra.mrb[0].mxu0 %v7635
      %v7814 = vpop.f32.mrb[0].mxu0
      %v7815 = vadd.f32 0.0, %v7814
      %v7816 = vpop.f32.mrb[0].mxu0
      %7817 = vmatprep.mubr.f32.mxu0 0.0
      %7818 = vmatmul.mubr.f32.gmra.mrb[0].mxu0 %v7638
      %v7819 = vpop.f32.mrb[0].mxu0
      %v7820 = vadd.f32 0.0, %v7819
      %v7821 = vpop.f32.mrb[0].mxu0
      %7822 = vmatprep.mubr.f32.mxu0 0.0
      %7823 = vmatmul.mubr.f32.gmra.mrb[0].mxu0 %v7641
      %v7824 = vpop.f32.mrb[0].mxu0
      %v7825 = vadd.f32 0.0, %v7824
      %v7826 = vpop.f32.mrb[0].mxu0
      %7827 = vmatprep.mubr.f32.mxu0 0.0
      %7828 = vmatmul.mubr.f32.gmra.mrb[0].mxu0 %v7644
      %v7829 = vpop.f32.mrb[0].mxu0
      %v7830 = vadd.f32 0.0, %v7829
      %v7831 = vpop.f32.mrb[0].mxu0
      %7832 = vmatprep.mubr.f32.mxu0 0.0
      %7833 = vmatmul.mubr.f32.gmra.mrb[0].mxu0 %v7647
      %v7834 = vpop.f32.mrb[0].mxu0
      %v7835 = vadd.f32 0.0, %v7834
      %v7836 = vpop.f32.mrb[0].mxu0
      %7837 = vmatprep.mubr.f32.mxu0 0.0
      %7838 = vmatmul.mubr.f32.gmra.mrb[0].mxu0 %v7650
      %v7839 = vpop.f32.mrb[0].mxu0
      %v7840 = vadd.f32 0.0, %v7839
      %v7841 = vpop.f32.mrb[0].mxu0
      %7842 = vmatprep.mubr.f32.mxu0 0.0
      %7843 = vmatmul.mubr.f32.gmra.mrb[0].mxu0 %v7653
      %v7844 = vpop.f32.mrb[0].mxu0
      %v7845 = vadd.f32 0.0, %v7844
      %v7846 = vpop.f32.mrb[0].mxu0
      %7847 = vmatprep.mubr.f32.mxu0 0.0
      %7848 = vmatmul.mubr.f32.gmra.mrb[0].mxu0 %v7656
      %v7849 = vpop.f32.mrb[0].mxu0
      %v7850 = vadd.f32 0.0, %v7849
      %v7851 = vpop.f32.mrb[0].mxu0
      %7852 = vmatprep.mubr.f32.mxu0 0.0
      %7853 = vmatmul.mubr.f32.gmra.mrb[0].mxu0 %v7659
      %v7854 = vpop.f32.mrb[0].mxu0
      %v7855 = vadd.f32 0.0, %v7854
      %v7856 = vpop.f32.mrb[0].mxu0
      %7857 = vmatprep.mubr.f32.mxu0 0.0
      %7858 = vmatmul.mubr.f32.gmra.mrb[0].mxu0 %v7662
      %v7859 = vpop.f32.mrb[0].mxu0
      %v7860 = vadd.f32 0.0, %v7859
      %v7861 = vpop.f32.mrb[0].mxu0
      %7862 = vmatprep.mubr.f32.mxu0 0.0
      %7863 = vmatmul.mubr.f32.gmra.mrb[0].mxu0 %v7665
      %v7864 = vpop.f32.mrb[0].mxu0
      %v7865 = vadd.f32 0.0, %v7864
      %v7866 = vpop.f32.mrb[0].mxu0
      %7867 = vmatprep.mubr.f32.mxu0 0.0
      %7868 = vmatmul.mubr.f32.gmra.mrb[0].mxu0 %v7668
      %v7869 = vpop.f32.mrb[0].mxu0
      %v7870 = vadd.f32 0.0, %v7869
      %v7871 = vpop.f32.mrb[0].mxu0
      %7872 = vmatprep.mubr.f32.mxu0 0.0
      %7873 = vmatmul.mubr.f32.gmra.mrb[0].mxu0 %v7671
      %v7874 = vpop.f32.mrb[0].mxu0
      %v7875 = vadd.f32 0.0, %v7874
      %v7876 = vpop.f32.mrb[0].mxu0
      %7877 = vmatprep.mubr.f32.mxu0 0.0
      %7878 = vmatmul.mubr.f32.gmra.mrb[0].mxu0 %v7674
      %v7879 = vpop.f32.mrb[0].mxu0
      %v7880 = vadd.f32 0.0, %v7879
      %v7881 = vpop.f32.mrb[0].mxu0
      %7882 = vmatprep.mubr.f32.mxu0 0.0
      %7883 = vmatmul.mubr.f32.gmra.mrb[0].mxu0 %v7677
      %v7884 = vpop.f32.mrb[0].mxu0
      %v7885 = vadd.f32 0.0, %v7884
      %v7886 = vpop.f32.mrb[0].mxu0
      %7887 = vmatprep.mubr.f32.mxu0 0.0
      %7888 = vmatmul.mubr.f32.gmra.mrb[0].mxu0 %v7680
      %v7889 = vpop.f32.mrb[0].mxu0
      %v7890 = vadd.f32 0.0, %v7889
      %v7891 = vpop.f32.mrb[0].mxu0
      %7892 = vmatprep.mubr.f32.mxu0 0.0
      %7893 = vmatmul.mubr.f32.gmra.mrb[0].mxu0 %v7683
      %v7894 = vpop.f32.mrb[0].mxu0
      %v7895 = vadd.f32 0.0, %v7894
      %v7896 = vpop.f32.mrb[0].mxu0
      %7897 = vmatprep.mubr.f32.mxu0 0.0
      %7898 = vmatmul.mubr.f32.gmra.mrb[0].mxu0 %v7686
      %v7899 = vpop.f32.mrb[0].mxu0
      %v7900 = vadd.f32 0.0, %v7899
      %v7901 = vpop.f32.mrb[0].mxu0
      %7902 = vmatprep.mubr.f32.mxu0 0.0
      %7903 = vmatmul.mubr.f32.gmra.mrb[0].mxu0 %v7689
      %v7904 = vpop.f32.mrb[0].mxu0
      %v7905 = vadd.f32 0.0, %v7904
      %v7906 = vpop.f32.mrb[0].mxu0
      %7907 = vmatprep.mubr.f32.mxu0 0.0
      %7908 = vmatmul.mubr.f32.gmra.mrb[0].mxu0 %v7692
      %v7909 = vpop.f32.mrb[0].mxu0
      %v7910 = vadd.f32 0.0, %v7909
      %v7911 = vpop.f32.mrb[0].mxu0
      %7912 = vmatprep.mubr.f32.mxu0 0.0
      %7913 = vmatmul.mubr.f32.gmra.mrb[0].mxu0 %v7695
      %v7914 = vpop.f32.mrb[0].mxu0
      %v7915 = vadd.f32 0.0, %v7914
      %v7916 = vpop.f32.mrb[0].mxu0
      %7917 = vmatprep.mubr.f32.mxu0 0.0
      %7918 = vmatmul.mubr.f32.gmra.mrb[0].mxu0 %v7698
      %v7919 = vpop.f32.mrb[0].mxu0
      %v7920 = vadd.f32 0.0, %v7919
      %v7921 = vpop.f32.mrb[0].mxu0
      %7922 = vmatprep.mubr.f32.mxu0 0.0
      %7923 = vmatmul.mubr.f32.gmra.mrb[0].mxu0 %v7701
      %v7924 = vpop.f32.mrb[0].mxu0
      %v7925 = vadd.f32 0.0, %v7924
      %v7926 = vpop.f32.mrb[0].mxu0
      %7927 = vdwg.mxu0
      %v7928 = vadd.f32 %v7313, %v7770
      %v7929 = vadd.f32 %v7314, %v7775
      %v7930 = vadd.f32 %v7315, %v7780
      %v7931 = vadd.f32 %v7316, %v7785
      %v7932 = vadd.f32 %v7317, %v7790
      %v7933 = vadd.f32 %v7318, %v7795
      %v7934 = vadd.f32 %v7319, %v7800
      %v7935 = vadd.f32 %v7320, %v7805
      %v7936 = vadd.f32 %v7321, %v7810
      %v7937 = vadd.f32 %v7322, %v7815
      %v7938 = vadd.f32 %v7323, %v7820
      %v7939 = vadd.f32 %v7324, %v7825
      %v7940 = vadd.f32 %v7325, %v7830
      %v7941 = vadd.f32 %v7326, %v7835
      %v7942 = vadd.f32 %v7327, %v7840
      %v7943 = vadd.f32 %v7328, %v7845
      %v7944 = vadd.f32 %v7329, %v7850
      %v7945 = vadd.f32 %v7330, %v7855
      %v7946 = vadd.f32 %v7331, %v7860
      %v7947 = vadd.f32 %v7332, %v7865
      %v7948 = vadd.f32 %v7333, %v7870
      %v7949 = vadd.f32 %v7334, %v7875
      %v7950 = vadd.f32 %v7335, %v7880
      %v7951 = vadd.f32 %v7336, %v7885
      %v7952 = vadd.f32 %v7337, %v7890
      %v7953 = vadd.f32 %v7338, %v7895
      %v7954 = vadd.f32 %v7339, %v7900
      %v7955 = vadd.f32 %v7340, %v7905
      %v7956 = vadd.f32 %v7341, %v7910
      %v7957 = vadd.f32 %v7342, %v7915
      %v7958 = vadd.f32 %v7343, %v7920
      %v7959 = vadd.f32 %v7344, %v7925
      %s7960 = scalar_lea.vmem %s6, 48
      %v7961 = vld [vmem:[%s7960] sm:$0xff]
      %v7963 = vsel %vm1672, %v7574, 0
      %v7966 = vsel %vm1672, %v7575, 0
      %v7969 = vsel %vm1672, %v7576, 0
      %v7972 = vsel %vm1672, %v7577, 0
      %v7975 = vsel %vm1672, %v7578, 0
      %v7978 = vsel %vm1672, %v7579, 0
      %v7981 = vsel %vm1672, %v7580, 0
      %v7984 = vsel %vm1672, %v7581, 0
      %v7987 = vsel %vm1672, %v7582, 0
      %v7990 = vsel %vm1672, %v7583, 0
      %v7993 = vsel %vm1672, %v7584, 0
      %v7996 = vsel %vm1672, %v7585, 0
      %v7999 = vsel %vm1672, %v7586, 0
      %v8002 = vsel %vm1672, %v7587, 0
      %v8005 = vsel %vm1672, %v7588, 0
      %v8008 = vsel %vm1672, %v7589, 0
      %v8011 = vsel %vm1672, %v7590, 0
      %v8014 = vsel %vm1672, %v7591, 0
      %v8017 = vsel %vm1672, %v7592, 0
      %v8020 = vsel %vm1672, %v7593, 0
      %v8023 = vsel %vm1672, %v7594, 0
      %v8026 = vsel %vm1672, %v7595, 0
      %v8029 = vsel %vm1672, %v7596, 0
      %v8032 = vsel %vm1672, %v7597, 0
      %v8035 = vsel %vm1672, %v7598, 0
      %v8038 = vsel %vm1672, %v7599, 0
      %v8041 = vsel %vm1672, %v7600, 0
      %v8044 = vsel %vm1672, %v7601, 0
      %v8047 = vsel %vm1672, %v7602, 0
      %v8050 = vsel %vm1672, %v7603, 0
      %v8053 = vsel %vm1672, %v7604, 0
      %8055 = vmatprep.subr.mxu0 0.0
      %8056 = vmatpush1.msra.mxu0 %v7961
      %8057 = vmatprep.subr.mxu0 0.0
      %8058 = vmatpush1.msra.mxu0 0.0
      %8059 = vmatprep.subr.mxu0 0.0
      %8060 = vmatpush1.msra.mxu0 0.0
      %8061 = vmatprep.subr.mxu0 0.0
      %8062 = vmatpush1.msra.mxu0 0.0
      %8063 = vmatprep.subr.mxu0 0.0
      %8064 = vmatpush1.msra.mxu0 0.0
      %8065 = vmatprep.subr.mxu0 0.0
      %8066 = vmatpush1.msra.mxu0 0.0
      %8067 = vmatprep.subr.mxu0 0.0
      %8068 = vmatpush1.msra.mxu0 0.0
      %8069 = vmatprep.subr.mxu0 0.0
      %8070 = vmatpush1.msra.mxu0 0.0
      %8071 = vmatprep.subr.mxu0 0.0
      %8072 = vmatpush1.msra.mxu0 0.0
      %8073 = vmatprep.subr.mxu0 0.0
      %8074 = vmatpush1.msra.mxu0 0.0
      %8075 = vmatprep.subr.mxu0 0.0
      %8076 = vmatpush1.msra.mxu0 0.0
      %8077 = vmatprep.subr.mxu0 0.0
      %8078 = vmatpush1.msra.mxu0 0.0
      %8079 = vmatprep.subr.mxu0 0.0
      %8080 = vmatpush1.msra.mxu0 0.0
      %8081 = vmatprep.subr.mxu0 0.0
      %8082 = vmatpush1.msra.mxu0 0.0
      %8083 = vmatprep.subr.mxu0 0.0
      %8084 = vmatpush1.msra.mxu0 0.0
      %8085 = vmatprep.subr.mxu0 0.0
      %8086 = vmatpush1.msra.mxu0 0.0
      %8087 = vmatprep.subr.mxu0 0.0
      %8088 = vmatpush1.msra.mxu0 0.0
      %8089 = vmatprep.subr.mxu0 0.0
      %8090 = vmatpush1.msra.mxu0 0.0
      %8091 = vmatprep.subr.mxu0 0.0
      %8092 = vmatpush1.msra.mxu0 0.0
      %8093 = vmatprep.subr.mxu0 0.0
      %8094 = vmatpush1.msra.mxu0 0.0
      %8095 = vmatprep.subr.mxu0 0.0
      %8096 = vmatpush1.msra.mxu0 0.0
      %8097 = vmatprep.subr.mxu0 0.0
      %8098 = vmatpush1.msra.mxu0 0.0
      %8099 = vmatprep.subr.mxu0 0.0
      %8100 = vmatpush1.msra.mxu0 0.0
      %8101 = vmatprep.subr.mxu0 0.0
      %8102 = vmatpush1.msra.mxu0 0.0
      %8103 = vmatprep.subr.mxu0 0.0
      %8104 = vmatpush1.msra.mxu0 0.0
      %8105 = vmatprep.subr.mxu0 0.0
      %8106 = vmatpush1.msra.mxu0 0.0
      %8107 = vmatprep.subr.mxu0 0.0
      %8108 = vmatpush1.msra.mxu0 0.0
      %8109 = vmatprep.subr.mxu0 0.0
      %8110 = vmatpush1.msra.mxu0 0.0
      %8111 = vmatprep.subr.mxu0 0.0
      %8112 = vmatpush1.msra.mxu0 0.0
      %8113 = vmatprep.subr.mxu0 0.0
      %8114 = vmatpush1.msra.mxu0 0.0
      %8115 = vmatprep.subr.mxu0 0.0
      %8116 = vmatpush1.msra.mxu0 0.0
      %8117 = vmatprep.subr.mxu0 0.0
      %8118 = vmatpush1.msra.mxu0 0.0
      %8119 = vmatprep.mubr.f32.mxu0 0.0
      %8120 = vmatmul.mubr.f32.gmra.mrb[0].mxu0 %v7963
      %v8121 = vpop.f32.mrb[0].mxu0
      %v8122 = vadd.f32 0.0, %v8121
      %v8123 = vpop.f32.mrb[0].mxu0
      %8124 = vmatprep.mubr.f32.mxu0 0.0
      %8125 = vmatmul.mubr.f32.gmra.mrb[0].mxu0 %v7966
      %v8126 = vpop.f32.mrb[0].mxu0
      %v8127 = vadd.f32 0.0, %v8126
      %v8128 = vpop.f32.mrb[0].mxu0
      %8129 = vmatprep.mubr.f32.mxu0 0.0
      %8130 = vmatmul.mubr.f32.gmra.mrb[0].mxu0 %v7969
      %v8131 = vpop.f32.mrb[0].mxu0
      %v8132 = vadd.f32 0.0, %v8131
      %v8133 = vpop.f32.mrb[0].mxu0
      %8134 = vmatprep.mubr.f32.mxu0 0.0
      %8135 = vmatmul.mubr.f32.gmra.mrb[0].mxu0 %v7972
      %v8136 = vpop.f32.mrb[0].mxu0
      %v8137 = vadd.f32 0.0, %v8136
      %v8138 = vpop.f32.mrb[0].mxu0
      %8139 = vmatprep.mubr.f32.mxu0 0.0
      %8140 = vmatmul.mubr.f32.gmra.mrb[0].mxu0 %v7975
      %v8141 = vpop.f32.mrb[0].mxu0
      %v8142 = vadd.f32 0.0, %v8141
      %v8143 = vpop.f32.mrb[0].mxu0
      %8144 = vmatprep.mubr.f32.mxu0 0.0
      %8145 = vmatmul.mubr.f32.gmra.mrb[0].mxu0 %v7978
      %v8146 = vpop.f32.mrb[0].mxu0
      %v8147 = vadd.f32 0.0, %v8146
      %v8148 = vpop.f32.mrb[0].mxu0
      %8149 = vmatprep.mubr.f32.mxu0 0.0
      %8150 = vmatmul.mubr.f32.gmra.mrb[0].mxu0 %v7981
      %v8151 = vpop.f32.mrb[0].mxu0
      %v8152 = vadd.f32 0.0, %v8151
      %v8153 = vpop.f32.mrb[0].mxu0
      %8154 = vmatprep.mubr.f32.mxu0 0.0
      %8155 = vmatmul.mubr.f32.gmra.mrb[0].mxu0 %v7984
      %v8156 = vpop.f32.mrb[0].mxu0
      %v8157 = vadd.f32 0.0, %v8156
      %v8158 = vpop.f32.mrb[0].mxu0
      %8159 = vmatprep.mubr.f32.mxu0 0.0
      %8160 = vmatmul.mubr.f32.gmra.mrb[0].mxu0 %v7987
      %v8161 = vpop.f32.mrb[0].mxu0
      %v8162 = vadd.f32 0.0, %v8161
      %v8163 = vpop.f32.mrb[0].mxu0
      %8164 = vmatprep.mubr.f32.mxu0 0.0
      %8165 = vmatmul.mubr.f32.gmra.mrb[0].mxu0 %v7990
      %v8166 = vpop.f32.mrb[0].mxu0
      %v8167 = vadd.f32 0.0, %v8166
      %v8168 = vpop.f32.mrb[0].mxu0
      %8169 = vmatprep.mubr.f32.mxu0 0.0
      %8170 = vmatmul.mubr.f32.gmra.mrb[0].mxu0 %v7993
      %v8171 = vpop.f32.mrb[0].mxu0
      %v8172 = vadd.f32 0.0, %v8171
      %v8173 = vpop.f32.mrb[0].mxu0
      %8174 = vmatprep.mubr.f32.mxu0 0.0
      %8175 = vmatmul.mubr.f32.gmra.mrb[0].mxu0 %v7996
      %v8176 = vpop.f32.mrb[0].mxu0
      %v8177 = vadd.f32 0.0, %v8176
      %v8178 = vpop.f32.mrb[0].mxu0
      %8179 = vmatprep.mubr.f32.mxu0 0.0
      %8180 = vmatmul.mubr.f32.gmra.mrb[0].mxu0 %v7999
      %v8181 = vpop.f32.mrb[0].mxu0
      %v8182 = vadd.f32 0.0, %v8181
      %v8183 = vpop.f32.mrb[0].mxu0
      %8184 = vmatprep.mubr.f32.mxu0 0.0
      %8185 = vmatmul.mubr.f32.gmra.mrb[0].mxu0 %v8002
      %v8186 = vpop.f32.mrb[0].mxu0
      %v8187 = vadd.f32 0.0, %v8186
      %v8188 = vpop.f32.mrb[0].mxu0
      %8189 = vmatprep.mubr.f32.mxu0 0.0
      %8190 = vmatmul.mubr.f32.gmra.mrb[0].mxu0 %v8005
      %v8191 = vpop.f32.mrb[0].mxu0
      %v8192 = vadd.f32 0.0, %v8191
      %v8193 = vpop.f32.mrb[0].mxu0
      %8194 = vmatprep.mubr.f32.mxu0 0.0
      %8195 = vmatmul.mubr.f32.gmra.mrb[0].mxu0 %v8008
      %v8196 = vpop.f32.mrb[0].mxu0
      %v8197 = vadd.f32 0.0, %v8196
      %v8198 = vpop.f32.mrb[0].mxu0
      %8199 = vmatprep.mubr.f32.mxu0 0.0
      %8200 = vmatmul.mubr.f32.gmra.mrb[0].mxu0 %v8011
      %v8201 = vpop.f32.mrb[0].mxu0
      %v8202 = vadd.f32 0.0, %v8201
      %v8203 = vpop.f32.mrb[0].mxu0
      %8204 = vmatprep.mubr.f32.mxu0 0.0
      %8205 = vmatmul.mubr.f32.gmra.mrb[0].mxu0 %v8014
      %v8206 = vpop.f32.mrb[0].mxu0
      %v8207 = vadd.f32 0.0, %v8206
      %v8208 = vpop.f32.mrb[0].mxu0
      %8209 = vmatprep.mubr.f32.mxu0 0.0
      %8210 = vmatmul.mubr.f32.gmra.mrb[0].mxu0 %v8017
      %v8211 = vpop.f32.mrb[0].mxu0
      %v8212 = vadd.f32 0.0, %v8211
      %v8213 = vpop.f32.mrb[0].mxu0
      %8214 = vmatprep.mubr.f32.mxu0 0.0
      %8215 = vmatmul.mubr.f32.gmra.mrb[0].mxu0 %v8020
      %v8216 = vpop.f32.mrb[0].mxu0
      %v8217 = vadd.f32 0.0, %v8216
      %v8218 = vpop.f32.mrb[0].mxu0
      %8219 = vmatprep.mubr.f32.mxu0 0.0
      %8220 = vmatmul.mubr.f32.gmra.mrb[0].mxu0 %v8023
      %v8221 = vpop.f32.mrb[0].mxu0
      %v8222 = vadd.f32 0.0, %v8221
      %v8223 = vpop.f32.mrb[0].mxu0
      %8224 = vmatprep.mubr.f32.mxu0 0.0
      %8225 = vmatmul.mubr.f32.gmra.mrb[0].mxu0 %v8026
      %v8226 = vpop.f32.mrb[0].mxu0
      %v8227 = vadd.f32 0.0, %v8226
      %v8228 = vpop.f32.mrb[0].mxu0
      %8229 = vmatprep.mubr.f32.mxu0 0.0
      %8230 = vmatmul.mubr.f32.gmra.mrb[0].mxu0 %v8029
      %v8231 = vpop.f32.mrb[0].mxu0
      %v8232 = vadd.f32 0.0, %v8231
      %v8233 = vpop.f32.mrb[0].mxu0
      %8234 = vmatprep.mubr.f32.mxu0 0.0
      %8235 = vmatmul.mubr.f32.gmra.mrb[0].mxu0 %v8032
      %v8236 = vpop.f32.mrb[0].mxu0
      %v8237 = vadd.f32 0.0, %v8236
      %v8238 = vpop.f32.mrb[0].mxu0
      %8239 = vmatprep.mubr.f32.mxu0 0.0
      %8240 = vmatmul.mubr.f32.gmra.mrb[0].mxu0 %v8035
      %v8241 = vpop.f32.mrb[0].mxu0
      %v8242 = vadd.f32 0.0, %v8241
      %v8243 = vpop.f32.mrb[0].mxu0
      %8244 = vmatprep.mubr.f32.mxu0 0.0
      %8245 = vmatmul.mubr.f32.gmra.mrb[0].mxu0 %v8038
      %v8246 = vpop.f32.mrb[0].mxu0
      %v8247 = vadd.f32 0.0, %v8246
      %v8248 = vpop.f32.mrb[0].mxu0
      %8249 = vmatprep.mubr.f32.mxu0 0.0
      %8250 = vmatmul.mubr.f32.gmra.mrb[0].mxu0 %v8041
      %v8251 = vpop.f32.mrb[0].mxu0
      %v8252 = vadd.f32 0.0, %v8251
      %v8253 = vpop.f32.mrb[0].mxu0
      %8254 = vmatprep.mubr.f32.mxu0 0.0
      %8255 = vmatmul.mubr.f32.gmra.mrb[0].mxu0 %v8044
      %v8256 = vpop.f32.mrb[0].mxu0
      %v8257 = vadd.f32 0.0, %v8256
      %v8258 = vpop.f32.mrb[0].mxu0
      %8259 = vmatprep.mubr.f32.mxu0 0.0
      %8260 = vmatmul.mubr.f32.gmra.mrb[0].mxu0 %v8047
      %v8261 = vpop.f32.mrb[0].mxu0
      %v8262 = vadd.f32 0.0, %v8261
      %v8263 = vpop.f32.mrb[0].mxu0
      %8264 = vmatprep.mubr.f32.mxu0 0.0
      %8265 = vmatmul.mubr.f32.gmra.mrb[0].mxu0 %v8050
      %v8266 = vpop.f32.mrb[0].mxu0
      %v8267 = vadd.f32 0.0, %v8266
      %v8268 = vpop.f32.mrb[0].mxu0
      %8269 = vmatprep.mubr.f32.mxu0 0.0
      %8270 = vmatmul.mubr.f32.gmra.mrb[0].mxu0 %v8053
      %v8271 = vpop.f32.mrb[0].mxu0
      %v8272 = vadd.f32 0.0, %v8271
      %v8273 = vpop.f32.mrb[0].mxu0
      %8274 = vmatprep.mubr.f32.mxu0 0.0
      %8275 = vmatmul.mubr.f32.gmra.mrb[0].mxu0 %v7701
      %v8276 = vpop.f32.mrb[0].mxu0
      %v8277 = vadd.f32 0.0, %v8276
      %v8278 = vpop.f32.mrb[0].mxu0
      %8279 = vdwg.mxu0
      %v8280 = vadd.f32 %v7928, %v8122
      %v8281 = vadd.f32 %v7929, %v8127
      %v8282 = vadd.f32 %v7930, %v8132
      %v8283 = vadd.f32 %v7931, %v8137
      %v8284 = vadd.f32 %v7932, %v8142
      %v8285 = vadd.f32 %v7933, %v8147
      %v8286 = vadd.f32 %v7934, %v8152
      %v8287 = vadd.f32 %v7935, %v8157
      %v8288 = vadd.f32 %v7936, %v8162
      %v8289 = vadd.f32 %v7937, %v8167
      %v8290 = vadd.f32 %v7938, %v8172
      %v8291 = vadd.f32 %v7939, %v8177
      %v8292 = vadd.f32 %v7940, %v8182
      %v8293 = vadd.f32 %v7941, %v8187
      %v8294 = vadd.f32 %v7942, %v8192
      %v8295 = vadd.f32 %v7943, %v8197
      %v8296 = vadd.f32 %v7944, %v8202
      %v8297 = vadd.f32 %v7945, %v8207
      %v8298 = vadd.f32 %v7946, %v8212
      %v8299 = vadd.f32 %v7947, %v8217
      %v8300 = vadd.f32 %v7948, %v8222
      %v8301 = vadd.f32 %v7949, %v8227
      %v8302 = vadd.f32 %v7950, %v8232
      %v8303 = vadd.f32 %v7951, %v8237
      %v8304 = vadd.f32 %v7952, %v8242
      %v8305 = vadd.f32 %v7953, %v8247
      %v8306 = vadd.f32 %v7954, %v8252
      %v8307 = vadd.f32 %v7955, %v8257
      %v8308 = vadd.f32 %v7956, %v8262
      %v8309 = vadd.f32 %v7957, %v8267
      %v8310 = vadd.f32 %v7958, %v8272
      %v8311 = vadd.f32 %v7959, %v8277
      %s8312 = scalar_lea.vmem %s7, 1792
      %v8313 = vld [vmem:[%s8312] sm:$0xff]
      %v8314 = vld [vmem:[%s8312 + $0x8] sm:$0xff]
      %v8315 = vld [vmem:[%s8312 + $0x10] sm:$0xff]
      %v8316 = vld [vmem:[%s8312 + $0x18] sm:$0xff]
      %v8317 = vld [vmem:[%s8312 + $0x20] sm:$0xff]
      %v8318 = vld [vmem:[%s8312 + $0x28] sm:$0xff]
      %v8319 = vld [vmem:[%s8312 + $0x30] sm:$0xff]
      %v8320 = vld [vmem:[%s8312 + $0x38] sm:$0xff]
      %v8321 = vld [vmem:[%s8312 + $0x40] sm:$0xff]
      %v8322 = vld [vmem:[%s8312 + $0x48] sm:$0xff]
      %v8323 = vld [vmem:[%s8312 + $0x50] sm:$0xff]
      %v8324 = vld [vmem:[%s8312 + $0x58] sm:$0xff]
      %v8325 = vld [vmem:[%s8312 + $0x60] sm:$0xff]
      %v8326 = vld [vmem:[%s8312 + $0x68] sm:$0xff]
      %v8327 = vld [vmem:[%s8312 + $0x70] sm:$0xff]
      %v8328 = vld [vmem:[%s8312 + $0x78] sm:$0xff]
      %v8329 = vld [vmem:[%s8312 + $0x80] sm:$0xff]
      %v8330 = vld [vmem:[%s8312 + $0x88] sm:$0xff]
      %v8331 = vld [vmem:[%s8312 + $0x90] sm:$0xff]
      %v8332 = vld [vmem:[%s8312 + $0x98] sm:$0xff]
      %v8333 = vld [vmem:[%s8312 + $0xa0] sm:$0xff]
      %v8334 = vld [vmem:[%s8312 + $0xa8] sm:$0xff]
      %v8335 = vld [vmem:[%s8312 + $0xb0] sm:$0xff]
      %v8336 = vld [vmem:[%s8312 + $0xb8] sm:$0xff]
      %v8337 = vld [vmem:[%s8312 + $0xc0] sm:$0xff]
      %v8338 = vld [vmem:[%s8312 + $0xc8] sm:$0xff]
      %v8339 = vld [vmem:[%s8312 + $0xd0] sm:$0xff]
      %v8340 = vld [vmem:[%s8312 + $0xd8] sm:$0xff]
      %v8341 = vld [vmem:[%s8312 + $0xe0] sm:$0xff]
      %v8342 = vld [vmem:[%s8312 + $0xe8] sm:$0xff]
      %v8343 = vld [vmem:[%s8312 + $0xf0] sm:$0xff]
      %v8344 = vld [vmem:[%s8312 + $0xf8] sm:$0xff]
      %8346 = vset.pattern.permute.xlu0 0
      %8347 = vperm.xlu0 %8346, %v8313
      %v8348 = vpop.permute.xlu0 %8347
      %8351 = vset.pattern.permute.xlu0 0
      %8352 = vperm.xlu0 %8351, %v8314
      %v8353 = vpop.permute.xlu0 %8352
      %8356 = vset.pattern.permute.xlu0 0
      %8357 = vperm.xlu0 %8356, %v8315
      %v8358 = vpop.permute.xlu0 %8357
      %8361 = vset.pattern.permute.xlu0 0
      %8362 = vperm.xlu0 %8361, %v8316
      %v8363 = vpop.permute.xlu0 %8362
      %8366 = vset.pattern.permute.xlu0 0
      %8367 = vperm.xlu0 %8366, %v8317
      %v8368 = vpop.permute.xlu0 %8367
      %8371 = vset.pattern.permute.xlu0 0
      %8372 = vperm.xlu0 %8371, %v8318
      %v8373 = vpop.permute.xlu0 %8372
      %8376 = vset.pattern.permute.xlu0 0
      %8377 = vperm.xlu0 %8376, %v8319
      %v8378 = vpop.permute.xlu0 %8377
      %8381 = vset.pattern.permute.xlu0 0
      %8382 = vperm.xlu0 %8381, %v8320
      %v8383 = vpop.permute.xlu0 %8382
      %8386 = vset.pattern.permute.xlu0 0
      %8387 = vperm.xlu0 %8386, %v8321
      %v8388 = vpop.permute.xlu0 %8387
      %8391 = vset.pattern.permute.xlu0 0
      %8392 = vperm.xlu0 %8391, %v8322
      %v8393 = vpop.permute.xlu0 %8392
      %8396 = vset.pattern.permute.xlu0 0
      %8397 = vperm.xlu0 %8396, %v8323
      %v8398 = vpop.permute.xlu0 %8397
      %8401 = vset.pattern.permute.xlu0 0
      %8402 = vperm.xlu0 %8401, %v8324
      %v8403 = vpop.permute.xlu0 %8402
      %8406 = vset.pattern.permute.xlu0 0
      %8407 = vperm.xlu0 %8406, %v8325
      %v8408 = vpop.permute.xlu0 %8407
      %8411 = vset.pattern.permute.xlu0 0
      %8412 = vperm.xlu0 %8411, %v8326
      %v8413 = vpop.permute.xlu0 %8412
      %8416 = vset.pattern.permute.xlu0 0
      %8417 = vperm.xlu0 %8416, %v8327
      %v8418 = vpop.permute.xlu0 %8417
      %8421 = vset.pattern.permute.xlu0 0
      %8422 = vperm.xlu0 %8421, %v8328
      %v8423 = vpop.permute.xlu0 %8422
      %8426 = vset.pattern.permute.xlu0 0
      %8427 = vperm.xlu0 %8426, %v8329
      %v8428 = vpop.permute.xlu0 %8427
      %8431 = vset.pattern.permute.xlu0 0
      %8432 = vperm.xlu0 %8431, %v8330
      %v8433 = vpop.permute.xlu0 %8432
      %8436 = vset.pattern.permute.xlu0 0
      %8437 = vperm.xlu0 %8436, %v8331
      %v8438 = vpop.permute.xlu0 %8437
      %8441 = vset.pattern.permute.xlu0 0
      %8442 = vperm.xlu0 %8441, %v8332
      %v8443 = vpop.permute.xlu0 %8442
      %8446 = vset.pattern.permute.xlu0 0
      %8447 = vperm.xlu0 %8446, %v8333
      %v8448 = vpop.permute.xlu0 %8447
      %8451 = vset.pattern.permute.xlu0 0
      %8452 = vperm.xlu0 %8451, %v8334
      %v8453 = vpop.permute.xlu0 %8452
      %8456 = vset.pattern.permute.xlu0 0
      %8457 = vperm.xlu0 %8456, %v8335
      %v8458 = vpop.permute.xlu0 %8457
      %8461 = vset.pattern.permute.xlu0 0
      %8462 = vperm.xlu0 %8461, %v8336
      %v8463 = vpop.permute.xlu0 %8462
      %8466 = vset.pattern.permute.xlu0 0
      %8467 = vperm.xlu0 %8466, %v8337
      %v8468 = vpop.permute.xlu0 %8467
      %8471 = vset.pattern.permute.xlu0 0
      %8472 = vperm.xlu0 %8471, %v8338
      %v8473 = vpop.permute.xlu0 %8472
      %8476 = vset.pattern.permute.xlu0 0
      %8477 = vperm.xlu0 %8476, %v8339
      %v8478 = vpop.permute.xlu0 %8477
      %8481 = vset.pattern.permute.xlu0 0
      %8482 = vperm.xlu0 %8481, %v8340
      %v8483 = vpop.permute.xlu0 %8482
      %8486 = vset.pattern.permute.xlu0 0
      %8487 = vperm.xlu0 %8486, %v8341
      %v8488 = vpop.permute.xlu0 %8487
      %8491 = vset.pattern.permute.xlu0 0
      %8492 = vperm.xlu0 %8491, %v8342
      %v8493 = vpop.permute.xlu0 %8492
      %8496 = vset.pattern.permute.xlu0 0
      %8497 = vperm.xlu0 %8496, %v8343
      %v8498 = vpop.permute.xlu0 %8497
      %8501 = vset.pattern.permute.xlu0 0
      %8502 = vperm.xlu0 %8501, %v8344
      %v8503 = vpop.permute.xlu0 %8502
      %v8505 = vmul.f32 %v672, %v8348
      %v8506 = vmul.f32 %v677, %v8353
      %v8507 = vmul.f32 %v682, %v8358
      %v8508 = vmul.f32 %v687, %v8363
      %v8509 = vmul.f32 %v692, %v8368
      %v8510 = vmul.f32 %v697, %v8373
      %v8511 = vmul.f32 %v702, %v8378
      %v8512 = vmul.f32 %v707, %v8383
      %v8513 = vmul.f32 %v712, %v8388
      %v8514 = vmul.f32 %v717, %v8393
      %v8515 = vmul.f32 %v722, %v8398
      %v8516 = vmul.f32 %v727, %v8403
      %v8517 = vmul.f32 %v732, %v8408
      %v8518 = vmul.f32 %v737, %v8413
      %v8519 = vmul.f32 %v742, %v8418
      %v8520 = vmul.f32 %v747, %v8423
      %v8521 = vmul.f32 %v752, %v8428
      %v8522 = vmul.f32 %v757, %v8433
      %v8523 = vmul.f32 %v762, %v8438
      %v8524 = vmul.f32 %v767, %v8443
      %v8525 = vmul.f32 %v772, %v8448
      %v8526 = vmul.f32 %v777, %v8453
      %v8527 = vmul.f32 %v782, %v8458
      %v8528 = vmul.f32 %v787, %v8463
      %v8529 = vmul.f32 %v792, %v8468
      %v8530 = vmul.f32 %v797, %v8473
      %v8531 = vmul.f32 %v802, %v8478
      %v8532 = vmul.f32 %v807, %v8483
      %v8533 = vmul.f32 %v812, %v8488
      %v8534 = vmul.f32 %v817, %v8493
      %v8535 = vmul.f32 %v8498, 0.0
      %v8536 = vmul.f32 %v8503, 0.0
      %v8537 = vmul.f32 %v1027, %v8348
      %v8538 = vmul.f32 %v1032, %v8353
      %v8539 = vmul.f32 %v1037, %v8358
      %v8540 = vmul.f32 %v1042, %v8363
      %v8541 = vmul.f32 %v1047, %v8368
      %v8542 = vmul.f32 %v1052, %v8373
      %v8543 = vmul.f32 %v1057, %v8378
      %v8544 = vmul.f32 %v1062, %v8383
      %v8545 = vmul.f32 %v1067, %v8388
      %v8546 = vmul.f32 %v1072, %v8393
      %v8547 = vmul.f32 %v1077, %v8398
      %v8548 = vmul.f32 %v1082, %v8403
      %v8549 = vmul.f32 %v1087, %v8408
      %v8550 = vmul.f32 %v1092, %v8413
      %v8551 = vmul.f32 %v1097, %v8418
      %v8552 = vmul.f32 %v1102, %v8423
      %v8553 = vmul.f32 %v1107, %v8428
      %v8554 = vmul.f32 %v1112, %v8433
      %v8555 = vmul.f32 %v1117, %v8438
      %v8556 = vmul.f32 %v1122, %v8443
      %v8557 = vmul.f32 %v1127, %v8448
      %v8558 = vmul.f32 %v1132, %v8453
      %v8559 = vmul.f32 %v1137, %v8458
      %v8560 = vmul.f32 %v1142, %v8463
      %v8561 = vmul.f32 %v1147, %v8468
      %v8562 = vmul.f32 %v1152, %v8473
      %v8563 = vmul.f32 %v1157, %v8478
      %v8564 = vmul.f32 %v1162, %v8483
      %v8565 = vmul.f32 %v1167, %v8488
      %v8566 = vmul.f32 %v1172, %v8493
      %s8567 = scalar_lea.vmem %s5, 56
      %v8568 = vld [vmem:[%s8567] sm:$0xff]
      %v8570 = vsel %vm1672, %v8505, 0
      %v8573 = vsel %vm1672, %v8506, 0
      %v8576 = vsel %vm1672, %v8507, 0
      %v8579 = vsel %vm1672, %v8508, 0
      %v8582 = vsel %vm1672, %v8509, 0
      %v8585 = vsel %vm1672, %v8510, 0
      %v8588 = vsel %vm1672, %v8511, 0
      %v8591 = vsel %vm1672, %v8512, 0
      %v8594 = vsel %vm1672, %v8513, 0
      %v8597 = vsel %vm1672, %v8514, 0
      %v8600 = vsel %vm1672, %v8515, 0
      %v8603 = vsel %vm1672, %v8516, 0
      %v8606 = vsel %vm1672, %v8517, 0
      %v8609 = vsel %vm1672, %v8518, 0
      %v8612 = vsel %vm1672, %v8519, 0
      %v8615 = vsel %vm1672, %v8520, 0
      %v8618 = vsel %vm1672, %v8521, 0
      %v8621 = vsel %vm1672, %v8522, 0
      %v8624 = vsel %vm1672, %v8523, 0
      %v8627 = vsel %vm1672, %v8524, 0
      %v8630 = vsel %vm1672, %v8525, 0
      %v8633 = vsel %vm1672, %v8526, 0
      %v8636 = vsel %vm1672, %v8527, 0
      %v8639 = vsel %vm1672, %v8528, 0
      %v8642 = vsel %vm1672, %v8529, 0
      %v8645 = vsel %vm1672, %v8530, 0
      %v8648 = vsel %vm1672, %v8531, 0
      %v8651 = vsel %vm1672, %v8532, 0
      %v8654 = vsel %vm1672, %v8533, 0
      %v8657 = vsel %vm1672, %v8534, 0
      %v8660 = vsel %vm1672, %v8535, 0
      %v8663 = vsel %vm1672, %v8536, 0
      %8665 = vmatprep.subr.mxu0 0.0
      %8666 = vmatpush1.msra.mxu0 %v8568
      %8667 = vmatprep.subr.mxu0 0.0
      %8668 = vmatpush1.msra.mxu0 0.0
      %8669 = vmatprep.subr.mxu0 0.0
      %8670 = vmatpush1.msra.mxu0 0.0
      %8671 = vmatprep.subr.mxu0 0.0
      %8672 = vmatpush1.msra.mxu0 0.0
      %8673 = vmatprep.subr.mxu0 0.0
      %8674 = vmatpush1.msra.mxu0 0.0
      %8675 = vmatprep.subr.mxu0 0.0
      %8676 = vmatpush1.msra.mxu0 0.0
      %8677 = vmatprep.subr.mxu0 0.0
      %8678 = vmatpush1.msra.mxu0 0.0
      %8679 = vmatprep.subr.mxu0 0.0
      %8680 = vmatpush1.msra.mxu0 0.0
      %8681 = vmatprep.subr.mxu0 0.0
      %8682 = vmatpush1.msra.mxu0 0.0
      %8683 = vmatprep.subr.mxu0 0.0
      %8684 = vmatpush1.msra.mxu0 0.0
      %8685 = vmatprep.subr.mxu0 0.0
      %8686 = vmatpush1.msra.mxu0 0.0
      %8687 = vmatprep.subr.mxu0 0.0
      %8688 = vmatpush1.msra.mxu0 0.0
      %8689 = vmatprep.subr.mxu0 0.0
      %8690 = vmatpush1.msra.mxu0 0.0
      %8691 = vmatprep.subr.mxu0 0.0
      %8692 = vmatpush1.msra.mxu0 0.0
      %8693 = vmatprep.subr.mxu0 0.0
      %8694 = vmatpush1.msra.mxu0 0.0
      %8695 = vmatprep.subr.mxu0 0.0
      %8696 = vmatpush1.msra.mxu0 0.0
      %8697 = vmatprep.subr.mxu0 0.0
      %8698 = vmatpush1.msra.mxu0 0.0
      %8699 = vmatprep.subr.mxu0 0.0
      %8700 = vmatpush1.msra.mxu0 0.0
      %8701 = vmatprep.subr.mxu0 0.0
      %8702 = vmatpush1.msra.mxu0 0.0
      %8703 = vmatprep.subr.mxu0 0.0
      %8704 = vmatpush1.msra.mxu0 0.0
      %8705 = vmatprep.subr.mxu0 0.0
      %8706 = vmatpush1.msra.mxu0 0.0
      %8707 = vmatprep.subr.mxu0 0.0
      %8708 = vmatpush1.msra.mxu0 0.0
      %8709 = vmatprep.subr.mxu0 0.0
      %8710 = vmatpush1.msra.mxu0 0.0
      %8711 = vmatprep.subr.mxu0 0.0
      %8712 = vmatpush1.msra.mxu0 0.0
      %8713 = vmatprep.subr.mxu0 0.0
      %8714 = vmatpush1.msra.mxu0 0.0
      %8715 = vmatprep.subr.mxu0 0.0
      %8716 = vmatpush1.msra.mxu0 0.0
      %8717 = vmatprep.subr.mxu0 0.0
      %8718 = vmatpush1.msra.mxu0 0.0
      %8719 = vmatprep.subr.mxu0 0.0
      %8720 = vmatpush1.msra.mxu0 0.0
      %8721 = vmatprep.subr.mxu0 0.0
      %8722 = vmatpush1.msra.mxu0 0.0
      %8723 = vmatprep.subr.mxu0 0.0
      %8724 = vmatpush1.msra.mxu0 0.0
      %8725 = vmatprep.subr.mxu0 0.0
      %8726 = vmatpush1.msra.mxu0 0.0
      %8727 = vmatprep.subr.mxu0 0.0
      %8728 = vmatpush1.msra.mxu0 0.0
      %8729 = vmatprep.mubr.f32.mxu0 0.0
      %8730 = vmatmul.mubr.f32.gmra.mrb[0].mxu0 %v8570
      %v8731 = vpop.f32.mrb[0].mxu0
      %v8732 = vadd.f32 0.0, %v8731
      %v8733 = vpop.f32.mrb[0].mxu0
      %8734 = vmatprep.mubr.f32.mxu0 0.0
      %8735 = vmatmul.mubr.f32.gmra.mrb[0].mxu0 %v8573
      %v8736 = vpop.f32.mrb[0].mxu0
      %v8737 = vadd.f32 0.0, %v8736
      %v8738 = vpop.f32.mrb[0].mxu0
      %8739 = vmatprep.mubr.f32.mxu0 0.0
      %8740 = vmatmul.mubr.f32.gmra.mrb[0].mxu0 %v8576
      %v8741 = vpop.f32.mrb[0].mxu0
      %v8742 = vadd.f32 0.0, %v8741
      %v8743 = vpop.f32.mrb[0].mxu0
      %8744 = vmatprep.mubr.f32.mxu0 0.0
      %8745 = vmatmul.mubr.f32.gmra.mrb[0].mxu0 %v8579
      %v8746 = vpop.f32.mrb[0].mxu0
      %v8747 = vadd.f32 0.0, %v8746
      %v8748 = vpop.f32.mrb[0].mxu0
      %8749 = vmatprep.mubr.f32.mxu0 0.0
      %8750 = vmatmul.mubr.f32.gmra.mrb[0].mxu0 %v8582
      %v8751 = vpop.f32.mrb[0].mxu0
      %v8752 = vadd.f32 0.0, %v8751
      %v8753 = vpop.f32.mrb[0].mxu0
      %8754 = vmatprep.mubr.f32.mxu0 0.0
      %8755 = vmatmul.mubr.f32.gmra.mrb[0].mxu0 %v8585
      %v8756 = vpop.f32.mrb[0].mxu0
      %v8757 = vadd.f32 0.0, %v8756
      %v8758 = vpop.f32.mrb[0].mxu0
      %8759 = vmatprep.mubr.f32.mxu0 0.0
      %8760 = vmatmul.mubr.f32.gmra.mrb[0].mxu0 %v8588
      %v8761 = vpop.f32.mrb[0].mxu0
      %v8762 = vadd.f32 0.0, %v8761
      %v8763 = vpop.f32.mrb[0].mxu0
      %8764 = vmatprep.mubr.f32.mxu0 0.0
      %8765 = vmatmul.mubr.f32.gmra.mrb[0].mxu0 %v8591
      %v8766 = vpop.f32.mrb[0].mxu0
      %v8767 = vadd.f32 0.0, %v8766
      %v8768 = vpop.f32.mrb[0].mxu0
      %8769 = vmatprep.mubr.f32.mxu0 0.0
      %8770 = vmatmul.mubr.f32.gmra.mrb[0].mxu0 %v8594
      %v8771 = vpop.f32.mrb[0].mxu0
      %v8772 = vadd.f32 0.0, %v8771
      %v8773 = vpop.f32.mrb[0].mxu0
      %8774 = vmatprep.mubr.f32.mxu0 0.0
      %8775 = vmatmul.mubr.f32.gmra.mrb[0].mxu0 %v8597
      %v8776 = vpop.f32.mrb[0].mxu0
      %v8777 = vadd.f32 0.0, %v8776
      %v8778 = vpop.f32.mrb[0].mxu0
      %8779 = vmatprep.mubr.f32.mxu0 0.0
      %8780 = vmatmul.mubr.f32.gmra.mrb[0].mxu0 %v8600
      %v8781 = vpop.f32.mrb[0].mxu0
      %v8782 = vadd.f32 0.0, %v8781
      %v8783 = vpop.f32.mrb[0].mxu0
      %8784 = vmatprep.mubr.f32.mxu0 0.0
      %8785 = vmatmul.mubr.f32.gmra.mrb[0].mxu0 %v8603
      %v8786 = vpop.f32.mrb[0].mxu0
      %v8787 = vadd.f32 0.0, %v8786
      %v8788 = vpop.f32.mrb[0].mxu0
      %8789 = vmatprep.mubr.f32.mxu0 0.0
      %8790 = vmatmul.mubr.f32.gmra.mrb[0].mxu0 %v8606
      %v8791 = vpop.f32.mrb[0].mxu0
      %v8792 = vadd.f32 0.0, %v8791
      %v8793 = vpop.f32.mrb[0].mxu0
      %8794 = vmatprep.mubr.f32.mxu0 0.0
      %8795 = vmatmul.mubr.f32.gmra.mrb[0].mxu0 %v8609
      %v8796 = vpop.f32.mrb[0].mxu0
      %v8797 = vadd.f32 0.0, %v8796
      %v8798 = vpop.f32.mrb[0].mxu0
      %8799 = vmatprep.mubr.f32.mxu0 0.0
      %8800 = vmatmul.mubr.f32.gmra.mrb[0].mxu0 %v8612
      %v8801 = vpop.f32.mrb[0].mxu0
      %v8802 = vadd.f32 0.0, %v8801
      %v8803 = vpop.f32.mrb[0].mxu0
      %8804 = vmatprep.mubr.f32.mxu0 0.0
      %8805 = vmatmul.mubr.f32.gmra.mrb[0].mxu0 %v8615
      %v8806 = vpop.f32.mrb[0].mxu0
      %v8807 = vadd.f32 0.0, %v8806
      %v8808 = vpop.f32.mrb[0].mxu0
      %8809 = vmatprep.mubr.f32.mxu0 0.0
      %8810 = vmatmul.mubr.f32.gmra.mrb[0].mxu0 %v8618
      %v8811 = vpop.f32.mrb[0].mxu0
      %v8812 = vadd.f32 0.0, %v8811
      %v8813 = vpop.f32.mrb[0].mxu0
      %8814 = vmatprep.mubr.f32.mxu0 0.0
      %8815 = vmatmul.mubr.f32.gmra.mrb[0].mxu0 %v8621
      %v8816 = vpop.f32.mrb[0].mxu0
      %v8817 = vadd.f32 0.0, %v8816
      %v8818 = vpop.f32.mrb[0].mxu0
      %8819 = vmatprep.mubr.f32.mxu0 0.0
      %8820 = vmatmul.mubr.f32.gmra.mrb[0].mxu0 %v8624
      %v8821 = vpop.f32.mrb[0].mxu0
      %v8822 = vadd.f32 0.0, %v8821
      %v8823 = vpop.f32.mrb[0].mxu0
      %8824 = vmatprep.mubr.f32.mxu0 0.0
      %8825 = vmatmul.mubr.f32.gmra.mrb[0].mxu0 %v8627
      %v8826 = vpop.f32.mrb[0].mxu0
      %v8827 = vadd.f32 0.0, %v8826
      %v8828 = vpop.f32.mrb[0].mxu0
      %8829 = vmatprep.mubr.f32.mxu0 0.0
      %8830 = vmatmul.mubr.f32.gmra.mrb[0].mxu0 %v8630
      %v8831 = vpop.f32.mrb[0].mxu0
      %v8832 = vadd.f32 0.0, %v8831
      %v8833 = vpop.f32.mrb[0].mxu0
      %8834 = vmatprep.mubr.f32.mxu0 0.0
      %8835 = vmatmul.mubr.f32.gmra.mrb[0].mxu0 %v8633
      %v8836 = vpop.f32.mrb[0].mxu0
      %v8837 = vadd.f32 0.0, %v8836
      %v8838 = vpop.f32.mrb[0].mxu0
      %8839 = vmatprep.mubr.f32.mxu0 0.0
      %8840 = vmatmul.mubr.f32.gmra.mrb[0].mxu0 %v8636
      %v8841 = vpop.f32.mrb[0].mxu0
      %v8842 = vadd.f32 0.0, %v8841
      %v8843 = vpop.f32.mrb[0].mxu0
      %8844 = vmatprep.mubr.f32.mxu0 0.0
      %8845 = vmatmul.mubr.f32.gmra.mrb[0].mxu0 %v8639
      %v8846 = vpop.f32.mrb[0].mxu0
      %v8847 = vadd.f32 0.0, %v8846
      %v8848 = vpop.f32.mrb[0].mxu0
      %8849 = vmatprep.mubr.f32.mxu0 0.0
      %8850 = vmatmul.mubr.f32.gmra.mrb[0].mxu0 %v8642
      %v8851 = vpop.f32.mrb[0].mxu0
      %v8852 = vadd.f32 0.0, %v8851
      %v8853 = vpop.f32.mrb[0].mxu0
      %8854 = vmatprep.mubr.f32.mxu0 0.0
      %8855 = vmatmul.mubr.f32.gmra.mrb[0].mxu0 %v8645
      %v8856 = vpop.f32.mrb[0].mxu0
      %v8857 = vadd.f32 0.0, %v8856
      %v8858 = vpop.f32.mrb[0].mxu0
      %8859 = vmatprep.mubr.f32.mxu0 0.0
      %8860 = vmatmul.mubr.f32.gmra.mrb[0].mxu0 %v8648
      %v8861 = vpop.f32.mrb[0].mxu0
      %v8862 = vadd.f32 0.0, %v8861
      %v8863 = vpop.f32.mrb[0].mxu0
      %8864 = vmatprep.mubr.f32.mxu0 0.0
      %8865 = vmatmul.mubr.f32.gmra.mrb[0].mxu0 %v8651
      %v8866 = vpop.f32.mrb[0].mxu0
      %v8867 = vadd.f32 0.0, %v8866
      %v8868 = vpop.f32.mrb[0].mxu0
      %8869 = vmatprep.mubr.f32.mxu0 0.0
      %8870 = vmatmul.mubr.f32.gmra.mrb[0].mxu0 %v8654
      %v8871 = vpop.f32.mrb[0].mxu0
      %v8872 = vadd.f32 0.0, %v8871
      %v8873 = vpop.f32.mrb[0].mxu0
      %8874 = vmatprep.mubr.f32.mxu0 0.0
      %8875 = vmatmul.mubr.f32.gmra.mrb[0].mxu0 %v8657
      %v8876 = vpop.f32.mrb[0].mxu0
      %v8877 = vadd.f32 0.0, %v8876
      %v8878 = vpop.f32.mrb[0].mxu0
      %8879 = vmatprep.mubr.f32.mxu0 0.0
      %8880 = vmatmul.mubr.f32.gmra.mrb[0].mxu0 %v8660
      %v8881 = vpop.f32.mrb[0].mxu0
      %v8882 = vadd.f32 0.0, %v8881
      %v8883 = vpop.f32.mrb[0].mxu0
      %8884 = vmatprep.mubr.f32.mxu0 0.0
      %8885 = vmatmul.mubr.f32.gmra.mrb[0].mxu0 %v8663
      %v8886 = vpop.f32.mrb[0].mxu0
      %v8887 = vadd.f32 0.0, %v8886
      %v8888 = vpop.f32.mrb[0].mxu0
      %8889 = vdwg.mxu0
      %v8890 = vadd.f32 %v8280, %v8732
      %v8891 = vadd.f32 %v8281, %v8737
      %v8892 = vadd.f32 %v8282, %v8742
      %v8893 = vadd.f32 %v8283, %v8747
      %v8894 = vadd.f32 %v8284, %v8752
      %v8895 = vadd.f32 %v8285, %v8757
      %v8896 = vadd.f32 %v8286, %v8762
      %v8897 = vadd.f32 %v8287, %v8767
      %v8898 = vadd.f32 %v8288, %v8772
      %v8899 = vadd.f32 %v8289, %v8777
      %v8900 = vadd.f32 %v8290, %v8782
      %v8901 = vadd.f32 %v8291, %v8787
      %v8902 = vadd.f32 %v8292, %v8792
      %v8903 = vadd.f32 %v8293, %v8797
      %v8904 = vadd.f32 %v8294, %v8802
      %v8905 = vadd.f32 %v8295, %v8807
      %v8906 = vadd.f32 %v8296, %v8812
      %v8907 = vadd.f32 %v8297, %v8817
      %v8908 = vadd.f32 %v8298, %v8822
      %v8909 = vadd.f32 %v8299, %v8827
      %v8910 = vadd.f32 %v8300, %v8832
      %v8911 = vadd.f32 %v8301, %v8837
      %v8912 = vadd.f32 %v8302, %v8842
      %v8913 = vadd.f32 %v8303, %v8847
      %v8914 = vadd.f32 %v8304, %v8852
      %v8915 = vadd.f32 %v8305, %v8857
      %v8916 = vadd.f32 %v8306, %v8862
      %v8917 = vadd.f32 %v8307, %v8867
      %v8918 = vadd.f32 %v8308, %v8872
      %v8919 = vadd.f32 %v8309, %v8877
      %v8920 = vadd.f32 %v8310, %v8882
      %v8921 = vadd.f32 %v8311, %v8887
      %s8922 = scalar_lea.vmem %s6, 56
      %v8923 = vld [vmem:[%s8922] sm:$0xff]
      %v8925 = vsel %vm1672, %v8537, 0
      %v8928 = vsel %vm1672, %v8538, 0
      %v8931 = vsel %vm1672, %v8539, 0
      %v8934 = vsel %vm1672, %v8540, 0
      %v8937 = vsel %vm1672, %v8541, 0
      %v8940 = vsel %vm1672, %v8542, 0
      %v8943 = vsel %vm1672, %v8543, 0
      %v8946 = vsel %vm1672, %v8544, 0
      %v8949 = vsel %vm1672, %v8545, 0
      %v8952 = vsel %vm1672, %v8546, 0
      %v8955 = vsel %vm1672, %v8547, 0
      %v8958 = vsel %vm1672, %v8548, 0
      %v8961 = vsel %vm1672, %v8549, 0
      %v8964 = vsel %vm1672, %v8550, 0
      %v8967 = vsel %vm1672, %v8551, 0
      %v8970 = vsel %vm1672, %v8552, 0
      %v8973 = vsel %vm1672, %v8553, 0
      %v8976 = vsel %vm1672, %v8554, 0
      %v8979 = vsel %vm1672, %v8555, 0
      %v8982 = vsel %vm1672, %v8556, 0
      %v8985 = vsel %vm1672, %v8557, 0
      %v8988 = vsel %vm1672, %v8558, 0
      %v8991 = vsel %vm1672, %v8559, 0
      %v8994 = vsel %vm1672, %v8560, 0
      %v8997 = vsel %vm1672, %v8561, 0
      %v9000 = vsel %vm1672, %v8562, 0
      %v9003 = vsel %vm1672, %v8563, 0
      %v9006 = vsel %vm1672, %v8564, 0
      %v9009 = vsel %vm1672, %v8565, 0
      %v9012 = vsel %vm1672, %v8566, 0
      %9014 = vmatprep.subr.mxu0 0.0
      %9015 = vmatpush1.msra.mxu0 %v8923
      %9016 = vmatprep.subr.mxu0 0.0
      %9017 = vmatpush1.msra.mxu0 0.0
      %9018 = vmatprep.subr.mxu0 0.0
      %9019 = vmatpush1.msra.mxu0 0.0
      %9020 = vmatprep.subr.mxu0 0.0
      %9021 = vmatpush1.msra.mxu0 0.0
      %9022 = vmatprep.subr.mxu0 0.0
      %9023 = vmatpush1.msra.mxu0 0.0
      %9024 = vmatprep.subr.mxu0 0.0
      %9025 = vmatpush1.msra.mxu0 0.0
      %9026 = vmatprep.subr.mxu0 0.0
      %9027 = vmatpush1.msra.mxu0 0.0
      %9028 = vmatprep.subr.mxu0 0.0
      %9029 = vmatpush1.msra.mxu0 0.0
      %9030 = vmatprep.subr.mxu0 0.0
      %9031 = vmatpush1.msra.mxu0 0.0
      %9032 = vmatprep.subr.mxu0 0.0
      %9033 = vmatpush1.msra.mxu0 0.0
      %9034 = vmatprep.subr.mxu0 0.0
      %9035 = vmatpush1.msra.mxu0 0.0
      %9036 = vmatprep.subr.mxu0 0.0
      %9037 = vmatpush1.msra.mxu0 0.0
      %9038 = vmatprep.subr.mxu0 0.0
      %9039 = vmatpush1.msra.mxu0 0.0
      %9040 = vmatprep.subr.mxu0 0.0
      %9041 = vmatpush1.msra.mxu0 0.0
      %9042 = vmatprep.subr.mxu0 0.0
      %9043 = vmatpush1.msra.mxu0 0.0
      %9044 = vmatprep.subr.mxu0 0.0
      %9045 = vmatpush1.msra.mxu0 0.0
      %9046 = vmatprep.subr.mxu0 0.0
      %9047 = vmatpush1.msra.mxu0 0.0
      %9048 = vmatprep.subr.mxu0 0.0
      %9049 = vmatpush1.msra.mxu0 0.0
      %9050 = vmatprep.subr.mxu0 0.0
      %9051 = vmatpush1.msra.mxu0 0.0
      %9052 = vmatprep.subr.mxu0 0.0
      %9053 = vmatpush1.msra.mxu0 0.0
      %9054 = vmatprep.subr.mxu0 0.0
      %9055 = vmatpush1.msra.mxu0 0.0
      %9056 = vmatprep.subr.mxu0 0.0
      %9057 = vmatpush1.msra.mxu0 0.0
      %9058 = vmatprep.subr.mxu0 0.0
      %9059 = vmatpush1.msra.mxu0 0.0
      %9060 = vmatprep.subr.mxu0 0.0
      %9061 = vmatpush1.msra.mxu0 0.0
      %9062 = vmatprep.subr.mxu0 0.0
      %9063 = vmatpush1.msra.mxu0 0.0
      %9064 = vmatprep.subr.mxu0 0.0
      %9065 = vmatpush1.msra.mxu0 0.0
      %9066 = vmatprep.subr.mxu0 0.0
      %9067 = vmatpush1.msra.mxu0 0.0
      %9068 = vmatprep.subr.mxu0 0.0
      %9069 = vmatpush1.msra.mxu0 0.0
      %9070 = vmatprep.subr.mxu0 0.0
      %9071 = vmatpush1.msra.mxu0 0.0
      %9072 = vmatprep.subr.mxu0 0.0
      %9073 = vmatpush1.msra.mxu0 0.0
      %9074 = vmatprep.subr.mxu0 0.0
      %9075 = vmatpush1.msra.mxu0 0.0
      %9076 = vmatprep.subr.mxu0 0.0
      %9077 = vmatpush1.msra.mxu0 0.0
      %9078 = vmatprep.mubr.f32.mxu0 0.0
      %9079 = vmatmul.mubr.f32.gmra.mrb[0].mxu0 %v8925
      %v9080 = vpop.f32.mrb[0].mxu0
      %v9081 = vadd.f32 0.0, %v9080
      %v9082 = vpop.f32.mrb[0].mxu0
      %9083 = vmatprep.mubr.f32.mxu0 0.0
      %9084 = vmatmul.mubr.f32.gmra.mrb[0].mxu0 %v8928
      %v9085 = vpop.f32.mrb[0].mxu0
      %v9086 = vadd.f32 0.0, %v9085
      %v9087 = vpop.f32.mrb[0].mxu0
      %9088 = vmatprep.mubr.f32.mxu0 0.0
      %9089 = vmatmul.mubr.f32.gmra.mrb[0].mxu0 %v8931
      %v9090 = vpop.f32.mrb[0].mxu0
      %v9091 = vadd.f32 0.0, %v9090
      %v9092 = vpop.f32.mrb[0].mxu0
      %9093 = vmatprep.mubr.f32.mxu0 0.0
      %9094 = vmatmul.mubr.f32.gmra.mrb[0].mxu0 %v8934
      %v9095 = vpop.f32.mrb[0].mxu0
      %v9096 = vadd.f32 0.0, %v9095
      %v9097 = vpop.f32.mrb[0].mxu0
      %9098 = vmatprep.mubr.f32.mxu0 0.0
      %9099 = vmatmul.mubr.f32.gmra.mrb[0].mxu0 %v8937
      %v9100 = vpop.f32.mrb[0].mxu0
      %v9101 = vadd.f32 0.0, %v9100
      %v9102 = vpop.f32.mrb[0].mxu0
      %9103 = vmatprep.mubr.f32.mxu0 0.0
      %9104 = vmatmul.mubr.f32.gmra.mrb[0].mxu0 %v8940
      %v9105 = vpop.f32.mrb[0].mxu0
      %v9106 = vadd.f32 0.0, %v9105
      %v9107 = vpop.f32.mrb[0].mxu0
      %9108 = vmatprep.mubr.f32.mxu0 0.0
      %9109 = vmatmul.mubr.f32.gmra.mrb[0].mxu0 %v8943
      %v9110 = vpop.f32.mrb[0].mxu0
      %v9111 = vadd.f32 0.0, %v9110
      %v9112 = vpop.f32.mrb[0].mxu0
      %9113 = vmatprep.mubr.f32.mxu0 0.0
      %9114 = vmatmul.mubr.f32.gmra.mrb[0].mxu0 %v8946
      %v9115 = vpop.f32.mrb[0].mxu0
      %v9116 = vadd.f32 0.0, %v9115
      %v9117 = vpop.f32.mrb[0].mxu0
      %9118 = vmatprep.mubr.f32.mxu0 0.0
      %9119 = vmatmul.mubr.f32.gmra.mrb[0].mxu0 %v8949
      %v9120 = vpop.f32.mrb[0].mxu0
      %v9121 = vadd.f32 0.0, %v9120
      %v9122 = vpop.f32.mrb[0].mxu0
      %9123 = vmatprep.mubr.f32.mxu0 0.0
      %9124 = vmatmul.mubr.f32.gmra.mrb[0].mxu0 %v8952
      %v9125 = vpop.f32.mrb[0].mxu0
      %v9126 = vadd.f32 0.0, %v9125
      %v9127 = vpop.f32.mrb[0].mxu0
      %9128 = vmatprep.mubr.f32.mxu0 0.0
      %9129 = vmatmul.mubr.f32.gmra.mrb[0].mxu0 %v8955
      %v9130 = vpop.f32.mrb[0].mxu0
      %v9131 = vadd.f32 0.0, %v9130
      %v9132 = vpop.f32.mrb[0].mxu0
      %9133 = vmatprep.mubr.f32.mxu0 0.0
      %9134 = vmatmul.mubr.f32.gmra.mrb[0].mxu0 %v8958
      %v9135 = vpop.f32.mrb[0].mxu0
      %v9136 = vadd.f32 0.0, %v9135
      %v9137 = vpop.f32.mrb[0].mxu0
      %9138 = vmatprep.mubr.f32.mxu0 0.0
      %9139 = vmatmul.mubr.f32.gmra.mrb[0].mxu0 %v8961
      %v9140 = vpop.f32.mrb[0].mxu0
      %v9141 = vadd.f32 0.0, %v9140
      %v9142 = vpop.f32.mrb[0].mxu0
      %9143 = vmatprep.mubr.f32.mxu0 0.0
      %9144 = vmatmul.mubr.f32.gmra.mrb[0].mxu0 %v8964
      %v9145 = vpop.f32.mrb[0].mxu0
      %v9146 = vadd.f32 0.0, %v9145
      %v9147 = vpop.f32.mrb[0].mxu0
      %9148 = vmatprep.mubr.f32.mxu0 0.0
      %9149 = vmatmul.mubr.f32.gmra.mrb[0].mxu0 %v8967
      %v9150 = vpop.f32.mrb[0].mxu0
      %v9151 = vadd.f32 0.0, %v9150
      %v9152 = vpop.f32.mrb[0].mxu0
      %9153 = vmatprep.mubr.f32.mxu0 0.0
      %9154 = vmatmul.mubr.f32.gmra.mrb[0].mxu0 %v8970
      %v9155 = vpop.f32.mrb[0].mxu0
      %v9156 = vadd.f32 0.0, %v9155
      %v9157 = vpop.f32.mrb[0].mxu0
      %9158 = vmatprep.mubr.f32.mxu0 0.0
      %9159 = vmatmul.mubr.f32.gmra.mrb[0].mxu0 %v8973
      %v9160 = vpop.f32.mrb[0].mxu0
      %v9161 = vadd.f32 0.0, %v9160
      %v9162 = vpop.f32.mrb[0].mxu0
      %9163 = vmatprep.mubr.f32.mxu0 0.0
      %9164 = vmatmul.mubr.f32.gmra.mrb[0].mxu0 %v8976
      %v9165 = vpop.f32.mrb[0].mxu0
      %v9166 = vadd.f32 0.0, %v9165
      %v9167 = vpop.f32.mrb[0].mxu0
      %9168 = vmatprep.mubr.f32.mxu0 0.0
      %9169 = vmatmul.mubr.f32.gmra.mrb[0].mxu0 %v8979
      %v9170 = vpop.f32.mrb[0].mxu0
      %v9171 = vadd.f32 0.0, %v9170
      %v9172 = vpop.f32.mrb[0].mxu0
      %9173 = vmatprep.mubr.f32.mxu0 0.0
      %9174 = vmatmul.mubr.f32.gmra.mrb[0].mxu0 %v8982
      %v9175 = vpop.f32.mrb[0].mxu0
      %v9176 = vadd.f32 0.0, %v9175
      %v9177 = vpop.f32.mrb[0].mxu0
      %9178 = vmatprep.mubr.f32.mxu0 0.0
      %9179 = vmatmul.mubr.f32.gmra.mrb[0].mxu0 %v8985
      %v9180 = vpop.f32.mrb[0].mxu0
      %v9181 = vadd.f32 0.0, %v9180
      %v9182 = vpop.f32.mrb[0].mxu0
      %9183 = vmatprep.mubr.f32.mxu0 0.0
      %9184 = vmatmul.mubr.f32.gmra.mrb[0].mxu0 %v8988
      %v9185 = vpop.f32.mrb[0].mxu0
      %v9186 = vadd.f32 0.0, %v9185
      %v9187 = vpop.f32.mrb[0].mxu0
      %9188 = vmatprep.mubr.f32.mxu0 0.0
      %9189 = vmatmul.mubr.f32.gmra.mrb[0].mxu0 %v8991
      %v9190 = vpop.f32.mrb[0].mxu0
      %v9191 = vadd.f32 0.0, %v9190
      %v9192 = vpop.f32.mrb[0].mxu0
      %9193 = vmatprep.mubr.f32.mxu0 0.0
      %9194 = vmatmul.mubr.f32.gmra.mrb[0].mxu0 %v8994
      %v9195 = vpop.f32.mrb[0].mxu0
      %v9196 = vadd.f32 0.0, %v9195
      %v9197 = vpop.f32.mrb[0].mxu0
      %9198 = vmatprep.mubr.f32.mxu0 0.0
      %9199 = vmatmul.mubr.f32.gmra.mrb[0].mxu0 %v8997
      %v9200 = vpop.f32.mrb[0].mxu0
      %v9201 = vadd.f32 0.0, %v9200
      %v9202 = vpop.f32.mrb[0].mxu0
      %9203 = vmatprep.mubr.f32.mxu0 0.0
      %9204 = vmatmul.mubr.f32.gmra.mrb[0].mxu0 %v9000
      %v9205 = vpop.f32.mrb[0].mxu0
      %v9206 = vadd.f32 0.0, %v9205
      %v9207 = vpop.f32.mrb[0].mxu0
      %9208 = vmatprep.mubr.f32.mxu0 0.0
      %9209 = vmatmul.mubr.f32.gmra.mrb[0].mxu0 %v9003
      %v9210 = vpop.f32.mrb[0].mxu0
      %v9211 = vadd.f32 0.0, %v9210
      %v9212 = vpop.f32.mrb[0].mxu0
      %9213 = vmatprep.mubr.f32.mxu0 0.0
      %9214 = vmatmul.mubr.f32.gmra.mrb[0].mxu0 %v9006
      %v9215 = vpop.f32.mrb[0].mxu0
      %v9216 = vadd.f32 0.0, %v9215
      %v9217 = vpop.f32.mrb[0].mxu0
      %9218 = vmatprep.mubr.f32.mxu0 0.0
      %9219 = vmatmul.mubr.f32.gmra.mrb[0].mxu0 %v9009
      %v9220 = vpop.f32.mrb[0].mxu0
      %v9221 = vadd.f32 0.0, %v9220
      %v9222 = vpop.f32.mrb[0].mxu0
      %9223 = vmatprep.mubr.f32.mxu0 0.0
      %9224 = vmatmul.mubr.f32.gmra.mrb[0].mxu0 %v9012
      %v9225 = vpop.f32.mrb[0].mxu0
      %v9226 = vadd.f32 0.0, %v9225
      %v9227 = vpop.f32.mrb[0].mxu0
      %9228 = vmatprep.mubr.f32.mxu0 0.0
      %9229 = vmatmul.mubr.f32.gmra.mrb[0].mxu0 %v8660
      %v9230 = vpop.f32.mrb[0].mxu0
      %v9231 = vadd.f32 0.0, %v9230
      %v9232 = vpop.f32.mrb[0].mxu0
      %9233 = vmatprep.mubr.f32.mxu0 0.0
      %9234 = vmatmul.mubr.f32.gmra.mrb[0].mxu0 %v8663
      %v9235 = vpop.f32.mrb[0].mxu0
      %v9236 = vadd.f32 0.0, %v9235
      %v9237 = vpop.f32.mrb[0].mxu0
      %9238 = vdwg.mxu0
      %v9239 = vadd.f32 %v8890, %v9081
      %v9240 = vadd.f32 %v8891, %v9086
      %v9241 = vadd.f32 %v8892, %v9091
      %v9242 = vadd.f32 %v8893, %v9096
      %v9243 = vadd.f32 %v8894, %v9101
      %v9244 = vadd.f32 %v8895, %v9106
      %v9245 = vadd.f32 %v8896, %v9111
      %v9246 = vadd.f32 %v8897, %v9116
      %v9247 = vadd.f32 %v8898, %v9121
      %v9248 = vadd.f32 %v8899, %v9126
      %v9249 = vadd.f32 %v8900, %v9131
      %v9250 = vadd.f32 %v8901, %v9136
      %v9251 = vadd.f32 %v8902, %v9141
      %v9252 = vadd.f32 %v8903, %v9146
      %v9253 = vadd.f32 %v8904, %v9151
      %v9254 = vadd.f32 %v8905, %v9156
      %v9255 = vadd.f32 %v8906, %v9161
      %v9256 = vadd.f32 %v8907, %v9166
      %v9257 = vadd.f32 %v8908, %v9171
      %v9258 = vadd.f32 %v8909, %v9176
      %v9259 = vadd.f32 %v8910, %v9181
      %v9260 = vadd.f32 %v8911, %v9186
      %v9261 = vadd.f32 %v8912, %v9191
      %v9262 = vadd.f32 %v8913, %v9196
      %v9263 = vadd.f32 %v8914, %v9201
      %v9264 = vadd.f32 %v8915, %v9206
      %v9265 = vadd.f32 %v8916, %v9211
      %v9266 = vadd.f32 %v8917, %v9216
      %v9267 = vadd.f32 %v8918, %v9221
      %v9268 = vadd.f32 %v8919, %v9226
      %v9269 = vadd.f32 %v8920, %v9231
      %v9270 = vadd.f32 %v8921, %v9236
      %s9271 = scalar_lea.vmem %s7, 2048
      %v9272 = vld [vmem:[%s9271] sm:$0xff]
      %v9273 = vld [vmem:[%s9271 + $0x8] sm:$0xff]
      %v9274 = vld [vmem:[%s9271 + $0x10] sm:$0xff]
      %v9275 = vld [vmem:[%s9271 + $0x18] sm:$0xff]
      %v9276 = vld [vmem:[%s9271 + $0x20] sm:$0xff]
      %v9277 = vld [vmem:[%s9271 + $0x28] sm:$0xff]
      %v9278 = vld [vmem:[%s9271 + $0x30] sm:$0xff]
      %v9279 = vld [vmem:[%s9271 + $0x38] sm:$0xff]
      %v9280 = vld [vmem:[%s9271 + $0x40] sm:$0xff]
      %v9281 = vld [vmem:[%s9271 + $0x48] sm:$0xff]
      %v9282 = vld [vmem:[%s9271 + $0x50] sm:$0xff]
      %v9283 = vld [vmem:[%s9271 + $0x58] sm:$0xff]
      %v9284 = vld [vmem:[%s9271 + $0x60] sm:$0xff]
      %v9285 = vld [vmem:[%s9271 + $0x68] sm:$0xff]
      %v9286 = vld [vmem:[%s9271 + $0x70] sm:$0xff]
      %v9287 = vld [vmem:[%s9271 + $0x78] sm:$0xff]
      %v9288 = vld [vmem:[%s9271 + $0x80] sm:$0xff]
      %v9289 = vld [vmem:[%s9271 + $0x88] sm:$0xff]
      %v9290 = vld [vmem:[%s9271 + $0x90] sm:$0xff]
      %v9291 = vld [vmem:[%s9271 + $0x98] sm:$0xff]
      %v9292 = vld [vmem:[%s9271 + $0xa0] sm:$0xff]
      %v9293 = vld [vmem:[%s9271 + $0xa8] sm:$0xff]
      %v9294 = vld [vmem:[%s9271 + $0xb0] sm:$0xff]
      %v9295 = vld [vmem:[%s9271 + $0xb8] sm:$0xff]
      %v9296 = vld [vmem:[%s9271 + $0xc0] sm:$0xff]
      %v9297 = vld [vmem:[%s9271 + $0xc8] sm:$0xff]
      %v9298 = vld [vmem:[%s9271 + $0xd0] sm:$0xff]
      %v9299 = vld [vmem:[%s9271 + $0xd8] sm:$0xff]
      %v9300 = vld [vmem:[%s9271 + $0xe0] sm:$0xff]
      %v9301 = vld [vmem:[%s9271 + $0xe8] sm:$0xff]
      %v9302 = vld [vmem:[%s9271 + $0xf0] sm:$0xff]
      %v9303 = vld [vmem:[%s9271 + $0xf8] sm:$0xff]
      %9305 = vset.pattern.permute.xlu0 0
      %9306 = vperm.xlu0 %9305, %v9272
      %v9307 = vpop.permute.xlu0 %9306
      %9310 = vset.pattern.permute.xlu0 0
      %9311 = vperm.xlu0 %9310, %v9273
      %v9312 = vpop.permute.xlu0 %9311
      %9315 = vset.pattern.permute.xlu0 0
      %9316 = vperm.xlu0 %9315, %v9274
      %v9317 = vpop.permute.xlu0 %9316
      %9320 = vset.pattern.permute.xlu0 0
      %9321 = vperm.xlu0 %9320, %v9275
      %v9322 = vpop.permute.xlu0 %9321
      %9325 = vset.pattern.permute.xlu0 0
      %9326 = vperm.xlu0 %9325, %v9276
      %v9327 = vpop.permute.xlu0 %9326
      %9330 = vset.pattern.permute.xlu0 0
      %9331 = vperm.xlu0 %9330, %v9277
      %v9332 = vpop.permute.xlu0 %9331
      %9335 = vset.pattern.permute.xlu0 0
      %9336 = vperm.xlu0 %9335, %v9278
      %v9337 = vpop.permute.xlu0 %9336
      %9340 = vset.pattern.permute.xlu0 0
      %9341 = vperm.xlu0 %9340, %v9279
      %v9342 = vpop.permute.xlu0 %9341
      %9345 = vset.pattern.permute.xlu0 0
      %9346 = vperm.xlu0 %9345, %v9280
      %v9347 = vpop.permute.xlu0 %9346
      %9350 = vset.pattern.permute.xlu0 0
      %9351 = vperm.xlu0 %9350, %v9281
      %v9352 = vpop.permute.xlu0 %9351
      %9355 = vset.pattern.permute.xlu0 0
      %9356 = vperm.xlu0 %9355, %v9282
      %v9357 = vpop.permute.xlu0 %9356
      %9360 = vset.pattern.permute.xlu0 0
      %9361 = vperm.xlu0 %9360, %v9283
      %v9362 = vpop.permute.xlu0 %9361
      %9365 = vset.pattern.permute.xlu0 0
      %9366 = vperm.xlu0 %9365, %v9284
      %v9367 = vpop.permute.xlu0 %9366
      %9370 = vset.pattern.permute.xlu0 0
      %9371 = vperm.xlu0 %9370, %v9285
      %v9372 = vpop.permute.xlu0 %9371
      %9375 = vset.pattern.permute.xlu0 0
      %9376 = vperm.xlu0 %9375, %v9286
      %v9377 = vpop.permute.xlu0 %9376
      %9380 = vset.pattern.permute.xlu0 0
      %9381 = vperm.xlu0 %9380, %v9287
      %v9382 = vpop.permute.xlu0 %9381
      %9385 = vset.pattern.permute.xlu0 0
      %9386 = vperm.xlu0 %9385, %v9288
      %v9387 = vpop.permute.xlu0 %9386
      %9390 = vset.pattern.permute.xlu0 0
      %9391 = vperm.xlu0 %9390, %v9289
      %v9392 = vpop.permute.xlu0 %9391
      %9395 = vset.pattern.permute.xlu0 0
      %9396 = vperm.xlu0 %9395, %v9290
      %v9397 = vpop.permute.xlu0 %9396
      %9400 = vset.pattern.permute.xlu0 0
      %9401 = vperm.xlu0 %9400, %v9291
      %v9402 = vpop.permute.xlu0 %9401
      %9405 = vset.pattern.permute.xlu0 0
      %9406 = vperm.xlu0 %9405, %v9292
      %v9407 = vpop.permute.xlu0 %9406
      %9410 = vset.pattern.permute.xlu0 0
      %9411 = vperm.xlu0 %9410, %v9293
      %v9412 = vpop.permute.xlu0 %9411
      %9415 = vset.pattern.permute.xlu0 0
      %9416 = vperm.xlu0 %9415, %v9294
      %v9417 = vpop.permute.xlu0 %9416
      %9420 = vset.pattern.permute.xlu0 0
      %9421 = vperm.xlu0 %9420, %v9295
      %v9422 = vpop.permute.xlu0 %9421
      %9425 = vset.pattern.permute.xlu0 0
      %9426 = vperm.xlu0 %9425, %v9296
      %v9427 = vpop.permute.xlu0 %9426
      %9430 = vset.pattern.permute.xlu0 0
      %9431 = vperm.xlu0 %9430, %v9297
      %v9432 = vpop.permute.xlu0 %9431
      %9435 = vset.pattern.permute.xlu0 0
      %9436 = vperm.xlu0 %9435, %v9298
      %v9437 = vpop.permute.xlu0 %9436
      %9440 = vset.pattern.permute.xlu0 0
      %9441 = vperm.xlu0 %9440, %v9299
      %v9442 = vpop.permute.xlu0 %9441
      %9445 = vset.pattern.permute.xlu0 0
      %9446 = vperm.xlu0 %9445, %v9300
      %v9447 = vpop.permute.xlu0 %9446
      %9450 = vset.pattern.permute.xlu0 0
      %9451 = vperm.xlu0 %9450, %v9301
      %v9452 = vpop.permute.xlu0 %9451
      %9455 = vset.pattern.permute.xlu0 0
      %9456 = vperm.xlu0 %9455, %v9302
      %v9457 = vpop.permute.xlu0 %9456
      %9460 = vset.pattern.permute.xlu0 0
      %9461 = vperm.xlu0 %9460, %v9303
      %v9462 = vpop.permute.xlu0 %9461
      %v9464 = vmul.f32 %v3309, %v9307
      %v9465 = vmul.f32 %v3311, %v9312
      %v9466 = vmul.f32 %v3313, %v9317
      %v9467 = vmul.f32 %v3315, %v9322
      %v9468 = vmul.f32 %v3317, %v9327
      %v9469 = vmul.f32 %v3319, %v9332
      %v9470 = vmul.f32 %v3321, %v9337
      %v9471 = vmul.f32 %v3323, %v9342
      %v9472 = vmul.f32 %v3325, %v9347
      %v9473 = vmul.f32 %v3327, %v9352
      %v9474 = vmul.f32 %v3329, %v9357
      %v9475 = vmul.f32 %v3331, %v9362
      %v9476 = vmul.f32 %v3333, %v9367
      %v9477 = vmul.f32 %v3335, %v9372
      %v9478 = vmul.f32 %v3337, %v9377
      %v9479 = vmul.f32 %v3339, %v9382
      %v9480 = vmul.f32 %v3341, %v9387
      %v9481 = vmul.f32 %v3343, %v9392
      %v9482 = vmul.f32 %v3345, %v9397
      %v9483 = vmul.f32 %v3347, %v9402
      %v9484 = vmul.f32 %v3349, %v9407
      %v9485 = vmul.f32 %v3351, %v9412
      %v9486 = vmul.f32 %v3353, %v9417
      %v9487 = vmul.f32 %v3355, %v9422
      %v9488 = vmul.f32 %v3357, %v9427
      %v9489 = vmul.f32 %v3359, %v9432
      %v9490 = vmul.f32 %v3361, %v9437
      %v9491 = vmul.f32 %v3363, %v9442
      %v9492 = vmul.f32 %v6402, %v9447
      %v9493 = vmul.f32 %v6405, %v9452
      %v9494 = vmul.f32 %v9457, 0.0
      %v9495 = vmul.f32 %v9462, 0.0
      %v9496 = vmul.f32 %v3595, %v9307
      %v9497 = vmul.f32 %v3597, %v9312
      %v9498 = vmul.f32 %v3599, %v9317
      %v9499 = vmul.f32 %v3601, %v9322
      %v9500 = vmul.f32 %v3603, %v9327
      %v9501 = vmul.f32 %v3605, %v9332
      %v9502 = vmul.f32 %v3607, %v9337
      %v9503 = vmul.f32 %v3609, %v9342
      %v9504 = vmul.f32 %v3611, %v9347
      %v9505 = vmul.f32 %v3613, %v9352
      %v9506 = vmul.f32 %v3615, %v9357
      %v9507 = vmul.f32 %v3617, %v9362
      %v9508 = vmul.f32 %v3619, %v9367
      %v9509 = vmul.f32 %v3621, %v9372
      %v9510 = vmul.f32 %v3623, %v9377
      %v9511 = vmul.f32 %v3625, %v9382
      %v9512 = vmul.f32 %v3627, %v9387
      %v9513 = vmul.f32 %v3629, %v9392
      %v9514 = vmul.f32 %v3631, %v9397
      %v9515 = vmul.f32 %v3633, %v9402
      %v9516 = vmul.f32 %v3635, %v9407
      %v9517 = vmul.f32 %v3637, %v9412
      %v9518 = vmul.f32 %v3639, %v9417
      %v9519 = vmul.f32 %v3641, %v9422
      %v9520 = vmul.f32 %v3643, %v9427
      %v9521 = vmul.f32 %v3645, %v9432
      %v9522 = vmul.f32 %v3647, %v9437
      %v9523 = vmul.f32 %v3649, %v9442
      %v9524 = vmul.f32 %v6599, %v9447
      %v9525 = vmul.f32 %v6602, %v9452
      %s9526 = scalar_lea.vmem %s5, 64
      %v9527 = vld [vmem:[%s9526] sm:$0xff]
      %v9529 = vsel %vm1672, %v9464, 0
      %v9532 = vsel %vm1672, %v9465, 0
      %v9535 = vsel %vm1672, %v9466, 0
      %v9538 = vsel %vm1672, %v9467, 0
      %v9541 = vsel %vm1672, %v9468, 0
      %v9544 = vsel %vm1672, %v9469, 0
      %v9547 = vsel %vm1672, %v9470, 0
      %v9550 = vsel %vm1672, %v9471, 0
      %v9553 = vsel %vm1672, %v9472, 0
      %v9556 = vsel %vm1672, %v9473, 0
      %v9559 = vsel %vm1672, %v9474, 0
      %v9562 = vsel %vm1672, %v9475, 0
      %v9565 = vsel %vm1672, %v9476, 0
      %v9568 = vsel %vm1672, %v9477, 0
      %v9571 = vsel %vm1672, %v9478, 0
      %v9574 = vsel %vm1672, %v9479, 0
      %v9577 = vsel %vm1672, %v9480, 0
      %v9580 = vsel %vm1672, %v9481, 0
      %v9583 = vsel %vm1672, %v9482, 0
      %v9586 = vsel %vm1672, %v9483, 0
      %v9589 = vsel %vm1672, %v9484, 0
      %v9592 = vsel %vm1672, %v9485, 0
      %v9595 = vsel %vm1672, %v9486, 0
      %v9598 = vsel %vm1672, %v9487, 0
      %v9601 = vsel %vm1672, %v9488, 0
      %v9604 = vsel %vm1672, %v9489, 0
      %v9607 = vsel %vm1672, %v9490, 0
      %v9610 = vsel %vm1672, %v9491, 0
      %v9613 = vsel %vm1672, %v9492, 0
      %v9616 = vsel %vm1672, %v9493, 0
      %v9619 = vsel %vm1672, %v9494, 0
      %v9622 = vsel %vm1672, %v9495, 0
      %9624 = vmatprep.subr.mxu0 0.0
      %9625 = vmatpush1.msra.mxu0 %v9527
      %9626 = vmatprep.subr.mxu0 0.0
      %9627 = vmatpush1.msra.mxu0 0.0
      %9628 = vmatprep.subr.mxu0 0.0
      %9629 = vmatpush1.msra.mxu0 0.0
      %9630 = vmatprep.subr.mxu0 0.0
      %9631 = vmatpush1.msra.mxu0 0.0
      %9632 = vmatprep.subr.mxu0 0.0
      %9633 = vmatpush1.msra.mxu0 0.0
      %9634 = vmatprep.subr.mxu0 0.0
      %9635 = vmatpush1.msra.mxu0 0.0
      %9636 = vmatprep.subr.mxu0 0.0
      %9637 = vmatpush1.msra.mxu0 0.0
      %9638 = vmatprep.subr.mxu0 0.0
      %9639 = vmatpush1.msra.mxu0 0.0
      %9640 = vmatprep.subr.mxu0 0.0
      %9641 = vmatpush1.msra.mxu0 0.0
      %9642 = vmatprep.subr.mxu0 0.0
      %9643 = vmatpush1.msra.mxu0 0.0
      %9644 = vmatprep.subr.mxu0 0.0
      %9645 = vmatpush1.msra.mxu0 0.0
      %9646 = vmatprep.subr.mxu0 0.0
      %9647 = vmatpush1.msra.mxu0 0.0
      %9648 = vmatprep.subr.mxu0 0.0
      %9649 = vmatpush1.msra.mxu0 0.0
      %9650 = vmatprep.subr.mxu0 0.0
      %9651 = vmatpush1.msra.mxu0 0.0
      %9652 = vmatprep.subr.mxu0 0.0
      %9653 = vmatpush1.msra.mxu0 0.0
      %9654 = vmatprep.subr.mxu0 0.0
      %9655 = vmatpush1.msra.mxu0 0.0
      %9656 = vmatprep.subr.mxu0 0.0
      %9657 = vmatpush1.msra.mxu0 0.0
      %9658 = vmatprep.subr.mxu0 0.0
      %9659 = vmatpush1.msra.mxu0 0.0
      %9660 = vmatprep.subr.mxu0 0.0
      %9661 = vmatpush1.msra.mxu0 0.0
      %9662 = vmatprep.subr.mxu0 0.0
      %9663 = vmatpush1.msra.mxu0 0.0
      %9664 = vmatprep.subr.mxu0 0.0
      %9665 = vmatpush1.msra.mxu0 0.0
      %9666 = vmatprep.subr.mxu0 0.0
      %9667 = vmatpush1.msra.mxu0 0.0
      %9668 = vmatprep.subr.mxu0 0.0
      %9669 = vmatpush1.msra.mxu0 0.0
      %9670 = vmatprep.subr.mxu0 0.0
      %9671 = vmatpush1.msra.mxu0 0.0
      %9672 = vmatprep.subr.mxu0 0.0
      %9673 = vmatpush1.msra.mxu0 0.0
      %9674 = vmatprep.subr.mxu0 0.0
      %9675 = vmatpush1.msra.mxu0 0.0
      %9676 = vmatprep.subr.mxu0 0.0
      %9677 = vmatpush1.msra.mxu0 0.0
      %9678 = vmatprep.subr.mxu0 0.0
      %9679 = vmatpush1.msra.mxu0 0.0
      %9680 = vmatprep.subr.mxu0 0.0
      %9681 = vmatpush1.msra.mxu0 0.0
      %9682 = vmatprep.subr.mxu0 0.0
      %9683 = vmatpush1.msra.mxu0 0.0
      %9684 = vmatprep.subr.mxu0 0.0
      %9685 = vmatpush1.msra.mxu0 0.0
      %9686 = vmatprep.subr.mxu0 0.0
      %9687 = vmatpush1.msra.mxu0 0.0
      %9688 = vmatprep.mubr.f32.mxu0 0.0
      %9689 = vmatmul.mubr.f32.gmra.mrb[0].mxu0 %v9529
      %v9690 = vpop.f32.mrb[0].mxu0
      %v9691 = vadd.f32 0.0, %v9690
      %v9692 = vpop.f32.mrb[0].mxu0
      %9693 = vmatprep.mubr.f32.mxu0 0.0
      %9694 = vmatmul.mubr.f32.gmra.mrb[0].mxu0 %v9532
      %v9695 = vpop.f32.mrb[0].mxu0
      %v9696 = vadd.f32 0.0, %v9695
      %v9697 = vpop.f32.mrb[0].mxu0
      %9698 = vmatprep.mubr.f32.mxu0 0.0
      %9699 = vmatmul.mubr.f32.gmra.mrb[0].mxu0 %v9535
      %v9700 = vpop.f32.mrb[0].mxu0
      %v9701 = vadd.f32 0.0, %v9700
      %v9702 = vpop.f32.mrb[0].mxu0
      %9703 = vmatprep.mubr.f32.mxu0 0.0
      %9704 = vmatmul.mubr.f32.gmra.mrb[0].mxu0 %v9538
      %v9705 = vpop.f32.mrb[0].mxu0
      %v9706 = vadd.f32 0.0, %v9705
      %v9707 = vpop.f32.mrb[0].mxu0
      %9708 = vmatprep.mubr.f32.mxu0 0.0
      %9709 = vmatmul.mubr.f32.gmra.mrb[0].mxu0 %v9541
      %v9710 = vpop.f32.mrb[0].mxu0
      %v9711 = vadd.f32 0.0, %v9710
      %v9712 = vpop.f32.mrb[0].mxu0
      %9713 = vmatprep.mubr.f32.mxu0 0.0
      %9714 = vmatmul.mubr.f32.gmra.mrb[0].mxu0 %v9544
      %v9715 = vpop.f32.mrb[0].mxu0
      %v9716 = vadd.f32 0.0, %v9715
      %v9717 = vpop.f32.mrb[0].mxu0
      %9718 = vmatprep.mubr.f32.mxu0 0.0
      %9719 = vmatmul.mubr.f32.gmra.mrb[0].mxu0 %v9547
      %v9720 = vpop.f32.mrb[0].mxu0
      %v9721 = vadd.f32 0.0, %v9720
      %v9722 = vpop.f32.mrb[0].mxu0
      %9723 = vmatprep.mubr.f32.mxu0 0.0
      %9724 = vmatmul.mubr.f32.gmra.mrb[0].mxu0 %v9550
      %v9725 = vpop.f32.mrb[0].mxu0
      %v9726 = vadd.f32 0.0, %v9725
      %v9727 = vpop.f32.mrb[0].mxu0
      %9728 = vmatprep.mubr.f32.mxu0 0.0
      %9729 = vmatmul.mubr.f32.gmra.mrb[0].mxu0 %v9553
      %v9730 = vpop.f32.mrb[0].mxu0
      %v9731 = vadd.f32 0.0, %v9730
      %v9732 = vpop.f32.mrb[0].mxu0
      %9733 = vmatprep.mubr.f32.mxu0 0.0
      %9734 = vmatmul.mubr.f32.gmra.mrb[0].mxu0 %v9556
      %v9735 = vpop.f32.mrb[0].mxu0
      %v9736 = vadd.f32 0.0, %v9735
      %v9737 = vpop.f32.mrb[0].mxu0
      %9738 = vmatprep.mubr.f32.mxu0 0.0
      %9739 = vmatmul.mubr.f32.gmra.mrb[0].mxu0 %v9559
      %v9740 = vpop.f32.mrb[0].mxu0
      %v9741 = vadd.f32 0.0, %v9740
      %v9742 = vpop.f32.mrb[0].mxu0
      %9743 = vmatprep.mubr.f32.mxu0 0.0
      %9744 = vmatmul.mubr.f32.gmra.mrb[0].mxu0 %v9562
      %v9745 = vpop.f32.mrb[0].mxu0
      %v9746 = vadd.f32 0.0, %v9745
      %v9747 = vpop.f32.mrb[0].mxu0
      %9748 = vmatprep.mubr.f32.mxu0 0.0
      %9749 = vmatmul.mubr.f32.gmra.mrb[0].mxu0 %v9565
      %v9750 = vpop.f32.mrb[0].mxu0
      %v9751 = vadd.f32 0.0, %v9750
      %v9752 = vpop.f32.mrb[0].mxu0
      %9753 = vmatprep.mubr.f32.mxu0 0.0
      %9754 = vmatmul.mubr.f32.gmra.mrb[0].mxu0 %v9568
      %v9755 = vpop.f32.mrb[0].mxu0
      %v9756 = vadd.f32 0.0, %v9755
      %v9757 = vpop.f32.mrb[0].mxu0
      %9758 = vmatprep.mubr.f32.mxu0 0.0
      %9759 = vmatmul.mubr.f32.gmra.mrb[0].mxu0 %v9571
      %v9760 = vpop.f32.mrb[0].mxu0
      %v9761 = vadd.f32 0.0, %v9760
      %v9762 = vpop.f32.mrb[0].mxu0
      %9763 = vmatprep.mubr.f32.mxu0 0.0
      %9764 = vmatmul.mubr.f32.gmra.mrb[0].mxu0 %v9574
      %v9765 = vpop.f32.mrb[0].mxu0
      %v9766 = vadd.f32 0.0, %v9765
      %v9767 = vpop.f32.mrb[0].mxu0
      %9768 = vmatprep.mubr.f32.mxu0 0.0
      %9769 = vmatmul.mubr.f32.gmra.mrb[0].mxu0 %v9577
      %v9770 = vpop.f32.mrb[0].mxu0
      %v9771 = vadd.f32 0.0, %v9770
      %v9772 = vpop.f32.mrb[0].mxu0
      %9773 = vmatprep.mubr.f32.mxu0 0.0
      %9774 = vmatmul.mubr.f32.gmra.mrb[0].mxu0 %v9580
      %v9775 = vpop.f32.mrb[0].mxu0
      %v9776 = vadd.f32 0.0, %v9775
      %v9777 = vpop.f32.mrb[0].mxu0
      %9778 = vmatprep.mubr.f32.mxu0 0.0
      %9779 = vmatmul.mubr.f32.gmra.mrb[0].mxu0 %v9583
      %v9780 = vpop.f32.mrb[0].mxu0
      %v9781 = vadd.f32 0.0, %v9780
      %v9782 = vpop.f32.mrb[0].mxu0
      %9783 = vmatprep.mubr.f32.mxu0 0.0
      %9784 = vmatmul.mubr.f32.gmra.mrb[0].mxu0 %v9586
      %v9785 = vpop.f32.mrb[0].mxu0
      %v9786 = vadd.f32 0.0, %v9785
      %v9787 = vpop.f32.mrb[0].mxu0
      %9788 = vmatprep.mubr.f32.mxu0 0.0
      %9789 = vmatmul.mubr.f32.gmra.mrb[0].mxu0 %v9589
      %v9790 = vpop.f32.mrb[0].mxu0
      %v9791 = vadd.f32 0.0, %v9790
      %v9792 = vpop.f32.mrb[0].mxu0
      %9793 = vmatprep.mubr.f32.mxu0 0.0
      %9794 = vmatmul.mubr.f32.gmra.mrb[0].mxu0 %v9592
      %v9795 = vpop.f32.mrb[0].mxu0
      %v9796 = vadd.f32 0.0, %v9795
      %v9797 = vpop.f32.mrb[0].mxu0
      %9798 = vmatprep.mubr.f32.mxu0 0.0
      %9799 = vmatmul.mubr.f32.gmra.mrb[0].mxu0 %v9595
      %v9800 = vpop.f32.mrb[0].mxu0
      %v9801 = vadd.f32 0.0, %v9800
      %v9802 = vpop.f32.mrb[0].mxu0
      %9803 = vmatprep.mubr.f32.mxu0 0.0
      %9804 = vmatmul.mubr.f32.gmra.mrb[0].mxu0 %v9598
      %v9805 = vpop.f32.mrb[0].mxu0
      %v9806 = vadd.f32 0.0, %v9805
      %v9807 = vpop.f32.mrb[0].mxu0
      %9808 = vmatprep.mubr.f32.mxu0 0.0
      %9809 = vmatmul.mubr.f32.gmra.mrb[0].mxu0 %v9601
      %v9810 = vpop.f32.mrb[0].mxu0
      %v9811 = vadd.f32 0.0, %v9810
      %v9812 = vpop.f32.mrb[0].mxu0
      %9813 = vmatprep.mubr.f32.mxu0 0.0
      %9814 = vmatmul.mubr.f32.gmra.mrb[0].mxu0 %v9604
      %v9815 = vpop.f32.mrb[0].mxu0
      %v9816 = vadd.f32 0.0, %v9815
      %v9817 = vpop.f32.mrb[0].mxu0
      %9818 = vmatprep.mubr.f32.mxu0 0.0
      %9819 = vmatmul.mubr.f32.gmra.mrb[0].mxu0 %v9607
      %v9820 = vpop.f32.mrb[0].mxu0
      %v9821 = vadd.f32 0.0, %v9820
      %v9822 = vpop.f32.mrb[0].mxu0
      %9823 = vmatprep.mubr.f32.mxu0 0.0
      %9824 = vmatmul.mubr.f32.gmra.mrb[0].mxu0 %v9610
      %v9825 = vpop.f32.mrb[0].mxu0
      %v9826 = vadd.f32 0.0, %v9825
      %v9827 = vpop.f32.mrb[0].mxu0
      %9828 = vmatprep.mubr.f32.mxu0 0.0
      %9829 = vmatmul.mubr.f32.gmra.mrb[0].mxu0 %v9613
      %v9830 = vpop.f32.mrb[0].mxu0
      %v9831 = vadd.f32 0.0, %v9830
      %v9832 = vpop.f32.mrb[0].mxu0
      %9833 = vmatprep.mubr.f32.mxu0 0.0
      %9834 = vmatmul.mubr.f32.gmra.mrb[0].mxu0 %v9616
      %v9835 = vpop.f32.mrb[0].mxu0
      %v9836 = vadd.f32 0.0, %v9835
      %v9837 = vpop.f32.mrb[0].mxu0
      %9838 = vmatprep.mubr.f32.mxu0 0.0
      %9839 = vmatmul.mubr.f32.gmra.mrb[0].mxu0 %v9619
      %v9840 = vpop.f32.mrb[0].mxu0
      %v9841 = vadd.f32 0.0, %v9840
      %v9842 = vpop.f32.mrb[0].mxu0
      %9843 = vmatprep.mubr.f32.mxu0 0.0
      %9844 = vmatmul.mubr.f32.gmra.mrb[0].mxu0 %v9622
      %v9845 = vpop.f32.mrb[0].mxu0
      %v9846 = vadd.f32 0.0, %v9845
      %v9847 = vpop.f32.mrb[0].mxu0
      %9848 = vdwg.mxu0
      %v9849 = vadd.f32 %v9239, %v9691
      %v9850 = vadd.f32 %v9240, %v9696
      %v9851 = vadd.f32 %v9241, %v9701
      %v9852 = vadd.f32 %v9242, %v9706
      %v9853 = vadd.f32 %v9243, %v9711
      %v9854 = vadd.f32 %v9244, %v9716
      %v9855 = vadd.f32 %v9245, %v9721
      %v9856 = vadd.f32 %v9246, %v9726
      %v9857 = vadd.f32 %v9247, %v9731
      %v9858 = vadd.f32 %v9248, %v9736
      %v9859 = vadd.f32 %v9249, %v9741
      %v9860 = vadd.f32 %v9250, %v9746
      %v9861 = vadd.f32 %v9251, %v9751
      %v9862 = vadd.f32 %v9252, %v9756
      %v9863 = vadd.f32 %v9253, %v9761
      %v9864 = vadd.f32 %v9254, %v9766
      %v9865 = vadd.f32 %v9255, %v9771
      %v9866 = vadd.f32 %v9256, %v9776
      %v9867 = vadd.f32 %v9257, %v9781
      %v9868 = vadd.f32 %v9258, %v9786
      %v9869 = vadd.f32 %v9259, %v9791
      %v9870 = vadd.f32 %v9260, %v9796
      %v9871 = vadd.f32 %v9261, %v9801
      %v9872 = vadd.f32 %v9262, %v9806
      %v9873 = vadd.f32 %v9263, %v9811
      %v9874 = vadd.f32 %v9264, %v9816
      %v9875 = vadd.f32 %v9265, %v9821
      %v9876 = vadd.f32 %v9266, %v9826
      %v9877 = vadd.f32 %v9267, %v9831
      %v9878 = vadd.f32 %v9268, %v9836
      %v9879 = vadd.f32 %v9269, %v9841
      %v9880 = vadd.f32 %v9270, %v9846
      %s9881 = scalar_lea.vmem %s6, 64
      %v9882 = vld [vmem:[%s9881] sm:$0xff]
      %v9884 = vsel %vm1672, %v9496, 0
      %v9887 = vsel %vm1672, %v9497, 0
      %v9890 = vsel %vm1672, %v9498, 0
      %v9893 = vsel %vm1672, %v9499, 0
      %v9896 = vsel %vm1672, %v9500, 0
      %v9899 = vsel %vm1672, %v9501, 0
      %v9902 = vsel %vm1672, %v9502, 0
      %v9905 = vsel %vm1672, %v9503, 0
      %v9908 = vsel %vm1672, %v9504, 0
      %v9911 = vsel %vm1672, %v9505, 0
      %v9914 = vsel %vm1672, %v9506, 0
      %v9917 = vsel %vm1672, %v9507, 0
      %v9920 = vsel %vm1672, %v9508, 0
      %v9923 = vsel %vm1672, %v9509, 0
      %v9926 = vsel %vm1672, %v9510, 0
      %v9929 = vsel %vm1672, %v9511, 0
      %v9932 = vsel %vm1672, %v9512, 0
      %v9935 = vsel %vm1672, %v9513, 0
      %v9938 = vsel %vm1672, %v9514, 0
      %v9941 = vsel %vm1672, %v9515, 0
      %v9944 = vsel %vm1672, %v9516, 0
      %v9947 = vsel %vm1672, %v9517, 0
      %v9950 = vsel %vm1672, %v9518, 0
      %v9953 = vsel %vm1672, %v9519, 0
      %v9956 = vsel %vm1672, %v9520, 0
      %v9959 = vsel %vm1672, %v9521, 0
      %v9962 = vsel %vm1672, %v9522, 0
      %v9965 = vsel %vm1672, %v9523, 0
      %v9968 = vsel %vm1672, %v9524, 0
      %v9971 = vsel %vm1672, %v9525, 0
      %9973 = vmatprep.subr.mxu0 0.0
      %9974 = vmatpush1.msra.mxu0 %v9882
      %9975 = vmatprep.subr.mxu0 0.0
      %9976 = vmatpush1.msra.mxu0 0.0
      %9977 = vmatprep.subr.mxu0 0.0
      %9978 = vmatpush1.msra.mxu0 0.0
      %9979 = vmatprep.subr.mxu0 0.0
      %9980 = vmatpush1.msra.mxu0 0.0
      %9981 = vmatprep.subr.mxu0 0.0
      %9982 = vmatpush1.msra.mxu0 0.0
      %9983 = vmatprep.subr.mxu0 0.0
      %9984 = vmatpush1.msra.mxu0 0.0
      %9985 = vmatprep.subr.mxu0 0.0
      %9986 = vmatpush1.msra.mxu0 0.0
      %9987 = vmatprep.subr.mxu0 0.0
      %9988 = vmatpush1.msra.mxu0 0.0
      %9989 = vmatprep.subr.mxu0 0.0
      %9990 = vmatpush1.msra.mxu0 0.0
      %9991 = vmatprep.subr.mxu0 0.0
      %9992 = vmatpush1.msra.mxu0 0.0
      %9993 = vmatprep.subr.mxu0 0.0
      %9994 = vmatpush1.msra.mxu0 0.0
      %9995 = vmatprep.subr.mxu0 0.0
      %9996 = vmatpush1.msra.mxu0 0.0
      %9997 = vmatprep.subr.mxu0 0.0
      %9998 = vmatpush1.msra.mxu0 0.0
      %9999 = vmatprep.subr.mxu0 0.0
      %10000 = vmatpush1.msra.mxu0 0.0
      %10001 = vmatprep.subr.mxu0 0.0
      %10002 = vmatpush1.msra.mxu0 0.0
      %10003 = vmatprep.subr.mxu0 0.0
      %10004 = vmatpush1.msra.mxu0 0.0
      %10005 = vmatprep.subr.mxu0 0.0
      %10006 = vmatpush1.msra.mxu0 0.0
      %10007 = vmatprep.subr.mxu0 0.0
      %10008 = vmatpush1.msra.mxu0 0.0
      %10009 = vmatprep.subr.mxu0 0.0
      %10010 = vmatpush1.msra.mxu0 0.0
      %10011 = vmatprep.subr.mxu0 0.0
      %10012 = vmatpush1.msra.mxu0 0.0
      %10013 = vmatprep.subr.mxu0 0.0
      %10014 = vmatpush1.msra.mxu0 0.0
      %10015 = vmatprep.subr.mxu0 0.0
      %10016 = vmatpush1.msra.mxu0 0.0
      %10017 = vmatprep.subr.mxu0 0.0
      %10018 = vmatpush1.msra.mxu0 0.0
      %10019 = vmatprep.subr.mxu0 0.0
      %10020 = vmatpush1.msra.mxu0 0.0
      %10021 = vmatprep.subr.mxu0 0.0
      %10022 = vmatpush1.msra.mxu0 0.0
      %10023 = vmatprep.subr.mxu0 0.0
      %10024 = vmatpush1.msra.mxu0 0.0
      %10025 = vmatprep.subr.mxu0 0.0
      %10026 = vmatpush1.msra.mxu0 0.0
      %10027 = vmatprep.subr.mxu0 0.0
      %10028 = vmatpush1.msra.mxu0 0.0
      %10029 = vmatprep.subr.mxu0 0.0
      %10030 = vmatpush1.msra.mxu0 0.0
      %10031 = vmatprep.subr.mxu0 0.0
      %10032 = vmatpush1.msra.mxu0 0.0
      %10033 = vmatprep.subr.mxu0 0.0
      %10034 = vmatpush1.msra.mxu0 0.0
      %10035 = vmatprep.subr.mxu0 0.0
      %10036 = vmatpush1.msra.mxu0 0.0
      %10037 = vmatprep.mubr.f32.mxu0 0.0
      %10038 = vmatmul.mubr.f32.gmra.mrb[0].mxu0 %v9884
      %v10039 = vpop.f32.mrb[0].mxu0
      %v10040 = vadd.f32 0.0, %v10039
      %v10041 = vpop.f32.mrb[0].mxu0
      %10042 = vmatprep.mubr.f32.mxu0 0.0
      %10043 = vmatmul.mubr.f32.gmra.mrb[0].mxu0 %v9887
      %v10044 = vpop.f32.mrb[0].mxu0
      %v10045 = vadd.f32 0.0, %v10044
      %v10046 = vpop.f32.mrb[0].mxu0
      %10047 = vmatprep.mubr.f32.mxu0 0.0
      %10048 = vmatmul.mubr.f32.gmra.mrb[0].mxu0 %v9890
      %v10049 = vpop.f32.mrb[0].mxu0
      %v10050 = vadd.f32 0.0, %v10049
      %v10051 = vpop.f32.mrb[0].mxu0
      %10052 = vmatprep.mubr.f32.mxu0 0.0
      %10053 = vmatmul.mubr.f32.gmra.mrb[0].mxu0 %v9893
      %v10054 = vpop.f32.mrb[0].mxu0
      %v10055 = vadd.f32 0.0, %v10054
      %v10056 = vpop.f32.mrb[0].mxu0
      %10057 = vmatprep.mubr.f32.mxu0 0.0
      %10058 = vmatmul.mubr.f32.gmra.mrb[0].mxu0 %v9896
      %v10059 = vpop.f32.mrb[0].mxu0
      %v10060 = vadd.f32 0.0, %v10059
      %v10061 = vpop.f32.mrb[0].mxu0
      %10062 = vmatprep.mubr.f32.mxu0 0.0
      %10063 = vmatmul.mubr.f32.gmra.mrb[0].mxu0 %v9899
      %v10064 = vpop.f32.mrb[0].mxu0
      %v10065 = vadd.f32 0.0, %v10064
      %v10066 = vpop.f32.mrb[0].mxu0
      %10067 = vmatprep.mubr.f32.mxu0 0.0
      %10068 = vmatmul.mubr.f32.gmra.mrb[0].mxu0 %v9902
      %v10069 = vpop.f32.mrb[0].mxu0
      %v10070 = vadd.f32 0.0, %v10069
      %v10071 = vpop.f32.mrb[0].mxu0
      %10072 = vmatprep.mubr.f32.mxu0 0.0
      %10073 = vmatmul.mubr.f32.gmra.mrb[0].mxu0 %v9905
      %v10074 = vpop.f32.mrb[0].mxu0
      %v10075 = vadd.f32 0.0, %v10074
      %v10076 = vpop.f32.mrb[0].mxu0
      %10077 = vmatprep.mubr.f32.mxu0 0.0
      %10078 = vmatmul.mubr.f32.gmra.mrb[0].mxu0 %v9908
      %v10079 = vpop.f32.mrb[0].mxu0
      %v10080 = vadd.f32 0.0, %v10079
      %v10081 = vpop.f32.mrb[0].mxu0
      %10082 = vmatprep.mubr.f32.mxu0 0.0
      %10083 = vmatmul.mubr.f32.gmra.mrb[0].mxu0 %v9911
      %v10084 = vpop.f32.mrb[0].mxu0
      %v10085 = vadd.f32 0.0, %v10084
      %v10086 = vpop.f32.mrb[0].mxu0
      %10087 = vmatprep.mubr.f32.mxu0 0.0
      %10088 = vmatmul.mubr.f32.gmra.mrb[0].mxu0 %v9914
      %v10089 = vpop.f32.mrb[0].mxu0
      %v10090 = vadd.f32 0.0, %v10089
      %v10091 = vpop.f32.mrb[0].mxu0
      %10092 = vmatprep.mubr.f32.mxu0 0.0
      %10093 = vmatmul.mubr.f32.gmra.mrb[0].mxu0 %v9917
      %v10094 = vpop.f32.mrb[0].mxu0
      %v10095 = vadd.f32 0.0, %v10094
      %v10096 = vpop.f32.mrb[0].mxu0
      %10097 = vmatprep.mubr.f32.mxu0 0.0
      %10098 = vmatmul.mubr.f32.gmra.mrb[0].mxu0 %v9920
      %v10099 = vpop.f32.mrb[0].mxu0
      %v10100 = vadd.f32 0.0, %v10099
      %v10101 = vpop.f32.mrb[0].mxu0
      %10102 = vmatprep.mubr.f32.mxu0 0.0
      %10103 = vmatmul.mubr.f32.gmra.mrb[0].mxu0 %v9923
      %v10104 = vpop.f32.mrb[0].mxu0
      %v10105 = vadd.f32 0.0, %v10104
      %v10106 = vpop.f32.mrb[0].mxu0
      %10107 = vmatprep.mubr.f32.mxu0 0.0
      %10108 = vmatmul.mubr.f32.gmra.mrb[0].mxu0 %v9926
      %v10109 = vpop.f32.mrb[0].mxu0
      %v10110 = vadd.f32 0.0, %v10109
      %v10111 = vpop.f32.mrb[0].mxu0
      %10112 = vmatprep.mubr.f32.mxu0 0.0
      %10113 = vmatmul.mubr.f32.gmra.mrb[0].mxu0 %v9929
      %v10114 = vpop.f32.mrb[0].mxu0
      %v10115 = vadd.f32 0.0, %v10114
      %v10116 = vpop.f32.mrb[0].mxu0
      %10117 = vmatprep.mubr.f32.mxu0 0.0
      %10118 = vmatmul.mubr.f32.gmra.mrb[0].mxu0 %v9932
      %v10119 = vpop.f32.mrb[0].mxu0
      %v10120 = vadd.f32 0.0, %v10119
      %v10121 = vpop.f32.mrb[0].mxu0
      %10122 = vmatprep.mubr.f32.mxu0 0.0
      %10123 = vmatmul.mubr.f32.gmra.mrb[0].mxu0 %v9935
      %v10124 = vpop.f32.mrb[0].mxu0
      %v10125 = vadd.f32 0.0, %v10124
      %v10126 = vpop.f32.mrb[0].mxu0
      %10127 = vmatprep.mubr.f32.mxu0 0.0
      %10128 = vmatmul.mubr.f32.gmra.mrb[0].mxu0 %v9938
      %v10129 = vpop.f32.mrb[0].mxu0
      %v10130 = vadd.f32 0.0, %v10129
      %v10131 = vpop.f32.mrb[0].mxu0
      %10132 = vmatprep.mubr.f32.mxu0 0.0
      %10133 = vmatmul.mubr.f32.gmra.mrb[0].mxu0 %v9941
      %v10134 = vpop.f32.mrb[0].mxu0
      %v10135 = vadd.f32 0.0, %v10134
      %v10136 = vpop.f32.mrb[0].mxu0
      %10137 = vmatprep.mubr.f32.mxu0 0.0
      %10138 = vmatmul.mubr.f32.gmra.mrb[0].mxu0 %v9944
      %v10139 = vpop.f32.mrb[0].mxu0
      %v10140 = vadd.f32 0.0, %v10139
      %v10141 = vpop.f32.mrb[0].mxu0
      %10142 = vmatprep.mubr.f32.mxu0 0.0
      %10143 = vmatmul.mubr.f32.gmra.mrb[0].mxu0 %v9947
      %v10144 = vpop.f32.mrb[0].mxu0
      %v10145 = vadd.f32 0.0, %v10144
      %v10146 = vpop.f32.mrb[0].mxu0
      %10147 = vmatprep.mubr.f32.mxu0 0.0
      %10148 = vmatmul.mubr.f32.gmra.mrb[0].mxu0 %v9950
      %v10149 = vpop.f32.mrb[0].mxu0
      %v10150 = vadd.f32 0.0, %v10149
      %v10151 = vpop.f32.mrb[0].mxu0
      %10152 = vmatprep.mubr.f32.mxu0 0.0
      %10153 = vmatmul.mubr.f32.gmra.mrb[0].mxu0 %v9953
      %v10154 = vpop.f32.mrb[0].mxu0
      %v10155 = vadd.f32 0.0, %v10154
      %v10156 = vpop.f32.mrb[0].mxu0
      %10157 = vmatprep.mubr.f32.mxu0 0.0
      %10158 = vmatmul.mubr.f32.gmra.mrb[0].mxu0 %v9956
      %v10159 = vpop.f32.mrb[0].mxu0
      %v10160 = vadd.f32 0.0, %v10159
      %v10161 = vpop.f32.mrb[0].mxu0
      %10162 = vmatprep.mubr.f32.mxu0 0.0
      %10163 = vmatmul.mubr.f32.gmra.mrb[0].mxu0 %v9959
      %v10164 = vpop.f32.mrb[0].mxu0
      %v10165 = vadd.f32 0.0, %v10164
      %v10166 = vpop.f32.mrb[0].mxu0
      %10167 = vmatprep.mubr.f32.mxu0 0.0
      %10168 = vmatmul.mubr.f32.gmra.mrb[0].mxu0 %v9962
      %v10169 = vpop.f32.mrb[0].mxu0
      %v10170 = vadd.f32 0.0, %v10169
      %v10171 = vpop.f32.mrb[0].mxu0
      %10172 = vmatprep.mubr.f32.mxu0 0.0
      %10173 = vmatmul.mubr.f32.gmra.mrb[0].mxu0 %v9965
      %v10174 = vpop.f32.mrb[0].mxu0
      %v10175 = vadd.f32 0.0, %v10174
      %v10176 = vpop.f32.mrb[0].mxu0
      %10177 = vmatprep.mubr.f32.mxu0 0.0
      %10178 = vmatmul.mubr.f32.gmra.mrb[0].mxu0 %v9968
      %v10179 = vpop.f32.mrb[0].mxu0
      %v10180 = vadd.f32 0.0, %v10179
      %v10181 = vpop.f32.mrb[0].mxu0
      %10182 = vmatprep.mubr.f32.mxu0 0.0
      %10183 = vmatmul.mubr.f32.gmra.mrb[0].mxu0 %v9971
      %v10184 = vpop.f32.mrb[0].mxu0
      %v10185 = vadd.f32 0.0, %v10184
      %v10186 = vpop.f32.mrb[0].mxu0
      %10187 = vmatprep.mubr.f32.mxu0 0.0
      %10188 = vmatmul.mubr.f32.gmra.mrb[0].mxu0 %v9619
      %v10189 = vpop.f32.mrb[0].mxu0
      %v10190 = vadd.f32 0.0, %v10189
      %v10191 = vpop.f32.mrb[0].mxu0
      %10192 = vmatprep.mubr.f32.mxu0 0.0
      %10193 = vmatmul.mubr.f32.gmra.mrb[0].mxu0 %v9622
      %v10194 = vpop.f32.mrb[0].mxu0
      %v10195 = vadd.f32 0.0, %v10194
      %v10196 = vpop.f32.mrb[0].mxu0
      %10197 = vdwg.mxu0
      %v10198 = vadd.f32 %v9849, %v10040
      %v10199 = vadd.f32 %v9850, %v10045
      %v10200 = vadd.f32 %v9851, %v10050
      %v10201 = vadd.f32 %v9852, %v10055
      %v10202 = vadd.f32 %v9853, %v10060
      %v10203 = vadd.f32 %v9854, %v10065
      %v10204 = vadd.f32 %v9855, %v10070
      %v10205 = vadd.f32 %v9856, %v10075
      %v10206 = vadd.f32 %v9857, %v10080
      %v10207 = vadd.f32 %v9858, %v10085
      %v10208 = vadd.f32 %v9859, %v10090
      %v10209 = vadd.f32 %v9860, %v10095
      %v10210 = vadd.f32 %v9861, %v10100
      %v10211 = vadd.f32 %v9862, %v10105
      %v10212 = vadd.f32 %v9863, %v10110
      %v10213 = vadd.f32 %v9864, %v10115
      %v10214 = vadd.f32 %v9865, %v10120
      %v10215 = vadd.f32 %v9866, %v10125
      %v10216 = vadd.f32 %v9867, %v10130
      %v10217 = vadd.f32 %v9868, %v10135
      %v10218 = vadd.f32 %v9869, %v10140
      %v10219 = vadd.f32 %v9870, %v10145
      %v10220 = vadd.f32 %v9871, %v10150
      %v10221 = vadd.f32 %v9872, %v10155
      %v10222 = vadd.f32 %v9873, %v10160
      %v10223 = vadd.f32 %v9874, %v10165
      %v10224 = vadd.f32 %v9875, %v10170
      %v10225 = vadd.f32 %v9876, %v10175
      %v10226 = vadd.f32 %v9877, %v10180
      %v10227 = vadd.f32 %v9878, %v10185
      %v10228 = vadd.f32 %v9879, %v10190
      %v10229 = vadd.f32 %v9880, %v10195
      %vm10230 = vcmask 15360
      %10231 = vst.msk [vmem:[%s325] sm:$0xff] %vm10230, %v10198
      %10232 = vst.msk [vmem:[%s325 + $0x8] sm:$0xff] %vm10230, %v10199
      %10233 = vst.msk [vmem:[%s325 + $0x10] sm:$0xff] %vm10230, %v10200
      %10234 = vst.msk [vmem:[%s325 + $0x18] sm:$0xff] %vm10230, %v10201
      %10235 = vst.msk [vmem:[%s325 + $0x20] sm:$0xff] %vm10230, %v10202
      %10236 = vst.msk [vmem:[%s325 + $0x28] sm:$0xff] %vm10230, %v10203
      %10237 = vst.msk [vmem:[%s325 + $0x30] sm:$0xff] %vm10230, %v10204
      %10238 = vst.msk [vmem:[%s325 + $0x38] sm:$0xff] %vm10230, %v10205
      %10239 = vst.msk [vmem:[%s325 + $0x40] sm:$0xff] %vm10230, %v10206
      %10240 = vst.msk [vmem:[%s325 + $0x48] sm:$0xff] %vm10230, %v10207
      %10241 = vst.msk [vmem:[%s325 + $0x50] sm:$0xff] %vm10230, %v10208
      %10242 = vst.msk [vmem:[%s325 + $0x58] sm:$0xff] %vm10230, %v10209
      %10243 = vst.msk [vmem:[%s325 + $0x60] sm:$0xff] %vm10230, %v10210
      %10244 = vst.msk [vmem:[%s325 + $0x68] sm:$0xff] %vm10230, %v10211
      %10245 = vst.msk [vmem:[%s325 + $0x70] sm:$0xff] %vm10230, %v10212
      %10246 = vst.msk [vmem:[%s325 + $0x78] sm:$0xff] %vm10230, %v10213
      %10247 = vst.msk [vmem:[%s325 + $0x80] sm:$0xff] %vm10230, %v10214
      %10248 = vst.msk [vmem:[%s325 + $0x88] sm:$0xff] %vm10230, %v10215
      %10249 = vst.msk [vmem:[%s325 + $0x90] sm:$0xff] %vm10230, %v10216
      %10250 = vst.msk [vmem:[%s325 + $0x98] sm:$0xff] %vm10230, %v10217
      %10251 = vst.msk [vmem:[%s325 + $0xa0] sm:$0xff] %vm10230, %v10218
      %10252 = vst.msk [vmem:[%s325 + $0xa8] sm:$0xff] %vm10230, %v10219
      %10253 = vst.msk [vmem:[%s325 + $0xb0] sm:$0xff] %vm10230, %v10220
      %10254 = vst.msk [vmem:[%s325 + $0xb8] sm:$0xff] %vm10230, %v10221
      %10255 = vst.msk [vmem:[%s325 + $0xc0] sm:$0xff] %vm10230, %v10222
      %10256 = vst.msk [vmem:[%s325 + $0xc8] sm:$0xff] %vm10230, %v10223
      %10257 = vst.msk [vmem:[%s325 + $0xd0] sm:$0xff] %vm10230, %v10224
      %10258 = vst.msk [vmem:[%s325 + $0xd8] sm:$0xff] %vm10230, %v10225
      %10259 = vst.msk [vmem:[%s325 + $0xe0] sm:$0xff] %vm10230, %v10226
      %10260 = vst.msk [vmem:[%s325 + $0xe8] sm:$0xff] %vm10230, %v10227
      %10261 = vst.msk [vmem:[%s325 + $0xf0] sm:$0xff] %vm10230, %v10228
      %10262 = vst.msk [vmem:[%s325 + $0xf8] sm:$0xff] %vm10230, %v10229
      %p10263 = scmp.lt.s32.totalorder %s19, 1
      %s10264 = scalar_select %p10263, %s19, 1
      %s10265 = smul.addr %s10264, 32
      %s10266 = smul.addr %s10265, 8
      %s10267 = scalar_lea.vmem %s8, %s10266
      // Predicated region
      $region53: #{aligned_module_forward.2} parent=51 // pred_check
        %p10268 = pneg %p215
      $region54: #{aligned_module_forward.2} parent=51 // pred_check_branch
        %10270 = sbr.rel (%p10268) target = $region56
      $region55: #{aligned_module_forward.2} parent=51 // pred_region
        _
      $region56: #{aligned_module_forward.2} parent=51 // pred_fallthru
        _
    $region52: #{aligned_module_forward.2} parent=5 // pred_fallthru
      _
    %p10271 = scmp.le.s32.totalorder 2, %s14
    // Predicated region
    $region57: #{aligned_module_forward.2} parent=5 // pred_check
      %p10272 = pneg %p10271
    $region58: #{aligned_module_forward.2} parent=5 // pred_check_branch
      %10274 = sbr.rel (%p10272) target = $region60
    $region59: #{aligned_module_forward.2} parent=5 // pred_region
      %s10275 = ssub.s32 %s14, 2
      // Predicated region
      $region61: #{aligned_module_forward.2} parent=59 // pred_check
        %p10276 = pneg %p221
      $region62: #{aligned_module_forward.2} parent=59 // pred_check_branch
        %10278 = sbr.rel (%p10276) target = $region64
      $region63: #{aligned_module_forward.2} parent=59 // pred_region
        %p10279 = scmp.lt.s32.totalorder %s20, 1
        %s10280 = scalar_select %p10279, %s20, 1
        %s10281 = smul.addr %s10280, 32
        %s10282 = smul.addr %s10281, 8
        %s10283 = scalar_lea.vmem %s8, %s10282
      $region64: #{aligned_module_forward.2} parent=59 // pred_fallthru
        _
    $region60: #{aligned_module_forward.2} parent=5 // pred_fallthru
      _
  $region6: #{aligned_module_forward.2} parent=0 // loop_footer
    %s18 = sadd.s32 1, %s14
  $region7: #{aligned_module_forward.2} parent=0 // loop_footer_branch
    %13 = sbr.rel target = $region3
  $region8: #{aligned_module_forward.2} parent=0 // loop_exit
    _

</llo_original>
